<compile_context>
chip_gen: v5e
topology: v5e:2x2
jax: 0.10.0
libtpu: 0.0.40
codegen_flags: <defaults>
</compile_context>

<pallas_src>
import jax
import jax.numpy as jnp
from jax import lax
from jax.experimental import pallas as pl
from jax.experimental.pallas import tpu as pltpu

NUM_HEADS = 8
LN_EPS = 1e-5
NEG_SLOPE = 0.2


def _leaky(v):
    return jnp.where(v >= 0.0, v, NEG_SLOPE * v)


# ------------------------- fused GAT-encoder kernel -------------------------
def _make_gat_encoder_kernel(B, S, H, depth):
    def kernel(feats_ref, mask_ref, edge_ref, wproj_ref, wsrc_ref, wtag_ref,
               gamma_ref, beta_ref, bias_ref, expand_ref, gmean_ref,
               hmean_ref, sel_ref, out_ref):
        # ---- constants / per-block invariants, loaded ONCE ----
        expand = expand_ref[...]                       # (H, H*D)
        gmean = gmean_ref[...]                         # (H*D, H)
        hmean = hmean_ref[...]                         # (H*D, D)
        sel = sel_ref[...]                             # (L, S) readout selector
        lane_ids = lax.broadcasted_iota(jnp.int32, (1, H), 1)

        valid = mask_ref[...] > 0.5                    # (B*S, 1) bool
        x = feats_ref[...]                             # (B*S, D) f32
        edge_list = [edge_ref[b].astype(jnp.float32) for b in range(B)]   # (S,S)
        valid_list = [valid[b * S:(b + 1) * S] for b in range(B)]         # (S,1)

        # ---- GAT layers (statically unrolled) ----
        for d in range(depth):
            wp = wproj_ref[d]                          # (D, H*D) bf16
            ws = wsrc_ref[d]                           # (D, H)   f32
            wt = wtag_ref[d]                           # (D, H)   f32
            gamma = gamma_ref[d]                       # (1, H*D)
            beta = beta_ref[d]                         # (1, H*D)
            bias = bias_ref[d]                         # (1, D)

            # Batched projection + folded per-head scores over all B*S rows.
            proj = jnp.dot(x.astype(jnp.bfloat16), wp,
                           preferred_element_type=jnp.float32)            # (BS, HD)
            proj = jnp.where(valid, proj, 0.0)         # == masked_fill(~mask, 0)
            a_all = jnp.where(valid, jnp.dot(x, ws,
                              preferred_element_type=jnp.float32), 0.0)   # (BS, H)
            b_all = jnp.where(valid, jnp.dot(x, wt,
                              preferred_element_type=jnp.float32), 0.0)   # (BS, H)

            # Per-protein attention: diagonal coefficient / edge-masked denominator.
            att_parts = []
            for b in range(B):
                a_b = a_all[b * S:(b + 1) * S]                      # (S, H)
                b_b = b_all[b * S:(b + 1) * S]                      # (S, H)
                bT = b_b.T                                          # (H, S) one transpose
                edge_f = edge_list[b]                               # (S, S) 0/1
                v_b = valid_list[b]                                 # (S, 1)
                cb_all = jnp.max(b_b, axis=0, keepdims=True)        # (1, H) row shift

                att_b = jnp.zeros((S, H), jnp.float32)
                for h in range(H):
                    a_col = a_b[:, h:h + 1]                         # (S, 1)
                    b_col = b_b[:, h:h + 1]                         # (S, 1)
                    b_row = bT[h:h + 1, :]                          # (1, S)
                    cb = cb_all[:, h:h + 1]                         # (1, 1)

                    # Row shift (upper bound of the row max) -> all exps <= 1.
                    m = _leaky(a_col + cb)                          # (S, 1)
                    ea1 = jnp.exp(a_col + cb - m)                   # (S, 1)
                    ea2 = jnp.exp(0.2 * (a_col + cb) - m)           # (S, 1)
                    eb1 = jnp.exp(b_row - cb)                       # (1, S)
                    eb2 = jnp.exp(0.2 * (b_row - cb))               # (1, S)
                    num = jnp.exp(_leaky(a_col + b_col) - m)        # (S, 1) diagonal

                    pair = a_col + b_row                            # (S, S)
                    posm = pair >= 0.0
                    t_pos = edge_f * jnp.where(posm, eb1, 0.0)
                    t_neg = edge_f * jnp.where(posm, 0.0, eb2)
                    pos = jnp.sum(t_pos, axis=1, keepdims=True)     # (S, 1)
                    neg = jnp.sum(t_neg, axis=1, keepdims=True)     # (S, 1)
                    denom = jnp.maximum(ea1 * pos + ea2 * neg, 1e-30)
                    att_h = num * pl.reciprocal(denom, approx=True)  # (S, 1)

                    onehot = (lane_ids == h).astype(jnp.float32)     # (1, H)
                    att_b = att_b + att_h * onehot
                att_b = jnp.where(v_b, att_b, 0.0)                   # zero invalid rows
                att_parts.append(att_b)
            # (B>1 path concatenates sublane-aligned (S,H) pieces; B==1 at test shape.)
            att = att_parts[0] if B == 1 else jnp.concatenate(att_parts, axis=0)

            # Batched lane-dense epilogue on the (BS, H*D) slab:
            # per-head scaling, LayerNorm(dim), skip, mean over heads, bias.
            att_e = jnp.dot(att, expand, preferred_element_type=jnp.float32)   # (BS, HD)
            oh = att_e * proj
            mu = jnp.dot(oh, gmean, preferred_element_type=jnp.float32)        # (BS, H)
            mu_e = jnp.dot(mu, expand, preferred_element_type=jnp.float32)     # (BS, HD)
            ctr = oh - mu_e
            var = jnp.dot(ctr * ctr, gmean, preferred_element_type=jnp.float32)
            inv = lax.rsqrt(var + LN_EPS)                                      # (BS, H)
            inv_e = jnp.dot(inv, expand, preferred_element_type=jnp.float32)   # (BS, HD)
            ln = ctr * inv_e * gamma + beta
            head_mean = jnp.dot(ln, hmean, preferred_element_type=jnp.float32)  # (BS, D)
            # mean_h(LN_h + x) == mean_h(LN_h) + x   (skip connection)
            x = head_mean + x + bias

        # ---- readout 'sum': zero masked atoms, sum 14 atoms per residue ----
        x = jnp.where(valid, x, 0.0)
        for b in range(B):
            xb = x[b * S:(b + 1) * S]
            out_ref[b] = jnp.dot(sel, xb, preferred_element_type=jnp.float32)

    return kernel


def _pick_batch_block(n, cap=8):
    """Largest divisor B of n (<= cap) keeping n // B >= 2 (megacore on v7x)."""
    best = 1
    for b in range(1, min(cap, n) + 1):
        if n % b == 0 and n // b >= 2:
            best = b
    return best


def gat_encoder_pallas(layer_params, feats, mask, edge, L):
    """Fused GAT stack + sum readout. feats (N,S,D) f32, mask (N,S) bool, edge (N,S,S) bool."""
    N, S, D = feats.shape
    H = NUM_HEADS
    depth = len(layer_params)

    # Fold per-head scoring vectors into the projection weight (f32):
    #   score_src = masked(x @ W) . a_src == mask * (x @ (W @ a_src))
    wproj, wsrc, wtag, gammas, betas, biases = [], [], [], [], [], []
    for lp in layer_params:
        W = lp["W"]                                             # (D, H*D)
        Wr = W.reshape(D, H, D)
        wproj.append(W)
        wsrc.append(jnp.einsum("ehd,hd->eh", Wr, lp["a_src"]))  # (D, H)
        wtag.append(jnp.einsum("ehd,hd->eh", Wr, lp["a_tag"]))  # (D, H)
        gammas.append(jnp.tile(lp["gamma"], H)[None])           # (1, H*D)
        betas.append(jnp.tile(lp["beta"], H)[None])
        biases.append(lp["bias"][None])                         # (1, D)
    wproj = jnp.stack(wproj).astype(jnp.bfloat16)               # (depth, D, H*D)
    wsrc = jnp.stack(wsrc).astype(jnp.float32)                  # (depth, D, H)
    wtag = jnp.stack(wtag).astype(jnp.float32)
    gammas = jnp.stack(gammas).astype(jnp.float32)              # (depth, 1, H*D)
    betas = jnp.stack(betas).astype(jnp.float32)
    biases = jnp.stack(biases).astype(jnp.float32)              # (depth, 1, D)

    # Constant helper matrices (one-hot expansion / group-mean / head-mean / readout).
    expand = jnp.kron(jnp.eye(H, dtype=jnp.float32),
                      jnp.ones((1, D), jnp.float32))                    # (H, H*D)
    gmean = expand.T / D                                                # (H*D, H)
    hmean = jnp.tile(jnp.eye(D, dtype=jnp.float32), (H, 1)) / H         # (H*D, D)
    sel = jnp.repeat(jnp.eye(L, dtype=jnp.float32), S // L, axis=1)     # (L, S)

    feats2 = feats.reshape(N * S, D).astype(jnp.float32)
    mask2 = mask.astype(jnp.float32).reshape(N * S, 1)
    edge_i8 = edge.astype(jnp.int8)

    B = _pick_batch_block(N)
    grid = (N // B,)
    kernel = _make_gat_encoder_kernel(B, S, H, depth)

    return pl.pallas_call(
        kernel,
        out_shape=jax.ShapeDtypeStruct((N, L, D), jnp.float32),
        grid_spec=pltpu.PrefetchScalarGridSpec(
            num_scalar_prefetch=0,
            grid=grid,
            in_specs=[
                pl.BlockSpec((B * S, D), lambda n: (n, 0)),             # feats (rows)
                pl.BlockSpec((B * S, 1), lambda n: (n, 0)),             # node mask
                pl.BlockSpec((B, S, S), lambda n: (n, 0, 0)),           # edge mask (int8)
                pl.BlockSpec((depth, D, H * D), lambda n: (0, 0, 0)),   # W (bf16)
                pl.BlockSpec((depth, D, H), lambda n: (0, 0, 0)),       # folded a_src
                pl.BlockSpec((depth, D, H), lambda n: (0, 0, 0)),       # folded a_tag
                pl.BlockSpec((depth, 1, H * D), lambda n: (0, 0, 0)),   # LN gamma (tiled)
                pl.BlockSpec((depth, 1, H * D), lambda n: (0, 0, 0)),   # LN beta (tiled)
                pl.BlockSpec((depth, 1, D), lambda n: (0, 0, 0)),       # GAT bias
                pl.BlockSpec((H, H * D), lambda n: (0, 0)),             # head expand
                pl.BlockSpec((H * D, H), lambda n: (0, 0)),             # per-head mean
                pl.BlockSpec((H * D, D), lambda n: (0, 0)),             # mean over heads
                pl.BlockSpec((L, S), lambda n: (0, 0)),                 # readout selector
            ],
            out_specs=pl.BlockSpec((B, L, D), lambda n: (n, 0, 0)),
        ),
        compiler_params=pltpu.CompilerParams(
            dimension_semantics=("parallel",),
            vmem_limit_bytes=32 * 1024 * 1024,
        ),
    )(feats2, mask2, edge_i8, wproj, wsrc, wtag, gammas, betas, biases,
      expand, gmean, hmean, sel)


# ----------------------------- glue (plain JAX) -----------------------------
def atom_encoder(aa, pos14, atom_mask, params, max_dist=3.0):
    # TODO(synk): AtomEncoderWithCoordDistCutoff source not provided; approximated with
    # residue + atom-slot embeddings and a distance-cutoff edge mask (max_dist=3.0).
    N, L = aa.shape
    feats = params["aa_emb"][aa]                                        # (N, L, D)
    feats = feats[:, :, None, :] + params["atom_emb"][None, None]       # (N, L, 14, D)
    feats = feats * atom_mask[..., None].astype(jnp.float32)
    feats = feats.reshape(N, L * 14, -1).astype(jnp.float32)
    mask = atom_mask.reshape(N, L * 14)
    pos = pos14.reshape(N, L * 14, 3)
    d2 = jnp.sum((pos[:, :, None, :] - pos[:, None, :, :]) ** 2, axis=-1)
    edge = (d2 < max_dist ** 2) & mask[:, :, None] & mask[:, None, :]
    return feats, mask, edge


def init_params(key, feat_dim, depth, num_heads=NUM_HEADS, vocab=21):
    keys = jax.random.split(key, 2 + 6 * depth)
    params = {
        "aa_emb": 0.1 * jax.random.normal(keys[0], (vocab, feat_dim), jnp.float32),
        "atom_emb": 0.1 * jax.random.normal(keys[1], (14, feat_dim), jnp.float32),
        "layers": [],
    }
    for l in range(depth):
        k1, k2, k3, k4, k5, k6 = keys[2 + 6 * l: 8 + 6 * l]
        b_w = (6.0 / (feat_dim + feat_dim * num_heads)) ** 0.5
        W = jax.random.uniform(k1, (feat_dim, feat_dim * num_heads), jnp.float32, -b_w, b_w)
        b_s = (6.0 / (num_heads * feat_dim + feat_dim)) ** 0.5
        a_src = jax.random.uniform(k2, (num_heads, feat_dim), jnp.float32, -b_s, b_s)
        a_tag = jax.random.uniform(k3, (num_heads, feat_dim), jnp.float32, -b_s, b_s)
        # Non-trivial LN/bias values so the affine / bias paths are exercised.
        gamma = 1.0 + 0.1 * jax.random.normal(k4, (feat_dim,), jnp.float32)
        beta = 0.1 * jax.random.normal(k5, (feat_dim,), jnp.float32)
        bias = 0.1 * jax.random.normal(k6, (feat_dim,), jnp.float32)
        params["layers"].append({
            "W": W, "a_src": a_src, "a_tag": a_tag,
            "gamma": gamma, "beta": beta, "bias": bias,
        })
    return params


def gat_encoder_forward(params, aa, pos14, atom_mask):
    N, L = aa.shape
    feats, mask, edge = atom_encoder(aa, pos14, atom_mask, params)
    return gat_encoder_pallas(params["layers"], feats, mask, edge, L)


# ------------------- plain-JAX reference (original form) --------------------
def _reference_forward(layer_params, feats, mask, edge, L):
    """Mirror of the PyTorch GAT stack + 'sum' readout (eval mode).

    The linear projection uses bf16 inputs / f32 accumulation to match the
    kernel's MXU dtype choice; everything else runs in f32 and follows the
    original (unfused, per-head, full-softmax) formulation.
    """
    N, S, D = feats.shape
    H = NUM_HEADS
    x = feats.astype(jnp.float32)
    node = mask.astype(bool)
    edge_b = edge.astype(bool)
    for lp in layer_params:
        proj = jnp.dot(x.astype(jnp.bfloat16), lp["W"].astype(jnp.bfloat16),
                       preferred_element_type=jnp.float32).reshape(N, S, H, D)
        proj = jnp.where(node[:, :, None, None], proj, 0.0)
        s_src = jnp.einsum("nlhd,hd->nlh", proj, lp["a_src"])
        s_tag = jnp.einsum("nlhd,hd->nlh", proj, lp["a_tag"])
        scores = jax.nn.leaky_relu(
            s_src.transpose(0, 2, 1)[:, :, :, None]
            + s_tag.transpose(0, 2, 1)[:, :, None, :],
            negative_slope=NEG_SLOPE)                                    # (N,H,S,S)
        scores = jnp.where(edge_b[:, None], scores, -jnp.inf)
        att = jax.nn.softmax(scores, axis=-1)
        # torch.einsum('nhll,nhld->nhld', att, proj) == diag(att) * proj
        att_diag = jnp.diagonal(att, axis1=-2, axis2=-1)                 # (N,H,S)
        fo = att_diag[..., None] * proj.transpose(0, 2, 1, 3)            # (N,H,S,D)
        fo = fo.transpose(0, 2, 1, 3)                                    # (N,S,H,D)
        mu = jnp.mean(fo, axis=-1, keepdims=True)
        var = jnp.mean((fo - mu) ** 2, axis=-1, keepdims=True)
        fo = (fo - mu) * lax.rsqrt(var + LN_EPS) * lp["gamma"] + lp["beta"]
        fo = fo + x[:, :, None, :]
        x = jnp.mean(fo, axis=2) + lp["bias"]
    x = jnp.where(node[:, :, None], x, 0.0)
    return x.reshape(N, L, S // L, D).sum(axis=2)


if __name__ == "__main__":
    key = jax.random.PRNGKey(0)
    k_aa, k_pos, k_param, k_mask = jax.random.split(key, 4)

    N, L, feat_dim, depth = 2, 4, 32, 2                   # S = L*14 = 56
    aa = jax.random.randint(k_aa, (N, L), 0, 21)
    pos14 = 2.0 * jax.random.normal(k_pos, (N, L, 14, 3), jnp.float32)
    params = init_params(k_param, feat_dim, depth)

    # Case 1: all atoms present.  Case 2: partial mask (masked-row path).
    atom_mask_full = jnp.ones((N, L, 14), dtype=bool)
    atom_mask_part = jax.random.uniform(k_mask, (N, L, 14)) > 0.25

    for atom_mask in (atom_mask_full, atom_mask_part):
        out = gat_encoder_forward(params, aa, pos14, atom_mask)
        out = jax.block_until_ready(out)
        assert out.shape == (N, L, feat_dim)
        assert bool(jnp.isfinite(out).all())

        feats, mask, edge = atom_encoder(aa, pos14, atom_mask, params)
        ref = _reference_forward(params["layers"], feats, mask, edge, L)
        err = float(jnp.max(jnp.abs(out - ref)))
        tol = 5e-2 * (1.0 + float(jnp.max(jnp.abs(ref))))
        assert err <= tol, f"kernel vs reference mismatch: {err} > {tol}"

    print("KERNEL_OK")
</pallas_src>

<mosaic_0001>
module attributes {stable_mosaic.version = 11 : i64} {
  func.func @kernel(%arg0: i32, %arg1: memref<56x32xf32, #tpu.memory_space<vmem>>, %arg2: memref<56x1xf32, #tpu.memory_space<vmem>>, %arg3: memref<1x56x56xi8, #tpu.memory_space<vmem>>, %arg4: memref<2x32x256xbf16, #tpu.memory_space<vmem>>, %arg5: memref<2x32x8xf32, #tpu.memory_space<vmem>>, %arg6: memref<2x32x8xf32, #tpu.memory_space<vmem>>, %arg7: memref<2x1x256xf32, #tpu.memory_space<vmem>>, %arg8: memref<2x1x256xf32, #tpu.memory_space<vmem>>, %arg9: memref<2x1x32xf32, #tpu.memory_space<vmem>>, %arg10: memref<8x256xf32, #tpu.memory_space<vmem>>, %arg11: memref<256x8xf32, #tpu.memory_space<vmem>>, %arg12: memref<256x32xf32, #tpu.memory_space<vmem>>, %arg13: memref<4x56xf32, #tpu.memory_space<vmem>>, %arg14: memref<1x4x32xf32, #tpu.memory_space<vmem>>) attributes {dimension_semantics = [#tpu.dimension_semantics<parallel>], iteration_bounds = array<i64: 2>, scalar_prefetch = 0 : i64, scratch_operands = 0 : i64, tpu.core_type = #tpu.core_type<tc>, window_params = [{transform_indices = @transform_0, window_bounds = array<i64: 56, 32>}, {transform_indices = @transform_1, window_bounds = array<i64: 56, 1>}, {transform_indices = @transform_2, window_bounds = array<i64: 1, 56, 56>}, {pipeline_mode = #tpu.pipeline_mode<synchronous>, transform_indices = @transform_3, window_bounds = array<i64: 2, 32, 256>}, {pipeline_mode = #tpu.pipeline_mode<synchronous>, transform_indices = @transform_4, window_bounds = array<i64: 2, 32, 8>}, {pipeline_mode = #tpu.pipeline_mode<synchronous>, transform_indices = @transform_5, window_bounds = array<i64: 2, 32, 8>}, {pipeline_mode = #tpu.pipeline_mode<synchronous>, transform_indices = @transform_6, window_bounds = array<i64: 2, 1, 256>}, {pipeline_mode = #tpu.pipeline_mode<synchronous>, transform_indices = @transform_7, window_bounds = array<i64: 2, 1, 256>}, {pipeline_mode = #tpu.pipeline_mode<synchronous>, transform_indices = @transform_8, window_bounds = array<i64: 2, 1, 32>}, {pipeline_mode = #tpu.pipeline_mode<synchronous>, transform_indices = @transform_9, window_bounds = array<i64: 8, 256>}, {pipeline_mode = #tpu.pipeline_mode<synchronous>, transform_indices = @transform_10, window_bounds = array<i64: 256, 8>}, {pipeline_mode = #tpu.pipeline_mode<synchronous>, transform_indices = @transform_11, window_bounds = array<i64: 256, 32>}, {pipeline_mode = #tpu.pipeline_mode<synchronous>, transform_indices = @transform_12, window_bounds = array<i64: 4, 56>}, {transform_indices = @transform_13, window_bounds = array<i64: 1, 4, 32>}]} {
    %c0 = arith.constant 0 : index
    %c0_0 = arith.constant 0 : index
    %0 = vector.load %arg10[%c0, %c0_0] : memref<8x256xf32, #tpu.memory_space<vmem>>, vector<8x256xf32>
    %c0_1 = arith.constant 0 : index
    %c0_2 = arith.constant 0 : index
    %1 = vector.load %arg11[%c0_1, %c0_2] : memref<256x8xf32, #tpu.memory_space<vmem>>, vector<256x8xf32>
    %c0_3 = arith.constant 0 : index
    %c0_4 = arith.constant 0 : index
    %2 = vector.load %arg12[%c0_3, %c0_4] : memref<256x32xf32, #tpu.memory_space<vmem>>, vector<256x32xf32>
    %c0_5 = arith.constant 0 : index
    %c0_6 = arith.constant 0 : index
    %3 = vector.load %arg13[%c0_5, %c0_6] : memref<4x56xf32, #tpu.memory_space<vmem>>, vector<4x56xf32>
    %4 = tpu.iota {dimensions = array<i32: 1>} : vector<1x8xi32>
    %c0_7 = arith.constant 0 : index
    %c0_8 = arith.constant 0 : index
    %5 = vector.load %arg2[%c0_7, %c0_8] : memref<56x1xf32, #tpu.memory_space<vmem>>, vector<56x1xf32>
    %cst = arith.constant 5.000000e-01 : f32
    %6 = vector.broadcast %cst : f32 to vector<56x1xf32>
    %7 = arith.cmpf ogt, %5, %6 : vector<56x1xf32>
    %c0_9 = arith.constant 0 : index
    %c0_10 = arith.constant 0 : index
    %8 = vector.load %arg1[%c0_9, %c0_10] : memref<56x32xf32, #tpu.memory_space<vmem>>, vector<56x32xf32>
    %c0_11 = arith.constant 0 : index
    %c0_12 = arith.constant 0 : index
    %c0_13 = arith.constant 0 : index
    %9 = vector.load %arg3[%c0_11, %c0_12, %c0_13] : memref<1x56x56xi8, #tpu.memory_space<vmem>>, vector<1x56x56xi8>
    %10 = vector.shape_cast %9 : vector<1x56x56xi8> to vector<56x56xi8>
    %11 = arith.sitofp %10 : vector<56x56xi8> to vector<56x56xf32>
    %c0_14 = arith.constant 0 : index
    %c0_15 = arith.constant 0 : index
    %c0_16 = arith.constant 0 : index
    %12 = vector.load %arg4[%c0_14, %c0_15, %c0_16] : memref<2x32x256xbf16, #tpu.memory_space<vmem>>, vector<1x32x256xbf16>
    %13 = vector.shape_cast %12 : vector<1x32x256xbf16> to vector<32x256xbf16>
    %c0_17 = arith.constant 0 : index
    %c0_18 = arith.constant 0 : index
    %c0_19 = arith.constant 0 : index
    %14 = vector.load %arg5[%c0_17, %c0_18, %c0_19] : memref<2x32x8xf32, #tpu.memory_space<vmem>>, vector<1x32x8xf32>
    %15 = vector.shape_cast %14 : vector<1x32x8xf32> to vector<32x8xf32>
    %c0_20 = arith.constant 0 : index
    %c0_21 = arith.constant 0 : index
    %c0_22 = arith.constant 0 : index
    %16 = vector.load %arg6[%c0_20, %c0_21, %c0_22] : memref<2x32x8xf32, #tpu.memory_space<vmem>>, vector<1x32x8xf32>
    %17 = vector.shape_cast %16 : vector<1x32x8xf32> to vector<32x8xf32>
    %c0_23 = arith.constant 0 : index
    %c0_24 = arith.constant 0 : index
    %c0_25 = arith.constant 0 : index
    %18 = vector.load %arg7[%c0_23, %c0_24, %c0_25] : memref<2x1x256xf32, #tpu.memory_space<vmem>>, vector<1x1x256xf32>
    %19 = vector.shape_cast %18 : vector<1x1x256xf32> to vector<1x256xf32>
    %c0_26 = arith.constant 0 : index
    %c0_27 = arith.constant 0 : index
    %c0_28 = arith.constant 0 : index
    %20 = vector.load %arg8[%c0_26, %c0_27, %c0_28] : memref<2x1x256xf32, #tpu.memory_space<vmem>>, vector<1x1x256xf32>
    %21 = vector.shape_cast %20 : vector<1x1x256xf32> to vector<1x256xf32>
    %c0_29 = arith.constant 0 : index
    %c0_30 = arith.constant 0 : index
    %c0_31 = arith.constant 0 : index
    %22 = vector.load %arg9[%c0_29, %c0_30, %c0_31] : memref<2x1x32xf32, #tpu.memory_space<vmem>>, vector<1x1x32xf32>
    %23 = vector.shape_cast %22 : vector<1x1x32xf32> to vector<1x32xf32>
    %24 = arith.truncf %8 : vector<56x32xf32> to vector<56x32xbf16>
    %cst_32 = arith.constant dense<0.000000e+00> : vector<56x256xf32>
    %25 = tpu.matmul %24, %13, %cst_32 {dimension_numbers = #tpu.dot_dimension_numbers<[1], [0], [0], [1], [0, 0, 1, 1], [], []>} : vector<56x32xbf16>, vector<32x256xbf16>, vector<56x256xf32> -> vector<56x256xf32>
    %cst_33 = arith.constant 0.000000e+00 : f32
    %26 = vector.shape_cast %7 : vector<56x1xi1> to vector<56x1xi1>
    %27 = vector.broadcast %26 : vector<56x1xi1> to vector<56x256xi1>
    %28 = vector.broadcast %cst_33 : f32 to vector<56x256xf32>
    %29 = arith.select %27, %25, %28 : vector<56x256xi1>, vector<56x256xf32>
    %cst_34 = arith.constant dense<0.000000e+00> : vector<56x8xf32>
    %30 = tpu.matmul %8, %15, %cst_34 {dimension_numbers = #tpu.dot_dimension_numbers<[1], [0], [0], [1], [0, 0, 1, 1], [], []>} : vector<56x32xf32>, vector<32x8xf32>, vector<56x8xf32> -> vector<56x8xf32>
    %cst_35 = arith.constant 0.000000e+00 : f32
    %31 = vector.shape_cast %7 : vector<56x1xi1> to vector<56x1xi1>
    %32 = vector.broadcast %31 : vector<56x1xi1> to vector<56x8xi1>
    %33 = vector.broadcast %cst_35 : f32 to vector<56x8xf32>
    %34 = arith.select %32, %30, %33 : vector<56x8xi1>, vector<56x8xf32>
    %cst_36 = arith.constant dense<0.000000e+00> : vector<56x8xf32>
    %35 = tpu.matmul %8, %17, %cst_36 {dimension_numbers = #tpu.dot_dimension_numbers<[1], [0], [0], [1], [0, 0, 1, 1], [], []>} : vector<56x32xf32>, vector<32x8xf32>, vector<56x8xf32> -> vector<56x8xf32>
    %cst_37 = arith.constant 0.000000e+00 : f32
    %36 = vector.shape_cast %7 : vector<56x1xi1> to vector<56x1xi1>
    %37 = vector.broadcast %36 : vector<56x1xi1> to vector<56x8xi1>
    %38 = vector.broadcast %cst_37 : f32 to vector<56x8xf32>
    %39 = arith.select %37, %35, %38 : vector<56x8xi1>, vector<56x8xf32>
    %40 = tpu.transpose %39, [1, 0] : vector<56x8xf32> -> vector<8x56xf32>
    %cst_38 = arith.constant dense<0xFF800000> : vector<8xf32>
    %41 = vector.multi_reduction <maximumf>, %39, %cst_38 [0] : vector<56x8xf32> to vector<8xf32>
    %42 = vector.shape_cast %41 : vector<8xf32> to vector<1x8xf32>
    %cst_39 = arith.constant 0.000000e+00 : f32
    %43 = vector.broadcast %cst_39 : f32 to vector<56x8xf32>
    %44 = vector.extract_strided_slice %34 {offsets = [0, 0], sizes = [56, 1], strides = [1, 1]} : vector<56x8xf32> to vector<56x1xf32>
    %45 = vector.extract_strided_slice %39 {offsets = [0, 0], sizes = [56, 1], strides = [1, 1]} : vector<56x8xf32> to vector<56x1xf32>
    %46 = vector.extract_strided_slice %40 {offsets = [0, 0], sizes = [1, 56], strides = [1, 1]} : vector<8x56xf32> to vector<1x56xf32>
    %47 = vector.extract_strided_slice %42 {offsets = [0, 0], sizes = [1, 1], strides = [1, 1]} : vector<1x8xf32> to vector<1x1xf32>
    %48 = vector.broadcast %47 : vector<1x1xf32> to vector<56x1xf32>
    %49 = arith.addf %44, %48 : vector<56x1xf32>
    %cst_40 = arith.constant 0.000000e+00 : f32
    %50 = vector.broadcast %cst_40 : f32 to vector<56x1xf32>
    %51 = arith.cmpf oge, %49, %50 : vector<56x1xf32>
    %cst_41 = arith.constant 2.000000e-01 : f32
    %52 = vector.broadcast %cst_41 : f32 to vector<56x1xf32>
    %53 = arith.mulf %52, %49 : vector<56x1xf32>
    %54 = arith.select %51, %49, %53 : vector<56x1xi1>, vector<56x1xf32>
    %55 = vector.broadcast %47 : vector<1x1xf32> to vector<56x1xf32>
    %56 = arith.addf %44, %55 : vector<56x1xf32>
    %57 = arith.subf %56, %54 : vector<56x1xf32>
    %58 = math.exp %57 : vector<56x1xf32>
    %59 = vector.broadcast %47 : vector<1x1xf32> to vector<56x1xf32>
    %60 = arith.addf %44, %59 : vector<56x1xf32>
    %cst_42 = arith.constant 2.000000e-01 : f32
    %61 = vector.broadcast %cst_42 : f32 to vector<56x1xf32>
    %62 = arith.mulf %61, %60 : vector<56x1xf32>
    %63 = arith.subf %62, %54 : vector<56x1xf32>
    %64 = math.exp %63 : vector<56x1xf32>
    %65 = vector.broadcast %47 : vector<1x1xf32> to vector<1x56xf32>
    %66 = arith.subf %46, %65 : vector<1x56xf32>
    %67 = math.exp %66 : vector<1x56xf32>
    %68 = vector.broadcast %47 : vector<1x1xf32> to vector<1x56xf32>
    %69 = arith.subf %46, %68 : vector<1x56xf32>
    %cst_43 = arith.constant 2.000000e-01 : f32
    %70 = vector.broadcast %cst_43 : f32 to vector<1x56xf32>
    %71 = arith.mulf %70, %69 : vector<1x56xf32>
    %72 = math.exp %71 : vector<1x56xf32>
    %73 = arith.addf %44, %45 : vector<56x1xf32>
    %cst_44 = arith.constant 0.000000e+00 : f32
    %74 = vector.broadcast %cst_44 : f32 to vector<56x1xf32>
    %75 = arith.cmpf oge, %73, %74 : vector<56x1xf32>
    %cst_45 = arith.constant 2.000000e-01 : f32
    %76 = vector.broadcast %cst_45 : f32 to vector<56x1xf32>
    %77 = arith.mulf %76, %73 : vector<56x1xf32>
    %78 = arith.select %75, %73, %77 : vector<56x1xi1>, vector<56x1xf32>
    %79 = arith.subf %78, %54 : vector<56x1xf32>
    %80 = math.exp %79 : vector<56x1xf32>
    %81 = vector.broadcast %44 : vector<56x1xf32> to vector<56x56xf32>
    %82 = vector.broadcast %46 : vector<1x56xf32> to vector<56x56xf32>
    %83 = arith.addf %81, %82 : vector<56x56xf32>
    %cst_46 = arith.constant 0.000000e+00 : f32
    %84 = vector.broadcast %cst_46 : f32 to vector<56x56xf32>
    %85 = arith.cmpf oge, %83, %84 : vector<56x56xf32>
    %cst_47 = arith.constant 0.000000e+00 : f32
    %86 = vector.shape_cast %67 : vector<1x56xf32> to vector<1x56xf32>
    %87 = vector.broadcast %86 : vector<1x56xf32> to vector<56x56xf32>
    %88 = vector.broadcast %cst_47 : f32 to vector<56x56xf32>
    %89 = arith.select %85, %87, %88 : vector<56x56xi1>, vector<56x56xf32>
    %90 = arith.mulf %11, %89 : vector<56x56xf32>
    %cst_48 = arith.constant 0.000000e+00 : f32
    %91 = vector.broadcast %cst_48 : f32 to vector<56x56xf32>
    %92 = vector.shape_cast %72 : vector<1x56xf32> to vector<1x56xf32>
    %93 = vector.broadcast %92 : vector<1x56xf32> to vector<56x56xf32>
    %94 = arith.select %85, %91, %93 : vector<56x56xi1>, vector<56x56xf32>
    %95 = arith.mulf %11, %94 : vector<56x56xf32>
    %cst_49 = arith.constant dense<0.000000e+00> : vector<56xf32>
    %96 = vector.multi_reduction <add>, %90, %cst_49 [1] : vector<56x56xf32> to vector<56xf32>
    %97 = vector.shape_cast %96 : vector<56xf32> to vector<56x1xf32>
    %cst_50 = arith.constant dense<0.000000e+00> : vector<56xf32>
    %98 = vector.multi_reduction <add>, %95, %cst_50 [1] : vector<56x56xf32> to vector<56xf32>
    %99 = vector.shape_cast %98 : vector<56xf32> to vector<56x1xf32>
    %100 = arith.mulf %58, %97 : vector<56x1xf32>
    %101 = arith.mulf %64, %99 : vector<56x1xf32>
    %102 = arith.addf %100, %101 : vector<56x1xf32>
    %cst_51 = arith.constant 1.000000e-30 : f32
    %103 = vector.broadcast %cst_51 : f32 to vector<56x1xf32>
    %104 = arith.maximumf %102, %103 : vector<56x1xf32>
    %105 = tpu.reciprocal %104 {approx = true} : vector<56x1xf32> -> vector<56x1xf32>
    %106 = arith.mulf %80, %105 : vector<56x1xf32>
    %c0_i32 = arith.constant 0 : i32
    %107 = vector.broadcast %c0_i32 : i32 to vector<1x8xi32>
    %108 = arith.cmpi eq, %4, %107 : vector<1x8xi32>
    %109 = arith.extui %108 : vector<1x8xi1> to vector<1x8xi32>
    %110 = arith.sitofp %109 : vector<1x8xi32> to vector<1x8xf32>
    %111 = vector.broadcast %106 : vector<56x1xf32> to vector<56x8xf32>
    %112 = vector.broadcast %110 : vector<1x8xf32> to vector<56x8xf32>
    %113 = arith.mulf %111, %112 : vector<56x8xf32>
    %114 = arith.addf %43, %113 : vector<56x8xf32>
    %115 = vector.extract_strided_slice %34 {offsets = [0, 1], sizes = [56, 1], strides = [1, 1]} : vector<56x8xf32> to vector<56x1xf32>
    %116 = vector.extract_strided_slice %39 {offsets = [0, 1], sizes = [56, 1], strides = [1, 1]} : vector<56x8xf32> to vector<56x1xf32>
    %117 = vector.extract_strided_slice %40 {offsets = [1, 0], sizes = [1, 56], strides = [1, 1]} : vector<8x56xf32> to vector<1x56xf32>
    %118 = vector.extract_strided_slice %42 {offsets = [0, 1], sizes = [1, 1], strides = [1, 1]} : vector<1x8xf32> to vector<1x1xf32>
    %119 = vector.broadcast %118 : vector<1x1xf32> to vector<56x1xf32>
    %120 = arith.addf %115, %119 : vector<56x1xf32>
    %cst_52 = arith.constant 0.000000e+00 : f32
    %121 = vector.broadcast %cst_52 : f32 to vector<56x1xf32>
    %122 = arith.cmpf oge, %120, %121 : vector<56x1xf32>
    %cst_53 = arith.constant 2.000000e-01 : f32
    %123 = vector.broadcast %cst_53 : f32 to vector<56x1xf32>
    %124 = arith.mulf %123, %120 : vector<56x1xf32>
    %125 = arith.select %122, %120, %124 : vector<56x1xi1>, vector<56x1xf32>
    %126 = vector.broadcast %118 : vector<1x1xf32> to vector<56x1xf32>
    %127 = arith.addf %115, %126 : vector<56x1xf32>
    %128 = arith.subf %127, %125 : vector<56x1xf32>
    %129 = math.exp %128 : vector<56x1xf32>
    %130 = vector.broadcast %118 : vector<1x1xf32> to vector<56x1xf32>
    %131 = arith.addf %115, %130 : vector<56x1xf32>
    %cst_54 = arith.constant 2.000000e-01 : f32
    %132 = vector.broadcast %cst_54 : f32 to vector<56x1xf32>
    %133 = arith.mulf %132, %131 : vector<56x1xf32>
    %134 = arith.subf %133, %125 : vector<56x1xf32>
    %135 = math.exp %134 : vector<56x1xf32>
    %136 = vector.broadcast %118 : vector<1x1xf32> to vector<1x56xf32>
    %137 = arith.subf %117, %136 : vector<1x56xf32>
    %138 = math.exp %137 : vector<1x56xf32>
    %139 = vector.broadcast %118 : vector<1x1xf32> to vector<1x56xf32>
    %140 = arith.subf %117, %139 : vector<1x56xf32>
    %cst_55 = arith.constant 2.000000e-01 : f32
    %141 = vector.broadcast %cst_55 : f32 to vector<1x56xf32>
    %142 = arith.mulf %141, %140 : vector<1x56xf32>
    %143 = math.exp %142 : vector<1x56xf32>
    %144 = arith.addf %115, %116 : vector<56x1xf32>
    %cst_56 = arith.constant 0.000000e+00 : f32
    %145 = vector.broadcast %cst_56 : f32 to vector<56x1xf32>
    %146 = arith.cmpf oge, %144, %145 : vector<56x1xf32>
    %cst_57 = arith.constant 2.000000e-01 : f32
    %147 = vector.broadcast %cst_57 : f32 to vector<56x1xf32>
    %148 = arith.mulf %147, %144 : vector<56x1xf32>
    %149 = arith.select %146, %144, %148 : vector<56x1xi1>, vector<56x1xf32>
    %150 = arith.subf %149, %125 : vector<56x1xf32>
    %151 = math.exp %150 : vector<56x1xf32>
    %152 = vector.broadcast %115 : vector<56x1xf32> to vector<56x56xf32>
    %153 = vector.broadcast %117 : vector<1x56xf32> to vector<56x56xf32>
    %154 = arith.addf %152, %153 : vector<56x56xf32>
    %cst_58 = arith.constant 0.000000e+00 : f32
    %155 = vector.broadcast %cst_58 : f32 to vector<56x56xf32>
    %156 = arith.cmpf oge, %154, %155 : vector<56x56xf32>
    %cst_59 = arith.constant 0.000000e+00 : f32
    %157 = vector.shape_cast %138 : vector<1x56xf32> to vector<1x56xf32>
    %158 = vector.broadcast %157 : vector<1x56xf32> to vector<56x56xf32>
    %159 = vector.broadcast %cst_59 : f32 to vector<56x56xf32>
    %160 = arith.select %156, %158, %159 : vector<56x56xi1>, vector<56x56xf32>
    %161 = arith.mulf %11, %160 : vector<56x56xf32>
    %cst_60 = arith.constant 0.000000e+00 : f32
    %162 = vector.broadcast %cst_60 : f32 to vector<56x56xf32>
    %163 = vector.shape_cast %143 : vector<1x56xf32> to vector<1x56xf32>
    %164 = vector.broadcast %163 : vector<1x56xf32> to vector<56x56xf32>
    %165 = arith.select %156, %162, %164 : vector<56x56xi1>, vector<56x56xf32>
    %166 = arith.mulf %11, %165 : vector<56x56xf32>
    %cst_61 = arith.constant dense<0.000000e+00> : vector<56xf32>
    %167 = vector.multi_reduction <add>, %161, %cst_61 [1] : vector<56x56xf32> to vector<56xf32>
    %168 = vector.shape_cast %167 : vector<56xf32> to vector<56x1xf32>
    %cst_62 = arith.constant dense<0.000000e+00> : vector<56xf32>
    %169 = vector.multi_reduction <add>, %166, %cst_62 [1] : vector<56x56xf32> to vector<56xf32>
    %170 = vector.shape_cast %169 : vector<56xf32> to vector<56x1xf32>
    %171 = arith.mulf %129, %168 : vector<56x1xf32>
    %172 = arith.mulf %135, %170 : vector<56x1xf32>
    %173 = arith.addf %171, %172 : vector<56x1xf32>
    %cst_63 = arith.constant 1.000000e-30 : f32
    %174 = vector.broadcast %cst_63 : f32 to vector<56x1xf32>
    %175 = arith.maximumf %173, %174 : vector<56x1xf32>
    %176 = tpu.reciprocal %175 {approx = true} : vector<56x1xf32> -> vector<56x1xf32>
    %177 = arith.mulf %151, %176 : vector<56x1xf32>
    %c1_i32 = arith.constant 1 : i32
    %178 = vector.broadcast %c1_i32 : i32 to vector<1x8xi32>
    %179 = arith.cmpi eq, %4, %178 : vector<1x8xi32>
    %180 = arith.extui %179 : vector<1x8xi1> to vector<1x8xi32>
    %181 = arith.sitofp %180 : vector<1x8xi32> to vector<1x8xf32>
    %182 = vector.broadcast %177 : vector<56x1xf32> to vector<56x8xf32>
    %183 = vector.broadcast %181 : vector<1x8xf32> to vector<56x8xf32>
    %184 = arith.mulf %182, %183 : vector<56x8xf32>
    %185 = arith.addf %114, %184 : vector<56x8xf32>
    %186 = vector.extract_strided_slice %34 {offsets = [0, 2], sizes = [56, 1], strides = [1, 1]} : vector<56x8xf32> to vector<56x1xf32>
    %187 = vector.extract_strided_slice %39 {offsets = [0, 2], sizes = [56, 1], strides = [1, 1]} : vector<56x8xf32> to vector<56x1xf32>
    %188 = vector.extract_strided_slice %40 {offsets = [2, 0], sizes = [1, 56], strides = [1, 1]} : vector<8x56xf32> to vector<1x56xf32>
    %189 = vector.extract_strided_slice %42 {offsets = [0, 2], sizes = [1, 1], strides = [1, 1]} : vector<1x8xf32> to vector<1x1xf32>
    %190 = vector.broadcast %189 : vector<1x1xf32> to vector<56x1xf32>
    %191 = arith.addf %186, %190 : vector<56x1xf32>
    %cst_64 = arith.constant 0.000000e+00 : f32
    %192 = vector.broadcast %cst_64 : f32 to vector<56x1xf32>
    %193 = arith.cmpf oge, %191, %192 : vector<56x1xf32>
    %cst_65 = arith.constant 2.000000e-01 : f32
    %194 = vector.broadcast %cst_65 : f32 to vector<56x1xf32>
    %195 = arith.mulf %194, %191 : vector<56x1xf32>
    %196 = arith.select %193, %191, %195 : vector<56x1xi1>, vector<56x1xf32>
    %197 = vector.broadcast %189 : vector<1x1xf32> to vector<56x1xf32>
    %198 = arith.addf %186, %197 : vector<56x1xf32>
    %199 = arith.subf %198, %196 : vector<56x1xf32>
    %200 = math.exp %199 : vector<56x1xf32>
    %201 = vector.broadcast %189 : vector<1x1xf32> to vector<56x1xf32>
    %202 = arith.addf %186, %201 : vector<56x1xf32>
    %cst_66 = arith.constant 2.000000e-01 : f32
    %203 = vector.broadcast %cst_66 : f32 to vector<56x1xf32>
    %204 = arith.mulf %203, %202 : vector<56x1xf32>
    %205 = arith.subf %204, %196 : vector<56x1xf32>
    %206 = math.exp %205 : vector<56x1xf32>
    %207 = vector.broadcast %189 : vector<1x1xf32> to vector<1x56xf32>
    %208 = arith.subf %188, %207 : vector<1x56xf32>
    %209 = math.exp %208 : vector<1x56xf32>
    %210 = vector.broadcast %189 : vector<1x1xf32> to vector<1x56xf32>
    %211 = arith.subf %188, %210 : vector<1x56xf32>
    %cst_67 = arith.constant 2.000000e-01 : f32
    %212 = vector.broadcast %cst_67 : f32 to vector<1x56xf32>
    %213 = arith.mulf %212, %211 : vector<1x56xf32>
    %214 = math.exp %213 : vector<1x56xf32>
    %215 = arith.addf %186, %187 : vector<56x1xf32>
    %cst_68 = arith.constant 0.000000e+00 : f32
    %216 = vector.broadcast %cst_68 : f32 to vector<56x1xf32>
    %217 = arith.cmpf oge, %215, %216 : vector<56x1xf32>
    %cst_69 = arith.constant 2.000000e-01 : f32
    %218 = vector.broadcast %cst_69 : f32 to vector<56x1xf32>
    %219 = arith.mulf %218, %215 : vector<56x1xf32>
    %220 = arith.select %217, %215, %219 : vector<56x1xi1>, vector<56x1xf32>
    %221 = arith.subf %220, %196 : vector<56x1xf32>
    %222 = math.exp %221 : vector<56x1xf32>
    %223 = vector.broadcast %186 : vector<56x1xf32> to vector<56x56xf32>
    %224 = vector.broadcast %188 : vector<1x56xf32> to vector<56x56xf32>
    %225 = arith.addf %223, %224 : vector<56x56xf32>
    %cst_70 = arith.constant 0.000000e+00 : f32
    %226 = vector.broadcast %cst_70 : f32 to vector<56x56xf32>
    %227 = arith.cmpf oge, %225, %226 : vector<56x56xf32>
    %cst_71 = arith.constant 0.000000e+00 : f32
    %228 = vector.shape_cast %209 : vector<1x56xf32> to vector<1x56xf32>
    %229 = vector.broadcast %228 : vector<1x56xf32> to vector<56x56xf32>
    %230 = vector.broadcast %cst_71 : f32 to vector<56x56xf32>
    %231 = arith.select %227, %229, %230 : vector<56x56xi1>, vector<56x56xf32>
    %232 = arith.mulf %11, %231 : vector<56x56xf32>
    %cst_72 = arith.constant 0.000000e+00 : f32
    %233 = vector.broadcast %cst_72 : f32 to vector<56x56xf32>
    %234 = vector.shape_cast %214 : vector<1x56xf32> to vector<1x56xf32>
    %235 = vector.broadcast %234 : vector<1x56xf32> to vector<56x56xf32>
    %236 = arith.select %227, %233, %235 : vector<56x56xi1>, vector<56x56xf32>
    %237 = arith.mulf %11, %236 : vector<56x56xf32>
    %cst_73 = arith.constant dense<0.000000e+00> : vector<56xf32>
    %238 = vector.multi_reduction <add>, %232, %cst_73 [1] : vector<56x56xf32> to vector<56xf32>
    %239 = vector.shape_cast %238 : vector<56xf32> to vector<56x1xf32>
    %cst_74 = arith.constant dense<0.000000e+00> : vector<56xf32>
    %240 = vector.multi_reduction <add>, %237, %cst_74 [1] : vector<56x56xf32> to vector<56xf32>
    %241 = vector.shape_cast %240 : vector<56xf32> to vector<56x1xf32>
    %242 = arith.mulf %200, %239 : vector<56x1xf32>
    %243 = arith.mulf %206, %241 : vector<56x1xf32>
    %244 = arith.addf %242, %243 : vector<56x1xf32>
    %cst_75 = arith.constant 1.000000e-30 : f32
    %245 = vector.broadcast %cst_75 : f32 to vector<56x1xf32>
    %246 = arith.maximumf %244, %245 : vector<56x1xf32>
    %247 = tpu.reciprocal %246 {approx = true} : vector<56x1xf32> -> vector<56x1xf32>
    %248 = arith.mulf %222, %247 : vector<56x1xf32>
    %c2_i32 = arith.constant 2 : i32
    %249 = vector.broadcast %c2_i32 : i32 to vector<1x8xi32>
    %250 = arith.cmpi eq, %4, %249 : vector<1x8xi32>
    %251 = arith.extui %250 : vector<1x8xi1> to vector<1x8xi32>
    %252 = arith.sitofp %251 : vector<1x8xi32> to vector<1x8xf32>
    %253 = vector.broadcast %248 : vector<56x1xf32> to vector<56x8xf32>
    %254 = vector.broadcast %252 : vector<1x8xf32> to vector<56x8xf32>
    %255 = arith.mulf %253, %254 : vector<56x8xf32>
    %256 = arith.addf %185, %255 : vector<56x8xf32>
    %257 = vector.extract_strided_slice %34 {offsets = [0, 3], sizes = [56, 1], strides = [1, 1]} : vector<56x8xf32> to vector<56x1xf32>
    %258 = vector.extract_strided_slice %39 {offsets = [0, 3], sizes = [56, 1], strides = [1, 1]} : vector<56x8xf32> to vector<56x1xf32>
    %259 = vector.extract_strided_slice %40 {offsets = [3, 0], sizes = [1, 56], strides = [1, 1]} : vector<8x56xf32> to vector<1x56xf32>
    %260 = vector.extract_strided_slice %42 {offsets = [0, 3], sizes = [1, 1], strides = [1, 1]} : vector<1x8xf32> to vector<1x1xf32>
    %261 = vector.broadcast %260 : vector<1x1xf32> to vector<56x1xf32>
    %262 = arith.addf %257, %261 : vector<56x1xf32>
    %cst_76 = arith.constant 0.000000e+00 : f32
    %263 = vector.broadcast %cst_76 : f32 to vector<56x1xf32>
    %264 = arith.cmpf oge, %262, %263 : vector<56x1xf32>
    %cst_77 = arith.constant 2.000000e-01 : f32
    %265 = vector.broadcast %cst_77 : f32 to vector<56x1xf32>
    %266 = arith.mulf %265, %262 : vector<56x1xf32>
    %267 = arith.select %264, %262, %266 : vector<56x1xi1>, vector<56x1xf32>
    %268 = vector.broadcast %260 : vector<1x1xf32> to vector<56x1xf32>
    %269 = arith.addf %257, %268 : vector<56x1xf32>
    %270 = arith.subf %269, %267 : vector<56x1xf32>
    %271 = math.exp %270 : vector<56x1xf32>
    %272 = vector.broadcast %260 : vector<1x1xf32> to vector<56x1xf32>
    %273 = arith.addf %257, %272 : vector<56x1xf32>
    %cst_78 = arith.constant 2.000000e-01 : f32
    %274 = vector.broadcast %cst_78 : f32 to vector<56x1xf32>
    %275 = arith.mulf %274, %273 : vector<56x1xf32>
    %276 = arith.subf %275, %267 : vector<56x1xf32>
    %277 = math.exp %276 : vector<56x1xf32>
    %278 = vector.broadcast %260 : vector<1x1xf32> to vector<1x56xf32>
    %279 = arith.subf %259, %278 : vector<1x56xf32>
    %280 = math.exp %279 : vector<1x56xf32>
    %281 = vector.broadcast %260 : vector<1x1xf32> to vector<1x56xf32>
    %282 = arith.subf %259, %281 : vector<1x56xf32>
    %cst_79 = arith.constant 2.000000e-01 : f32
    %283 = vector.broadcast %cst_79 : f32 to vector<1x56xf32>
    %284 = arith.mulf %283, %282 : vector<1x56xf32>
    %285 = math.exp %284 : vector<1x56xf32>
    %286 = arith.addf %257, %258 : vector<56x1xf32>
    %cst_80 = arith.constant 0.000000e+00 : f32
    %287 = vector.broadcast %cst_80 : f32 to vector<56x1xf32>
    %288 = arith.cmpf oge, %286, %287 : vector<56x1xf32>
    %cst_81 = arith.constant 2.000000e-01 : f32
    %289 = vector.broadcast %cst_81 : f32 to vector<56x1xf32>
    %290 = arith.mulf %289, %286 : vector<56x1xf32>
    %291 = arith.select %288, %286, %290 : vector<56x1xi1>, vector<56x1xf32>
    %292 = arith.subf %291, %267 : vector<56x1xf32>
    %293 = math.exp %292 : vector<56x1xf32>
    %294 = vector.broadcast %257 : vector<56x1xf32> to vector<56x56xf32>
    %295 = vector.broadcast %259 : vector<1x56xf32> to vector<56x56xf32>
    %296 = arith.addf %294, %295 : vector<56x56xf32>
    %cst_82 = arith.constant 0.000000e+00 : f32
    %297 = vector.broadcast %cst_82 : f32 to vector<56x56xf32>
    %298 = arith.cmpf oge, %296, %297 : vector<56x56xf32>
    %cst_83 = arith.constant 0.000000e+00 : f32
    %299 = vector.shape_cast %280 : vector<1x56xf32> to vector<1x56xf32>
    %300 = vector.broadcast %299 : vector<1x56xf32> to vector<56x56xf32>
    %301 = vector.broadcast %cst_83 : f32 to vector<56x56xf32>
    %302 = arith.select %298, %300, %301 : vector<56x56xi1>, vector<56x56xf32>
    %303 = arith.mulf %11, %302 : vector<56x56xf32>
    %cst_84 = arith.constant 0.000000e+00 : f32
    %304 = vector.broadcast %cst_84 : f32 to vector<56x56xf32>
    %305 = vector.shape_cast %285 : vector<1x56xf32> to vector<1x56xf32>
    %306 = vector.broadcast %305 : vector<1x56xf32> to vector<56x56xf32>
    %307 = arith.select %298, %304, %306 : vector<56x56xi1>, vector<56x56xf32>
    %308 = arith.mulf %11, %307 : vector<56x56xf32>
    %cst_85 = arith.constant dense<0.000000e+00> : vector<56xf32>
    %309 = vector.multi_reduction <add>, %303, %cst_85 [1] : vector<56x56xf32> to vector<56xf32>
    %310 = vector.shape_cast %309 : vector<56xf32> to vector<56x1xf32>
    %cst_86 = arith.constant dense<0.000000e+00> : vector<56xf32>
    %311 = vector.multi_reduction <add>, %308, %cst_86 [1] : vector<56x56xf32> to vector<56xf32>
    %312 = vector.shape_cast %311 : vector<56xf32> to vector<56x1xf32>
    %313 = arith.mulf %271, %310 : vector<56x1xf32>
    %314 = arith.mulf %277, %312 : vector<56x1xf32>
    %315 = arith.addf %313, %314 : vector<56x1xf32>
    %cst_87 = arith.constant 1.000000e-30 : f32
    %316 = vector.broadcast %cst_87 : f32 to vector<56x1xf32>
    %317 = arith.maximumf %315, %316 : vector<56x1xf32>
    %318 = tpu.reciprocal %317 {approx = true} : vector<56x1xf32> -> vector<56x1xf32>
    %319 = arith.mulf %293, %318 : vector<56x1xf32>
    %c3_i32 = arith.constant 3 : i32
    %320 = vector.broadcast %c3_i32 : i32 to vector<1x8xi32>
    %321 = arith.cmpi eq, %4, %320 : vector<1x8xi32>
    %322 = arith.extui %321 : vector<1x8xi1> to vector<1x8xi32>
    %323 = arith.sitofp %322 : vector<1x8xi32> to vector<1x8xf32>
    %324 = vector.broadcast %319 : vector<56x1xf32> to vector<56x8xf32>
    %325 = vector.broadcast %323 : vector<1x8xf32> to vector<56x8xf32>
    %326 = arith.mulf %324, %325 : vector<56x8xf32>
    %327 = arith.addf %256, %326 : vector<56x8xf32>
    %328 = vector.extract_strided_slice %34 {offsets = [0, 4], sizes = [56, 1], strides = [1, 1]} : vector<56x8xf32> to vector<56x1xf32>
    %329 = vector.extract_strided_slice %39 {offsets = [0, 4], sizes = [56, 1], strides = [1, 1]} : vector<56x8xf32> to vector<56x1xf32>
    %330 = vector.extract_strided_slice %40 {offsets = [4, 0], sizes = [1, 56], strides = [1, 1]} : vector<8x56xf32> to vector<1x56xf32>
    %331 = vector.extract_strided_slice %42 {offsets = [0, 4], sizes = [1, 1], strides = [1, 1]} : vector<1x8xf32> to vector<1x1xf32>
    %332 = vector.broadcast %331 : vector<1x1xf32> to vector<56x1xf32>
    %333 = arith.addf %328, %332 : vector<56x1xf32>
    %cst_88 = arith.constant 0.000000e+00 : f32
    %334 = vector.broadcast %cst_88 : f32 to vector<56x1xf32>
    %335 = arith.cmpf oge, %333, %334 : vector<56x1xf32>
    %cst_89 = arith.constant 2.000000e-01 : f32
    %336 = vector.broadcast %cst_89 : f32 to vector<56x1xf32>
    %337 = arith.mulf %336, %333 : vector<56x1xf32>
    %338 = arith.select %335, %333, %337 : vector<56x1xi1>, vector<56x1xf32>
    %339 = vector.broadcast %331 : vector<1x1xf32> to vector<56x1xf32>
    %340 = arith.addf %328, %339 : vector<56x1xf32>
    %341 = arith.subf %340, %338 : vector<56x1xf32>
    %342 = math.exp %341 : vector<56x1xf32>
    %343 = vector.broadcast %331 : vector<1x1xf32> to vector<56x1xf32>
    %344 = arith.addf %328, %343 : vector<56x1xf32>
    %cst_90 = arith.constant 2.000000e-01 : f32
    %345 = vector.broadcast %cst_90 : f32 to vector<56x1xf32>
    %346 = arith.mulf %345, %344 : vector<56x1xf32>
    %347 = arith.subf %346, %338 : vector<56x1xf32>
    %348 = math.exp %347 : vector<56x1xf32>
    %349 = vector.broadcast %331 : vector<1x1xf32> to vector<1x56xf32>
    %350 = arith.subf %330, %349 : vector<1x56xf32>
    %351 = math.exp %350 : vector<1x56xf32>
    %352 = vector.broadcast %331 : vector<1x1xf32> to vector<1x56xf32>
    %353 = arith.subf %330, %352 : vector<1x56xf32>
    %cst_91 = arith.constant 2.000000e-01 : f32
    %354 = vector.broadcast %cst_91 : f32 to vector<1x56xf32>
    %355 = arith.mulf %354, %353 : vector<1x56xf32>
    %356 = math.exp %355 : vector<1x56xf32>
    %357 = arith.addf %328, %329 : vector<56x1xf32>
    %cst_92 = arith.constant 0.000000e+00 : f32
    %358 = vector.broadcast %cst_92 : f32 to vector<56x1xf32>
    %359 = arith.cmpf oge, %357, %358 : vector<56x1xf32>
    %cst_93 = arith.constant 2.000000e-01 : f32
    %360 = vector.broadcast %cst_93 : f32 to vector<56x1xf32>
    %361 = arith.mulf %360, %357 : vector<56x1xf32>
    %362 = arith.select %359, %357, %361 : vector<56x1xi1>, vector<56x1xf32>
    %363 = arith.subf %362, %338 : vector<56x1xf32>
    %364 = math.exp %363 : vector<56x1xf32>
    %365 = vector.broadcast %328 : vector<56x1xf32> to vector<56x56xf32>
    %366 = vector.broadcast %330 : vector<1x56xf32> to vector<56x56xf32>
    %367 = arith.addf %365, %366 : vector<56x56xf32>
    %cst_94 = arith.constant 0.000000e+00 : f32
    %368 = vector.broadcast %cst_94 : f32 to vector<56x56xf32>
    %369 = arith.cmpf oge, %367, %368 : vector<56x56xf32>
    %cst_95 = arith.constant 0.000000e+00 : f32
    %370 = vector.shape_cast %351 : vector<1x56xf32> to vector<1x56xf32>
    %371 = vector.broadcast %370 : vector<1x56xf32> to vector<56x56xf32>
    %372 = vector.broadcast %cst_95 : f32 to vector<56x56xf32>
    %373 = arith.select %369, %371, %372 : vector<56x56xi1>, vector<56x56xf32>
    %374 = arith.mulf %11, %373 : vector<56x56xf32>
    %cst_96 = arith.constant 0.000000e+00 : f32
    %375 = vector.broadcast %cst_96 : f32 to vector<56x56xf32>
    %376 = vector.shape_cast %356 : vector<1x56xf32> to vector<1x56xf32>
    %377 = vector.broadcast %376 : vector<1x56xf32> to vector<56x56xf32>
    %378 = arith.select %369, %375, %377 : vector<56x56xi1>, vector<56x56xf32>
    %379 = arith.mulf %11, %378 : vector<56x56xf32>
    %cst_97 = arith.constant dense<0.000000e+00> : vector<56xf32>
    %380 = vector.multi_reduction <add>, %374, %cst_97 [1] : vector<56x56xf32> to vector<56xf32>
    %381 = vector.shape_cast %380 : vector<56xf32> to vector<56x1xf32>
    %cst_98 = arith.constant dense<0.000000e+00> : vector<56xf32>
    %382 = vector.multi_reduction <add>, %379, %cst_98 [1] : vector<56x56xf32> to vector<56xf32>
    %383 = vector.shape_cast %382 : vector<56xf32> to vector<56x1xf32>
    %384 = arith.mulf %342, %381 : vector<56x1xf32>
    %385 = arith.mulf %348, %383 : vector<56x1xf32>
    %386 = arith.addf %384, %385 : vector<56x1xf32>
    %cst_99 = arith.constant 1.000000e-30 : f32
    %387 = vector.broadcast %cst_99 : f32 to vector<56x1xf32>
    %388 = arith.maximumf %386, %387 : vector<56x1xf32>
    %389 = tpu.reciprocal %388 {approx = true} : vector<56x1xf32> -> vector<56x1xf32>
    %390 = arith.mulf %364, %389 : vector<56x1xf32>
    %c4_i32 = arith.constant 4 : i32
    %391 = vector.broadcast %c4_i32 : i32 to vector<1x8xi32>
    %392 = arith.cmpi eq, %4, %391 : vector<1x8xi32>
    %393 = arith.extui %392 : vector<1x8xi1> to vector<1x8xi32>
    %394 = arith.sitofp %393 : vector<1x8xi32> to vector<1x8xf32>
    %395 = vector.broadcast %390 : vector<56x1xf32> to vector<56x8xf32>
    %396 = vector.broadcast %394 : vector<1x8xf32> to vector<56x8xf32>
    %397 = arith.mulf %395, %396 : vector<56x8xf32>
    %398 = arith.addf %327, %397 : vector<56x8xf32>
    %399 = vector.extract_strided_slice %34 {offsets = [0, 5], sizes = [56, 1], strides = [1, 1]} : vector<56x8xf32> to vector<56x1xf32>
    %400 = vector.extract_strided_slice %39 {offsets = [0, 5], sizes = [56, 1], strides = [1, 1]} : vector<56x8xf32> to vector<56x1xf32>
    %401 = vector.extract_strided_slice %40 {offsets = [5, 0], sizes = [1, 56], strides = [1, 1]} : vector<8x56xf32> to vector<1x56xf32>
    %402 = vector.extract_strided_slice %42 {offsets = [0, 5], sizes = [1, 1], strides = [1, 1]} : vector<1x8xf32> to vector<1x1xf32>
    %403 = vector.broadcast %402 : vector<1x1xf32> to vector<56x1xf32>
    %404 = arith.addf %399, %403 : vector<56x1xf32>
    %cst_100 = arith.constant 0.000000e+00 : f32
    %405 = vector.broadcast %cst_100 : f32 to vector<56x1xf32>
    %406 = arith.cmpf oge, %404, %405 : vector<56x1xf32>
    %cst_101 = arith.constant 2.000000e-01 : f32
    %407 = vector.broadcast %cst_101 : f32 to vector<56x1xf32>
    %408 = arith.mulf %407, %404 : vector<56x1xf32>
    %409 = arith.select %406, %404, %408 : vector<56x1xi1>, vector<56x1xf32>
    %410 = vector.broadcast %402 : vector<1x1xf32> to vector<56x1xf32>
    %411 = arith.addf %399, %410 : vector<56x1xf32>
    %412 = arith.subf %411, %409 : vector<56x1xf32>
    %413 = math.exp %412 : vector<56x1xf32>
    %414 = vector.broadcast %402 : vector<1x1xf32> to vector<56x1xf32>
    %415 = arith.addf %399, %414 : vector<56x1xf32>
    %cst_102 = arith.constant 2.000000e-01 : f32
    %416 = vector.broadcast %cst_102 : f32 to vector<56x1xf32>
    %417 = arith.mulf %416, %415 : vector<56x1xf32>
    %418 = arith.subf %417, %409 : vector<56x1xf32>
    %419 = math.exp %418 : vector<56x1xf32>
    %420 = vector.broadcast %402 : vector<1x1xf32> to vector<1x56xf32>
    %421 = arith.subf %401, %420 : vector<1x56xf32>
    %422 = math.exp %421 : vector<1x56xf32>
    %423 = vector.broadcast %402 : vector<1x1xf32> to vector<1x56xf32>
    %424 = arith.subf %401, %423 : vector<1x56xf32>
    %cst_103 = arith.constant 2.000000e-01 : f32
    %425 = vector.broadcast %cst_103 : f32 to vector<1x56xf32>
    %426 = arith.mulf %425, %424 : vector<1x56xf32>
    %427 = math.exp %426 : vector<1x56xf32>
    %428 = arith.addf %399, %400 : vector<56x1xf32>
    %cst_104 = arith.constant 0.000000e+00 : f32
    %429 = vector.broadcast %cst_104 : f32 to vector<56x1xf32>
    %430 = arith.cmpf oge, %428, %429 : vector<56x1xf32>
    %cst_105 = arith.constant 2.000000e-01 : f32
    %431 = vector.broadcast %cst_105 : f32 to vector<56x1xf32>
    %432 = arith.mulf %431, %428 : vector<56x1xf32>
    %433 = arith.select %430, %428, %432 : vector<56x1xi1>, vector<56x1xf32>
    %434 = arith.subf %433, %409 : vector<56x1xf32>
    %435 = math.exp %434 : vector<56x1xf32>
    %436 = vector.broadcast %399 : vector<56x1xf32> to vector<56x56xf32>
    %437 = vector.broadcast %401 : vector<1x56xf32> to vector<56x56xf32>
    %438 = arith.addf %436, %437 : vector<56x56xf32>
    %cst_106 = arith.constant 0.000000e+00 : f32
    %439 = vector.broadcast %cst_106 : f32 to vector<56x56xf32>
    %440 = arith.cmpf oge, %438, %439 : vector<56x56xf32>
    %cst_107 = arith.constant 0.000000e+00 : f32
    %441 = vector.shape_cast %422 : vector<1x56xf32> to vector<1x56xf32>
    %442 = vector.broadcast %441 : vector<1x56xf32> to vector<56x56xf32>
    %443 = vector.broadcast %cst_107 : f32 to vector<56x56xf32>
    %444 = arith.select %440, %442, %443 : vector<56x56xi1>, vector<56x56xf32>
    %445 = arith.mulf %11, %444 : vector<56x56xf32>
    %cst_108 = arith.constant 0.000000e+00 : f32
    %446 = vector.broadcast %cst_108 : f32 to vector<56x56xf32>
    %447 = vector.shape_cast %427 : vector<1x56xf32> to vector<1x56xf32>
    %448 = vector.broadcast %447 : vector<1x56xf32> to vector<56x56xf32>
    %449 = arith.select %440, %446, %448 : vector<56x56xi1>, vector<56x56xf32>
    %450 = arith.mulf %11, %449 : vector<56x56xf32>
    %cst_109 = arith.constant dense<0.000000e+00> : vector<56xf32>
    %451 = vector.multi_reduction <add>, %445, %cst_109 [1] : vector<56x56xf32> to vector<56xf32>
    %452 = vector.shape_cast %451 : vector<56xf32> to vector<56x1xf32>
    %cst_110 = arith.constant dense<0.000000e+00> : vector<56xf32>
    %453 = vector.multi_reduction <add>, %450, %cst_110 [1] : vector<56x56xf32> to vector<56xf32>
    %454 = vector.shape_cast %453 : vector<56xf32> to vector<56x1xf32>
    %455 = arith.mulf %413, %452 : vector<56x1xf32>
    %456 = arith.mulf %419, %454 : vector<56x1xf32>
    %457 = arith.addf %455, %456 : vector<56x1xf32>
    %cst_111 = arith.constant 1.000000e-30 : f32
    %458 = vector.broadcast %cst_111 : f32 to vector<56x1xf32>
    %459 = arith.maximumf %457, %458 : vector<56x1xf32>
    %460 = tpu.reciprocal %459 {approx = true} : vector<56x1xf32> -> vector<56x1xf32>
    %461 = arith.mulf %435, %460 : vector<56x1xf32>
    %c5_i32 = arith.constant 5 : i32
    %462 = vector.broadcast %c5_i32 : i32 to vector<1x8xi32>
    %463 = arith.cmpi eq, %4, %462 : vector<1x8xi32>
    %464 = arith.extui %463 : vector<1x8xi1> to vector<1x8xi32>
    %465 = arith.sitofp %464 : vector<1x8xi32> to vector<1x8xf32>
    %466 = vector.broadcast %461 : vector<56x1xf32> to vector<56x8xf32>
    %467 = vector.broadcast %465 : vector<1x8xf32> to vector<56x8xf32>
    %468 = arith.mulf %466, %467 : vector<56x8xf32>
    %469 = arith.addf %398, %468 : vector<56x8xf32>
    %470 = vector.extract_strided_slice %34 {offsets = [0, 6], sizes = [56, 1], strides = [1, 1]} : vector<56x8xf32> to vector<56x1xf32>
    %471 = vector.extract_strided_slice %39 {offsets = [0, 6], sizes = [56, 1], strides = [1, 1]} : vector<56x8xf32> to vector<56x1xf32>
    %472 = vector.extract_strided_slice %40 {offsets = [6, 0], sizes = [1, 56], strides = [1, 1]} : vector<8x56xf32> to vector<1x56xf32>
    %473 = vector.extract_strided_slice %42 {offsets = [0, 6], sizes = [1, 1], strides = [1, 1]} : vector<1x8xf32> to vector<1x1xf32>
    %474 = vector.broadcast %473 : vector<1x1xf32> to vector<56x1xf32>
    %475 = arith.addf %470, %474 : vector<56x1xf32>
    %cst_112 = arith.constant 0.000000e+00 : f32
    %476 = vector.broadcast %cst_112 : f32 to vector<56x1xf32>
    %477 = arith.cmpf oge, %475, %476 : vector<56x1xf32>
    %cst_113 = arith.constant 2.000000e-01 : f32
    %478 = vector.broadcast %cst_113 : f32 to vector<56x1xf32>
    %479 = arith.mulf %478, %475 : vector<56x1xf32>
    %480 = arith.select %477, %475, %479 : vector<56x1xi1>, vector<56x1xf32>
    %481 = vector.broadcast %473 : vector<1x1xf32> to vector<56x1xf32>
    %482 = arith.addf %470, %481 : vector<56x1xf32>
    %483 = arith.subf %482, %480 : vector<56x1xf32>
    %484 = math.exp %483 : vector<56x1xf32>
    %485 = vector.broadcast %473 : vector<1x1xf32> to vector<56x1xf32>
    %486 = arith.addf %470, %485 : vector<56x1xf32>
    %cst_114 = arith.constant 2.000000e-01 : f32
    %487 = vector.broadcast %cst_114 : f32 to vector<56x1xf32>
    %488 = arith.mulf %487, %486 : vector<56x1xf32>
    %489 = arith.subf %488, %480 : vector<56x1xf32>
    %490 = math.exp %489 : vector<56x1xf32>
    %491 = vector.broadcast %473 : vector<1x1xf32> to vector<1x56xf32>
    %492 = arith.subf %472, %491 : vector<1x56xf32>
    %493 = math.exp %492 : vector<1x56xf32>
    %494 = vector.broadcast %473 : vector<1x1xf32> to vector<1x56xf32>
    %495 = arith.subf %472, %494 : vector<1x56xf32>
    %cst_115 = arith.constant 2.000000e-01 : f32
    %496 = vector.broadcast %cst_115 : f32 to vector<1x56xf32>
    %497 = arith.mulf %496, %495 : vector<1x56xf32>
    %498 = math.exp %497 : vector<1x56xf32>
    %499 = arith.addf %470, %471 : vector<56x1xf32>
    %cst_116 = arith.constant 0.000000e+00 : f32
    %500 = vector.broadcast %cst_116 : f32 to vector<56x1xf32>
    %501 = arith.cmpf oge, %499, %500 : vector<56x1xf32>
    %cst_117 = arith.constant 2.000000e-01 : f32
    %502 = vector.broadcast %cst_117 : f32 to vector<56x1xf32>
    %503 = arith.mulf %502, %499 : vector<56x1xf32>
    %504 = arith.select %501, %499, %503 : vector<56x1xi1>, vector<56x1xf32>
    %505 = arith.subf %504, %480 : vector<56x1xf32>
    %506 = math.exp %505 : vector<56x1xf32>
    %507 = vector.broadcast %470 : vector<56x1xf32> to vector<56x56xf32>
    %508 = vector.broadcast %472 : vector<1x56xf32> to vector<56x56xf32>
    %509 = arith.addf %507, %508 : vector<56x56xf32>
    %cst_118 = arith.constant 0.000000e+00 : f32
    %510 = vector.broadcast %cst_118 : f32 to vector<56x56xf32>
    %511 = arith.cmpf oge, %509, %510 : vector<56x56xf32>
    %cst_119 = arith.constant 0.000000e+00 : f32
    %512 = vector.shape_cast %493 : vector<1x56xf32> to vector<1x56xf32>
    %513 = vector.broadcast %512 : vector<1x56xf32> to vector<56x56xf32>
    %514 = vector.broadcast %cst_119 : f32 to vector<56x56xf32>
    %515 = arith.select %511, %513, %514 : vector<56x56xi1>, vector<56x56xf32>
    %516 = arith.mulf %11, %515 : vector<56x56xf32>
    %cst_120 = arith.constant 0.000000e+00 : f32
    %517 = vector.broadcast %cst_120 : f32 to vector<56x56xf32>
    %518 = vector.shape_cast %498 : vector<1x56xf32> to vector<1x56xf32>
    %519 = vector.broadcast %518 : vector<1x56xf32> to vector<56x56xf32>
    %520 = arith.select %511, %517, %519 : vector<56x56xi1>, vector<56x56xf32>
    %521 = arith.mulf %11, %520 : vector<56x56xf32>
    %cst_121 = arith.constant dense<0.000000e+00> : vector<56xf32>
    %522 = vector.multi_reduction <add>, %516, %cst_121 [1] : vector<56x56xf32> to vector<56xf32>
    %523 = vector.shape_cast %522 : vector<56xf32> to vector<56x1xf32>
    %cst_122 = arith.constant dense<0.000000e+00> : vector<56xf32>
    %524 = vector.multi_reduction <add>, %521, %cst_122 [1] : vector<56x56xf32> to vector<56xf32>
    %525 = vector.shape_cast %524 : vector<56xf32> to vector<56x1xf32>
    %526 = arith.mulf %484, %523 : vector<56x1xf32>
    %527 = arith.mulf %490, %525 : vector<56x1xf32>
    %528 = arith.addf %526, %527 : vector<56x1xf32>
    %cst_123 = arith.constant 1.000000e-30 : f32
    %529 = vector.broadcast %cst_123 : f32 to vector<56x1xf32>
    %530 = arith.maximumf %528, %529 : vector<56x1xf32>
    %531 = tpu.reciprocal %530 {approx = true} : vector<56x1xf32> -> vector<56x1xf32>
    %532 = arith.mulf %506, %531 : vector<56x1xf32>
    %c6_i32 = arith.constant 6 : i32
    %533 = vector.broadcast %c6_i32 : i32 to vector<1x8xi32>
    %534 = arith.cmpi eq, %4, %533 : vector<1x8xi32>
    %535 = arith.extui %534 : vector<1x8xi1> to vector<1x8xi32>
    %536 = arith.sitofp %535 : vector<1x8xi32> to vector<1x8xf32>
    %537 = vector.broadcast %532 : vector<56x1xf32> to vector<56x8xf32>
    %538 = vector.broadcast %536 : vector<1x8xf32> to vector<56x8xf32>
    %539 = arith.mulf %537, %538 : vector<56x8xf32>
    %540 = arith.addf %469, %539 : vector<56x8xf32>
    %541 = vector.extract_strided_slice %34 {offsets = [0, 7], sizes = [56, 1], strides = [1, 1]} : vector<56x8xf32> to vector<56x1xf32>
    %542 = vector.extract_strided_slice %39 {offsets = [0, 7], sizes = [56, 1], strides = [1, 1]} : vector<56x8xf32> to vector<56x1xf32>
    %543 = vector.extract_strided_slice %40 {offsets = [7, 0], sizes = [1, 56], strides = [1, 1]} : vector<8x56xf32> to vector<1x56xf32>
    %544 = vector.extract_strided_slice %42 {offsets = [0, 7], sizes = [1, 1], strides = [1, 1]} : vector<1x8xf32> to vector<1x1xf32>
    %545 = vector.broadcast %544 : vector<1x1xf32> to vector<56x1xf32>
    %546 = arith.addf %541, %545 : vector<56x1xf32>
    %cst_124 = arith.constant 0.000000e+00 : f32
    %547 = vector.broadcast %cst_124 : f32 to vector<56x1xf32>
    %548 = arith.cmpf oge, %546, %547 : vector<56x1xf32>
    %cst_125 = arith.constant 2.000000e-01 : f32
    %549 = vector.broadcast %cst_125 : f32 to vector<56x1xf32>
    %550 = arith.mulf %549, %546 : vector<56x1xf32>
    %551 = arith.select %548, %546, %550 : vector<56x1xi1>, vector<56x1xf32>
    %552 = vector.broadcast %544 : vector<1x1xf32> to vector<56x1xf32>
    %553 = arith.addf %541, %552 : vector<56x1xf32>
    %554 = arith.subf %553, %551 : vector<56x1xf32>
    %555 = math.exp %554 : vector<56x1xf32>
    %556 = vector.broadcast %544 : vector<1x1xf32> to vector<56x1xf32>
    %557 = arith.addf %541, %556 : vector<56x1xf32>
    %cst_126 = arith.constant 2.000000e-01 : f32
    %558 = vector.broadcast %cst_126 : f32 to vector<56x1xf32>
    %559 = arith.mulf %558, %557 : vector<56x1xf32>
    %560 = arith.subf %559, %551 : vector<56x1xf32>
    %561 = math.exp %560 : vector<56x1xf32>
    %562 = vector.broadcast %544 : vector<1x1xf32> to vector<1x56xf32>
    %563 = arith.subf %543, %562 : vector<1x56xf32>
    %564 = math.exp %563 : vector<1x56xf32>
    %565 = vector.broadcast %544 : vector<1x1xf32> to vector<1x56xf32>
    %566 = arith.subf %543, %565 : vector<1x56xf32>
    %cst_127 = arith.constant 2.000000e-01 : f32
    %567 = vector.broadcast %cst_127 : f32 to vector<1x56xf32>
    %568 = arith.mulf %567, %566 : vector<1x56xf32>
    %569 = math.exp %568 : vector<1x56xf32>
    %570 = arith.addf %541, %542 : vector<56x1xf32>
    %cst_128 = arith.constant 0.000000e+00 : f32
    %571 = vector.broadcast %cst_128 : f32 to vector<56x1xf32>
    %572 = arith.cmpf oge, %570, %571 : vector<56x1xf32>
    %cst_129 = arith.constant 2.000000e-01 : f32
    %573 = vector.broadcast %cst_129 : f32 to vector<56x1xf32>
    %574 = arith.mulf %573, %570 : vector<56x1xf32>
    %575 = arith.select %572, %570, %574 : vector<56x1xi1>, vector<56x1xf32>
    %576 = arith.subf %575, %551 : vector<56x1xf32>
    %577 = math.exp %576 : vector<56x1xf32>
    %578 = vector.broadcast %541 : vector<56x1xf32> to vector<56x56xf32>
    %579 = vector.broadcast %543 : vector<1x56xf32> to vector<56x56xf32>
    %580 = arith.addf %578, %579 : vector<56x56xf32>
    %cst_130 = arith.constant 0.000000e+00 : f32
    %581 = vector.broadcast %cst_130 : f32 to vector<56x56xf32>
    %582 = arith.cmpf oge, %580, %581 : vector<56x56xf32>
    %cst_131 = arith.constant 0.000000e+00 : f32
    %583 = vector.shape_cast %564 : vector<1x56xf32> to vector<1x56xf32>
    %584 = vector.broadcast %583 : vector<1x56xf32> to vector<56x56xf32>
    %585 = vector.broadcast %cst_131 : f32 to vector<56x56xf32>
    %586 = arith.select %582, %584, %585 : vector<56x56xi1>, vector<56x56xf32>
    %587 = arith.mulf %11, %586 : vector<56x56xf32>
    %cst_132 = arith.constant 0.000000e+00 : f32
    %588 = vector.broadcast %cst_132 : f32 to vector<56x56xf32>
    %589 = vector.shape_cast %569 : vector<1x56xf32> to vector<1x56xf32>
    %590 = vector.broadcast %589 : vector<1x56xf32> to vector<56x56xf32>
    %591 = arith.select %582, %588, %590 : vector<56x56xi1>, vector<56x56xf32>
    %592 = arith.mulf %11, %591 : vector<56x56xf32>
    %cst_133 = arith.constant dense<0.000000e+00> : vector<56xf32>
    %593 = vector.multi_reduction <add>, %587, %cst_133 [1] : vector<56x56xf32> to vector<56xf32>
    %594 = vector.shape_cast %593 : vector<56xf32> to vector<56x1xf32>
    %cst_134 = arith.constant dense<0.000000e+00> : vector<56xf32>
    %595 = vector.multi_reduction <add>, %592, %cst_134 [1] : vector<56x56xf32> to vector<56xf32>
    %596 = vector.shape_cast %595 : vector<56xf32> to vector<56x1xf32>
    %597 = arith.mulf %555, %594 : vector<56x1xf32>
    %598 = arith.mulf %561, %596 : vector<56x1xf32>
    %599 = arith.addf %597, %598 : vector<56x1xf32>
    %cst_135 = arith.constant 1.000000e-30 : f32
    %600 = vector.broadcast %cst_135 : f32 to vector<56x1xf32>
    %601 = arith.maximumf %599, %600 : vector<56x1xf32>
    %602 = tpu.reciprocal %601 {approx = true} : vector<56x1xf32> -> vector<56x1xf32>
    %603 = arith.mulf %577, %602 : vector<56x1xf32>
    %c7_i32 = arith.constant 7 : i32
    %604 = vector.broadcast %c7_i32 : i32 to vector<1x8xi32>
    %605 = arith.cmpi eq, %4, %604 : vector<1x8xi32>
    %606 = arith.extui %605 : vector<1x8xi1> to vector<1x8xi32>
    %607 = arith.sitofp %606 : vector<1x8xi32> to vector<1x8xf32>
    %608 = vector.broadcast %603 : vector<56x1xf32> to vector<56x8xf32>
    %609 = vector.broadcast %607 : vector<1x8xf32> to vector<56x8xf32>
    %610 = arith.mulf %608, %609 : vector<56x8xf32>
    %611 = arith.addf %540, %610 : vector<56x8xf32>
    %cst_136 = arith.constant 0.000000e+00 : f32
    %612 = vector.shape_cast %7 : vector<56x1xi1> to vector<56x1xi1>
    %613 = vector.broadcast %612 : vector<56x1xi1> to vector<56x8xi1>
    %614 = vector.broadcast %cst_136 : f32 to vector<56x8xf32>
    %615 = arith.select %613, %611, %614 : vector<56x8xi1>, vector<56x8xf32>
    %cst_137 = arith.constant dense<0.000000e+00> : vector<56x256xf32>
    %616 = tpu.matmul %615, %0, %cst_137 {dimension_numbers = #tpu.dot_dimension_numbers<[1], [0], [0], [1], [0, 0, 1, 1], [], []>} : vector<56x8xf32>, vector<8x256xf32>, vector<56x256xf32> -> vector<56x256xf32>
    %617 = arith.mulf %616, %29 : vector<56x256xf32>
    %cst_138 = arith.constant dense<0.000000e+00> : vector<56x8xf32>
    %618 = tpu.matmul %617, %1, %cst_138 {dimension_numbers = #tpu.dot_dimension_numbers<[1], [0], [0], [1], [0, 0, 1, 1], [], []>} : vector<56x256xf32>, vector<256x8xf32>, vector<56x8xf32> -> vector<56x8xf32>
    %cst_139 = arith.constant dense<0.000000e+00> : vector<56x256xf32>
    %619 = tpu.matmul %618, %0, %cst_139 {dimension_numbers = #tpu.dot_dimension_numbers<[1], [0], [0], [1], [0, 0, 1, 1], [], []>} : vector<56x8xf32>, vector<8x256xf32>, vector<56x256xf32> -> vector<56x256xf32>
    %620 = arith.subf %617, %619 : vector<56x256xf32>
    %621 = arith.mulf %620, %620 : vector<56x256xf32>
    %cst_140 = arith.constant dense<0.000000e+00> : vector<56x8xf32>
    %622 = tpu.matmul %621, %1, %cst_140 {dimension_numbers = #tpu.dot_dimension_numbers<[1], [0], [0], [1], [0, 0, 1, 1], [], []>} : vector<56x256xf32>, vector<256x8xf32>, vector<56x8xf32> -> vector<56x8xf32>
    %cst_141 = arith.constant 9.99999974E-6 : f32
    %623 = vector.broadcast %cst_141 : f32 to vector<56x8xf32>
    %624 = arith.addf %622, %623 : vector<56x8xf32>
    %625 = math.rsqrt %624 : vector<56x8xf32>
    %cst_142 = arith.constant dense<0.000000e+00> : vector<56x256xf32>
    %626 = tpu.matmul %625, %0, %cst_142 {dimension_numbers = #tpu.dot_dimension_numbers<[1], [0], [0], [1], [0, 0, 1, 1], [], []>} : vector<56x8xf32>, vector<8x256xf32>, vector<56x256xf32> -> vector<56x256xf32>
    %627 = arith.mulf %620, %626 : vector<56x256xf32>
    %628 = vector.broadcast %19 : vector<1x256xf32> to vector<56x256xf32>
    %629 = arith.mulf %627, %628 : vector<56x256xf32>
    %630 = vector.broadcast %21 : vector<1x256xf32> to vector<56x256xf32>
    %631 = arith.addf %629, %630 : vector<56x256xf32>
    %cst_143 = arith.constant dense<0.000000e+00> : vector<56x32xf32>
    %632 = tpu.matmul %631, %2, %cst_143 {dimension_numbers = #tpu.dot_dimension_numbers<[1], [0], [0], [1], [0, 0, 1, 1], [], []>} : vector<56x256xf32>, vector<256x32xf32>, vector<56x32xf32> -> vector<56x32xf32>
    %633 = arith.addf %632, %8 : vector<56x32xf32>
    %634 = vector.broadcast %23 : vector<1x32xf32> to vector<56x32xf32>
    %635 = arith.addf %633, %634 : vector<56x32xf32>
    %c1 = arith.constant 1 : index
    %c0_144 = arith.constant 0 : index
    %c0_145 = arith.constant 0 : index
    %636 = vector.load %arg4[%c1, %c0_144, %c0_145] : memref<2x32x256xbf16, #tpu.memory_space<vmem>>, vector<1x32x256xbf16>
    %637 = vector.shape_cast %636 : vector<1x32x256xbf16> to vector<32x256xbf16>
    %c1_146 = arith.constant 1 : index
    %c0_147 = arith.constant 0 : index
    %c0_148 = arith.constant 0 : index
    %638 = vector.load %arg5[%c1_146, %c0_147, %c0_148] : memref<2x32x8xf32, #tpu.memory_space<vmem>>, vector<1x32x8xf32>
    %639 = vector.shape_cast %638 : vector<1x32x8xf32> to vector<32x8xf32>
    %c1_149 = arith.constant 1 : index
    %c0_150 = arith.constant 0 : index
    %c0_151 = arith.constant 0 : index
    %640 = vector.load %arg6[%c1_149, %c0_150, %c0_151] : memref<2x32x8xf32, #tpu.memory_space<vmem>>, vector<1x32x8xf32>
    %641 = vector.shape_cast %640 : vector<1x32x8xf32> to vector<32x8xf32>
    %c1_152 = arith.constant 1 : index
    %c0_153 = arith.constant 0 : index
    %c0_154 = arith.constant 0 : index
    %642 = vector.load %arg7[%c1_152, %c0_153, %c0_154] : memref<2x1x256xf32, #tpu.memory_space<vmem>>, vector<1x1x256xf32>
    %643 = vector.shape_cast %642 : vector<1x1x256xf32> to vector<1x256xf32>
    %c1_155 = arith.constant 1 : index
    %c0_156 = arith.constant 0 : index
    %c0_157 = arith.constant 0 : index
    %644 = vector.load %arg8[%c1_155, %c0_156, %c0_157] : memref<2x1x256xf32, #tpu.memory_space<vmem>>, vector<1x1x256xf32>
    %645 = vector.shape_cast %644 : vector<1x1x256xf32> to vector<1x256xf32>
    %c1_158 = arith.constant 1 : index
    %c0_159 = arith.constant 0 : index
    %c0_160 = arith.constant 0 : index
    %646 = vector.load %arg9[%c1_158, %c0_159, %c0_160] : memref<2x1x32xf32, #tpu.memory_space<vmem>>, vector<1x1x32xf32>
    %647 = vector.shape_cast %646 : vector<1x1x32xf32> to vector<1x32xf32>
    %648 = arith.truncf %635 : vector<56x32xf32> to vector<56x32xbf16>
    %cst_161 = arith.constant dense<0.000000e+00> : vector<56x256xf32>
    %649 = tpu.matmul %648, %637, %cst_161 {dimension_numbers = #tpu.dot_dimension_numbers<[1], [0], [0], [1], [0, 0, 1, 1], [], []>} : vector<56x32xbf16>, vector<32x256xbf16>, vector<56x256xf32> -> vector<56x256xf32>
    %cst_162 = arith.constant 0.000000e+00 : f32
    %650 = vector.shape_cast %7 : vector<56x1xi1> to vector<56x1xi1>
    %651 = vector.broadcast %650 : vector<56x1xi1> to vector<56x256xi1>
    %652 = vector.broadcast %cst_162 : f32 to vector<56x256xf32>
    %653 = arith.select %651, %649, %652 : vector<56x256xi1>, vector<56x256xf32>
    %cst_163 = arith.constant dense<0.000000e+00> : vector<56x8xf32>
    %654 = tpu.matmul %635, %639, %cst_163 {dimension_numbers = #tpu.dot_dimension_numbers<[1], [0], [0], [1], [0, 0, 1, 1], [], []>} : vector<56x32xf32>, vector<32x8xf32>, vector<56x8xf32> -> vector<56x8xf32>
    %cst_164 = arith.constant 0.000000e+00 : f32
    %655 = vector.shape_cast %7 : vector<56x1xi1> to vector<56x1xi1>
    %656 = vector.broadcast %655 : vector<56x1xi1> to vector<56x8xi1>
    %657 = vector.broadcast %cst_164 : f32 to vector<56x8xf32>
    %658 = arith.select %656, %654, %657 : vector<56x8xi1>, vector<56x8xf32>
    %cst_165 = arith.constant dense<0.000000e+00> : vector<56x8xf32>
    %659 = tpu.matmul %635, %641, %cst_165 {dimension_numbers = #tpu.dot_dimension_numbers<[1], [0], [0], [1], [0, 0, 1, 1], [], []>} : vector<56x32xf32>, vector<32x8xf32>, vector<56x8xf32> -> vector<56x8xf32>
    %cst_166 = arith.constant 0.000000e+00 : f32
    %660 = vector.shape_cast %7 : vector<56x1xi1> to vector<56x1xi1>
    %661 = vector.broadcast %660 : vector<56x1xi1> to vector<56x8xi1>
    %662 = vector.broadcast %cst_166 : f32 to vector<56x8xf32>
    %663 = arith.select %661, %659, %662 : vector<56x8xi1>, vector<56x8xf32>
    %664 = tpu.transpose %663, [1, 0] : vector<56x8xf32> -> vector<8x56xf32>
    %cst_167 = arith.constant dense<0xFF800000> : vector<8xf32>
    %665 = vector.multi_reduction <maximumf>, %663, %cst_167 [0] : vector<56x8xf32> to vector<8xf32>
    %666 = vector.shape_cast %665 : vector<8xf32> to vector<1x8xf32>
    %cst_168 = arith.constant 0.000000e+00 : f32
    %667 = vector.broadcast %cst_168 : f32 to vector<56x8xf32>
    %668 = vector.extract_strided_slice %658 {offsets = [0, 0], sizes = [56, 1], strides = [1, 1]} : vector<56x8xf32> to vector<56x1xf32>
    %669 = vector.extract_strided_slice %663 {offsets = [0, 0], sizes = [56, 1], strides = [1, 1]} : vector<56x8xf32> to vector<56x1xf32>
    %670 = vector.extract_strided_slice %664 {offsets = [0, 0], sizes = [1, 56], strides = [1, 1]} : vector<8x56xf32> to vector<1x56xf32>
    %671 = vector.extract_strided_slice %666 {offsets = [0, 0], sizes = [1, 1], strides = [1, 1]} : vector<1x8xf32> to vector<1x1xf32>
    %672 = vector.broadcast %671 : vector<1x1xf32> to vector<56x1xf32>
    %673 = arith.addf %668, %672 : vector<56x1xf32>
    %cst_169 = arith.constant 0.000000e+00 : f32
    %674 = vector.broadcast %cst_169 : f32 to vector<56x1xf32>
    %675 = arith.cmpf oge, %673, %674 : vector<56x1xf32>
    %cst_170 = arith.constant 2.000000e-01 : f32
    %676 = vector.broadcast %cst_170 : f32 to vector<56x1xf32>
    %677 = arith.mulf %676, %673 : vector<56x1xf32>
    %678 = arith.select %675, %673, %677 : vector<56x1xi1>, vector<56x1xf32>
    %679 = vector.broadcast %671 : vector<1x1xf32> to vector<56x1xf32>
    %680 = arith.addf %668, %679 : vector<56x1xf32>
    %681 = arith.subf %680, %678 : vector<56x1xf32>
    %682 = math.exp %681 : vector<56x1xf32>
    %683 = vector.broadcast %671 : vector<1x1xf32> to vector<56x1xf32>
    %684 = arith.addf %668, %683 : vector<56x1xf32>
    %cst_171 = arith.constant 2.000000e-01 : f32
    %685 = vector.broadcast %cst_171 : f32 to vector<56x1xf32>
    %686 = arith.mulf %685, %684 : vector<56x1xf32>
    %687 = arith.subf %686, %678 : vector<56x1xf32>
    %688 = math.exp %687 : vector<56x1xf32>
    %689 = vector.broadcast %671 : vector<1x1xf32> to vector<1x56xf32>
    %690 = arith.subf %670, %689 : vector<1x56xf32>
    %691 = math.exp %690 : vector<1x56xf32>
    %692 = vector.broadcast %671 : vector<1x1xf32> to vector<1x56xf32>
    %693 = arith.subf %670, %692 : vector<1x56xf32>
    %cst_172 = arith.constant 2.000000e-01 : f32
    %694 = vector.broadcast %cst_172 : f32 to vector<1x56xf32>
    %695 = arith.mulf %694, %693 : vector<1x56xf32>
    %696 = math.exp %695 : vector<1x56xf32>
    %697 = arith.addf %668, %669 : vector<56x1xf32>
    %cst_173 = arith.constant 0.000000e+00 : f32
    %698 = vector.broadcast %cst_173 : f32 to vector<56x1xf32>
    %699 = arith.cmpf oge, %697, %698 : vector<56x1xf32>
    %cst_174 = arith.constant 2.000000e-01 : f32
    %700 = vector.broadcast %cst_174 : f32 to vector<56x1xf32>
    %701 = arith.mulf %700, %697 : vector<56x1xf32>
    %702 = arith.select %699, %697, %701 : vector<56x1xi1>, vector<56x1xf32>
    %703 = arith.subf %702, %678 : vector<56x1xf32>
    %704 = math.exp %703 : vector<56x1xf32>
    %705 = vector.broadcast %668 : vector<56x1xf32> to vector<56x56xf32>
    %706 = vector.broadcast %670 : vector<1x56xf32> to vector<56x56xf32>
    %707 = arith.addf %705, %706 : vector<56x56xf32>
    %cst_175 = arith.constant 0.000000e+00 : f32
    %708 = vector.broadcast %cst_175 : f32 to vector<56x56xf32>
    %709 = arith.cmpf oge, %707, %708 : vector<56x56xf32>
    %cst_176 = arith.constant 0.000000e+00 : f32
    %710 = vector.shape_cast %691 : vector<1x56xf32> to vector<1x56xf32>
    %711 = vector.broadcast %710 : vector<1x56xf32> to vector<56x56xf32>
    %712 = vector.broadcast %cst_176 : f32 to vector<56x56xf32>
    %713 = arith.select %709, %711, %712 : vector<56x56xi1>, vector<56x56xf32>
    %714 = arith.mulf %11, %713 : vector<56x56xf32>
    %cst_177 = arith.constant 0.000000e+00 : f32
    %715 = vector.broadcast %cst_177 : f32 to vector<56x56xf32>
    %716 = vector.shape_cast %696 : vector<1x56xf32> to vector<1x56xf32>
    %717 = vector.broadcast %716 : vector<1x56xf32> to vector<56x56xf32>
    %718 = arith.select %709, %715, %717 : vector<56x56xi1>, vector<56x56xf32>
    %719 = arith.mulf %11, %718 : vector<56x56xf32>
    %cst_178 = arith.constant dense<0.000000e+00> : vector<56xf32>
    %720 = vector.multi_reduction <add>, %714, %cst_178 [1] : vector<56x56xf32> to vector<56xf32>
    %721 = vector.shape_cast %720 : vector<56xf32> to vector<56x1xf32>
    %cst_179 = arith.constant dense<0.000000e+00> : vector<56xf32>
    %722 = vector.multi_reduction <add>, %719, %cst_179 [1] : vector<56x56xf32> to vector<56xf32>
    %723 = vector.shape_cast %722 : vector<56xf32> to vector<56x1xf32>
    %724 = arith.mulf %682, %721 : vector<56x1xf32>
    %725 = arith.mulf %688, %723 : vector<56x1xf32>
    %726 = arith.addf %724, %725 : vector<56x1xf32>
    %cst_180 = arith.constant 1.000000e-30 : f32
    %727 = vector.broadcast %cst_180 : f32 to vector<56x1xf32>
    %728 = arith.maximumf %726, %727 : vector<56x1xf32>
    %729 = tpu.reciprocal %728 {approx = true} : vector<56x1xf32> -> vector<56x1xf32>
    %730 = arith.mulf %704, %729 : vector<56x1xf32>
    %c0_i32_181 = arith.constant 0 : i32
    %731 = vector.broadcast %c0_i32_181 : i32 to vector<1x8xi32>
    %732 = arith.cmpi eq, %4, %731 : vector<1x8xi32>
    %733 = arith.extui %732 : vector<1x8xi1> to vector<1x8xi32>
    %734 = arith.sitofp %733 : vector<1x8xi32> to vector<1x8xf32>
    %735 = vector.broadcast %730 : vector<56x1xf32> to vector<56x8xf32>
    %736 = vector.broadcast %734 : vector<1x8xf32> to vector<56x8xf32>
    %737 = arith.mulf %735, %736 : vector<56x8xf32>
    %738 = arith.addf %667, %737 : vector<56x8xf32>
    %739 = vector.extract_strided_slice %658 {offsets = [0, 1], sizes = [56, 1], strides = [1, 1]} : vector<56x8xf32> to vector<56x1xf32>
    %740 = vector.extract_strided_slice %663 {offsets = [0, 1], sizes = [56, 1], strides = [1, 1]} : vector<56x8xf32> to vector<56x1xf32>
    %741 = vector.extract_strided_slice %664 {offsets = [1, 0], sizes = [1, 56], strides = [1, 1]} : vector<8x56xf32> to vector<1x56xf32>
    %742 = vector.extract_strided_slice %666 {offsets = [0, 1], sizes = [1, 1], strides = [1, 1]} : vector<1x8xf32> to vector<1x1xf32>
    %743 = vector.broadcast %742 : vector<1x1xf32> to vector<56x1xf32>
    %744 = arith.addf %739, %743 : vector<56x1xf32>
    %cst_182 = arith.constant 0.000000e+00 : f32
    %745 = vector.broadcast %cst_182 : f32 to vector<56x1xf32>
    %746 = arith.cmpf oge, %744, %745 : vector<56x1xf32>
    %cst_183 = arith.constant 2.000000e-01 : f32
    %747 = vector.broadcast %cst_183 : f32 to vector<56x1xf32>
    %748 = arith.mulf %747, %744 : vector<56x1xf32>
    %749 = arith.select %746, %744, %748 : vector<56x1xi1>, vector<56x1xf32>
    %750 = vector.broadcast %742 : vector<1x1xf32> to vector<56x1xf32>
    %751 = arith.addf %739, %750 : vector<56x1xf32>
    %752 = arith.subf %751, %749 : vector<56x1xf32>
    %753 = math.exp %752 : vector<56x1xf32>
    %754 = vector.broadcast %742 : vector<1x1xf32> to vector<56x1xf32>
    %755 = arith.addf %739, %754 : vector<56x1xf32>
    %cst_184 = arith.constant 2.000000e-01 : f32
    %756 = vector.broadcast %cst_184 : f32 to vector<56x1xf32>
    %757 = arith.mulf %756, %755 : vector<56x1xf32>
    %758 = arith.subf %757, %749 : vector<56x1xf32>
    %759 = math.exp %758 : vector<56x1xf32>
    %760 = vector.broadcast %742 : vector<1x1xf32> to vector<1x56xf32>
    %761 = arith.subf %741, %760 : vector<1x56xf32>
    %762 = math.exp %761 : vector<1x56xf32>
    %763 = vector.broadcast %742 : vector<1x1xf32> to vector<1x56xf32>
    %764 = arith.subf %741, %763 : vector<1x56xf32>
    %cst_185 = arith.constant 2.000000e-01 : f32
    %765 = vector.broadcast %cst_185 : f32 to vector<1x56xf32>
    %766 = arith.mulf %765, %764 : vector<1x56xf32>
    %767 = math.exp %766 : vector<1x56xf32>
    %768 = arith.addf %739, %740 : vector<56x1xf32>
    %cst_186 = arith.constant 0.000000e+00 : f32
    %769 = vector.broadcast %cst_186 : f32 to vector<56x1xf32>
    %770 = arith.cmpf oge, %768, %769 : vector<56x1xf32>
    %cst_187 = arith.constant 2.000000e-01 : f32
    %771 = vector.broadcast %cst_187 : f32 to vector<56x1xf32>
    %772 = arith.mulf %771, %768 : vector<56x1xf32>
    %773 = arith.select %770, %768, %772 : vector<56x1xi1>, vector<56x1xf32>
    %774 = arith.subf %773, %749 : vector<56x1xf32>
    %775 = math.exp %774 : vector<56x1xf32>
    %776 = vector.broadcast %739 : vector<56x1xf32> to vector<56x56xf32>
    %777 = vector.broadcast %741 : vector<1x56xf32> to vector<56x56xf32>
    %778 = arith.addf %776, %777 : vector<56x56xf32>
    %cst_188 = arith.constant 0.000000e+00 : f32
    %779 = vector.broadcast %cst_188 : f32 to vector<56x56xf32>
    %780 = arith.cmpf oge, %778, %779 : vector<56x56xf32>
    %cst_189 = arith.constant 0.000000e+00 : f32
    %781 = vector.shape_cast %762 : vector<1x56xf32> to vector<1x56xf32>
    %782 = vector.broadcast %781 : vector<1x56xf32> to vector<56x56xf32>
    %783 = vector.broadcast %cst_189 : f32 to vector<56x56xf32>
    %784 = arith.select %780, %782, %783 : vector<56x56xi1>, vector<56x56xf32>
    %785 = arith.mulf %11, %784 : vector<56x56xf32>
    %cst_190 = arith.constant 0.000000e+00 : f32
    %786 = vector.broadcast %cst_190 : f32 to vector<56x56xf32>
    %787 = vector.shape_cast %767 : vector<1x56xf32> to vector<1x56xf32>
    %788 = vector.broadcast %787 : vector<1x56xf32> to vector<56x56xf32>
    %789 = arith.select %780, %786, %788 : vector<56x56xi1>, vector<56x56xf32>
    %790 = arith.mulf %11, %789 : vector<56x56xf32>
    %cst_191 = arith.constant dense<0.000000e+00> : vector<56xf32>
    %791 = vector.multi_reduction <add>, %785, %cst_191 [1] : vector<56x56xf32> to vector<56xf32>
    %792 = vector.shape_cast %791 : vector<56xf32> to vector<56x1xf32>
    %cst_192 = arith.constant dense<0.000000e+00> : vector<56xf32>
    %793 = vector.multi_reduction <add>, %790, %cst_192 [1] : vector<56x56xf32> to vector<56xf32>
    %794 = vector.shape_cast %793 : vector<56xf32> to vector<56x1xf32>
    %795 = arith.mulf %753, %792 : vector<56x1xf32>
    %796 = arith.mulf %759, %794 : vector<56x1xf32>
    %797 = arith.addf %795, %796 : vector<56x1xf32>
    %cst_193 = arith.constant 1.000000e-30 : f32
    %798 = vector.broadcast %cst_193 : f32 to vector<56x1xf32>
    %799 = arith.maximumf %797, %798 : vector<56x1xf32>
    %800 = tpu.reciprocal %799 {approx = true} : vector<56x1xf32> -> vector<56x1xf32>
    %801 = arith.mulf %775, %800 : vector<56x1xf32>
    %c1_i32_194 = arith.constant 1 : i32
    %802 = vector.broadcast %c1_i32_194 : i32 to vector<1x8xi32>
    %803 = arith.cmpi eq, %4, %802 : vector<1x8xi32>
    %804 = arith.extui %803 : vector<1x8xi1> to vector<1x8xi32>
    %805 = arith.sitofp %804 : vector<1x8xi32> to vector<1x8xf32>
    %806 = vector.broadcast %801 : vector<56x1xf32> to vector<56x8xf32>
    %807 = vector.broadcast %805 : vector<1x8xf32> to vector<56x8xf32>
    %808 = arith.mulf %806, %807 : vector<56x8xf32>
    %809 = arith.addf %738, %808 : vector<56x8xf32>
    %810 = vector.extract_strided_slice %658 {offsets = [0, 2], sizes = [56, 1], strides = [1, 1]} : vector<56x8xf32> to vector<56x1xf32>
    %811 = vector.extract_strided_slice %663 {offsets = [0, 2], sizes = [56, 1], strides = [1, 1]} : vector<56x8xf32> to vector<56x1xf32>
    %812 = vector.extract_strided_slice %664 {offsets = [2, 0], sizes = [1, 56], strides = [1, 1]} : vector<8x56xf32> to vector<1x56xf32>
    %813 = vector.extract_strided_slice %666 {offsets = [0, 2], sizes = [1, 1], strides = [1, 1]} : vector<1x8xf32> to vector<1x1xf32>
    %814 = vector.broadcast %813 : vector<1x1xf32> to vector<56x1xf32>
    %815 = arith.addf %810, %814 : vector<56x1xf32>
    %cst_195 = arith.constant 0.000000e+00 : f32
    %816 = vector.broadcast %cst_195 : f32 to vector<56x1xf32>
    %817 = arith.cmpf oge, %815, %816 : vector<56x1xf32>
    %cst_196 = arith.constant 2.000000e-01 : f32
    %818 = vector.broadcast %cst_196 : f32 to vector<56x1xf32>
    %819 = arith.mulf %818, %815 : vector<56x1xf32>
    %820 = arith.select %817, %815, %819 : vector<56x1xi1>, vector<56x1xf32>
    %821 = vector.broadcast %813 : vector<1x1xf32> to vector<56x1xf32>
    %822 = arith.addf %810, %821 : vector<56x1xf32>
    %823 = arith.subf %822, %820 : vector<56x1xf32>
    %824 = math.exp %823 : vector<56x1xf32>
    %825 = vector.broadcast %813 : vector<1x1xf32> to vector<56x1xf32>
    %826 = arith.addf %810, %825 : vector<56x1xf32>
    %cst_197 = arith.constant 2.000000e-01 : f32
    %827 = vector.broadcast %cst_197 : f32 to vector<56x1xf32>
    %828 = arith.mulf %827, %826 : vector<56x1xf32>
    %829 = arith.subf %828, %820 : vector<56x1xf32>
    %830 = math.exp %829 : vector<56x1xf32>
    %831 = vector.broadcast %813 : vector<1x1xf32> to vector<1x56xf32>
    %832 = arith.subf %812, %831 : vector<1x56xf32>
    %833 = math.exp %832 : vector<1x56xf32>
    %834 = vector.broadcast %813 : vector<1x1xf32> to vector<1x56xf32>
    %835 = arith.subf %812, %834 : vector<1x56xf32>
    %cst_198 = arith.constant 2.000000e-01 : f32
    %836 = vector.broadcast %cst_198 : f32 to vector<1x56xf32>
    %837 = arith.mulf %836, %835 : vector<1x56xf32>
    %838 = math.exp %837 : vector<1x56xf32>
    %839 = arith.addf %810, %811 : vector<56x1xf32>
    %cst_199 = arith.constant 0.000000e+00 : f32
    %840 = vector.broadcast %cst_199 : f32 to vector<56x1xf32>
    %841 = arith.cmpf oge, %839, %840 : vector<56x1xf32>
    %cst_200 = arith.constant 2.000000e-01 : f32
    %842 = vector.broadcast %cst_200 : f32 to vector<56x1xf32>
    %843 = arith.mulf %842, %839 : vector<56x1xf32>
    %844 = arith.select %841, %839, %843 : vector<56x1xi1>, vector<56x1xf32>
    %845 = arith.subf %844, %820 : vector<56x1xf32>
    %846 = math.exp %845 : vector<56x1xf32>
    %847 = vector.broadcast %810 : vector<56x1xf32> to vector<56x56xf32>
    %848 = vector.broadcast %812 : vector<1x56xf32> to vector<56x56xf32>
    %849 = arith.addf %847, %848 : vector<56x56xf32>
    %cst_201 = arith.constant 0.000000e+00 : f32
    %850 = vector.broadcast %cst_201 : f32 to vector<56x56xf32>
    %851 = arith.cmpf oge, %849, %850 : vector<56x56xf32>
    %cst_202 = arith.constant 0.000000e+00 : f32
    %852 = vector.shape_cast %833 : vector<1x56xf32> to vector<1x56xf32>
    %853 = vector.broadcast %852 : vector<1x56xf32> to vector<56x56xf32>
    %854 = vector.broadcast %cst_202 : f32 to vector<56x56xf32>
    %855 = arith.select %851, %853, %854 : vector<56x56xi1>, vector<56x56xf32>
    %856 = arith.mulf %11, %855 : vector<56x56xf32>
    %cst_203 = arith.constant 0.000000e+00 : f32
    %857 = vector.broadcast %cst_203 : f32 to vector<56x56xf32>
    %858 = vector.shape_cast %838 : vector<1x56xf32> to vector<1x56xf32>
    %859 = vector.broadcast %858 : vector<1x56xf32> to vector<56x56xf32>
    %860 = arith.select %851, %857, %859 : vector<56x56xi1>, vector<56x56xf32>
    %861 = arith.mulf %11, %860 : vector<56x56xf32>
    %cst_204 = arith.constant dense<0.000000e+00> : vector<56xf32>
    %862 = vector.multi_reduction <add>, %856, %cst_204 [1] : vector<56x56xf32> to vector<56xf32>
    %863 = vector.shape_cast %862 : vector<56xf32> to vector<56x1xf32>
    %cst_205 = arith.constant dense<0.000000e+00> : vector<56xf32>
    %864 = vector.multi_reduction <add>, %861, %cst_205 [1] : vector<56x56xf32> to vector<56xf32>
    %865 = vector.shape_cast %864 : vector<56xf32> to vector<56x1xf32>
    %866 = arith.mulf %824, %863 : vector<56x1xf32>
    %867 = arith.mulf %830, %865 : vector<56x1xf32>
    %868 = arith.addf %866, %867 : vector<56x1xf32>
    %cst_206 = arith.constant 1.000000e-30 : f32
    %869 = vector.broadcast %cst_206 : f32 to vector<56x1xf32>
    %870 = arith.maximumf %868, %869 : vector<56x1xf32>
    %871 = tpu.reciprocal %870 {approx = true} : vector<56x1xf32> -> vector<56x1xf32>
    %872 = arith.mulf %846, %871 : vector<56x1xf32>
    %c2_i32_207 = arith.constant 2 : i32
    %873 = vector.broadcast %c2_i32_207 : i32 to vector<1x8xi32>
    %874 = arith.cmpi eq, %4, %873 : vector<1x8xi32>
    %875 = arith.extui %874 : vector<1x8xi1> to vector<1x8xi32>
    %876 = arith.sitofp %875 : vector<1x8xi32> to vector<1x8xf32>
    %877 = vector.broadcast %872 : vector<56x1xf32> to vector<56x8xf32>
    %878 = vector.broadcast %876 : vector<1x8xf32> to vector<56x8xf32>
    %879 = arith.mulf %877, %878 : vector<56x8xf32>
    %880 = arith.addf %809, %879 : vector<56x8xf32>
    %881 = vector.extract_strided_slice %658 {offsets = [0, 3], sizes = [56, 1], strides = [1, 1]} : vector<56x8xf32> to vector<56x1xf32>
    %882 = vector.extract_strided_slice %663 {offsets = [0, 3], sizes = [56, 1], strides = [1, 1]} : vector<56x8xf32> to vector<56x1xf32>
    %883 = vector.extract_strided_slice %664 {offsets = [3, 0], sizes = [1, 56], strides = [1, 1]} : vector<8x56xf32> to vector<1x56xf32>
    %884 = vector.extract_strided_slice %666 {offsets = [0, 3], sizes = [1, 1], strides = [1, 1]} : vector<1x8xf32> to vector<1x1xf32>
    %885 = vector.broadcast %884 : vector<1x1xf32> to vector<56x1xf32>
    %886 = arith.addf %881, %885 : vector<56x1xf32>
    %cst_208 = arith.constant 0.000000e+00 : f32
    %887 = vector.broadcast %cst_208 : f32 to vector<56x1xf32>
    %888 = arith.cmpf oge, %886, %887 : vector<56x1xf32>
    %cst_209 = arith.constant 2.000000e-01 : f32
    %889 = vector.broadcast %cst_209 : f32 to vector<56x1xf32>
    %890 = arith.mulf %889, %886 : vector<56x1xf32>
    %891 = arith.select %888, %886, %890 : vector<56x1xi1>, vector<56x1xf32>
    %892 = vector.broadcast %884 : vector<1x1xf32> to vector<56x1xf32>
    %893 = arith.addf %881, %892 : vector<56x1xf32>
    %894 = arith.subf %893, %891 : vector<56x1xf32>
    %895 = math.exp %894 : vector<56x1xf32>
    %896 = vector.broadcast %884 : vector<1x1xf32> to vector<56x1xf32>
    %897 = arith.addf %881, %896 : vector<56x1xf32>
    %cst_210 = arith.constant 2.000000e-01 : f32
    %898 = vector.broadcast %cst_210 : f32 to vector<56x1xf32>
    %899 = arith.mulf %898, %897 : vector<56x1xf32>
    %900 = arith.subf %899, %891 : vector<56x1xf32>
    %901 = math.exp %900 : vector<56x1xf32>
    %902 = vector.broadcast %884 : vector<1x1xf32> to vector<1x56xf32>
    %903 = arith.subf %883, %902 : vector<1x56xf32>
    %904 = math.exp %903 : vector<1x56xf32>
    %905 = vector.broadcast %884 : vector<1x1xf32> to vector<1x56xf32>
    %906 = arith.subf %883, %905 : vector<1x56xf32>
    %cst_211 = arith.constant 2.000000e-01 : f32
    %907 = vector.broadcast %cst_211 : f32 to vector<1x56xf32>
    %908 = arith.mulf %907, %906 : vector<1x56xf32>
    %909 = math.exp %908 : vector<1x56xf32>
    %910 = arith.addf %881, %882 : vector<56x1xf32>
    %cst_212 = arith.constant 0.000000e+00 : f32
    %911 = vector.broadcast %cst_212 : f32 to vector<56x1xf32>
    %912 = arith.cmpf oge, %910, %911 : vector<56x1xf32>
    %cst_213 = arith.constant 2.000000e-01 : f32
    %913 = vector.broadcast %cst_213 : f32 to vector<56x1xf32>
    %914 = arith.mulf %913, %910 : vector<56x1xf32>
    %915 = arith.select %912, %910, %914 : vector<56x1xi1>, vector<56x1xf32>
    %916 = arith.subf %915, %891 : vector<56x1xf32>
    %917 = math.exp %916 : vector<56x1xf32>
    %918 = vector.broadcast %881 : vector<56x1xf32> to vector<56x56xf32>
    %919 = vector.broadcast %883 : vector<1x56xf32> to vector<56x56xf32>
    %920 = arith.addf %918, %919 : vector<56x56xf32>
    %cst_214 = arith.constant 0.000000e+00 : f32
    %921 = vector.broadcast %cst_214 : f32 to vector<56x56xf32>
    %922 = arith.cmpf oge, %920, %921 : vector<56x56xf32>
    %cst_215 = arith.constant 0.000000e+00 : f32
    %923 = vector.shape_cast %904 : vector<1x56xf32> to vector<1x56xf32>
    %924 = vector.broadcast %923 : vector<1x56xf32> to vector<56x56xf32>
    %925 = vector.broadcast %cst_215 : f32 to vector<56x56xf32>
    %926 = arith.select %922, %924, %925 : vector<56x56xi1>, vector<56x56xf32>
    %927 = arith.mulf %11, %926 : vector<56x56xf32>
    %cst_216 = arith.constant 0.000000e+00 : f32
    %928 = vector.broadcast %cst_216 : f32 to vector<56x56xf32>
    %929 = vector.shape_cast %909 : vector<1x56xf32> to vector<1x56xf32>
    %930 = vector.broadcast %929 : vector<1x56xf32> to vector<56x56xf32>
    %931 = arith.select %922, %928, %930 : vector<56x56xi1>, vector<56x56xf32>
    %932 = arith.mulf %11, %931 : vector<56x56xf32>
    %cst_217 = arith.constant dense<0.000000e+00> : vector<56xf32>
    %933 = vector.multi_reduction <add>, %927, %cst_217 [1] : vector<56x56xf32> to vector<56xf32>
    %934 = vector.shape_cast %933 : vector<56xf32> to vector<56x1xf32>
    %cst_218 = arith.constant dense<0.000000e+00> : vector<56xf32>
    %935 = vector.multi_reduction <add>, %932, %cst_218 [1] : vector<56x56xf32> to vector<56xf32>
    %936 = vector.shape_cast %935 : vector<56xf32> to vector<56x1xf32>
    %937 = arith.mulf %895, %934 : vector<56x1xf32>
    %938 = arith.mulf %901, %936 : vector<56x1xf32>
    %939 = arith.addf %937, %938 : vector<56x1xf32>
    %cst_219 = arith.constant 1.000000e-30 : f32
    %940 = vector.broadcast %cst_219 : f32 to vector<56x1xf32>
    %941 = arith.maximumf %939, %940 : vector<56x1xf32>
    %942 = tpu.reciprocal %941 {approx = true} : vector<56x1xf32> -> vector<56x1xf32>
    %943 = arith.mulf %917, %942 : vector<56x1xf32>
    %c3_i32_220 = arith.constant 3 : i32
    %944 = vector.broadcast %c3_i32_220 : i32 to vector<1x8xi32>
    %945 = arith.cmpi eq, %4, %944 : vector<1x8xi32>
    %946 = arith.extui %945 : vector<1x8xi1> to vector<1x8xi32>
    %947 = arith.sitofp %946 : vector<1x8xi32> to vector<1x8xf32>
    %948 = vector.broadcast %943 : vector<56x1xf32> to vector<56x8xf32>
    %949 = vector.broadcast %947 : vector<1x8xf32> to vector<56x8xf32>
    %950 = arith.mulf %948, %949 : vector<56x8xf32>
    %951 = arith.addf %880, %950 : vector<56x8xf32>
    %952 = vector.extract_strided_slice %658 {offsets = [0, 4], sizes = [56, 1], strides = [1, 1]} : vector<56x8xf32> to vector<56x1xf32>
    %953 = vector.extract_strided_slice %663 {offsets = [0, 4], sizes = [56, 1], strides = [1, 1]} : vector<56x8xf32> to vector<56x1xf32>
    %954 = vector.extract_strided_slice %664 {offsets = [4, 0], sizes = [1, 56], strides = [1, 1]} : vector<8x56xf32> to vector<1x56xf32>
    %955 = vector.extract_strided_slice %666 {offsets = [0, 4], sizes = [1, 1], strides = [1, 1]} : vector<1x8xf32> to vector<1x1xf32>
    %956 = vector.broadcast %955 : vector<1x1xf32> to vector<56x1xf32>
    %957 = arith.addf %952, %956 : vector<56x1xf32>
    %cst_221 = arith.constant 0.000000e+00 : f32
    %958 = vector.broadcast %cst_221 : f32 to vector<56x1xf32>
    %959 = arith.cmpf oge, %957, %958 : vector<56x1xf32>
    %cst_222 = arith.constant 2.000000e-01 : f32
    %960 = vector.broadcast %cst_222 : f32 to vector<56x1xf32>
    %961 = arith.mulf %960, %957 : vector<56x1xf32>
    %962 = arith.select %959, %957, %961 : vector<56x1xi1>, vector<56x1xf32>
    %963 = vector.broadcast %955 : vector<1x1xf32> to vector<56x1xf32>
    %964 = arith.addf %952, %963 : vector<56x1xf32>
    %965 = arith.subf %964, %962 : vector<56x1xf32>
    %966 = math.exp %965 : vector<56x1xf32>
    %967 = vector.broadcast %955 : vector<1x1xf32> to vector<56x1xf32>
    %968 = arith.addf %952, %967 : vector<56x1xf32>
    %cst_223 = arith.constant 2.000000e-01 : f32
    %969 = vector.broadcast %cst_223 : f32 to vector<56x1xf32>
    %970 = arith.mulf %969, %968 : vector<56x1xf32>
    %971 = arith.subf %970, %962 : vector<56x1xf32>
    %972 = math.exp %971 : vector<56x1xf32>
    %973 = vector.broadcast %955 : vector<1x1xf32> to vector<1x56xf32>
    %974 = arith.subf %954, %973 : vector<1x56xf32>
    %975 = math.exp %974 : vector<1x56xf32>
    %976 = vector.broadcast %955 : vector<1x1xf32> to vector<1x56xf32>
    %977 = arith.subf %954, %976 : vector<1x56xf32>
    %cst_224 = arith.constant 2.000000e-01 : f32
    %978 = vector.broadcast %cst_224 : f32 to vector<1x56xf32>
    %979 = arith.mulf %978, %977 : vector<1x56xf32>
    %980 = math.exp %979 : vector<1x56xf32>
    %981 = arith.addf %952, %953 : vector<56x1xf32>
    %cst_225 = arith.constant 0.000000e+00 : f32
    %982 = vector.broadcast %cst_225 : f32 to vector<56x1xf32>
    %983 = arith.cmpf oge, %981, %982 : vector<56x1xf32>
    %cst_226 = arith.constant 2.000000e-01 : f32
    %984 = vector.broadcast %cst_226 : f32 to vector<56x1xf32>
    %985 = arith.mulf %984, %981 : vector<56x1xf32>
    %986 = arith.select %983, %981, %985 : vector<56x1xi1>, vector<56x1xf32>
    %987 = arith.subf %986, %962 : vector<56x1xf32>
    %988 = math.exp %987 : vector<56x1xf32>
    %989 = vector.broadcast %952 : vector<56x1xf32> to vector<56x56xf32>
    %990 = vector.broadcast %954 : vector<1x56xf32> to vector<56x56xf32>
    %991 = arith.addf %989, %990 : vector<56x56xf32>
    %cst_227 = arith.constant 0.000000e+00 : f32
    %992 = vector.broadcast %cst_227 : f32 to vector<56x56xf32>
    %993 = arith.cmpf oge, %991, %992 : vector<56x56xf32>
    %cst_228 = arith.constant 0.000000e+00 : f32
    %994 = vector.shape_cast %975 : vector<1x56xf32> to vector<1x56xf32>
    %995 = vector.broadcast %994 : vector<1x56xf32> to vector<56x56xf32>
    %996 = vector.broadcast %cst_228 : f32 to vector<56x56xf32>
    %997 = arith.select %993, %995, %996 : vector<56x56xi1>, vector<56x56xf32>
    %998 = arith.mulf %11, %997 : vector<56x56xf32>
    %cst_229 = arith.constant 0.000000e+00 : f32
    %999 = vector.broadcast %cst_229 : f32 to vector<56x56xf32>
    %1000 = vector.shape_cast %980 : vector<1x56xf32> to vector<1x56xf32>
    %1001 = vector.broadcast %1000 : vector<1x56xf32> to vector<56x56xf32>
    %1002 = arith.select %993, %999, %1001 : vector<56x56xi1>, vector<56x56xf32>
    %1003 = arith.mulf %11, %1002 : vector<56x56xf32>
    %cst_230 = arith.constant dense<0.000000e+00> : vector<56xf32>
    %1004 = vector.multi_reduction <add>, %998, %cst_230 [1] : vector<56x56xf32> to vector<56xf32>
    %1005 = vector.shape_cast %1004 : vector<56xf32> to vector<56x1xf32>
    %cst_231 = arith.constant dense<0.000000e+00> : vector<56xf32>
    %1006 = vector.multi_reduction <add>, %1003, %cst_231 [1] : vector<56x56xf32> to vector<56xf32>
    %1007 = vector.shape_cast %1006 : vector<56xf32> to vector<56x1xf32>
    %1008 = arith.mulf %966, %1005 : vector<56x1xf32>
    %1009 = arith.mulf %972, %1007 : vector<56x1xf32>
    %1010 = arith.addf %1008, %1009 : vector<56x1xf32>
    %cst_232 = arith.constant 1.000000e-30 : f32
    %1011 = vector.broadcast %cst_232 : f32 to vector<56x1xf32>
    %1012 = arith.maximumf %1010, %1011 : vector<56x1xf32>
    %1013 = tpu.reciprocal %1012 {approx = true} : vector<56x1xf32> -> vector<56x1xf32>
    %1014 = arith.mulf %988, %1013 : vector<56x1xf32>
    %c4_i32_233 = arith.constant 4 : i32
    %1015 = vector.broadcast %c4_i32_233 : i32 to vector<1x8xi32>
    %1016 = arith.cmpi eq, %4, %1015 : vector<1x8xi32>
    %1017 = arith.extui %1016 : vector<1x8xi1> to vector<1x8xi32>
    %1018 = arith.sitofp %1017 : vector<1x8xi32> to vector<1x8xf32>
    %1019 = vector.broadcast %1014 : vector<56x1xf32> to vector<56x8xf32>
    %1020 = vector.broadcast %1018 : vector<1x8xf32> to vector<56x8xf32>
    %1021 = arith.mulf %1019, %1020 : vector<56x8xf32>
    %1022 = arith.addf %951, %1021 : vector<56x8xf32>
    %1023 = vector.extract_strided_slice %658 {offsets = [0, 5], sizes = [56, 1], strides = [1, 1]} : vector<56x8xf32> to vector<56x1xf32>
    %1024 = vector.extract_strided_slice %663 {offsets = [0, 5], sizes = [56, 1], strides = [1, 1]} : vector<56x8xf32> to vector<56x1xf32>
    %1025 = vector.extract_strided_slice %664 {offsets = [5, 0], sizes = [1, 56], strides = [1, 1]} : vector<8x56xf32> to vector<1x56xf32>
    %1026 = vector.extract_strided_slice %666 {offsets = [0, 5], sizes = [1, 1], strides = [1, 1]} : vector<1x8xf32> to vector<1x1xf32>
    %1027 = vector.broadcast %1026 : vector<1x1xf32> to vector<56x1xf32>
    %1028 = arith.addf %1023, %1027 : vector<56x1xf32>
    %cst_234 = arith.constant 0.000000e+00 : f32
    %1029 = vector.broadcast %cst_234 : f32 to vector<56x1xf32>
    %1030 = arith.cmpf oge, %1028, %1029 : vector<56x1xf32>
    %cst_235 = arith.constant 2.000000e-01 : f32
    %1031 = vector.broadcast %cst_235 : f32 to vector<56x1xf32>
    %1032 = arith.mulf %1031, %1028 : vector<56x1xf32>
    %1033 = arith.select %1030, %1028, %1032 : vector<56x1xi1>, vector<56x1xf32>
    %1034 = vector.broadcast %1026 : vector<1x1xf32> to vector<56x1xf32>
    %1035 = arith.addf %1023, %1034 : vector<56x1xf32>
    %1036 = arith.subf %1035, %1033 : vector<56x1xf32>
    %1037 = math.exp %1036 : vector<56x1xf32>
    %1038 = vector.broadcast %1026 : vector<1x1xf32> to vector<56x1xf32>
    %1039 = arith.addf %1023, %1038 : vector<56x1xf32>
    %cst_236 = arith.constant 2.000000e-01 : f32
    %1040 = vector.broadcast %cst_236 : f32 to vector<56x1xf32>
    %1041 = arith.mulf %1040, %1039 : vector<56x1xf32>
    %1042 = arith.subf %1041, %1033 : vector<56x1xf32>
    %1043 = math.exp %1042 : vector<56x1xf32>
    %1044 = vector.broadcast %1026 : vector<1x1xf32> to vector<1x56xf32>
    %1045 = arith.subf %1025, %1044 : vector<1x56xf32>
    %1046 = math.exp %1045 : vector<1x56xf32>
    %1047 = vector.broadcast %1026 : vector<1x1xf32> to vector<1x56xf32>
    %1048 = arith.subf %1025, %1047 : vector<1x56xf32>
    %cst_237 = arith.constant 2.000000e-01 : f32
    %1049 = vector.broadcast %cst_237 : f32 to vector<1x56xf32>
    %1050 = arith.mulf %1049, %1048 : vector<1x56xf32>
    %1051 = math.exp %1050 : vector<1x56xf32>
    %1052 = arith.addf %1023, %1024 : vector<56x1xf32>
    %cst_238 = arith.constant 0.000000e+00 : f32
    %1053 = vector.broadcast %cst_238 : f32 to vector<56x1xf32>
    %1054 = arith.cmpf oge, %1052, %1053 : vector<56x1xf32>
    %cst_239 = arith.constant 2.000000e-01 : f32
    %1055 = vector.broadcast %cst_239 : f32 to vector<56x1xf32>
    %1056 = arith.mulf %1055, %1052 : vector<56x1xf32>
    %1057 = arith.select %1054, %1052, %1056 : vector<56x1xi1>, vector<56x1xf32>
    %1058 = arith.subf %1057, %1033 : vector<56x1xf32>
    %1059 = math.exp %1058 : vector<56x1xf32>
    %1060 = vector.broadcast %1023 : vector<56x1xf32> to vector<56x56xf32>
    %1061 = vector.broadcast %1025 : vector<1x56xf32> to vector<56x56xf32>
    %1062 = arith.addf %1060, %1061 : vector<56x56xf32>
    %cst_240 = arith.constant 0.000000e+00 : f32
    %1063 = vector.broadcast %cst_240 : f32 to vector<56x56xf32>
    %1064 = arith.cmpf oge, %1062, %1063 : vector<56x56xf32>
    %cst_241 = arith.constant 0.000000e+00 : f32
    %1065 = vector.shape_cast %1046 : vector<1x56xf32> to vector<1x56xf32>
    %1066 = vector.broadcast %1065 : vector<1x56xf32> to vector<56x56xf32>
    %1067 = vector.broadcast %cst_241 : f32 to vector<56x56xf32>
    %1068 = arith.select %1064, %1066, %1067 : vector<56x56xi1>, vector<56x56xf32>
    %1069 = arith.mulf %11, %1068 : vector<56x56xf32>
    %cst_242 = arith.constant 0.000000e+00 : f32
    %1070 = vector.broadcast %cst_242 : f32 to vector<56x56xf32>
    %1071 = vector.shape_cast %1051 : vector<1x56xf32> to vector<1x56xf32>
    %1072 = vector.broadcast %1071 : vector<1x56xf32> to vector<56x56xf32>
    %1073 = arith.select %1064, %1070, %1072 : vector<56x56xi1>, vector<56x56xf32>
    %1074 = arith.mulf %11, %1073 : vector<56x56xf32>
    %cst_243 = arith.constant dense<0.000000e+00> : vector<56xf32>
    %1075 = vector.multi_reduction <add>, %1069, %cst_243 [1] : vector<56x56xf32> to vector<56xf32>
    %1076 = vector.shape_cast %1075 : vector<56xf32> to vector<56x1xf32>
    %cst_244 = arith.constant dense<0.000000e+00> : vector<56xf32>
    %1077 = vector.multi_reduction <add>, %1074, %cst_244 [1] : vector<56x56xf32> to vector<56xf32>
    %1078 = vector.shape_cast %1077 : vector<56xf32> to vector<56x1xf32>
    %1079 = arith.mulf %1037, %1076 : vector<56x1xf32>
    %1080 = arith.mulf %1043, %1078 : vector<56x1xf32>
    %1081 = arith.addf %1079, %1080 : vector<56x1xf32>
    %cst_245 = arith.constant 1.000000e-30 : f32
    %1082 = vector.broadcast %cst_245 : f32 to vector<56x1xf32>
    %1083 = arith.maximumf %1081, %1082 : vector<56x1xf32>
    %1084 = tpu.reciprocal %1083 {approx = true} : vector<56x1xf32> -> vector<56x1xf32>
    %1085 = arith.mulf %1059, %1084 : vector<56x1xf32>
    %c5_i32_246 = arith.constant 5 : i32
    %1086 = vector.broadcast %c5_i32_246 : i32 to vector<1x8xi32>
    %1087 = arith.cmpi eq, %4, %1086 : vector<1x8xi32>
    %1088 = arith.extui %1087 : vector<1x8xi1> to vector<1x8xi32>
    %1089 = arith.sitofp %1088 : vector<1x8xi32> to vector<1x8xf32>
    %1090 = vector.broadcast %1085 : vector<56x1xf32> to vector<56x8xf32>
    %1091 = vector.broadcast %1089 : vector<1x8xf32> to vector<56x8xf32>
    %1092 = arith.mulf %1090, %1091 : vector<56x8xf32>
    %1093 = arith.addf %1022, %1092 : vector<56x8xf32>
    %1094 = vector.extract_strided_slice %658 {offsets = [0, 6], sizes = [56, 1], strides = [1, 1]} : vector<56x8xf32> to vector<56x1xf32>
    %1095 = vector.extract_strided_slice %663 {offsets = [0, 6], sizes = [56, 1], strides = [1, 1]} : vector<56x8xf32> to vector<56x1xf32>
    %1096 = vector.extract_strided_slice %664 {offsets = [6, 0], sizes = [1, 56], strides = [1, 1]} : vector<8x56xf32> to vector<1x56xf32>
    %1097 = vector.extract_strided_slice %666 {offsets = [0, 6], sizes = [1, 1], strides = [1, 1]} : vector<1x8xf32> to vector<1x1xf32>
    %1098 = vector.broadcast %1097 : vector<1x1xf32> to vector<56x1xf32>
    %1099 = arith.addf %1094, %1098 : vector<56x1xf32>
    %cst_247 = arith.constant 0.000000e+00 : f32
    %1100 = vector.broadcast %cst_247 : f32 to vector<56x1xf32>
    %1101 = arith.cmpf oge, %1099, %1100 : vector<56x1xf32>
    %cst_248 = arith.constant 2.000000e-01 : f32
    %1102 = vector.broadcast %cst_248 : f32 to vector<56x1xf32>
    %1103 = arith.mulf %1102, %1099 : vector<56x1xf32>
    %1104 = arith.select %1101, %1099, %1103 : vector<56x1xi1>, vector<56x1xf32>
    %1105 = vector.broadcast %1097 : vector<1x1xf32> to vector<56x1xf32>
    %1106 = arith.addf %1094, %1105 : vector<56x1xf32>
    %1107 = arith.subf %1106, %1104 : vector<56x1xf32>
    %1108 = math.exp %1107 : vector<56x1xf32>
    %1109 = vector.broadcast %1097 : vector<1x1xf32> to vector<56x1xf32>
    %1110 = arith.addf %1094, %1109 : vector<56x1xf32>
    %cst_249 = arith.constant 2.000000e-01 : f32
    %1111 = vector.broadcast %cst_249 : f32 to vector<56x1xf32>
    %1112 = arith.mulf %1111, %1110 : vector<56x1xf32>
    %1113 = arith.subf %1112, %1104 : vector<56x1xf32>
    %1114 = math.exp %1113 : vector<56x1xf32>
    %1115 = vector.broadcast %1097 : vector<1x1xf32> to vector<1x56xf32>
    %1116 = arith.subf %1096, %1115 : vector<1x56xf32>
    %1117 = math.exp %1116 : vector<1x56xf32>
    %1118 = vector.broadcast %1097 : vector<1x1xf32> to vector<1x56xf32>
    %1119 = arith.subf %1096, %1118 : vector<1x56xf32>
    %cst_250 = arith.constant 2.000000e-01 : f32
    %1120 = vector.broadcast %cst_250 : f32 to vector<1x56xf32>
    %1121 = arith.mulf %1120, %1119 : vector<1x56xf32>
    %1122 = math.exp %1121 : vector<1x56xf32>
    %1123 = arith.addf %1094, %1095 : vector<56x1xf32>
    %cst_251 = arith.constant 0.000000e+00 : f32
    %1124 = vector.broadcast %cst_251 : f32 to vector<56x1xf32>
    %1125 = arith.cmpf oge, %1123, %1124 : vector<56x1xf32>
    %cst_252 = arith.constant 2.000000e-01 : f32
    %1126 = vector.broadcast %cst_252 : f32 to vector<56x1xf32>
    %1127 = arith.mulf %1126, %1123 : vector<56x1xf32>
    %1128 = arith.select %1125, %1123, %1127 : vector<56x1xi1>, vector<56x1xf32>
    %1129 = arith.subf %1128, %1104 : vector<56x1xf32>
    %1130 = math.exp %1129 : vector<56x1xf32>
    %1131 = vector.broadcast %1094 : vector<56x1xf32> to vector<56x56xf32>
    %1132 = vector.broadcast %1096 : vector<1x56xf32> to vector<56x56xf32>
    %1133 = arith.addf %1131, %1132 : vector<56x56xf32>
    %cst_253 = arith.constant 0.000000e+00 : f32
    %1134 = vector.broadcast %cst_253 : f32 to vector<56x56xf32>
    %1135 = arith.cmpf oge, %1133, %1134 : vector<56x56xf32>
    %cst_254 = arith.constant 0.000000e+00 : f32
    %1136 = vector.shape_cast %1117 : vector<1x56xf32> to vector<1x56xf32>
    %1137 = vector.broadcast %1136 : vector<1x56xf32> to vector<56x56xf32>
    %1138 = vector.broadcast %cst_254 : f32 to vector<56x56xf32>
    %1139 = arith.select %1135, %1137, %1138 : vector<56x56xi1>, vector<56x56xf32>
    %1140 = arith.mulf %11, %1139 : vector<56x56xf32>
    %cst_255 = arith.constant 0.000000e+00 : f32
    %1141 = vector.broadcast %cst_255 : f32 to vector<56x56xf32>
    %1142 = vector.shape_cast %1122 : vector<1x56xf32> to vector<1x56xf32>
    %1143 = vector.broadcast %1142 : vector<1x56xf32> to vector<56x56xf32>
    %1144 = arith.select %1135, %1141, %1143 : vector<56x56xi1>, vector<56x56xf32>
    %1145 = arith.mulf %11, %1144 : vector<56x56xf32>
    %cst_256 = arith.constant dense<0.000000e+00> : vector<56xf32>
    %1146 = vector.multi_reduction <add>, %1140, %cst_256 [1] : vector<56x56xf32> to vector<56xf32>
    %1147 = vector.shape_cast %1146 : vector<56xf32> to vector<56x1xf32>
    %cst_257 = arith.constant dense<0.000000e+00> : vector<56xf32>
    %1148 = vector.multi_reduction <add>, %1145, %cst_257 [1] : vector<56x56xf32> to vector<56xf32>
    %1149 = vector.shape_cast %1148 : vector<56xf32> to vector<56x1xf32>
    %1150 = arith.mulf %1108, %1147 : vector<56x1xf32>
    %1151 = arith.mulf %1114, %1149 : vector<56x1xf32>
    %1152 = arith.addf %1150, %1151 : vector<56x1xf32>
    %cst_258 = arith.constant 1.000000e-30 : f32
    %1153 = vector.broadcast %cst_258 : f32 to vector<56x1xf32>
    %1154 = arith.maximumf %1152, %1153 : vector<56x1xf32>
    %1155 = tpu.reciprocal %1154 {approx = true} : vector<56x1xf32> -> vector<56x1xf32>
    %1156 = arith.mulf %1130, %1155 : vector<56x1xf32>
    %c6_i32_259 = arith.constant 6 : i32
    %1157 = vector.broadcast %c6_i32_259 : i32 to vector<1x8xi32>
    %1158 = arith.cmpi eq, %4, %1157 : vector<1x8xi32>
    %1159 = arith.extui %1158 : vector<1x8xi1> to vector<1x8xi32>
    %1160 = arith.sitofp %1159 : vector<1x8xi32> to vector<1x8xf32>
    %1161 = vector.broadcast %1156 : vector<56x1xf32> to vector<56x8xf32>
    %1162 = vector.broadcast %1160 : vector<1x8xf32> to vector<56x8xf32>
    %1163 = arith.mulf %1161, %1162 : vector<56x8xf32>
    %1164 = arith.addf %1093, %1163 : vector<56x8xf32>
    %1165 = vector.extract_strided_slice %658 {offsets = [0, 7], sizes = [56, 1], strides = [1, 1]} : vector<56x8xf32> to vector<56x1xf32>
    %1166 = vector.extract_strided_slice %663 {offsets = [0, 7], sizes = [56, 1], strides = [1, 1]} : vector<56x8xf32> to vector<56x1xf32>
    %1167 = vector.extract_strided_slice %664 {offsets = [7, 0], sizes = [1, 56], strides = [1, 1]} : vector<8x56xf32> to vector<1x56xf32>
    %1168 = vector.extract_strided_slice %666 {offsets = [0, 7], sizes = [1, 1], strides = [1, 1]} : vector<1x8xf32> to vector<1x1xf32>
    %1169 = vector.broadcast %1168 : vector<1x1xf32> to vector<56x1xf32>
    %1170 = arith.addf %1165, %1169 : vector<56x1xf32>
    %cst_260 = arith.constant 0.000000e+00 : f32
    %1171 = vector.broadcast %cst_260 : f32 to vector<56x1xf32>
    %1172 = arith.cmpf oge, %1170, %1171 : vector<56x1xf32>
    %cst_261 = arith.constant 2.000000e-01 : f32
    %1173 = vector.broadcast %cst_261 : f32 to vector<56x1xf32>
    %1174 = arith.mulf %1173, %1170 : vector<56x1xf32>
    %1175 = arith.select %1172, %1170, %1174 : vector<56x1xi1>, vector<56x1xf32>
    %1176 = vector.broadcast %1168 : vector<1x1xf32> to vector<56x1xf32>
    %1177 = arith.addf %1165, %1176 : vector<56x1xf32>
    %1178 = arith.subf %1177, %1175 : vector<56x1xf32>
    %1179 = math.exp %1178 : vector<56x1xf32>
    %1180 = vector.broadcast %1168 : vector<1x1xf32> to vector<56x1xf32>
    %1181 = arith.addf %1165, %1180 : vector<56x1xf32>
    %cst_262 = arith.constant 2.000000e-01 : f32
    %1182 = vector.broadcast %cst_262 : f32 to vector<56x1xf32>
    %1183 = arith.mulf %1182, %1181 : vector<56x1xf32>
    %1184 = arith.subf %1183, %1175 : vector<56x1xf32>
    %1185 = math.exp %1184 : vector<56x1xf32>
    %1186 = vector.broadcast %1168 : vector<1x1xf32> to vector<1x56xf32>
    %1187 = arith.subf %1167, %1186 : vector<1x56xf32>
    %1188 = math.exp %1187 : vector<1x56xf32>
    %1189 = vector.broadcast %1168 : vector<1x1xf32> to vector<1x56xf32>
    %1190 = arith.subf %1167, %1189 : vector<1x56xf32>
    %cst_263 = arith.constant 2.000000e-01 : f32
    %1191 = vector.broadcast %cst_263 : f32 to vector<1x56xf32>
    %1192 = arith.mulf %1191, %1190 : vector<1x56xf32>
    %1193 = math.exp %1192 : vector<1x56xf32>
    %1194 = arith.addf %1165, %1166 : vector<56x1xf32>
    %cst_264 = arith.constant 0.000000e+00 : f32
    %1195 = vector.broadcast %cst_264 : f32 to vector<56x1xf32>
    %1196 = arith.cmpf oge, %1194, %1195 : vector<56x1xf32>
    %cst_265 = arith.constant 2.000000e-01 : f32
    %1197 = vector.broadcast %cst_265 : f32 to vector<56x1xf32>
    %1198 = arith.mulf %1197, %1194 : vector<56x1xf32>
    %1199 = arith.select %1196, %1194, %1198 : vector<56x1xi1>, vector<56x1xf32>
    %1200 = arith.subf %1199, %1175 : vector<56x1xf32>
    %1201 = math.exp %1200 : vector<56x1xf32>
    %1202 = vector.broadcast %1165 : vector<56x1xf32> to vector<56x56xf32>
    %1203 = vector.broadcast %1167 : vector<1x56xf32> to vector<56x56xf32>
    %1204 = arith.addf %1202, %1203 : vector<56x56xf32>
    %cst_266 = arith.constant 0.000000e+00 : f32
    %1205 = vector.broadcast %cst_266 : f32 to vector<56x56xf32>
    %1206 = arith.cmpf oge, %1204, %1205 : vector<56x56xf32>
    %cst_267 = arith.constant 0.000000e+00 : f32
    %1207 = vector.shape_cast %1188 : vector<1x56xf32> to vector<1x56xf32>
    %1208 = vector.broadcast %1207 : vector<1x56xf32> to vector<56x56xf32>
    %1209 = vector.broadcast %cst_267 : f32 to vector<56x56xf32>
    %1210 = arith.select %1206, %1208, %1209 : vector<56x56xi1>, vector<56x56xf32>
    %1211 = arith.mulf %11, %1210 : vector<56x56xf32>
    %cst_268 = arith.constant 0.000000e+00 : f32
    %1212 = vector.broadcast %cst_268 : f32 to vector<56x56xf32>
    %1213 = vector.shape_cast %1193 : vector<1x56xf32> to vector<1x56xf32>
    %1214 = vector.broadcast %1213 : vector<1x56xf32> to vector<56x56xf32>
    %1215 = arith.select %1206, %1212, %1214 : vector<56x56xi1>, vector<56x56xf32>
    %1216 = arith.mulf %11, %1215 : vector<56x56xf32>
    %cst_269 = arith.constant dense<0.000000e+00> : vector<56xf32>
    %1217 = vector.multi_reduction <add>, %1211, %cst_269 [1] : vector<56x56xf32> to vector<56xf32>
    %1218 = vector.shape_cast %1217 : vector<56xf32> to vector<56x1xf32>
    %cst_270 = arith.constant dense<0.000000e+00> : vector<56xf32>
    %1219 = vector.multi_reduction <add>, %1216, %cst_270 [1] : vector<56x56xf32> to vector<56xf32>
    %1220 = vector.shape_cast %1219 : vector<56xf32> to vector<56x1xf32>
    %1221 = arith.mulf %1179, %1218 : vector<56x1xf32>
    %1222 = arith.mulf %1185, %1220 : vector<56x1xf32>
    %1223 = arith.addf %1221, %1222 : vector<56x1xf32>
    %cst_271 = arith.constant 1.000000e-30 : f32
    %1224 = vector.broadcast %cst_271 : f32 to vector<56x1xf32>
    %1225 = arith.maximumf %1223, %1224 : vector<56x1xf32>
    %1226 = tpu.reciprocal %1225 {approx = true} : vector<56x1xf32> -> vector<56x1xf32>
    %1227 = arith.mulf %1201, %1226 : vector<56x1xf32>
    %c7_i32_272 = arith.constant 7 : i32
    %1228 = vector.broadcast %c7_i32_272 : i32 to vector<1x8xi32>
    %1229 = arith.cmpi eq, %4, %1228 : vector<1x8xi32>
    %1230 = arith.extui %1229 : vector<1x8xi1> to vector<1x8xi32>
    %1231 = arith.sitofp %1230 : vector<1x8xi32> to vector<1x8xf32>
    %1232 = vector.broadcast %1227 : vector<56x1xf32> to vector<56x8xf32>
    %1233 = vector.broadcast %1231 : vector<1x8xf32> to vector<56x8xf32>
    %1234 = arith.mulf %1232, %1233 : vector<56x8xf32>
    %1235 = arith.addf %1164, %1234 : vector<56x8xf32>
    %cst_273 = arith.constant 0.000000e+00 : f32
    %1236 = vector.shape_cast %7 : vector<56x1xi1> to vector<56x1xi1>
    %1237 = vector.broadcast %1236 : vector<56x1xi1> to vector<56x8xi1>
    %1238 = vector.broadcast %cst_273 : f32 to vector<56x8xf32>
    %1239 = arith.select %1237, %1235, %1238 : vector<56x8xi1>, vector<56x8xf32>
    %cst_274 = arith.constant dense<0.000000e+00> : vector<56x256xf32>
    %1240 = tpu.matmul %1239, %0, %cst_274 {dimension_numbers = #tpu.dot_dimension_numbers<[1], [0], [0], [1], [0, 0, 1, 1], [], []>} : vector<56x8xf32>, vector<8x256xf32>, vector<56x256xf32> -> vector<56x256xf32>
    %1241 = arith.mulf %1240, %653 : vector<56x256xf32>
    %cst_275 = arith.constant dense<0.000000e+00> : vector<56x8xf32>
    %1242 = tpu.matmul %1241, %1, %cst_275 {dimension_numbers = #tpu.dot_dimension_numbers<[1], [0], [0], [1], [0, 0, 1, 1], [], []>} : vector<56x256xf32>, vector<256x8xf32>, vector<56x8xf32> -> vector<56x8xf32>
    %cst_276 = arith.constant dense<0.000000e+00> : vector<56x256xf32>
    %1243 = tpu.matmul %1242, %0, %cst_276 {dimension_numbers = #tpu.dot_dimension_numbers<[1], [0], [0], [1], [0, 0, 1, 1], [], []>} : vector<56x8xf32>, vector<8x256xf32>, vector<56x256xf32> -> vector<56x256xf32>
    %1244 = arith.subf %1241, %1243 : vector<56x256xf32>
    %1245 = arith.mulf %1244, %1244 : vector<56x256xf32>
    %cst_277 = arith.constant dense<0.000000e+00> : vector<56x8xf32>
    %1246 = tpu.matmul %1245, %1, %cst_277 {dimension_numbers = #tpu.dot_dimension_numbers<[1], [0], [0], [1], [0, 0, 1, 1], [], []>} : vector<56x256xf32>, vector<256x8xf32>, vector<56x8xf32> -> vector<56x8xf32>
    %cst_278 = arith.constant 9.99999974E-6 : f32
    %1247 = vector.broadcast %cst_278 : f32 to vector<56x8xf32>
    %1248 = arith.addf %1246, %1247 : vector<56x8xf32>
    %1249 = math.rsqrt %1248 : vector<56x8xf32>
    %cst_279 = arith.constant dense<0.000000e+00> : vector<56x256xf32>
    %1250 = tpu.matmul %1249, %0, %cst_279 {dimension_numbers = #tpu.dot_dimension_numbers<[1], [0], [0], [1], [0, 0, 1, 1], [], []>} : vector<56x8xf32>, vector<8x256xf32>, vector<56x256xf32> -> vector<56x256xf32>
    %1251 = arith.mulf %1244, %1250 : vector<56x256xf32>
    %1252 = vector.broadcast %643 : vector<1x256xf32> to vector<56x256xf32>
    %1253 = arith.mulf %1251, %1252 : vector<56x256xf32>
    %1254 = vector.broadcast %645 : vector<1x256xf32> to vector<56x256xf32>
    %1255 = arith.addf %1253, %1254 : vector<56x256xf32>
    %cst_280 = arith.constant dense<0.000000e+00> : vector<56x32xf32>
    %1256 = tpu.matmul %1255, %2, %cst_280 {dimension_numbers = #tpu.dot_dimension_numbers<[1], [0], [0], [1], [0, 0, 1, 1], [], []>} : vector<56x256xf32>, vector<256x32xf32>, vector<56x32xf32> -> vector<56x32xf32>
    %1257 = arith.addf %1256, %635 : vector<56x32xf32>
    %1258 = vector.broadcast %647 : vector<1x32xf32> to vector<56x32xf32>
    %1259 = arith.addf %1257, %1258 : vector<56x32xf32>
    %cst_281 = arith.constant 0.000000e+00 : f32
    %1260 = vector.shape_cast %7 : vector<56x1xi1> to vector<56x1xi1>
    %1261 = vector.broadcast %1260 : vector<56x1xi1> to vector<56x32xi1>
    %1262 = vector.broadcast %cst_281 : f32 to vector<56x32xf32>
    %1263 = arith.select %1261, %1259, %1262 : vector<56x32xi1>, vector<56x32xf32>
    %cst_282 = arith.constant dense<0.000000e+00> : vector<4x32xf32>
    %1264 = tpu.matmul %3, %1263, %cst_282 {dimension_numbers = #tpu.dot_dimension_numbers<[1], [0], [0], [1], [0, 0, 1, 1], [], []>} : vector<4x56xf32>, vector<56x32xf32>, vector<4x32xf32> -> vector<4x32xf32>
    %c0_283 = arith.constant 0 : index
    %c0_284 = arith.constant 0 : index
    %c0_285 = arith.constant 0 : index
    %1265 = vector.load %arg14[%c0_283, %c0_284, %c0_285] : memref<1x4x32xf32, #tpu.memory_space<vmem>>, vector<1x4x32xf32>
    %1266 = vector.shape_cast %1265 : vector<1x4x32xf32> to vector<4x32xf32>
    %1267 = vector.shape_cast %1264 : vector<4x32xf32> to vector<1x4x32xf32>
    tpu.vector_store %arg14[%c0_283, %c0_284, %c0_285], %1267 {strides = array<i32>} : memref<1x4x32xf32, #tpu.memory_space<vmem>>, vector<1x4x32xf32>,
    return
  }
  func.func @transform_0(%arg0: i32) -> (i32, i32) {
    %c0_i32 = arith.constant 0 : i32
    %c0_i32_0 = arith.constant 0 : i32
    return %arg0, %c0_i32 : i32, i32
  }
  func.func @transform_1(%arg0: i32) -> (i32, i32) {
    %c0_i32 = arith.constant 0 : i32
    %c0_i32_0 = arith.constant 0 : i32
    return %arg0, %c0_i32 : i32, i32
  }
  func.func @transform_2(%arg0: i32) -> (i32, i32, i32) {
    %c0_i32 = arith.constant 0 : i32
    %c0_i32_0 = arith.constant 0 : i32
    %c0_i32_1 = arith.constant 0 : i32
    return %arg0, %c0_i32, %c0_i32_0 : i32, i32, i32
  }
  func.func @transform_3(%arg0: i32) -> (i32, i32, i32) {
    %c0_i32 = arith.constant 0 : i32
    %c0_i32_0 = arith.constant 0 : i32
    %c0_i32_1 = arith.constant 0 : i32
    %c0_i32_2 = arith.constant 0 : i32
    return %c0_i32, %c0_i32_0, %c0_i32_1 : i32, i32, i32
  }
  func.func @transform_4(%arg0: i32) -> (i32, i32, i32) {
    %c0_i32 = arith.constant 0 : i32
    %c0_i32_0 = arith.constant 0 : i32
    %c0_i32_1 = arith.constant 0 : i32
    %c0_i32_2 = arith.constant 0 : i32
    return %c0_i32, %c0_i32_0, %c0_i32_1 : i32, i32, i32
  }
  func.func @transform_5(%arg0: i32) -> (i32, i32, i32) {
    %c0_i32 = arith.constant 0 : i32
    %c0_i32_0 = arith.constant 0 : i32
    %c0_i32_1 = arith.constant 0 : i32
    %c0_i32_2 = arith.constant 0 : i32
    return %c0_i32, %c0_i32_0, %c0_i32_1 : i32, i32, i32
  }
  func.func @transform_6(%arg0: i32) -> (i32, i32, i32) {
    %c0_i32 = arith.constant 0 : i32
    %c0_i32_0 = arith.constant 0 : i32
    %c0_i32_1 = arith.constant 0 : i32
    %c0_i32_2 = arith.constant 0 : i32
    return %c0_i32, %c0_i32_0, %c0_i32_1 : i32, i32, i32
  }
  func.func @transform_7(%arg0: i32) -> (i32, i32, i32) {
    %c0_i32 = arith.constant 0 : i32
    %c0_i32_0 = arith.constant 0 : i32
    %c0_i32_1 = arith.constant 0 : i32
    %c0_i32_2 = arith.constant 0 : i32
    return %c0_i32, %c0_i32_0, %c0_i32_1 : i32, i32, i32
  }
  func.func @transform_8(%arg0: i32) -> (i32, i32, i32) {
    %c0_i32 = arith.constant 0 : i32
    %c0_i32_0 = arith.constant 0 : i32
    %c0_i32_1 = arith.constant 0 : i32
    %c0_i32_2 = arith.constant 0 : i32
    return %c0_i32, %c0_i32_0, %c0_i32_1 : i32, i32, i32
  }
  func.func @transform_9(%arg0: i32) -> (i32, i32) {
    %c0_i32 = arith.constant 0 : i32
    %c0_i32_0 = arith.constant 0 : i32
    %c0_i32_1 = arith.constant 0 : i32
    return %c0_i32, %c0_i32_0 : i32, i32
  }
  func.func @transform_10(%arg0: i32) -> (i32, i32) {
    %c0_i32 = arith.constant 0 : i32
    %c0_i32_0 = arith.constant 0 : i32
    %c0_i32_1 = arith.constant 0 : i32
    return %c0_i32, %c0_i32_0 : i32, i32
  }
  func.func @transform_11(%arg0: i32) -> (i32, i32) {
    %c0_i32 = arith.constant 0 : i32
    %c0_i32_0 = arith.constant 0 : i32
    %c0_i32_1 = arith.constant 0 : i32
    return %c0_i32, %c0_i32_0 : i32, i32
  }
  func.func @transform_12(%arg0: i32) -> (i32, i32) {
    %c0_i32 = arith.constant 0 : i32
    %c0_i32_0 = arith.constant 0 : i32
    %c0_i32_1 = arith.constant 0 : i32
    return %c0_i32, %c0_i32_0 : i32, i32
  }
  func.func @transform_13(%arg0: i32) -> (i32, i32, i32) {
    %c0_i32 = arith.constant 0 : i32
    %c0_i32_0 = arith.constant 0 : i32
    %c0_i32_1 = arith.constant 0 : i32
    return %arg0, %c0_i32, %c0_i32_0 : i32, i32, i32
  }
}

</mosaic_0001>

<llo_original>
// kernel: tpu_custom_call.1
$region0: #{tpu_custom_call.1}
  #allocation0 [shape = 'u32[]', space=smem, size = 0x4, offset = 0x4, fixed_abs, tag = 'smem constant byte address 0x4 - core index']
  #allocation1 [shape = 'u32[72,128]{1,0:T(1,128)}', space=vmem, size = 0x9000, scoped, tag = 'internal scratch']
  %s0 = inlined_call_operand.vmem [shape: f32[112,32], index: 0, kind: input, shape index: {}]
  %s1 = inlined_call_operand.vmem [shape: f32[112,1], index: 1, kind: input, shape index: {}]
  %s2 = inlined_call_operand.vmem [shape: s8[2,56,56], index: 2, kind: input, shape index: {}]
  %s3 = inlined_call_operand.vmem [shape: bf16[2,32,256], index: 3, kind: input, shape index: {}]
  %s4 = inlined_call_operand.vmem [shape: f32[2,32,8], index: 4, kind: input, shape index: {}]
  %s5 = inlined_call_operand.vmem [shape: f32[2,32,8], index: 5, kind: input, shape index: {}]
  %s6 = inlined_call_operand.vmem [shape: f32[2,1,256], index: 6, kind: input, shape index: {}]
  %s7 = inlined_call_operand.vmem [shape: f32[2,1,256], index: 7, kind: input, shape index: {}]
  %s8 = inlined_call_operand.vmem [shape: f32[2,1,32], index: 8, kind: input, shape index: {}]
  %s9 = inlined_call_operand.vmem [shape: f32[8,256], index: 9, kind: input, shape index: {}]
  %s10 = inlined_call_operand.vmem [shape: f32[256,8], index: 10, kind: input, shape index: {}]
  %s11 = inlined_call_operand.vmem [shape: f32[256,32], index: 11, kind: input, shape index: {}]
  %s12 = inlined_call_operand.vmem [shape: f32[4,56], index: 12, kind: input, shape index: {}]
  %s13 = inlined_call_operand.hbm [shape: f32[2,4,32], index: 13, kind: output, shape index: {}]
  %s14 = sld [smem:[#allocation0]]
  $region85: #{tpu_custom_call.1} parent=0
    _
  %s16 = ssub.s32 1, %s14
  %s17 = scalar_select 0, %s16, %s14
  $region1: #{tpu_custom_call.1} parent=0
    #allocation2 [shape = 'u8[4096]{0}', space=vmem, size = 0x1000, scoped, tag = 'output window, operand 0']
    #allocation3 [shape = 's32[2]{0}', space=sflag, size = 0x8, scoped, tag = 'scoped memory for tpu_custom_call.1']
    %18 = vsyncpa [#allocation3], 0
    %s19 = scalar_lea.sflag [#allocation3], 1
    %20 = vsyncpa %s19, 0
    loop: start=0, step=1, limit=4
    $region2: #{tpu_custom_call.1} parent=1 // loop_pre_header
      _
    $region3: #{tpu_custom_call.1} parent=1 // loop_header
      %s22 = sphi 0, %s26
      %p23 = scmp.ge.s32.totalorder %s22, 4
      %s32 = sphi 0, %s34
      %s35 = sphi 0, %s32
      %s36 = sphi 0, %s35
      %s52 = sphi 0, %s36
      %s58 = sphi 0, %s60
      %s61 = sphi 0, %s58
      %s62 = sphi 0, %s61
      %s78 = sphi 0, %s62
      %s84 = sphi 0, %s86
      %s87 = sphi 0, %s84
      %s88 = sphi 0, %s87
      %s104 = sphi 0, %s88
      %s108 = sphi 0, %s108
      %s110 = sphi 0, %s108
      %s111 = sphi 0, %s110
      %s125 = sphi 0, %s111
      %s129 = sphi 0, %s129
      %s131 = sphi 0, %s129
      %s132 = sphi 0, %s131
      %s146 = sphi 0, %s132
      %s150 = sphi 0, %s150
      %s152 = sphi 0, %s150
      %s153 = sphi 0, %s152
      %s167 = sphi 0, %s153
      %s171 = sphi 0, %s171
      %s173 = sphi 0, %s171
      %s174 = sphi 0, %s173
      %s188 = sphi 0, %s174
      %s192 = sphi 0, %s192
      %s194 = sphi 0, %s192
      %s195 = sphi 0, %s194
      %s209 = sphi 0, %s195
      %s213 = sphi 0, %s213
      %s215 = sphi 0, %s213
      %s216 = sphi 0, %s215
      %s230 = sphi 0, %s216
      %s234 = sphi 0, %s234
      %s236 = sphi 0, %s234
      %s237 = sphi 0, %s236
      %s251 = sphi 0, %s237
      %s255 = sphi 0, %s255
      %s257 = sphi 0, %s255
      %s258 = sphi 0, %s257
      %s272 = sphi 0, %s258
      %s276 = sphi 0, %s276
      %s278 = sphi 0, %s276
      %s279 = sphi 0, %s278
      %s293 = sphi 0, %s279
      %s297 = sphi 0, %s297
      %s299 = sphi 0, %s297
      %s300 = sphi 0, %s299
      %s314 = sphi 0, %s300
      %s320 = sphi 0, %s322
      %s323 = sphi 0, %s320
      %s324 = sphi 0, %s323
      %s340 = sphi 0, %s324
    $region4: #{tpu_custom_call.1} parent=1 // loop_header_branch
      %25 = sbr.rel (%p23) target = $region8
    $region5: #{tpu_custom_call.1} parent=1 // loop_body
      %s27 = ssub.s32 %s22, 1
      %s28 = ssub.s32 %s22, 2
      %s29 = sadd.s32 %s22, 1
      %s30 = ssub.s32 %s22, %s29
      %p31 = scmp.eq.s32.totalorder %s30, 0
      %s33 = sadd.s32 %s32, 1
      %s34 = scalar_select %p31, %s32, %s33
      %p37 = pneg %p31
      %p38 = scmp.eq.s32.totalorder %s22, 1
      %p39 = por %p37, %p38
      %p40 = scmp.ne.s32.totalorder %s32, %s35
      %p41 = scmp.eq.s32.totalorder %s22, 0
      %p42 = por %p40, %p41
      %p43 = scmp.ne.s32.totalorder %s32, %s35
      %p44 = scmp.eq.s32.totalorder %s27, 1
      %p45 = por %p43, %p44
      %p46 = scmp.ne.s32.totalorder %s35, %s36
      %p47 = scmp.eq.s32.totalorder %s27, 0
      %p48 = por %p46, %p47
      %p49 = scmp.ne.s32.totalorder %s35, %s36
      %p50 = scmp.eq.s32.totalorder %s28, 1
      %p51 = por %p49, %p50
      %p53 = scmp.ne.s32.totalorder %s36, %s52
      %p54 = scmp.eq.s32.totalorder %s28, 0
      %p55 = por %p53, %p54
      %s56 = ssub.s32 %s22, %s29
      %p57 = scmp.eq.s32.totalorder %s56, 0
      %s59 = sadd.s32 %s58, 1
      %s60 = scalar_select %p57, %s58, %s59
      %p63 = pneg %p57
      %p64 = scmp.eq.s32.totalorder %s22, 1
      %p65 = por %p63, %p64
      %p66 = scmp.ne.s32.totalorder %s58, %s61
      %p67 = scmp.eq.s32.totalorder %s22, 0
      %p68 = por %p66, %p67
      %p69 = scmp.ne.s32.totalorder %s58, %s61
      %p70 = scmp.eq.s32.totalorder %s27, 1
      %p71 = por %p69, %p70
      %p72 = scmp.ne.s32.totalorder %s61, %s62
      %p73 = scmp.eq.s32.totalorder %s27, 0
      %p74 = por %p72, %p73
      %p75 = scmp.ne.s32.totalorder %s61, %s62
      %p76 = scmp.eq.s32.totalorder %s28, 1
      %p77 = por %p75, %p76
      %p79 = scmp.ne.s32.totalorder %s62, %s78
      %p80 = scmp.eq.s32.totalorder %s28, 0
      %p81 = por %p79, %p80
      %s82 = ssub.s32 %s22, %s29
      %p83 = scmp.eq.s32.totalorder %s82, 0
      %s85 = sadd.s32 %s84, 1
      %s86 = scalar_select %p83, %s84, %s85
      %p89 = pneg %p83
      %p90 = scmp.eq.s32.totalorder %s22, 1
      %p91 = por %p89, %p90
      %p92 = scmp.ne.s32.totalorder %s84, %s87
      %p93 = scmp.eq.s32.totalorder %s22, 0
      %p94 = por %p92, %p93
      %p95 = scmp.ne.s32.totalorder %s84, %s87
      %p96 = scmp.eq.s32.totalorder %s27, 1
      %p97 = por %p95, %p96
      %p98 = scmp.ne.s32.totalorder %s87, %s88
      %p99 = scmp.eq.s32.totalorder %s27, 0
      %p100 = por %p98, %p99
      %p101 = scmp.ne.s32.totalorder %s87, %s88
      %p102 = scmp.eq.s32.totalorder %s28, 1
      %p103 = por %p101, %p102
      %p105 = scmp.ne.s32.totalorder %s88, %s104
      %p106 = scmp.eq.s32.totalorder %s28, 0
      %p107 = por %p105, %p106
      %s109 = sadd.s32 %s108, 1
      %p112 = scmp.eq.s32.totalorder %s22, 1
      %p113 = scmp.ne.s32.totalorder %s108, %s110
      %p114 = scmp.eq.s32.totalorder %s22, 0
      %p115 = por %p113, %p114
      %p116 = scmp.ne.s32.totalorder %s108, %s110
      %p117 = scmp.eq.s32.totalorder %s27, 1
      %p118 = por %p116, %p117
      %p119 = scmp.ne.s32.totalorder %s110, %s111
      %p120 = scmp.eq.s32.totalorder %s27, 0
      %p121 = por %p119, %p120
      %p122 = scmp.ne.s32.totalorder %s110, %s111
      %p123 = scmp.eq.s32.totalorder %s28, 1
      %p124 = por %p122, %p123
      %p126 = scmp.ne.s32.totalorder %s111, %s125
      %p127 = scmp.eq.s32.totalorder %s28, 0
      %p128 = por %p126, %p127
      %s130 = sadd.s32 %s129, 1
      %p133 = scmp.eq.s32.totalorder %s22, 1
      %p134 = scmp.ne.s32.totalorder %s129, %s131
      %p135 = scmp.eq.s32.totalorder %s22, 0
      %p136 = por %p134, %p135
      %p137 = scmp.ne.s32.totalorder %s129, %s131
      %p138 = scmp.eq.s32.totalorder %s27, 1
      %p139 = por %p137, %p138
      %p140 = scmp.ne.s32.totalorder %s131, %s132
      %p141 = scmp.eq.s32.totalorder %s27, 0
      %p142 = por %p140, %p141
      %p143 = scmp.ne.s32.totalorder %s131, %s132
      %p144 = scmp.eq.s32.totalorder %s28, 1
      %p145 = por %p143, %p144
      %p147 = scmp.ne.s32.totalorder %s132, %s146
      %p148 = scmp.eq.s32.totalorder %s28, 0
      %p149 = por %p147, %p148
      %s151 = sadd.s32 %s150, 1
      %p154 = scmp.eq.s32.totalorder %s22, 1
      %p155 = scmp.ne.s32.totalorder %s150, %s152
      %p156 = scmp.eq.s32.totalorder %s22, 0
      %p157 = por %p155, %p156
      %p158 = scmp.ne.s32.totalorder %s150, %s152
      %p159 = scmp.eq.s32.totalorder %s27, 1
      %p160 = por %p158, %p159
      %p161 = scmp.ne.s32.totalorder %s152, %s153
      %p162 = scmp.eq.s32.totalorder %s27, 0
      %p163 = por %p161, %p162
      %p164 = scmp.ne.s32.totalorder %s152, %s153
      %p165 = scmp.eq.s32.totalorder %s28, 1
      %p166 = por %p164, %p165
      %p168 = scmp.ne.s32.totalorder %s153, %s167
      %p169 = scmp.eq.s32.totalorder %s28, 0
      %p170 = por %p168, %p169
      %s172 = sadd.s32 %s171, 1
      %p175 = scmp.eq.s32.totalorder %s22, 1
      %p176 = scmp.ne.s32.totalorder %s171, %s173
      %p177 = scmp.eq.s32.totalorder %s22, 0
      %p178 = por %p176, %p177
      %p179 = scmp.ne.s32.totalorder %s171, %s173
      %p180 = scmp.eq.s32.totalorder %s27, 1
      %p181 = por %p179, %p180
      %p182 = scmp.ne.s32.totalorder %s173, %s174
      %p183 = scmp.eq.s32.totalorder %s27, 0
      %p184 = por %p182, %p183
      %p185 = scmp.ne.s32.totalorder %s173, %s174
      %p186 = scmp.eq.s32.totalorder %s28, 1
      %p187 = por %p185, %p186
      %p189 = scmp.ne.s32.totalorder %s174, %s188
      %p190 = scmp.eq.s32.totalorder %s28, 0
      %p191 = por %p189, %p190
      %s193 = sadd.s32 %s192, 1
      %p196 = scmp.eq.s32.totalorder %s22, 1
      %p197 = scmp.ne.s32.totalorder %s192, %s194
      %p198 = scmp.eq.s32.totalorder %s22, 0
      %p199 = por %p197, %p198
      %p200 = scmp.ne.s32.totalorder %s192, %s194
      %p201 = scmp.eq.s32.totalorder %s27, 1
      %p202 = por %p200, %p201
      %p203 = scmp.ne.s32.totalorder %s194, %s195
      %p204 = scmp.eq.s32.totalorder %s27, 0
      %p205 = por %p203, %p204
      %p206 = scmp.ne.s32.totalorder %s194, %s195
      %p207 = scmp.eq.s32.totalorder %s28, 1
      %p208 = por %p206, %p207
      %p210 = scmp.ne.s32.totalorder %s195, %s209
      %p211 = scmp.eq.s32.totalorder %s28, 0
      %p212 = por %p210, %p211
      %s214 = sadd.s32 %s213, 1
      %p217 = scmp.eq.s32.totalorder %s22, 1
      %p218 = scmp.ne.s32.totalorder %s213, %s215
      %p219 = scmp.eq.s32.totalorder %s22, 0
      %p220 = por %p218, %p219
      %p221 = scmp.ne.s32.totalorder %s213, %s215
      %p222 = scmp.eq.s32.totalorder %s27, 1
      %p223 = por %p221, %p222
      %p224 = scmp.ne.s32.totalorder %s215, %s216
      %p225 = scmp.eq.s32.totalorder %s27, 0
      %p226 = por %p224, %p225
      %p227 = scmp.ne.s32.totalorder %s215, %s216
      %p228 = scmp.eq.s32.totalorder %s28, 1
      %p229 = por %p227, %p228
      %p231 = scmp.ne.s32.totalorder %s216, %s230
      %p232 = scmp.eq.s32.totalorder %s28, 0
      %p233 = por %p231, %p232
      %s235 = sadd.s32 %s234, 1
      %p238 = scmp.eq.s32.totalorder %s22, 1
      %p239 = scmp.ne.s32.totalorder %s234, %s236
      %p240 = scmp.eq.s32.totalorder %s22, 0
      %p241 = por %p239, %p240
      %p242 = scmp.ne.s32.totalorder %s234, %s236
      %p243 = scmp.eq.s32.totalorder %s27, 1
      %p244 = por %p242, %p243
      %p245 = scmp.ne.s32.totalorder %s236, %s237
      %p246 = scmp.eq.s32.totalorder %s27, 0
      %p247 = por %p245, %p246
      %p248 = scmp.ne.s32.totalorder %s236, %s237
      %p249 = scmp.eq.s32.totalorder %s28, 1
      %p250 = por %p248, %p249
      %p252 = scmp.ne.s32.totalorder %s237, %s251
      %p253 = scmp.eq.s32.totalorder %s28, 0
      %p254 = por %p252, %p253
      %s256 = sadd.s32 %s255, 1
      %p259 = scmp.eq.s32.totalorder %s22, 1
      %p260 = scmp.ne.s32.totalorder %s255, %s257
      %p261 = scmp.eq.s32.totalorder %s22, 0
      %p262 = por %p260, %p261
      %p263 = scmp.ne.s32.totalorder %s255, %s257
      %p264 = scmp.eq.s32.totalorder %s27, 1
      %p265 = por %p263, %p264
      %p266 = scmp.ne.s32.totalorder %s257, %s258
      %p267 = scmp.eq.s32.totalorder %s27, 0
      %p268 = por %p266, %p267
      %p269 = scmp.ne.s32.totalorder %s257, %s258
      %p270 = scmp.eq.s32.totalorder %s28, 1
      %p271 = por %p269, %p270
      %p273 = scmp.ne.s32.totalorder %s258, %s272
      %p274 = scmp.eq.s32.totalorder %s28, 0
      %p275 = por %p273, %p274
      %s277 = sadd.s32 %s276, 1
      %p280 = scmp.eq.s32.totalorder %s22, 1
      %p281 = scmp.ne.s32.totalorder %s276, %s278
      %p282 = scmp.eq.s32.totalorder %s22, 0
      %p283 = por %p281, %p282
      %p284 = scmp.ne.s32.totalorder %s276, %s278
      %p285 = scmp.eq.s32.totalorder %s27, 1
      %p286 = por %p284, %p285
      %p287 = scmp.ne.s32.totalorder %s278, %s279
      %p288 = scmp.eq.s32.totalorder %s27, 0
      %p289 = por %p287, %p288
      %p290 = scmp.ne.s32.totalorder %s278, %s279
      %p291 = scmp.eq.s32.totalorder %s28, 1
      %p292 = por %p290, %p291
      %p294 = scmp.ne.s32.totalorder %s279, %s293
      %p295 = scmp.eq.s32.totalorder %s28, 0
      %p296 = por %p294, %p295
      %s298 = sadd.s32 %s297, 1
      %p301 = scmp.eq.s32.totalorder %s22, 1
      %p302 = scmp.ne.s32.totalorder %s297, %s299
      %p303 = scmp.eq.s32.totalorder %s22, 0
      %p304 = por %p302, %p303
      %p305 = scmp.ne.s32.totalorder %s297, %s299
      %p306 = scmp.eq.s32.totalorder %s27, 1
      %p307 = por %p305, %p306
      %p308 = scmp.ne.s32.totalorder %s299, %s300
      %p309 = scmp.eq.s32.totalorder %s27, 0
      %p310 = por %p308, %p309
      %p311 = scmp.ne.s32.totalorder %s299, %s300
      %p312 = scmp.eq.s32.totalorder %s28, 1
      %p313 = por %p311, %p312
      %p315 = scmp.ne.s32.totalorder %s300, %s314
      %p316 = scmp.eq.s32.totalorder %s28, 0
      %p317 = por %p315, %p316
      %s318 = ssub.s32 %s22, %s29
      %p319 = scmp.eq.s32.totalorder %s318, 0
      %s321 = sadd.s32 %s320, 1
      %s322 = scalar_select %p319, %s320, %s321
      %p325 = pneg %p319
      %p326 = scmp.eq.s32.totalorder %s22, 1
      %p327 = por %p325, %p326
      %p328 = scmp.ne.s32.totalorder %s320, %s323
      %p329 = scmp.eq.s32.totalorder %s22, 0
      %p330 = por %p328, %p329
      %p331 = scmp.ne.s32.totalorder %s320, %s323
      %p332 = scmp.eq.s32.totalorder %s27, 1
      %p333 = por %p331, %p332
      %p334 = scmp.ne.s32.totalorder %s323, %s324
      %p335 = scmp.eq.s32.totalorder %s27, 0
      %p336 = por %p334, %p335
      %p337 = scmp.ne.s32.totalorder %s323, %s324
      %p338 = scmp.eq.s32.totalorder %s28, 1
      %p339 = por %p337, %p338
      %p341 = scmp.ne.s32.totalorder %s324, %s340
      %p342 = scmp.eq.s32.totalorder %s28, 0
      %p343 = por %p341, %p342
      %p344 = scmp.le.s32.totalorder 1, %s22
      %p345 = scmp.lt.s32.totalorder %s22, 3
      %p346 = pnand %p344, %p345
      %p347 = pneg %p346
      // Predicated region
      $region9: #{tpu_custom_call.1} parent=5 // pred_check
        _
      $region10: #{tpu_custom_call.1} parent=5 // pred_check_branch
        %349 = sbr.rel (%p346) target = $region12
      $region11: #{tpu_custom_call.1} parent=5 // pred_region
        %s350 = ssub.s32 %s22, 1
        // Predicated region
        $region13: #{tpu_custom_call.1} parent=11 // pred_check
          %p351 = pneg %p121
        $region14: #{tpu_custom_call.1} parent=11 // pred_check_branch
          %353 = sbr.rel (%p351) target = $region16
        $region15: #{tpu_custom_call.1} parent=11 // pred_region
          _
        $region16: #{tpu_custom_call.1} parent=11 // pred_fallthru
          _
        // Predicated region
        $region17: #{tpu_custom_call.1} parent=11 // pred_check
          %p354 = pneg %p142
        $region18: #{tpu_custom_call.1} parent=11 // pred_check_branch
          %356 = sbr.rel (%p354) target = $region20
        $region19: #{tpu_custom_call.1} parent=11 // pred_region
          _
        $region20: #{tpu_custom_call.1} parent=11 // pred_fallthru
          _
        // Predicated region
        $region21: #{tpu_custom_call.1} parent=11 // pred_check
          %p357 = pneg %p163
        $region22: #{tpu_custom_call.1} parent=11 // pred_check_branch
          %359 = sbr.rel (%p357) target = $region24
        $region23: #{tpu_custom_call.1} parent=11 // pred_region
          _
        $region24: #{tpu_custom_call.1} parent=11 // pred_fallthru
          _
        // Predicated region
        $region25: #{tpu_custom_call.1} parent=11 // pred_check
          %p360 = pneg %p184
        $region26: #{tpu_custom_call.1} parent=11 // pred_check_branch
          %362 = sbr.rel (%p360) target = $region28
        $region27: #{tpu_custom_call.1} parent=11 // pred_region
          _
        $region28: #{tpu_custom_call.1} parent=11 // pred_fallthru
          _
        // Predicated region
        $region29: #{tpu_custom_call.1} parent=11 // pred_check
          %p363 = pneg %p205
        $region30: #{tpu_custom_call.1} parent=11 // pred_check_branch
          %365 = sbr.rel (%p363) target = $region32
        $region31: #{tpu_custom_call.1} parent=11 // pred_region
          _
        $region32: #{tpu_custom_call.1} parent=11 // pred_fallthru
          _
        // Predicated region
        $region33: #{tpu_custom_call.1} parent=11 // pred_check
          %p366 = pneg %p226
        $region34: #{tpu_custom_call.1} parent=11 // pred_check_branch
          %368 = sbr.rel (%p366) target = $region36
        $region35: #{tpu_custom_call.1} parent=11 // pred_region
          _
        $region36: #{tpu_custom_call.1} parent=11 // pred_fallthru
          _
        // Predicated region
        $region37: #{tpu_custom_call.1} parent=11 // pred_check
          %p369 = pneg %p247
        $region38: #{tpu_custom_call.1} parent=11 // pred_check_branch
          %371 = sbr.rel (%p369) target = $region40
        $region39: #{tpu_custom_call.1} parent=11 // pred_region
          _
        $region40: #{tpu_custom_call.1} parent=11 // pred_fallthru
          _
        // Predicated region
        $region41: #{tpu_custom_call.1} parent=11 // pred_check
          %p372 = pneg %p268
        $region42: #{tpu_custom_call.1} parent=11 // pred_check_branch
          %374 = sbr.rel (%p372) target = $region44
        $region43: #{tpu_custom_call.1} parent=11 // pred_region
          _
        $region44: #{tpu_custom_call.1} parent=11 // pred_fallthru
          _
        // Predicated region
        $region45: #{tpu_custom_call.1} parent=11 // pred_check
          %p375 = pneg %p289
        $region46: #{tpu_custom_call.1} parent=11 // pred_check_branch
          %377 = sbr.rel (%p375) target = $region48
        $region47: #{tpu_custom_call.1} parent=11 // pred_region
          _
        $region48: #{tpu_custom_call.1} parent=11 // pred_fallthru
          _
        // Predicated region
        $region49: #{tpu_custom_call.1} parent=11 // pred_check
          %p378 = pneg %p310
        $region50: #{tpu_custom_call.1} parent=11 // pred_check_branch
          %380 = sbr.rel (%p378) target = $region52
        $region51: #{tpu_custom_call.1} parent=11 // pred_region
          _
        $region52: #{tpu_custom_call.1} parent=11 // pred_fallthru
          _
      $region12: #{tpu_custom_call.1} parent=5 // pred_fallthru
        _
      %p381 = scmp.lt.s32.totalorder %s22, 2
      // Predicated region
      $region53: #{tpu_custom_call.1} parent=5 // pred_check
        %p382 = pneg %p381
      $region54: #{tpu_custom_call.1} parent=5 // pred_check_branch
        %384 = sbr.rel (%p382) target = $region56
      $region55: #{tpu_custom_call.1} parent=5 // pred_region
        // Predicated region
        $region57: #{tpu_custom_call.1} parent=55 // pred_check
          %p385 = pneg %p42
        $region58: #{tpu_custom_call.1} parent=55 // pred_check_branch
          %387 = sbr.rel (%p385) target = $region60
        $region59: #{tpu_custom_call.1} parent=55 // pred_region
          %s388 = smul.u32 7, %s22
          %p389 = scmp.lt.s32.totalorder %s388, 13
          %s390 = scalar_select %p389, %s388, 13
          %s391 = smul.addr %s390, 8
          %s392 = scalar_lea.vmem %s0, %s391
          %s393 = smul.u32 7, %s22
        $region60: #{tpu_custom_call.1} parent=55 // pred_fallthru
          _
        // Predicated region
        $region61: #{tpu_custom_call.1} parent=55 // pred_check
          %p394 = pneg %p68
        $region62: #{tpu_custom_call.1} parent=55 // pred_check_branch
          %396 = sbr.rel (%p394) target = $region64
        $region63: #{tpu_custom_call.1} parent=55 // pred_region
          %s397 = smul.u32 7, %s22
          %p398 = scmp.lt.s32.totalorder %s397, 13
          %s399 = scalar_select %p398, %s397, 13
          %s400 = smul.addr %s399, 8
          %s401 = scalar_lea.vmem %s1, %s400
          %s402 = smul.u32 7, %s22
        $region64: #{tpu_custom_call.1} parent=55 // pred_fallthru
          _
        // Predicated region
        $region65: #{tpu_custom_call.1} parent=55 // pred_check
          %p403 = pneg %p94
        $region66: #{tpu_custom_call.1} parent=55 // pred_check_branch
          %405 = sbr.rel (%p403) target = $region68
        $region67: #{tpu_custom_call.1} parent=55 // pred_region
          %p406 = scmp.lt.s32.totalorder %s22, 1
          %s407 = scalar_select %p406, %s22, 1
          %s408 = smul.addr %s407, 7
          %s409 = smul.addr %s408, 2
          %s410 = scalar_lea.vmem %s2, %s409
        $region68: #{tpu_custom_call.1} parent=55 // pred_fallthru
          _
      $region56: #{tpu_custom_call.1} parent=5 // pred_fallthru
        _
      %p411 = scmp.le.s32.totalorder 1, %s22
      %p412 = scmp.lt.s32.totalorder %s22, 3
      %p413 = pnand %p411, %p412
      %p414 = pneg %p413
      // Predicated region
      $region69: #{tpu_custom_call.1} parent=5 // pred_check
        _
      $region70: #{tpu_custom_call.1} parent=5 // pred_check_branch
        %416 = sbr.rel (%p413) target = $region72
      $region71: #{tpu_custom_call.1} parent=5 // pred_region
        %s417 = ssub.s32 %s22, 1
        %s418 = smul.u32 7, %s27
        %p419 = scmp.lt.s32.totalorder %s418, 13
        %s420 = scalar_select %p419, %s418, 13
        %s421 = smul.addr %s420, 8
        %s422 = scalar_lea.vmem %s0, %s421
        %p423 = pneg %p48
        %p424 = pneg %p45
        %s425 = smul.u32 7, %s27
        %p426 = scmp.lt.s32.totalorder %s425, 13
        %s427 = scalar_select %p426, %s425, 13
        %s428 = smul.addr %s427, 8
        %s429 = scalar_lea.vmem %s1, %s428
        %p430 = pneg %p74
        %p431 = pneg %p71
        %p432 = scmp.lt.s32.totalorder %s27, 1
        %s433 = scalar_select %p432, %s27, 1
        %s434 = smul.addr %s433, 7
        %s435 = smul.addr %s434, 2
        %s436 = scalar_lea.vmem %s2, %s435
        %p437 = pneg %p100
        %p438 = pneg %p97
        %p439 = pneg %p121
        %p440 = pneg %p118
        %p441 = pneg %p142
        %p442 = pneg %p139
        %p443 = pneg %p163
        %p444 = pneg %p160
        %p445 = pneg %p184
        %p446 = pneg %p181
        %p447 = pneg %p205
        %p448 = pneg %p202
        %p449 = pneg %p226
        %p450 = pneg %p223
        %p451 = pneg %p247
        %p452 = pneg %p244
        %p453 = pneg %p268
        %p454 = pneg %p265
        %p455 = pneg %p289
        %p456 = pneg %p286
        %p457 = pneg %p310
        %p458 = pneg %p307
        %p459 = pneg %p336
        %p460 = pneg %p333
        %s461 = sand.u32 %s323, 1
        %s462 = scalar_lea.sflag [#allocation3], %s461
        %s463 = sand.u32 %s323, 1
        %s464 = smul.addr %s463, 4
        %s465 = scalar_lea.vmem [#allocation2], %s464
        %s466 = smul.u32 7, %s27
        %p467 = scmp.lt.s32.totalorder %s466, 13
        %s468 = scalar_select %p467, %s466, 13
        %s469 = smul.addr %s468, 8
        %s470 = scalar_lea.vmem %s0, %s469
        %s471 = smul.u32 7, %s27
        %s472 = smul.u32 7, %s27
        %p473 = scmp.lt.s32.totalorder %s472, 13
        %s474 = scalar_select %p473, %s472, 13
        %s475 = smul.addr %s474, 8
        %s476 = scalar_lea.vmem %s1, %s475
        %s477 = smul.u32 7, %s27
        %p478 = scmp.lt.s32.totalorder %s27, 1
        %s479 = scalar_select %p478, %s27, 1
        %s480 = smul.addr %s479, 7
        %s481 = smul.addr %s480, 2
        %s482 = scalar_lea.vmem %s2, %s481
        %v484 = vld [vmem:[%s9] sm:$0xff]
        %v485 = vld [vmem:[%s9 + $0x8] sm:$0xff]
        %v486 = vld [vmem:[%s10] sm:$0xff]
        %v487 = vld [vmem:[%s10 + $0x8] sm:$0xff]
        %v488 = vld [vmem:[%s10 + $0x10] sm:$0xff]
        %v489 = vld [vmem:[%s10 + $0x18] sm:$0xff]
        %v490 = vld [vmem:[%s10 + $0x20] sm:$0xff]
        %v491 = vld [vmem:[%s10 + $0x28] sm:$0xff]
        %v492 = vld [vmem:[%s10 + $0x30] sm:$0xff]
        %v493 = vld [vmem:[%s10 + $0x38] sm:$0xff]
        %v494 = vld [vmem:[%s10 + $0x40] sm:$0xff]
        %v495 = vld [vmem:[%s10 + $0x48] sm:$0xff]
        %v496 = vld [vmem:[%s10 + $0x50] sm:$0xff]
        %v497 = vld [vmem:[%s10 + $0x58] sm:$0xff]
        %v498 = vld [vmem:[%s10 + $0x60] sm:$0xff]
        %v499 = vld [vmem:[%s10 + $0x68] sm:$0xff]
        %v500 = vld [vmem:[%s10 + $0x70] sm:$0xff]
        %v501 = vld [vmem:[%s10 + $0x78] sm:$0xff]
        %v502 = vld [vmem:[%s10 + $0x80] sm:$0xff]
        %v503 = vld [vmem:[%s10 + $0x88] sm:$0xff]
        %v504 = vld [vmem:[%s10 + $0x90] sm:$0xff]
        %v505 = vld [vmem:[%s10 + $0x98] sm:$0xff]
        %v506 = vld [vmem:[%s10 + $0xa0] sm:$0xff]
        %v507 = vld [vmem:[%s10 + $0xa8] sm:$0xff]
        %v508 = vld [vmem:[%s10 + $0xb0] sm:$0xff]
        %v509 = vld [vmem:[%s10 + $0xb8] sm:$0xff]
        %v510 = vld [vmem:[%s10 + $0xc0] sm:$0xff]
        %v511 = vld [vmem:[%s10 + $0xc8] sm:$0xff]
        %v512 = vld [vmem:[%s10 + $0xd0] sm:$0xff]
        %v513 = vld [vmem:[%s10 + $0xd8] sm:$0xff]
        %v514 = vld [vmem:[%s10 + $0xe0] sm:$0xff]
        %v515 = vld [vmem:[%s10 + $0xe8] sm:$0xff]
        %v516 = vld [vmem:[%s10 + $0xf0] sm:$0xff]
        %v517 = vld [vmem:[%s10 + $0xf8] sm:$0xff]
        %v518 = vld [vmem:[%s11] sm:$0xff]
        %v519 = vld [vmem:[%s11 + $0x8] sm:$0xff]
        %v520 = vld [vmem:[%s11 + $0x10] sm:$0xff]
        %v521 = vld [vmem:[%s11 + $0x18] sm:$0xff]
        %v522 = vld [vmem:[%s11 + $0x20] sm:$0xff]
        %v523 = vld [vmem:[%s11 + $0x28] sm:$0xff]
        %v524 = vld [vmem:[%s11 + $0x30] sm:$0xff]
        %v525 = vld [vmem:[%s11 + $0x38] sm:$0xff]
        %v526 = vld [vmem:[%s11 + $0x40] sm:$0xff]
        %v527 = vld [vmem:[%s11 + $0x48] sm:$0xff]
        %v528 = vld [vmem:[%s11 + $0x50] sm:$0xff]
        %v529 = vld [vmem:[%s11 + $0x58] sm:$0xff]
        %v530 = vld [vmem:[%s11 + $0x60] sm:$0xff]
        %v531 = vld [vmem:[%s11 + $0x68] sm:$0xff]
        %v532 = vld [vmem:[%s11 + $0x70] sm:$0xff]
        %v533 = vld [vmem:[%s11 + $0x78] sm:$0xff]
        %v534 = vld [vmem:[%s11 + $0x80] sm:$0xff]
        %v535 = vld [vmem:[%s11 + $0x88] sm:$0xff]
        %v536 = vld [vmem:[%s11 + $0x90] sm:$0xff]
        %v537 = vld [vmem:[%s11 + $0x98] sm:$0xff]
        %v538 = vld [vmem:[%s11 + $0xa0] sm:$0xff]
        %v539 = vld [vmem:[%s11 + $0xa8] sm:$0xff]
        %v540 = vld [vmem:[%s11 + $0xb0] sm:$0xff]
        %v541 = vld [vmem:[%s11 + $0xb8] sm:$0xff]
        %v542 = vld [vmem:[%s11 + $0xc0] sm:$0xff]
        %v543 = vld [vmem:[%s11 + $0xc8] sm:$0xff]
        %v544 = vld [vmem:[%s11 + $0xd0] sm:$0xff]
        %v545 = vld [vmem:[%s11 + $0xd8] sm:$0xff]
        %v546 = vld [vmem:[%s11 + $0xe0] sm:$0xff]
        %v547 = vld [vmem:[%s11 + $0xe8] sm:$0xff]
        %v548 = vld [vmem:[%s11 + $0xf0] sm:$0xff]
        %v549 = vld [vmem:[%s11 + $0xf8] sm:$0xff]
        %v550 = vld [vmem:[%s12] sm:$0xf]
        %v551 = vlaneseq
        %v552 = vand.u32 %v551, 127
        %v553 = vld [vmem:[%s476] sm:$0xff]
        %v554 = vld [vmem:[%s476 + $0x8] sm:$0xff]
        %v555 = vld [vmem:[%s476 + $0x10] sm:$0xff]
        %v556 = vld [vmem:[%s476 + $0x18] sm:$0xff]
        %v557 = vld [vmem:[%s476 + $0x20] sm:$0xff]
        %v558 = vld [vmem:[%s476 + $0x28] sm:$0xff]
        %v559 = vld [vmem:[%s476 + $0x30] sm:$0xff]
        %vm560 = vcmp.gt.f32.partialorder %v553, 0.5
        %vm561 = vcmp.gt.f32.partialorder %v554, 0.5
        %vm562 = vcmp.gt.f32.partialorder %v555, 0.5
        %vm563 = vcmp.gt.f32.partialorder %v556, 0.5
        %vm564 = vcmp.gt.f32.partialorder %v557, 0.5
        %vm565 = vcmp.gt.f32.partialorder %v558, 0.5
        %vm566 = vcmp.gt.f32.partialorder %v559, 0.5
        %v567 = vld [vmem:[%s470] sm:$0xff]
        %v568 = vld [vmem:[%s470 + $0x8] sm:$0xff]
        %v569 = vld [vmem:[%s470 + $0x10] sm:$0xff]
        %v570 = vld [vmem:[%s470 + $0x18] sm:$0xff]
        %v571 = vld [vmem:[%s470 + $0x20] sm:$0xff]
        %v572 = vld [vmem:[%s470 + $0x28] sm:$0xff]
        %v573 = vld [vmem:[%s470 + $0x30] sm:$0xff]
        %v574 = vld [vmem:[%s482] sm:$0x3]
        %v575 = vld [vmem:[%s482 + $0x2] sm:$0x3]
        %v576 = vld [vmem:[%s482 + $0x4] sm:$0x3]
        %v577 = vld [vmem:[%s482 + $0x6] sm:$0x3]
        %v578 = vld [vmem:[%s482 + $0x8] sm:$0x3]
        %v579 = vld [vmem:[%s482 + $0xa] sm:$0x3]
        %v580 = vld [vmem:[%s482 + $0xc] sm:$0x3]
        %v581 = vunpack.c.0.s8 %v574
        %v582 = vunpack.c.0.s8 %v575
        %v583 = vunpack.c.0.s8 %v576
        %v584 = vunpack.c.0.s8 %v577
        %v585 = vunpack.c.0.s8 %v578
        %v586 = vunpack.c.0.s8 %v579
        %v587 = vunpack.c.0.s8 %v580
        %v588 = vcvt.s32.f32 %v581
        %v589 = vcvt.s32.f32 %v582
        %v590 = vcvt.s32.f32 %v583
        %v591 = vcvt.s32.f32 %v584
        %v592 = vcvt.s32.f32 %v585
        %v593 = vcvt.s32.f32 %v586
        %v594 = vcvt.s32.f32 %v587
        %v595 = vld [vmem:[%s3] sm:$0xff]
        %v596 = vld [vmem:[%s3 + $0x8] sm:$0xff]
        %v597 = vld [vmem:[%s3 + $0x10] sm:$0xff]
        %v598 = vld [vmem:[%s3 + $0x18] sm:$0xff]
        %v599 = vld [vmem:[%s4] sm:$0xff]
        %v600 = vld [vmem:[%s4 + $0x8] sm:$0xff]
        %v601 = vld [vmem:[%s4 + $0x10] sm:$0xff]
        %v602 = vld [vmem:[%s4 + $0x18] sm:$0xff]
        %v603 = vld [vmem:[%s5] sm:$0xff]
        %v604 = vld [vmem:[%s5 + $0x8] sm:$0xff]
        %v605 = vld [vmem:[%s5 + $0x10] sm:$0xff]
        %v606 = vld [vmem:[%s5 + $0x18] sm:$0xff]
        %v607 = vld [vmem:[%s6] sm:$0x3]
        %v608 = vld [vmem:[%s7] sm:$0x3]
        %v609 = vld [vmem:[%s8] sm:$0x1]
        %v610 = vpack.c.bf16 %v568, %v567
        %v611 = vpack.c.bf16 %v570, %v569
        %v612 = vpack.c.bf16 %v572, %v571
        %v613 = vpack.c.bf16 %v573, %v573
        %v618 = vunpack.c.l.b16 %v595
        %v619 = vunpack.c.h.b16 %v595
        %v620 = vunpack.c.l.b16 %v596
        %v621 = vunpack.c.h.b16 %v596
        %v622 = vunpack.c.l.b16 %v597
        %v623 = vunpack.c.h.b16 %v597
        %v624 = vunpack.c.l.b16 %v598
        %v625 = vunpack.c.h.b16 %v598
        %v626 = vpack.c.b16 %v620, %v618
        %v627 = vpack.c.b16 %v621, %v619
        %v628 = vpack.c.b16 %v624, %v622
        %v629 = vpack.c.b16 %v625, %v623
        %vm634 = vcmask 261120
        %v636 = vsel %vm634, %v610, 0
        %v639 = vsel %vm634, %v611, 0
        %v642 = vsel %vm634, %v612, 0
        %v645 = vsel %vm634, %v613, 0
        %647 = vmatpush.bf16.msra.mxu0 0
        %648 = vmatpush.bf16.msra.mxu0 0
        %649 = vmatpush.bf16.msra.mxu0 0
        %650 = vmatpush.bf16.msra.mxu0 0
        %651 = vmatpush.bf16.msra.mxu0 0
        %652 = vmatpush.bf16.msra.mxu0 0
        %653 = vmatpush.bf16.msra.mxu0 %v628
        %654 = vmatpush.bf16.msra.mxu0 %v626
        %655 = vmatmul.bf16.gmra.mxu0 %v636
        %v656 = vpop.f32.mrf.mxu0
        %v657 = vadd.f32 0.0, %v656
        %v658 = vpop.f32.mrf.mxu0
        %v659 = vadd.f32 0.0, %v658
        %660 = vmatmul.bf16.gmra.mxu0 %v639
        %v661 = vpop.f32.mrf.mxu0
        %v662 = vadd.f32 0.0, %v661
        %v663 = vpop.f32.mrf.mxu0
        %v664 = vadd.f32 0.0, %v663
        %665 = vmatmul.bf16.gmra.mxu0 %v642
        %v666 = vpop.f32.mrf.mxu0
        %v667 = vadd.f32 0.0, %v666
        %v668 = vpop.f32.mrf.mxu0
        %v669 = vadd.f32 0.0, %v668
        %670 = vmatmul.bf16.gmra.mxu0 %v645
        %v671 = vpop.f32.mrf.mxu0
        %v672 = vadd.f32 0.0, %v671
        %v673 = vpop.f32.mrf.mxu0
        %674 = vdwg.mxu0
        %675 = vmatpush.bf16.msra.mxu0 0
        %676 = vmatpush.bf16.msra.mxu0 0
        %677 = vmatpush.bf16.msra.mxu0 0
        %678 = vmatpush.bf16.msra.mxu0 0
        %679 = vmatpush.bf16.msra.mxu0 0
        %680 = vmatpush.bf16.msra.mxu0 0
        %681 = vmatpush.bf16.msra.mxu0 %v629
        %682 = vmatpush.bf16.msra.mxu0 %v627
        %683 = vmatmul.bf16.gmra.mxu0 %v636
        %v684 = vpop.f32.mrf.mxu0
        %v685 = vadd.f32 0.0, %v684
        %v686 = vpop.f32.mrf.mxu0
        %v687 = vadd.f32 0.0, %v686
        %688 = vmatmul.bf16.gmra.mxu0 %v639
        %v689 = vpop.f32.mrf.mxu0
        %v690 = vadd.f32 0.0, %v689
        %v691 = vpop.f32.mrf.mxu0
        %v692 = vadd.f32 0.0, %v691
        %693 = vmatmul.bf16.gmra.mxu0 %v642
        %v694 = vpop.f32.mrf.mxu0
        %v695 = vadd.f32 0.0, %v694
        %v696 = vpop.f32.mrf.mxu0
        %v697 = vadd.f32 0.0, %v696
        %698 = vmatmul.bf16.gmra.mxu0 %v645
        %v699 = vpop.f32.mrf.mxu0
        %v700 = vadd.f32 0.0, %v699
        %v701 = vpop.f32.mrf.mxu0
        %702 = vdwg.mxu0
        %v703 = vsel %vm560, 1, 0
        %v704 = vsel %vm561, 1, 0
        %v705 = vsel %vm562, 1, 0
        %v706 = vsel %vm563, 1, 0
        %v707 = vsel %vm564, 1, 0
        %v708 = vsel %vm565, 1, 0
        %v709 = vsel %vm566, 1, 0
        %710 = vset.pattern.permute.xlu0 0
        %711 = vperm.xlu0 %710, %v703
        %v712 = vpop.permute.xlu0 %711
        %713 = vset.pattern.permute.xlu0 0
        %714 = vperm.xlu0 %713, %v704
        %v715 = vpop.permute.xlu0 %714
        %716 = vset.pattern.permute.xlu0 0
        %717 = vperm.xlu0 %716, %v705
        %v718 = vpop.permute.xlu0 %717
        %719 = vset.pattern.permute.xlu0 0
        %720 = vperm.xlu0 %719, %v706
        %v721 = vpop.permute.xlu0 %720
        %722 = vset.pattern.permute.xlu0 0
        %723 = vperm.xlu0 %722, %v707
        %v724 = vpop.permute.xlu0 %723
        %725 = vset.pattern.permute.xlu0 0
        %726 = vperm.xlu0 %725, %v708
        %v727 = vpop.permute.xlu0 %726
        %728 = vset.pattern.permute.xlu0 0
        %729 = vperm.xlu0 %728, %v709
        %v730 = vpop.permute.xlu0 %729
        %vm731 = vcmp.eq.s32.totalorder %v712, 1
        %vm732 = vcmp.eq.s32.totalorder %v715, 1
        %vm733 = vcmp.eq.s32.totalorder %v718, 1
        %vm734 = vcmp.eq.s32.totalorder %v721, 1
        %vm735 = vcmp.eq.s32.totalorder %v724, 1
        %vm736 = vcmp.eq.s32.totalorder %v727, 1
        %vm737 = vcmp.eq.s32.totalorder %v730, 1
        %v738 = vsel %vm731, %v657, 0.0
        %v739 = vsel %vm731, %v685, 0.0
        %v740 = vsel %vm732, %v659, 0.0
        %v741 = vsel %vm732, %v687, 0.0
        %v742 = vsel %vm733, %v662, 0.0
        %v743 = vsel %vm733, %v690, 0.0
        %v744 = vsel %vm734, %v664, 0.0
        %v745 = vsel %vm734, %v692, 0.0
        %v746 = vsel %vm735, %v667, 0.0
        %v747 = vsel %vm735, %v695, 0.0
        %v748 = vsel %vm736, %v669, 0.0
        %v749 = vsel %vm736, %v697, 0.0
        %v750 = vsel %vm737, %v672, 0.0
        %v751 = vsel %vm737, %v700, 0.0
        %v753 = vsel %vm634, %v567, 0
        %v756 = vsel %vm634, %v568, 0
        %v759 = vsel %vm634, %v569, 0
        %v762 = vsel %vm634, %v570, 0
        %v765 = vsel %vm634, %v571, 0
        %v768 = vsel %vm634, %v572, 0
        %v771 = vsel %vm634, %v573, 0
        %773 = vmatpush.msra.mxu0 0.0
        %774 = vmatpush.msra.mxu0 0.0
        %775 = vmatpush.msra.mxu0 0.0
        %776 = vmatpush.msra.mxu0 0.0
        %777 = vmatpush.msra.mxu0 0.0
        %778 = vmatpush.msra.mxu0 0.0
        %779 = vmatpush.msra.mxu0 0.0
        %780 = vmatpush.msra.mxu0 0.0
        %781 = vmatpush.msra.mxu0 0.0
        %782 = vmatpush.msra.mxu0 0.0
        %783 = vmatpush.msra.mxu0 0.0
        %784 = vmatpush.msra.mxu0 0.0
        %785 = vmatpush.msra.mxu0 %v602
        %786 = vmatpush.msra.mxu0 %v601
        %787 = vmatpush.msra.mxu0 %v600
        %788 = vmatpush.msra.mxu0 %v599
        %789 = vmatmul.f32.gmra.mxu0 %v753
        %v790 = vpop.f32.mrf.mxu0
        %v791 = vadd.f32 0.0, %v790
        %792 = vmatmul.f32.gmra.mxu0 %v756
        %v793 = vpop.f32.mrf.mxu0
        %v794 = vadd.f32 0.0, %v793
        %795 = vmatmul.f32.gmra.mxu0 %v759
        %v796 = vpop.f32.mrf.mxu0
        %v797 = vadd.f32 0.0, %v796
        %798 = vmatmul.f32.gmra.mxu0 %v762
        %v799 = vpop.f32.mrf.mxu0
        %v800 = vadd.f32 0.0, %v799
        %801 = vmatmul.f32.gmra.mxu0 %v765
        %v802 = vpop.f32.mrf.mxu0
        %v803 = vadd.f32 0.0, %v802
        %804 = vmatmul.f32.gmra.mxu0 %v768
        %v805 = vpop.f32.mrf.mxu0
        %v806 = vadd.f32 0.0, %v805
        %807 = vmatmul.f32.gmra.mxu0 %v771
        %v808 = vpop.f32.mrf.mxu0
        %v809 = vadd.f32 0.0, %v808
        %810 = vdwg.mxu0
        %v811 = vsel %vm731, %v791, 0.0
        %v812 = vsel %vm732, %v794, 0.0
        %v813 = vsel %vm733, %v797, 0.0
        %v814 = vsel %vm734, %v800, 0.0
        %v815 = vsel %vm735, %v803, 0.0
        %v816 = vsel %vm736, %v806, 0.0
        %v817 = vsel %vm737, %v809, 0.0
        %818 = vmatpush.msra.mxu0 0.0
        %819 = vmatpush.msra.mxu0 0.0
        %820 = vmatpush.msra.mxu0 0.0
        %821 = vmatpush.msra.mxu0 0.0
        %822 = vmatpush.msra.mxu0 0.0
        %823 = vmatpush.msra.mxu0 0.0
        %824 = vmatpush.msra.mxu0 0.0
        %825 = vmatpush.msra.mxu0 0.0
        %826 = vmatpush.msra.mxu0 0.0
        %827 = vmatpush.msra.mxu0 0.0
        %828 = vmatpush.msra.mxu0 0.0
        %829 = vmatpush.msra.mxu0 0.0
        %830 = vmatpush.msra.mxu0 %v606
        %831 = vmatpush.msra.mxu0 %v605
        %832 = vmatpush.msra.mxu0 %v604
        %833 = vmatpush.msra.mxu0 %v603
        %834 = vmatmul.f32.gmra.mxu0 %v753
        %v835 = vpop.f32.mrf.mxu0
        %v836 = vadd.f32 0.0, %v835
        %837 = vmatmul.f32.gmra.mxu0 %v756
        %v838 = vpop.f32.mrf.mxu0
        %v839 = vadd.f32 0.0, %v838
        %840 = vmatmul.f32.gmra.mxu0 %v759
        %v841 = vpop.f32.mrf.mxu0
        %v842 = vadd.f32 0.0, %v841
        %843 = vmatmul.f32.gmra.mxu0 %v762
        %v844 = vpop.f32.mrf.mxu0
        %v845 = vadd.f32 0.0, %v844
        %846 = vmatmul.f32.gmra.mxu0 %v765
        %v847 = vpop.f32.mrf.mxu0
        %v848 = vadd.f32 0.0, %v847
        %849 = vmatmul.f32.gmra.mxu0 %v768
        %v850 = vpop.f32.mrf.mxu0
        %v851 = vadd.f32 0.0, %v850
        %852 = vmatmul.f32.gmra.mxu0 %v771
        %v853 = vpop.f32.mrf.mxu0
        %v854 = vadd.f32 0.0, %v853
        %855 = vdwg.mxu0
        %v856 = vsel %vm731, %v836, 0.0
        %v857 = vsel %vm732, %v839, 0.0
        %v858 = vsel %vm733, %v842, 0.0
        %v859 = vsel %vm734, %v845, 0.0
        %v860 = vsel %vm735, %v848, 0.0
        %v861 = vsel %vm736, %v851, 0.0
        %v862 = vsel %vm737, %v854, 0.0
        %863 = vxpose.xlu0.b32.start [1/16] %v856, 128
        %864 = vxpose.xlu0.b32.cont [2/16] %v857, 128
        %865 = vxpose.xlu0.b32.cont [3/16] %v858, 128
        %866 = vxpose.xlu0.b32.cont [4/16] %v859, 128
        %867 = vxpose.xlu0.b32.cont [5/16] %v860, 128
        %868 = vxpose.xlu0.b32.cont [6/16] %v861, 128
        %869 = vxpose.xlu0.b32.cont [7/16] %v862, 128
        %870 = vxpose.xlu0.b32.cont [8/16] 0.0, 128
        %871 = vxpose.xlu0.b32.cont [9/16] 0.0, 128
        %872 = vxpose.xlu0.b32.cont [10/16] 0.0, 128
        %873 = vxpose.xlu0.b32.cont [11/16] 0.0, 128
        %874 = vxpose.xlu0.b32.cont [12/16] 0.0, 128
        %875 = vxpose.xlu0.b32.cont [13/16] 0.0, 128
        %876 = vxpose.xlu0.b32.cont [14/16] 0.0, 128
        %877 = vxpose.xlu0.b32.cont [15/16] 0.0, 128
        %878 = vxpose.xlu0.b32.end [16/16] 0.0, 128
        %v879 = vpop.trf.xlu0
        %v880 = vpop.trf.xlu0
        %v881 = vpop.trf.xlu0
        %v882 = vpop.trf.xlu0
        %v883 = vpop.trf.xlu0
        %v884 = vpop.trf.xlu0
        %v885 = vpop.trf.xlu0
        %v886 = vpop.trf.xlu0
        %v887 = vpop.trf.xlu0
        %v888 = vpop.trf.xlu0
        %v889 = vpop.trf.xlu0
        %v890 = vpop.trf.xlu0
        %v891 = vpop.trf.xlu0
        %v892 = vpop.trf.xlu0
        %v893 = vpop.trf.xlu0
        %v894 = vpop.trf.xlu0
        %vm895 = vcmask 64512
        %v896 = vsel %vm895, %v856, -inf
        %v897 = vsel %vm895, %v857, -inf
        %v898 = vsel %vm895, %v858, -inf
        %v899 = vsel %vm895, %v859, -inf
        %v900 = vsel %vm895, %v860, -inf
        %v901 = vmax.f32 %v896, %v900
        %v902 = vsel %vm895, %v861, -inf
        %v903 = vmax.f32 %v897, %v902
        %v904 = vsel %vm895, %v862, -inf
        %v905 = vmax.f32 %v898, %v904
        %v906 = vmax.f32 %v901, %v903
        %v907 = vmax.f32 %v905, %v899
        %v908 = vmax.f32 %v906, %v907
        %v909 = vrot.slane %v908, 4
        %v910 = vmax.f32 %v908, %v909
        %v911 = vrot.slane %v910, 2
        %v912 = vmax.f32 %v910, %v911
        %v913 = vrot.slane %v912, 1
        %v914 = vmax.f32 %v912, %v913
        %v915 = vadd.f32 %v811, %v914
        %v916 = vadd.f32 %v812, %v914
        %v917 = vadd.f32 %v813, %v914
        %v918 = vadd.f32 %v814, %v914
        %v919 = vadd.f32 %v815, %v914
        %v920 = vadd.f32 %v816, %v914
        %v921 = vadd.f32 %v817, %v914
        %vm922 = vcmp.ge.f32.partialorder %v915, 0.0
        %vm923 = vcmp.ge.f32.partialorder %v916, 0.0
        %vm924 = vcmp.ge.f32.partialorder %v917, 0.0
        %vm925 = vcmp.ge.f32.partialorder %v918, 0.0
        %vm926 = vcmp.ge.f32.partialorder %v919, 0.0
        %vm927 = vcmp.ge.f32.partialorder %v920, 0.0
        %vm928 = vcmp.ge.f32.partialorder %v921, 0.0
        %v929 = vmul.f32 %v915, 0.2
        %v930 = vmul.f32 %v916, 0.2
        %v931 = vmul.f32 %v917, 0.2
        %v932 = vmul.f32 %v918, 0.2
        %v933 = vmul.f32 %v919, 0.2
        %v934 = vmul.f32 %v920, 0.2
        %v935 = vmul.f32 %v921, 0.2
        %v936 = vsel %vm922, %v915, %v929
        %v937 = vsel %vm923, %v916, %v930
        %v938 = vsel %vm924, %v917, %v931
        %v939 = vsel %vm925, %v918, %v932
        %v940 = vsel %vm926, %v919, %v933
        %v941 = vsel %vm927, %v920, %v934
        %v942 = vsel %vm928, %v921, %v935
        %v943 = vsub.f32 %v915, %v936
        %v944 = vsub.f32 %v916, %v937
        %v945 = vsub.f32 %v917, %v938
        %v946 = vsub.f32 %v918, %v939
        %v947 = vsub.f32 %v919, %v940
        %v948 = vsub.f32 %v920, %v941
        %v949 = vsub.f32 %v921, %v942
        %v950 = vmul.f32 %v943, 1.442695
        %v951 = vpow.pop %v950
        %v952 = vmul.f32 %v944, 1.442695
        %v953 = vpow.pop %v952
        %v954 = vmul.f32 %v945, 1.442695
        %v955 = vpow.pop %v954
        %v956 = vmul.f32 %v946, 1.442695
        %v957 = vpow.pop %v956
        %v958 = vmul.f32 %v947, 1.442695
        %v959 = vpow.pop %v958
        %v960 = vmul.f32 %v948, 1.442695
        %v961 = vpow.pop %v960
        %v962 = vmul.f32 %v949, 1.442695
        %v963 = vpow.pop %v962
        %v964 = vsub.f32 %v929, %v936
        %v965 = vsub.f32 %v930, %v937
        %v966 = vsub.f32 %v931, %v938
        %v967 = vsub.f32 %v932, %v939
        %v968 = vsub.f32 %v933, %v940
        %v969 = vsub.f32 %v934, %v941
        %v970 = vsub.f32 %v935, %v942
        %v971 = vmul.f32 %v964, 1.442695
        %v972 = vpow.pop %v971
        %v973 = vmul.f32 %v965, 1.442695
        %v974 = vpow.pop %v973
        %v975 = vmul.f32 %v966, 1.442695
        %v976 = vpow.pop %v975
        %v977 = vmul.f32 %v967, 1.442695
        %v978 = vpow.pop %v977
        %v979 = vmul.f32 %v968, 1.442695
        %v980 = vpow.pop %v979
        %v981 = vmul.f32 %v969, 1.442695
        %v982 = vpow.pop %v981
        %v983 = vmul.f32 %v970, 1.442695
        %v984 = vpow.pop %v983
        %986 = vset.pattern.permute.xlu0 0
        %987 = vperm.xlu0 %986, %v914
        %v988 = vpop.permute.xlu0 %987
        %v990 = vsub.f32 %v879, %v988
        %v991 = vmul.f32 %v990, 1.442695
        %v992 = vpow.pop %v991
        %v993 = vmul.f32 %v990, 0.2
        %v994 = vmul.f32 %v993, 1.442695
        %v995 = vpow.pop %v994
        %v996 = vadd.f32 %v811, %v856
        %v997 = vadd.f32 %v812, %v857
        %v998 = vadd.f32 %v813, %v858
        %v999 = vadd.f32 %v814, %v859
        %v1000 = vadd.f32 %v815, %v860
        %v1001 = vadd.f32 %v816, %v861
        %v1002 = vadd.f32 %v817, %v862
        %vm1003 = vcmp.ge.f32.partialorder %v996, 0.0
        %vm1004 = vcmp.ge.f32.partialorder %v997, 0.0
        %vm1005 = vcmp.ge.f32.partialorder %v998, 0.0
        %vm1006 = vcmp.ge.f32.partialorder %v999, 0.0
        %vm1007 = vcmp.ge.f32.partialorder %v1000, 0.0
        %vm1008 = vcmp.ge.f32.partialorder %v1001, 0.0
        %vm1009 = vcmp.ge.f32.partialorder %v1002, 0.0
        %v1010 = vmul.f32 %v996, 0.2
        %v1011 = vmul.f32 %v997, 0.2
        %v1012 = vmul.f32 %v998, 0.2
        %v1013 = vmul.f32 %v999, 0.2
        %v1014 = vmul.f32 %v1000, 0.2
        %v1015 = vmul.f32 %v1001, 0.2
        %v1016 = vmul.f32 %v1002, 0.2
        %v1017 = vsel %vm1003, %v996, %v1010
        %v1018 = vsel %vm1004, %v997, %v1011
        %v1019 = vsel %vm1005, %v998, %v1012
        %v1020 = vsel %vm1006, %v999, %v1013
        %v1021 = vsel %vm1007, %v1000, %v1014
        %v1022 = vsel %vm1008, %v1001, %v1015
        %v1023 = vsel %vm1009, %v1002, %v1016
        %v1024 = vsub.f32 %v1017, %v936
        %v1025 = vsub.f32 %v1018, %v937
        %v1026 = vsub.f32 %v1019, %v938
        %v1027 = vsub.f32 %v1020, %v939
        %v1028 = vsub.f32 %v1021, %v940
        %v1029 = vsub.f32 %v1022, %v941
        %v1030 = vsub.f32 %v1023, %v942
        %v1031 = vmul.f32 %v1024, 1.442695
        %v1032 = vpow.pop %v1031
        %v1033 = vmul.f32 %v1025, 1.442695
        %v1034 = vpow.pop %v1033
        %v1035 = vmul.f32 %v1026, 1.442695
        %v1036 = vpow.pop %v1035
        %v1037 = vmul.f32 %v1027, 1.442695
        %v1038 = vpow.pop %v1037
        %v1039 = vmul.f32 %v1028, 1.442695
        %v1040 = vpow.pop %v1039
        %v1041 = vmul.f32 %v1029, 1.442695
        %v1042 = vpow.pop %v1041
        %v1043 = vmul.f32 %v1030, 1.442695
        %v1044 = vpow.pop %v1043
        %1046 = vset.pattern.permute.xlu0 0
        %1047 = vperm.xlu0 %1046, %v811
        %v1048 = vpop.permute.xlu0 %1047
        %1051 = vset.pattern.permute.xlu0 0
        %1052 = vperm.xlu0 %1051, %v812
        %v1053 = vpop.permute.xlu0 %1052
        %1056 = vset.pattern.permute.xlu0 0
        %1057 = vperm.xlu0 %1056, %v813
        %v1058 = vpop.permute.xlu0 %1057
        %1061 = vset.pattern.permute.xlu0 0
        %1062 = vperm.xlu0 %1061, %v814
        %v1063 = vpop.permute.xlu0 %1062
        %1066 = vset.pattern.permute.xlu0 0
        %1067 = vperm.xlu0 %1066, %v815
        %v1068 = vpop.permute.xlu0 %1067
        %1071 = vset.pattern.permute.xlu0 0
        %1072 = vperm.xlu0 %1071, %v816
        %v1073 = vpop.permute.xlu0 %1072
        %1076 = vset.pattern.permute.xlu0 0
        %1077 = vperm.xlu0 %1076, %v817
        %v1078 = vpop.permute.xlu0 %1077
        %v1080 = vperm.slane %v879, 0
        %v1081 = vadd.f32 %v1048, %v1080
        %v1082 = vadd.f32 %v1053, %v1080
        %v1083 = vadd.f32 %v1058, %v1080
        %v1084 = vadd.f32 %v1063, %v1080
        %v1085 = vadd.f32 %v1068, %v1080
        %v1086 = vadd.f32 %v1073, %v1080
        %v1087 = vadd.f32 %v1078, %v1080
        %vm1088 = vcmp.ge.f32.partialorder %v1081, 0.0
        %vm1089 = vcmp.ge.f32.partialorder %v1082, 0.0
        %vm1090 = vcmp.ge.f32.partialorder %v1083, 0.0
        %vm1091 = vcmp.ge.f32.partialorder %v1084, 0.0
        %vm1092 = vcmp.ge.f32.partialorder %v1085, 0.0
        %vm1093 = vcmp.ge.f32.partialorder %v1086, 0.0
        %vm1094 = vcmp.ge.f32.partialorder %v1087, 0.0
        %v1095 = vperm.slane %v992, 0
        %v1096 = vsel %vm1088, %v1095, 0.0
        %v1097 = vsel %vm1089, %v1095, 0.0
        %v1098 = vsel %vm1090, %v1095, 0.0
        %v1099 = vsel %vm1091, %v1095, 0.0
        %v1100 = vsel %vm1092, %v1095, 0.0
        %v1101 = vsel %vm1093, %v1095, 0.0
        %v1102 = vsel %vm1094, %v1095, 0.0
        %v1103 = vmul.f32 %v588, %v1096
        %v1104 = vmul.f32 %v589, %v1097
        %v1105 = vmul.f32 %v590, %v1098
        %v1106 = vmul.f32 %v591, %v1099
        %v1107 = vmul.f32 %v592, %v1100
        %v1108 = vmul.f32 %v593, %v1101
        %v1109 = vmul.f32 %v594, %v1102
        %v1110 = vperm.slane %v995, 0
        %v1111 = vsel %vm1088, 0.0, %v1110
        %v1112 = vsel %vm1089, 0.0, %v1110
        %v1113 = vsel %vm1090, 0.0, %v1110
        %v1114 = vsel %vm1091, 0.0, %v1110
        %v1115 = vsel %vm1092, 0.0, %v1110
        %v1116 = vsel %vm1093, 0.0, %v1110
        %v1117 = vsel %vm1094, 0.0, %v1110
        %v1118 = vmul.f32 %v588, %v1111
        %v1119 = vmul.f32 %v589, %v1112
        %v1120 = vmul.f32 %v590, %v1113
        %v1121 = vmul.f32 %v591, %v1114
        %v1122 = vmul.f32 %v592, %v1115
        %v1123 = vmul.f32 %v593, %v1116
        %v1124 = vmul.f32 %v594, %v1117
        %vm1125 = vcmask 457728
        %v1126 = vsel %vm1125, %v1103, 0.0
        %1127 = vadd.xlane.f32.xlu0 %v1126
        %v1128 = vpop.xlane.xlu0 %1127
        %v1129 = vsel %vm1125, %v1104, 0.0
        %1130 = vadd.xlane.f32.xlu0 %v1129
        %v1131 = vpop.xlane.xlu0 %1130
        %v1132 = vsel %vm1125, %v1105, 0.0
        %1133 = vadd.xlane.f32.xlu0 %v1132
        %v1134 = vpop.xlane.xlu0 %1133
        %v1135 = vsel %vm1125, %v1106, 0.0
        %1136 = vadd.xlane.f32.xlu0 %v1135
        %v1137 = vpop.xlane.xlu0 %1136
        %v1138 = vsel %vm1125, %v1107, 0.0
        %1139 = vadd.xlane.f32.xlu0 %v1138
        %v1140 = vpop.xlane.xlu0 %1139
        %v1141 = vsel %vm1125, %v1108, 0.0
        %1142 = vadd.xlane.f32.xlu0 %v1141
        %v1143 = vpop.xlane.xlu0 %1142
        %v1144 = vsel %vm1125, %v1109, 0.0
        %1145 = vadd.xlane.f32.xlu0 %v1144
        %v1146 = vpop.xlane.xlu0 %1145
        %v1147 = vsel %vm1125, %v1118, 0.0
        %1148 = vadd.xlane.f32.xlu0 %v1147
        %v1149 = vpop.xlane.xlu0 %1148
        %v1150 = vsel %vm1125, %v1119, 0.0
        %1151 = vadd.xlane.f32.xlu0 %v1150
        %v1152 = vpop.xlane.xlu0 %1151
        %v1153 = vsel %vm1125, %v1120, 0.0
        %1154 = vadd.xlane.f32.xlu0 %v1153
        %v1155 = vpop.xlane.xlu0 %1154
        %v1156 = vsel %vm1125, %v1121, 0.0
        %1157 = vadd.xlane.f32.xlu0 %v1156
        %v1158 = vpop.xlane.xlu0 %1157
        %v1159 = vsel %vm1125, %v1122, 0.0
        %1160 = vadd.xlane.f32.xlu0 %v1159
        %v1161 = vpop.xlane.xlu0 %1160
        %v1162 = vsel %vm1125, %v1123, 0.0
        %1163 = vadd.xlane.f32.xlu0 %v1162
        %v1164 = vpop.xlane.xlu0 %1163
        %v1165 = vsel %vm1125, %v1124, 0.0
        %1166 = vadd.xlane.f32.xlu0 %v1165
        %v1167 = vpop.xlane.xlu0 %1166
        %v1168 = vmul.f32 %v951, %v1128
        %v1169 = vmul.f32 %v953, %v1131
        %v1170 = vmul.f32 %v955, %v1134
        %v1171 = vmul.f32 %v957, %v1137
        %v1172 = vmul.f32 %v959, %v1140
        %v1173 = vmul.f32 %v961, %v1143
        %v1174 = vmul.f32 %v963, %v1146
        %v1175 = vmul.f32 %v972, %v1149
        %v1176 = vmul.f32 %v974, %v1152
        %v1177 = vmul.f32 %v976, %v1155
        %v1178 = vmul.f32 %v978, %v1158
        %v1179 = vmul.f32 %v980, %v1161
        %v1180 = vmul.f32 %v982, %v1164
        %v1181 = vmul.f32 %v984, %v1167
        %v1182 = vadd.f32 %v1168, %v1175
        %v1183 = vadd.f32 %v1169, %v1176
        %v1184 = vadd.f32 %v1170, %v1177
        %v1185 = vadd.f32 %v1171, %v1178
        %v1186 = vadd.f32 %v1172, %v1179
        %v1187 = vadd.f32 %v1173, %v1180
        %v1188 = vadd.f32 %v1174, %v1181
        %v1189 = vmax.f32 %v1182, 1e-30
        %v1190 = vmax.f32 %v1183, 1e-30
        %v1191 = vmax.f32 %v1184, 1e-30
        %v1192 = vmax.f32 %v1185, 1e-30
        %v1193 = vmax.f32 %v1186, 1e-30
        %v1194 = vmax.f32 %v1187, 1e-30
        %v1195 = vmax.f32 %v1188, 1e-30
        %v1196 = vrcp.pop %v1189
        %v1197 = vrcp.pop %v1190
        %v1198 = vrcp.pop %v1191
        %v1199 = vrcp.pop %v1192
        %v1200 = vrcp.pop %v1193
        %v1201 = vrcp.pop %v1194
        %v1202 = vrcp.pop %v1195
        %v1203 = vmul.f32 %v1032, %v1196
        %v1204 = vmul.f32 %v1034, %v1197
        %v1205 = vmul.f32 %v1036, %v1198
        %v1206 = vmul.f32 %v1038, %v1199
        %v1207 = vmul.f32 %v1040, %v1200
        %v1208 = vmul.f32 %v1042, %v1201
        %v1209 = vmul.f32 %v1044, %v1202
        %vm1210 = vcmp.eq.s32.totalorder %v552, 0
        %v1211 = vsel %vm1210, 1, 0
        %v1212 = vcvt.s32.f32 %v1211
        %1214 = vset.pattern.permute.xlu0 0
        %1215 = vperm.xlu0 %1214, %v1203
        %v1216 = vpop.permute.xlu0 %1215
        %1219 = vset.pattern.permute.xlu0 0
        %1220 = vperm.xlu0 %1219, %v1204
        %v1221 = vpop.permute.xlu0 %1220
        %1224 = vset.pattern.permute.xlu0 0
        %1225 = vperm.xlu0 %1224, %v1205
        %v1226 = vpop.permute.xlu0 %1225
        %1229 = vset.pattern.permute.xlu0 0
        %1230 = vperm.xlu0 %1229, %v1206
        %v1231 = vpop.permute.xlu0 %1230
        %1234 = vset.pattern.permute.xlu0 0
        %1235 = vperm.xlu0 %1234, %v1207
        %v1236 = vpop.permute.xlu0 %1235
        %1239 = vset.pattern.permute.xlu0 0
        %1240 = vperm.xlu0 %1239, %v1208
        %v1241 = vpop.permute.xlu0 %1240
        %1244 = vset.pattern.permute.xlu0 0
        %1245 = vperm.xlu0 %1244, %v1209
        %v1246 = vpop.permute.xlu0 %1245
        %v1248 = vmul.f32 %v1216, %v1212
        %v1249 = vmul.f32 %v1221, %v1212
        %v1250 = vmul.f32 %v1226, %v1212
        %v1251 = vmul.f32 %v1231, %v1212
        %v1252 = vmul.f32 %v1236, %v1212
        %v1253 = vmul.f32 %v1241, %v1212
        %v1254 = vmul.f32 %v1246, %v1212
        %v1255 = vadd.f32 %v1248, 0.0
        %v1256 = vadd.f32 %v1249, 0.0
        %v1257 = vadd.f32 %v1250, 0.0
        %v1258 = vadd.f32 %v1251, 0.0
        %v1259 = vadd.f32 %v1252, 0.0
        %v1260 = vadd.f32 %v1253, 0.0
        %v1261 = vadd.f32 %v1254, 0.0
        %1262 = vset.pattern.permute.xlu0 1
        %1263 = vperm.xlu0 %1262, %v914
        %v1264 = vpop.permute.xlu0 %1263
        %v1266 = vsub.f32 %v879, %v1264
        %v1267 = vmul.f32 %v1266, 1.442695
        %v1268 = vpow.pop %v1267
        %v1269 = vmul.f32 %v1266, 0.2
        %v1270 = vmul.f32 %v1269, 1.442695
        %v1271 = vpow.pop %v1270
        %1272 = vset.pattern.permute.xlu0 1
        %1273 = vperm.xlu0 %1272, %v811
        %v1274 = vpop.permute.xlu0 %1273
        %1276 = vset.pattern.permute.xlu0 1
        %1277 = vperm.xlu0 %1276, %v812
        %v1278 = vpop.permute.xlu0 %1277
        %1280 = vset.pattern.permute.xlu0 1
        %1281 = vperm.xlu0 %1280, %v813
        %v1282 = vpop.permute.xlu0 %1281
        %1284 = vset.pattern.permute.xlu0 1
        %1285 = vperm.xlu0 %1284, %v814
        %v1286 = vpop.permute.xlu0 %1285
        %1288 = vset.pattern.permute.xlu0 1
        %1289 = vperm.xlu0 %1288, %v815
        %v1290 = vpop.permute.xlu0 %1289
        %1292 = vset.pattern.permute.xlu0 1
        %1293 = vperm.xlu0 %1292, %v816
        %v1294 = vpop.permute.xlu0 %1293
        %1296 = vset.pattern.permute.xlu0 1
        %1297 = vperm.xlu0 %1296, %v817
        %v1298 = vpop.permute.xlu0 %1297
        %v1300 = vperm.slane %v879, 1
        %v1301 = vadd.f32 %v1274, %v1300
        %v1302 = vadd.f32 %v1278, %v1300
        %v1303 = vadd.f32 %v1282, %v1300
        %v1304 = vadd.f32 %v1286, %v1300
        %v1305 = vadd.f32 %v1290, %v1300
        %v1306 = vadd.f32 %v1294, %v1300
        %v1307 = vadd.f32 %v1298, %v1300
        %vm1308 = vcmp.ge.f32.partialorder %v1301, 0.0
        %vm1309 = vcmp.ge.f32.partialorder %v1302, 0.0
        %vm1310 = vcmp.ge.f32.partialorder %v1303, 0.0
        %vm1311 = vcmp.ge.f32.partialorder %v1304, 0.0
        %vm1312 = vcmp.ge.f32.partialorder %v1305, 0.0
        %vm1313 = vcmp.ge.f32.partialorder %v1306, 0.0
        %vm1314 = vcmp.ge.f32.partialorder %v1307, 0.0
        %v1315 = vperm.slane %v1268, 1
        %v1316 = vsel %vm1308, %v1315, 0.0
        %v1317 = vsel %vm1309, %v1315, 0.0
        %v1318 = vsel %vm1310, %v1315, 0.0
        %v1319 = vsel %vm1311, %v1315, 0.0
        %v1320 = vsel %vm1312, %v1315, 0.0
        %v1321 = vsel %vm1313, %v1315, 0.0
        %v1322 = vsel %vm1314, %v1315, 0.0
        %v1323 = vmul.f32 %v588, %v1316
        %v1324 = vmul.f32 %v589, %v1317
        %v1325 = vmul.f32 %v590, %v1318
        %v1326 = vmul.f32 %v591, %v1319
        %v1327 = vmul.f32 %v592, %v1320
        %v1328 = vmul.f32 %v593, %v1321
        %v1329 = vmul.f32 %v594, %v1322
        %v1330 = vperm.slane %v1271, 1
        %v1331 = vsel %vm1308, 0.0, %v1330
        %v1332 = vsel %vm1309, 0.0, %v1330
        %v1333 = vsel %vm1310, 0.0, %v1330
        %v1334 = vsel %vm1311, 0.0, %v1330
        %v1335 = vsel %vm1312, 0.0, %v1330
        %v1336 = vsel %vm1313, 0.0, %v1330
        %v1337 = vsel %vm1314, 0.0, %v1330
        %v1338 = vmul.f32 %v588, %v1331
        %v1339 = vmul.f32 %v589, %v1332
        %v1340 = vmul.f32 %v590, %v1333
        %v1341 = vmul.f32 %v591, %v1334
        %v1342 = vmul.f32 %v592, %v1335
        %v1343 = vmul.f32 %v593, %v1336
        %v1344 = vmul.f32 %v594, %v1337
        %v1345 = vsel %vm1125, %v1323, 0.0
        %1346 = vadd.xlane.f32.xlu0 %v1345
        %v1347 = vpop.xlane.xlu0 %1346
        %v1348 = vsel %vm1125, %v1324, 0.0
        %1349 = vadd.xlane.f32.xlu0 %v1348
        %v1350 = vpop.xlane.xlu0 %1349
        %v1351 = vsel %vm1125, %v1325, 0.0
        %1352 = vadd.xlane.f32.xlu0 %v1351
        %v1353 = vpop.xlane.xlu0 %1352
        %v1354 = vsel %vm1125, %v1326, 0.0
        %1355 = vadd.xlane.f32.xlu0 %v1354
        %v1356 = vpop.xlane.xlu0 %1355
        %v1357 = vsel %vm1125, %v1327, 0.0
        %1358 = vadd.xlane.f32.xlu0 %v1357
        %v1359 = vpop.xlane.xlu0 %1358
        %v1360 = vsel %vm1125, %v1328, 0.0
        %1361 = vadd.xlane.f32.xlu0 %v1360
        %v1362 = vpop.xlane.xlu0 %1361
        %v1363 = vsel %vm1125, %v1329, 0.0
        %1364 = vadd.xlane.f32.xlu0 %v1363
        %v1365 = vpop.xlane.xlu0 %1364
        %v1366 = vsel %vm1125, %v1338, 0.0
        %1367 = vadd.xlane.f32.xlu0 %v1366
        %v1368 = vpop.xlane.xlu0 %1367
        %v1369 = vsel %vm1125, %v1339, 0.0
        %1370 = vadd.xlane.f32.xlu0 %v1369
        %v1371 = vpop.xlane.xlu0 %1370
        %v1372 = vsel %vm1125, %v1340, 0.0
        %1373 = vadd.xlane.f32.xlu0 %v1372
        %v1374 = vpop.xlane.xlu0 %1373
        %v1375 = vsel %vm1125, %v1341, 0.0
        %1376 = vadd.xlane.f32.xlu0 %v1375
        %v1377 = vpop.xlane.xlu0 %1376
        %v1378 = vsel %vm1125, %v1342, 0.0
        %1379 = vadd.xlane.f32.xlu0 %v1378
        %v1380 = vpop.xlane.xlu0 %1379
        %v1381 = vsel %vm1125, %v1343, 0.0
        %1382 = vadd.xlane.f32.xlu0 %v1381
        %v1383 = vpop.xlane.xlu0 %1382
        %v1384 = vsel %vm1125, %v1344, 0.0
        %1385 = vadd.xlane.f32.xlu0 %v1384
        %v1386 = vpop.xlane.xlu0 %1385
        %v1387 = vmul.f32 %v951, %v1347
        %v1388 = vmul.f32 %v953, %v1350
        %v1389 = vmul.f32 %v955, %v1353
        %v1390 = vmul.f32 %v957, %v1356
        %v1391 = vmul.f32 %v959, %v1359
        %v1392 = vmul.f32 %v961, %v1362
        %v1393 = vmul.f32 %v963, %v1365
        %v1394 = vmul.f32 %v972, %v1368
        %v1395 = vmul.f32 %v974, %v1371
        %v1396 = vmul.f32 %v976, %v1374
        %v1397 = vmul.f32 %v978, %v1377
        %v1398 = vmul.f32 %v980, %v1380
        %v1399 = vmul.f32 %v982, %v1383
        %v1400 = vmul.f32 %v984, %v1386
        %v1401 = vadd.f32 %v1387, %v1394
        %v1402 = vadd.f32 %v1388, %v1395
        %v1403 = vadd.f32 %v1389, %v1396
        %v1404 = vadd.f32 %v1390, %v1397
        %v1405 = vadd.f32 %v1391, %v1398
        %v1406 = vadd.f32 %v1392, %v1399
        %v1407 = vadd.f32 %v1393, %v1400
        %v1408 = vmax.f32 %v1401, 1e-30
        %v1409 = vmax.f32 %v1402, 1e-30
        %v1410 = vmax.f32 %v1403, 1e-30
        %v1411 = vmax.f32 %v1404, 1e-30
        %v1412 = vmax.f32 %v1405, 1e-30
        %v1413 = vmax.f32 %v1406, 1e-30
        %v1414 = vmax.f32 %v1407, 1e-30
        %v1415 = vrcp.pop %v1408
        %v1416 = vrcp.pop %v1409
        %v1417 = vrcp.pop %v1410
        %v1418 = vrcp.pop %v1411
        %v1419 = vrcp.pop %v1412
        %v1420 = vrcp.pop %v1413
        %v1421 = vrcp.pop %v1414
        %v1422 = vmul.f32 %v1032, %v1415
        %v1423 = vmul.f32 %v1034, %v1416
        %v1424 = vmul.f32 %v1036, %v1417
        %v1425 = vmul.f32 %v1038, %v1418
        %v1426 = vmul.f32 %v1040, %v1419
        %v1427 = vmul.f32 %v1042, %v1420
        %v1428 = vmul.f32 %v1044, %v1421
        %vm1429 = vcmp.eq.s32.totalorder %v552, 1
        %v1430 = vsel %vm1429, 1, 0
        %v1431 = vcvt.s32.f32 %v1430
        %1433 = vset.pattern.permute.xlu0 1
        %1434 = vperm.xlu0 %1433, %v1422
        %v1435 = vpop.permute.xlu0 %1434
        %1438 = vset.pattern.permute.xlu0 1
        %1439 = vperm.xlu0 %1438, %v1423
        %v1440 = vpop.permute.xlu0 %1439
        %1443 = vset.pattern.permute.xlu0 1
        %1444 = vperm.xlu0 %1443, %v1424
        %v1445 = vpop.permute.xlu0 %1444
        %1448 = vset.pattern.permute.xlu0 1
        %1449 = vperm.xlu0 %1448, %v1425
        %v1450 = vpop.permute.xlu0 %1449
        %1453 = vset.pattern.permute.xlu0 1
        %1454 = vperm.xlu0 %1453, %v1426
        %v1455 = vpop.permute.xlu0 %1454
        %1458 = vset.pattern.permute.xlu0 1
        %1459 = vperm.xlu0 %1458, %v1427
        %v1460 = vpop.permute.xlu0 %1459
        %1463 = vset.pattern.permute.xlu0 1
        %1464 = vperm.xlu0 %1463, %v1428
        %v1465 = vpop.permute.xlu0 %1464
        %v1467 = vmul.f32 %v1435, %v1431
        %v1468 = vmul.f32 %v1440, %v1431
        %v1469 = vmul.f32 %v1445, %v1431
        %v1470 = vmul.f32 %v1450, %v1431
        %v1471 = vmul.f32 %v1455, %v1431
        %v1472 = vmul.f32 %v1460, %v1431
        %v1473 = vmul.f32 %v1465, %v1431
        %v1474 = vadd.f32 %v1255, %v1467
        %v1475 = vadd.f32 %v1256, %v1468
        %v1476 = vadd.f32 %v1257, %v1469
        %v1477 = vadd.f32 %v1258, %v1470
        %v1478 = vadd.f32 %v1259, %v1471
        %v1479 = vadd.f32 %v1260, %v1472
        %v1480 = vadd.f32 %v1261, %v1473
        %1481 = vset.pattern.permute.xlu0 2
        %1482 = vperm.xlu0 %1481, %v914
        %v1483 = vpop.permute.xlu0 %1482
        %v1485 = vsub.f32 %v879, %v1483
        %v1486 = vmul.f32 %v1485, 1.442695
        %v1487 = vpow.pop %v1486
        %v1488 = vmul.f32 %v1485, 0.2
        %v1489 = vmul.f32 %v1488, 1.442695
        %v1490 = vpow.pop %v1489
        %1491 = vset.pattern.permute.xlu0 2
        %1492 = vperm.xlu0 %1491, %v811
        %v1493 = vpop.permute.xlu0 %1492
        %1495 = vset.pattern.permute.xlu0 2
        %1496 = vperm.xlu0 %1495, %v812
        %v1497 = vpop.permute.xlu0 %1496
        %1499 = vset.pattern.permute.xlu0 2
        %1500 = vperm.xlu0 %1499, %v813
        %v1501 = vpop.permute.xlu0 %1500
        %1503 = vset.pattern.permute.xlu0 2
        %1504 = vperm.xlu0 %1503, %v814
        %v1505 = vpop.permute.xlu0 %1504
        %1507 = vset.pattern.permute.xlu0 2
        %1508 = vperm.xlu0 %1507, %v815
        %v1509 = vpop.permute.xlu0 %1508
        %1511 = vset.pattern.permute.xlu0 2
        %1512 = vperm.xlu0 %1511, %v816
        %v1513 = vpop.permute.xlu0 %1512
        %1515 = vset.pattern.permute.xlu0 2
        %1516 = vperm.xlu0 %1515, %v817
        %v1517 = vpop.permute.xlu0 %1516
        %v1519 = vperm.slane %v879, 2
        %v1520 = vadd.f32 %v1493, %v1519
        %v1521 = vadd.f32 %v1497, %v1519
        %v1522 = vadd.f32 %v1501, %v1519
        %v1523 = vadd.f32 %v1505, %v1519
        %v1524 = vadd.f32 %v1509, %v1519
        %v1525 = vadd.f32 %v1513, %v1519
        %v1526 = vadd.f32 %v1517, %v1519
        %vm1527 = vcmp.ge.f32.partialorder %v1520, 0.0
        %vm1528 = vcmp.ge.f32.partialorder %v1521, 0.0
        %vm1529 = vcmp.ge.f32.partialorder %v1522, 0.0
        %vm1530 = vcmp.ge.f32.partialorder %v1523, 0.0
        %vm1531 = vcmp.ge.f32.partialorder %v1524, 0.0
        %vm1532 = vcmp.ge.f32.partialorder %v1525, 0.0
        %vm1533 = vcmp.ge.f32.partialorder %v1526, 0.0
        %v1534 = vperm.slane %v1487, 2
        %v1535 = vsel %vm1527, %v1534, 0.0
        %v1536 = vsel %vm1528, %v1534, 0.0
        %v1537 = vsel %vm1529, %v1534, 0.0
        %v1538 = vsel %vm1530, %v1534, 0.0
        %v1539 = vsel %vm1531, %v1534, 0.0
        %v1540 = vsel %vm1532, %v1534, 0.0
        %v1541 = vsel %vm1533, %v1534, 0.0
        %v1542 = vmul.f32 %v588, %v1535
        %v1543 = vmul.f32 %v589, %v1536
        %v1544 = vmul.f32 %v590, %v1537
        %v1545 = vmul.f32 %v591, %v1538
        %v1546 = vmul.f32 %v592, %v1539
        %v1547 = vmul.f32 %v593, %v1540
        %v1548 = vmul.f32 %v594, %v1541
        %v1549 = vperm.slane %v1490, 2
        %v1550 = vsel %vm1527, 0.0, %v1549
        %v1551 = vsel %vm1528, 0.0, %v1549
        %v1552 = vsel %vm1529, 0.0, %v1549
        %v1553 = vsel %vm1530, 0.0, %v1549
        %v1554 = vsel %vm1531, 0.0, %v1549
        %v1555 = vsel %vm1532, 0.0, %v1549
        %v1556 = vsel %vm1533, 0.0, %v1549
        %v1557 = vmul.f32 %v588, %v1550
        %v1558 = vmul.f32 %v589, %v1551
        %v1559 = vmul.f32 %v590, %v1552
        %v1560 = vmul.f32 %v591, %v1553
        %v1561 = vmul.f32 %v592, %v1554
        %v1562 = vmul.f32 %v593, %v1555
        %v1563 = vmul.f32 %v594, %v1556
        %v1564 = vsel %vm1125, %v1542, 0.0
        %1565 = vadd.xlane.f32.xlu0 %v1564
        %v1566 = vpop.xlane.xlu0 %1565
        %v1567 = vsel %vm1125, %v1543, 0.0
        %1568 = vadd.xlane.f32.xlu0 %v1567
        %v1569 = vpop.xlane.xlu0 %1568
        %v1570 = vsel %vm1125, %v1544, 0.0
        %1571 = vadd.xlane.f32.xlu0 %v1570
        %v1572 = vpop.xlane.xlu0 %1571
        %v1573 = vsel %vm1125, %v1545, 0.0
        %1574 = vadd.xlane.f32.xlu0 %v1573
        %v1575 = vpop.xlane.xlu0 %1574
        %v1576 = vsel %vm1125, %v1546, 0.0
        %1577 = vadd.xlane.f32.xlu0 %v1576
        %v1578 = vpop.xlane.xlu0 %1577
        %v1579 = vsel %vm1125, %v1547, 0.0
        %1580 = vadd.xlane.f32.xlu0 %v1579
        %v1581 = vpop.xlane.xlu0 %1580
        %v1582 = vsel %vm1125, %v1548, 0.0
        %1583 = vadd.xlane.f32.xlu0 %v1582
        %v1584 = vpop.xlane.xlu0 %1583
        %v1585 = vsel %vm1125, %v1557, 0.0
        %1586 = vadd.xlane.f32.xlu0 %v1585
        %v1587 = vpop.xlane.xlu0 %1586
        %v1588 = vsel %vm1125, %v1558, 0.0
        %1589 = vadd.xlane.f32.xlu0 %v1588
        %v1590 = vpop.xlane.xlu0 %1589
        %v1591 = vsel %vm1125, %v1559, 0.0
        %1592 = vadd.xlane.f32.xlu0 %v1591
        %v1593 = vpop.xlane.xlu0 %1592
        %v1594 = vsel %vm1125, %v1560, 0.0
        %1595 = vadd.xlane.f32.xlu0 %v1594
        %v1596 = vpop.xlane.xlu0 %1595
        %v1597 = vsel %vm1125, %v1561, 0.0
        %1598 = vadd.xlane.f32.xlu0 %v1597
        %v1599 = vpop.xlane.xlu0 %1598
        %v1600 = vsel %vm1125, %v1562, 0.0
        %1601 = vadd.xlane.f32.xlu0 %v1600
        %v1602 = vpop.xlane.xlu0 %1601
        %v1603 = vsel %vm1125, %v1563, 0.0
        %1604 = vadd.xlane.f32.xlu0 %v1603
        %v1605 = vpop.xlane.xlu0 %1604
        %v1606 = vmul.f32 %v951, %v1566
        %v1607 = vmul.f32 %v953, %v1569
        %v1608 = vmul.f32 %v955, %v1572
        %v1609 = vmul.f32 %v957, %v1575
        %v1610 = vmul.f32 %v959, %v1578
        %v1611 = vmul.f32 %v961, %v1581
        %v1612 = vmul.f32 %v963, %v1584
        %v1613 = vmul.f32 %v972, %v1587
        %v1614 = vmul.f32 %v974, %v1590
        %v1615 = vmul.f32 %v976, %v1593
        %v1616 = vmul.f32 %v978, %v1596
        %v1617 = vmul.f32 %v980, %v1599
        %v1618 = vmul.f32 %v982, %v1602
        %v1619 = vmul.f32 %v984, %v1605
        %v1620 = vadd.f32 %v1606, %v1613
        %v1621 = vadd.f32 %v1607, %v1614
        %v1622 = vadd.f32 %v1608, %v1615
        %v1623 = vadd.f32 %v1609, %v1616
        %v1624 = vadd.f32 %v1610, %v1617
        %v1625 = vadd.f32 %v1611, %v1618
        %v1626 = vadd.f32 %v1612, %v1619
        %v1627 = vmax.f32 %v1620, 1e-30
        %v1628 = vmax.f32 %v1621, 1e-30
        %v1629 = vmax.f32 %v1622, 1e-30
        %v1630 = vmax.f32 %v1623, 1e-30
        %v1631 = vmax.f32 %v1624, 1e-30
        %v1632 = vmax.f32 %v1625, 1e-30
        %v1633 = vmax.f32 %v1626, 1e-30
        %v1634 = vrcp.pop %v1627
        %v1635 = vrcp.pop %v1628
        %v1636 = vrcp.pop %v1629
        %v1637 = vrcp.pop %v1630
        %v1638 = vrcp.pop %v1631
        %v1639 = vrcp.pop %v1632
        %v1640 = vrcp.pop %v1633
        %v1641 = vmul.f32 %v1032, %v1634
        %v1642 = vmul.f32 %v1034, %v1635
        %v1643 = vmul.f32 %v1036, %v1636
        %v1644 = vmul.f32 %v1038, %v1637
        %v1645 = vmul.f32 %v1040, %v1638
        %v1646 = vmul.f32 %v1042, %v1639
        %v1647 = vmul.f32 %v1044, %v1640
        %vm1648 = vcmp.eq.s32.totalorder %v552, 2
        %v1649 = vsel %vm1648, 1, 0
        %v1650 = vcvt.s32.f32 %v1649
        %1652 = vset.pattern.permute.xlu0 2
        %1653 = vperm.xlu0 %1652, %v1641
        %v1654 = vpop.permute.xlu0 %1653
        %1657 = vset.pattern.permute.xlu0 2
        %1658 = vperm.xlu0 %1657, %v1642
        %v1659 = vpop.permute.xlu0 %1658
        %1662 = vset.pattern.permute.xlu0 2
        %1663 = vperm.xlu0 %1662, %v1643
        %v1664 = vpop.permute.xlu0 %1663
        %1667 = vset.pattern.permute.xlu0 2
        %1668 = vperm.xlu0 %1667, %v1644
        %v1669 = vpop.permute.xlu0 %1668
        %1672 = vset.pattern.permute.xlu0 2
        %1673 = vperm.xlu0 %1672, %v1645
        %v1674 = vpop.permute.xlu0 %1673
        %1677 = vset.pattern.permute.xlu0 2
        %1678 = vperm.xlu0 %1677, %v1646
        %v1679 = vpop.permute.xlu0 %1678
        %1682 = vset.pattern.permute.xlu0 2
        %1683 = vperm.xlu0 %1682, %v1647
        %v1684 = vpop.permute.xlu0 %1683
        %v1686 = vmul.f32 %v1654, %v1650
        %v1687 = vmul.f32 %v1659, %v1650
        %v1688 = vmul.f32 %v1664, %v1650
        %v1689 = vmul.f32 %v1669, %v1650
        %v1690 = vmul.f32 %v1674, %v1650
        %v1691 = vmul.f32 %v1679, %v1650
        %v1692 = vmul.f32 %v1684, %v1650
        %v1693 = vadd.f32 %v1474, %v1686
        %v1694 = vadd.f32 %v1475, %v1687
        %v1695 = vadd.f32 %v1476, %v1688
        %v1696 = vadd.f32 %v1477, %v1689
        %v1697 = vadd.f32 %v1478, %v1690
        %v1698 = vadd.f32 %v1479, %v1691
        %v1699 = vadd.f32 %v1480, %v1692
        %1700 = vset.pattern.permute.xlu0 3
        %1701 = vperm.xlu0 %1700, %v914
        %v1702 = vpop.permute.xlu0 %1701
        %v1704 = vsub.f32 %v879, %v1702
        %v1705 = vmul.f32 %v1704, 1.442695
        %v1706 = vpow.pop %v1705
        %v1707 = vmul.f32 %v1704, 0.2
        %v1708 = vmul.f32 %v1707, 1.442695
        %v1709 = vpow.pop %v1708
        %1710 = vset.pattern.permute.xlu0 3
        %1711 = vperm.xlu0 %1710, %v811
        %v1712 = vpop.permute.xlu0 %1711
        %1714 = vset.pattern.permute.xlu0 3
        %1715 = vperm.xlu0 %1714, %v812
        %v1716 = vpop.permute.xlu0 %1715
        %1718 = vset.pattern.permute.xlu0 3
        %1719 = vperm.xlu0 %1718, %v813
        %v1720 = vpop.permute.xlu0 %1719
        %1722 = vset.pattern.permute.xlu0 3
        %1723 = vperm.xlu0 %1722, %v814
        %v1724 = vpop.permute.xlu0 %1723
        %1726 = vset.pattern.permute.xlu0 3
        %1727 = vperm.xlu0 %1726, %v815
        %v1728 = vpop.permute.xlu0 %1727
        %1730 = vset.pattern.permute.xlu0 3
        %1731 = vperm.xlu0 %1730, %v816
        %v1732 = vpop.permute.xlu0 %1731
        %1734 = vset.pattern.permute.xlu0 3
        %1735 = vperm.xlu0 %1734, %v817
        %v1736 = vpop.permute.xlu0 %1735
        %v1738 = vperm.slane %v879, 3
        %v1739 = vadd.f32 %v1712, %v1738
        %v1740 = vadd.f32 %v1716, %v1738
        %v1741 = vadd.f32 %v1720, %v1738
        %v1742 = vadd.f32 %v1724, %v1738
        %v1743 = vadd.f32 %v1728, %v1738
        %v1744 = vadd.f32 %v1732, %v1738
        %v1745 = vadd.f32 %v1736, %v1738
        %vm1746 = vcmp.ge.f32.partialorder %v1739, 0.0
        %vm1747 = vcmp.ge.f32.partialorder %v1740, 0.0
        %vm1748 = vcmp.ge.f32.partialorder %v1741, 0.0
        %vm1749 = vcmp.ge.f32.partialorder %v1742, 0.0
        %vm1750 = vcmp.ge.f32.partialorder %v1743, 0.0
        %vm1751 = vcmp.ge.f32.partialorder %v1744, 0.0
        %vm1752 = vcmp.ge.f32.partialorder %v1745, 0.0
        %v1753 = vperm.slane %v1706, 3
        %v1754 = vsel %vm1746, %v1753, 0.0
        %v1755 = vsel %vm1747, %v1753, 0.0
        %v1756 = vsel %vm1748, %v1753, 0.0
        %v1757 = vsel %vm1749, %v1753, 0.0
        %v1758 = vsel %vm1750, %v1753, 0.0
        %v1759 = vsel %vm1751, %v1753, 0.0
        %v1760 = vsel %vm1752, %v1753, 0.0
        %v1761 = vmul.f32 %v588, %v1754
        %v1762 = vmul.f32 %v589, %v1755
        %v1763 = vmul.f32 %v590, %v1756
        %v1764 = vmul.f32 %v591, %v1757
        %v1765 = vmul.f32 %v592, %v1758
        %v1766 = vmul.f32 %v593, %v1759
        %v1767 = vmul.f32 %v594, %v1760
        %v1768 = vperm.slane %v1709, 3
        %v1769 = vsel %vm1746, 0.0, %v1768
        %v1770 = vsel %vm1747, 0.0, %v1768
        %v1771 = vsel %vm1748, 0.0, %v1768
        %v1772 = vsel %vm1749, 0.0, %v1768
        %v1773 = vsel %vm1750, 0.0, %v1768
        %v1774 = vsel %vm1751, 0.0, %v1768
        %v1775 = vsel %vm1752, 0.0, %v1768
        %v1776 = vmul.f32 %v588, %v1769
        %v1777 = vmul.f32 %v589, %v1770
        %v1778 = vmul.f32 %v590, %v1771
        %v1779 = vmul.f32 %v591, %v1772
        %v1780 = vmul.f32 %v592, %v1773
        %v1781 = vmul.f32 %v593, %v1774
        %v1782 = vmul.f32 %v594, %v1775
        %v1783 = vsel %vm1125, %v1761, 0.0
        %1784 = vadd.xlane.f32.xlu0 %v1783
        %v1785 = vpop.xlane.xlu0 %1784
        %v1786 = vsel %vm1125, %v1762, 0.0
        %1787 = vadd.xlane.f32.xlu0 %v1786
        %v1788 = vpop.xlane.xlu0 %1787
        %v1789 = vsel %vm1125, %v1763, 0.0
        %1790 = vadd.xlane.f32.xlu0 %v1789
        %v1791 = vpop.xlane.xlu0 %1790
        %v1792 = vsel %vm1125, %v1764, 0.0
        %1793 = vadd.xlane.f32.xlu0 %v1792
        %v1794 = vpop.xlane.xlu0 %1793
        %v1795 = vsel %vm1125, %v1765, 0.0
        %1796 = vadd.xlane.f32.xlu0 %v1795
        %v1797 = vpop.xlane.xlu0 %1796
        %v1798 = vsel %vm1125, %v1766, 0.0
        %1799 = vadd.xlane.f32.xlu0 %v1798
        %v1800 = vpop.xlane.xlu0 %1799
        %v1801 = vsel %vm1125, %v1767, 0.0
        %1802 = vadd.xlane.f32.xlu0 %v1801
        %v1803 = vpop.xlane.xlu0 %1802
        %v1804 = vsel %vm1125, %v1776, 0.0
        %1805 = vadd.xlane.f32.xlu0 %v1804
        %v1806 = vpop.xlane.xlu0 %1805
        %v1807 = vsel %vm1125, %v1777, 0.0
        %1808 = vadd.xlane.f32.xlu0 %v1807
        %v1809 = vpop.xlane.xlu0 %1808
        %v1810 = vsel %vm1125, %v1778, 0.0
        %1811 = vadd.xlane.f32.xlu0 %v1810
        %v1812 = vpop.xlane.xlu0 %1811
        %v1813 = vsel %vm1125, %v1779, 0.0
        %1814 = vadd.xlane.f32.xlu0 %v1813
        %v1815 = vpop.xlane.xlu0 %1814
        %v1816 = vsel %vm1125, %v1780, 0.0
        %1817 = vadd.xlane.f32.xlu0 %v1816
        %v1818 = vpop.xlane.xlu0 %1817
        %v1819 = vsel %vm1125, %v1781, 0.0
        %1820 = vadd.xlane.f32.xlu0 %v1819
        %v1821 = vpop.xlane.xlu0 %1820
        %v1822 = vsel %vm1125, %v1782, 0.0
        %1823 = vadd.xlane.f32.xlu0 %v1822
        %v1824 = vpop.xlane.xlu0 %1823
        %v1825 = vmul.f32 %v951, %v1785
        %v1826 = vmul.f32 %v953, %v1788
        %v1827 = vmul.f32 %v955, %v1791
        %v1828 = vmul.f32 %v957, %v1794
        %v1829 = vmul.f32 %v959, %v1797
        %v1830 = vmul.f32 %v961, %v1800
        %v1831 = vmul.f32 %v963, %v1803
        %v1832 = vmul.f32 %v972, %v1806
        %v1833 = vmul.f32 %v974, %v1809
        %v1834 = vmul.f32 %v976, %v1812
        %v1835 = vmul.f32 %v978, %v1815
        %v1836 = vmul.f32 %v980, %v1818
        %v1837 = vmul.f32 %v982, %v1821
        %v1838 = vmul.f32 %v984, %v1824
        %v1839 = vadd.f32 %v1825, %v1832
        %v1840 = vadd.f32 %v1826, %v1833
        %v1841 = vadd.f32 %v1827, %v1834
        %v1842 = vadd.f32 %v1828, %v1835
        %v1843 = vadd.f32 %v1829, %v1836
        %v1844 = vadd.f32 %v1830, %v1837
        %v1845 = vadd.f32 %v1831, %v1838
        %v1846 = vmax.f32 %v1839, 1e-30
        %v1847 = vmax.f32 %v1840, 1e-30
        %v1848 = vmax.f32 %v1841, 1e-30
        %v1849 = vmax.f32 %v1842, 1e-30
        %v1850 = vmax.f32 %v1843, 1e-30
        %v1851 = vmax.f32 %v1844, 1e-30
        %v1852 = vmax.f32 %v1845, 1e-30
        %v1853 = vrcp.pop %v1846
        %v1854 = vrcp.pop %v1847
        %v1855 = vrcp.pop %v1848
        %v1856 = vrcp.pop %v1849
        %v1857 = vrcp.pop %v1850
        %v1858 = vrcp.pop %v1851
        %v1859 = vrcp.pop %v1852
        %v1860 = vmul.f32 %v1032, %v1853
        %v1861 = vmul.f32 %v1034, %v1854
        %v1862 = vmul.f32 %v1036, %v1855
        %v1863 = vmul.f32 %v1038, %v1856
        %v1864 = vmul.f32 %v1040, %v1857
        %v1865 = vmul.f32 %v1042, %v1858
        %v1866 = vmul.f32 %v1044, %v1859
        %vm1867 = vcmp.eq.s32.totalorder %v552, 3
        %v1868 = vsel %vm1867, 1, 0
        %v1869 = vcvt.s32.f32 %v1868
        %1871 = vset.pattern.permute.xlu0 3
        %1872 = vperm.xlu0 %1871, %v1860
        %v1873 = vpop.permute.xlu0 %1872
        %1876 = vset.pattern.permute.xlu0 3
        %1877 = vperm.xlu0 %1876, %v1861
        %v1878 = vpop.permute.xlu0 %1877
        %1881 = vset.pattern.permute.xlu0 3
        %1882 = vperm.xlu0 %1881, %v1862
        %v1883 = vpop.permute.xlu0 %1882
        %1886 = vset.pattern.permute.xlu0 3
        %1887 = vperm.xlu0 %1886, %v1863
        %v1888 = vpop.permute.xlu0 %1887
        %1891 = vset.pattern.permute.xlu0 3
        %1892 = vperm.xlu0 %1891, %v1864
        %v1893 = vpop.permute.xlu0 %1892
        %1896 = vset.pattern.permute.xlu0 3
        %1897 = vperm.xlu0 %1896, %v1865
        %v1898 = vpop.permute.xlu0 %1897
        %1901 = vset.pattern.permute.xlu0 3
        %1902 = vperm.xlu0 %1901, %v1866
        %v1903 = vpop.permute.xlu0 %1902
        %v1905 = vmul.f32 %v1873, %v1869
        %v1906 = vmul.f32 %v1878, %v1869
        %v1907 = vmul.f32 %v1883, %v1869
        %v1908 = vmul.f32 %v1888, %v1869
        %v1909 = vmul.f32 %v1893, %v1869
        %v1910 = vmul.f32 %v1898, %v1869
        %v1911 = vmul.f32 %v1903, %v1869
        %v1912 = vadd.f32 %v1693, %v1905
        %v1913 = vadd.f32 %v1694, %v1906
        %v1914 = vadd.f32 %v1695, %v1907
        %v1915 = vadd.f32 %v1696, %v1908
        %v1916 = vadd.f32 %v1697, %v1909
        %v1917 = vadd.f32 %v1698, %v1910
        %v1918 = vadd.f32 %v1699, %v1911
        %1919 = vset.pattern.permute.xlu0 4
        %1920 = vperm.xlu0 %1919, %v914
        %v1921 = vpop.permute.xlu0 %1920
        %v1923 = vsub.f32 %v879, %v1921
        %v1924 = vmul.f32 %v1923, 1.442695
        %v1925 = vpow.pop %v1924
        %v1926 = vmul.f32 %v1923, 0.2
        %v1927 = vmul.f32 %v1926, 1.442695
        %v1928 = vpow.pop %v1927
        %1929 = vset.pattern.permute.xlu0 4
        %1930 = vperm.xlu0 %1929, %v811
        %v1931 = vpop.permute.xlu0 %1930
        %1933 = vset.pattern.permute.xlu0 4
        %1934 = vperm.xlu0 %1933, %v812
        %v1935 = vpop.permute.xlu0 %1934
        %1937 = vset.pattern.permute.xlu0 4
        %1938 = vperm.xlu0 %1937, %v813
        %v1939 = vpop.permute.xlu0 %1938
        %1941 = vset.pattern.permute.xlu0 4
        %1942 = vperm.xlu0 %1941, %v814
        %v1943 = vpop.permute.xlu0 %1942
        %1945 = vset.pattern.permute.xlu0 4
        %1946 = vperm.xlu0 %1945, %v815
        %v1947 = vpop.permute.xlu0 %1946
        %1949 = vset.pattern.permute.xlu0 4
        %1950 = vperm.xlu0 %1949, %v816
        %v1951 = vpop.permute.xlu0 %1950
        %1953 = vset.pattern.permute.xlu0 4
        %1954 = vperm.xlu0 %1953, %v817
        %v1955 = vpop.permute.xlu0 %1954
        %v1957 = vperm.slane %v879, 4
        %v1958 = vadd.f32 %v1931, %v1957
        %v1959 = vadd.f32 %v1935, %v1957
        %v1960 = vadd.f32 %v1939, %v1957
        %v1961 = vadd.f32 %v1943, %v1957
        %v1962 = vadd.f32 %v1947, %v1957
        %v1963 = vadd.f32 %v1951, %v1957
        %v1964 = vadd.f32 %v1955, %v1957
        %vm1965 = vcmp.ge.f32.partialorder %v1958, 0.0
        %vm1966 = vcmp.ge.f32.partialorder %v1959, 0.0
        %vm1967 = vcmp.ge.f32.partialorder %v1960, 0.0
        %vm1968 = vcmp.ge.f32.partialorder %v1961, 0.0
        %vm1969 = vcmp.ge.f32.partialorder %v1962, 0.0
        %vm1970 = vcmp.ge.f32.partialorder %v1963, 0.0
        %vm1971 = vcmp.ge.f32.partialorder %v1964, 0.0
        %v1972 = vperm.slane %v1925, 4
        %v1973 = vsel %vm1965, %v1972, 0.0
        %v1974 = vsel %vm1966, %v1972, 0.0
        %v1975 = vsel %vm1967, %v1972, 0.0
        %v1976 = vsel %vm1968, %v1972, 0.0
        %v1977 = vsel %vm1969, %v1972, 0.0
        %v1978 = vsel %vm1970, %v1972, 0.0
        %v1979 = vsel %vm1971, %v1972, 0.0
        %v1980 = vmul.f32 %v588, %v1973
        %v1981 = vmul.f32 %v589, %v1974
        %v1982 = vmul.f32 %v590, %v1975
        %v1983 = vmul.f32 %v591, %v1976
        %v1984 = vmul.f32 %v592, %v1977
        %v1985 = vmul.f32 %v593, %v1978
        %v1986 = vmul.f32 %v594, %v1979
        %v1987 = vperm.slane %v1928, 4
        %v1988 = vsel %vm1965, 0.0, %v1987
        %v1989 = vsel %vm1966, 0.0, %v1987
        %v1990 = vsel %vm1967, 0.0, %v1987
        %v1991 = vsel %vm1968, 0.0, %v1987
        %v1992 = vsel %vm1969, 0.0, %v1987
        %v1993 = vsel %vm1970, 0.0, %v1987
        %v1994 = vsel %vm1971, 0.0, %v1987
        %v1995 = vmul.f32 %v588, %v1988
        %v1996 = vmul.f32 %v589, %v1989
        %v1997 = vmul.f32 %v590, %v1990
        %v1998 = vmul.f32 %v591, %v1991
        %v1999 = vmul.f32 %v592, %v1992
        %v2000 = vmul.f32 %v593, %v1993
        %v2001 = vmul.f32 %v594, %v1994
        %v2002 = vsel %vm1125, %v1980, 0.0
        %2003 = vadd.xlane.f32.xlu0 %v2002
        %v2004 = vpop.xlane.xlu0 %2003
        %v2005 = vsel %vm1125, %v1981, 0.0
        %2006 = vadd.xlane.f32.xlu0 %v2005
        %v2007 = vpop.xlane.xlu0 %2006
        %v2008 = vsel %vm1125, %v1982, 0.0
        %2009 = vadd.xlane.f32.xlu0 %v2008
        %v2010 = vpop.xlane.xlu0 %2009
        %v2011 = vsel %vm1125, %v1983, 0.0
        %2012 = vadd.xlane.f32.xlu0 %v2011
        %v2013 = vpop.xlane.xlu0 %2012
        %v2014 = vsel %vm1125, %v1984, 0.0
        %2015 = vadd.xlane.f32.xlu0 %v2014
        %v2016 = vpop.xlane.xlu0 %2015
        %v2017 = vsel %vm1125, %v1985, 0.0
        %2018 = vadd.xlane.f32.xlu0 %v2017
        %v2019 = vpop.xlane.xlu0 %2018
        %v2020 = vsel %vm1125, %v1986, 0.0
        %2021 = vadd.xlane.f32.xlu0 %v2020
        %v2022 = vpop.xlane.xlu0 %2021
        %v2023 = vsel %vm1125, %v1995, 0.0
        %2024 = vadd.xlane.f32.xlu0 %v2023
        %v2025 = vpop.xlane.xlu0 %2024
        %v2026 = vsel %vm1125, %v1996, 0.0
        %2027 = vadd.xlane.f32.xlu0 %v2026
        %v2028 = vpop.xlane.xlu0 %2027
        %v2029 = vsel %vm1125, %v1997, 0.0
        %2030 = vadd.xlane.f32.xlu0 %v2029
        %v2031 = vpop.xlane.xlu0 %2030
        %v2032 = vsel %vm1125, %v1998, 0.0
        %2033 = vadd.xlane.f32.xlu0 %v2032
        %v2034 = vpop.xlane.xlu0 %2033
        %v2035 = vsel %vm1125, %v1999, 0.0
        %2036 = vadd.xlane.f32.xlu0 %v2035
        %v2037 = vpop.xlane.xlu0 %2036
        %v2038 = vsel %vm1125, %v2000, 0.0
        %2039 = vadd.xlane.f32.xlu0 %v2038
        %v2040 = vpop.xlane.xlu0 %2039
        %v2041 = vsel %vm1125, %v2001, 0.0
        %2042 = vadd.xlane.f32.xlu0 %v2041
        %v2043 = vpop.xlane.xlu0 %2042
        %v2044 = vmul.f32 %v951, %v2004
        %v2045 = vmul.f32 %v953, %v2007
        %v2046 = vmul.f32 %v955, %v2010
        %v2047 = vmul.f32 %v957, %v2013
        %v2048 = vmul.f32 %v959, %v2016
        %v2049 = vmul.f32 %v961, %v2019
        %v2050 = vmul.f32 %v963, %v2022
        %v2051 = vmul.f32 %v972, %v2025
        %v2052 = vmul.f32 %v974, %v2028
        %v2053 = vmul.f32 %v976, %v2031
        %v2054 = vmul.f32 %v978, %v2034
        %v2055 = vmul.f32 %v980, %v2037
        %v2056 = vmul.f32 %v982, %v2040
        %v2057 = vmul.f32 %v984, %v2043
        %v2058 = vadd.f32 %v2044, %v2051
        %v2059 = vadd.f32 %v2045, %v2052
        %v2060 = vadd.f32 %v2046, %v2053
        %v2061 = vadd.f32 %v2047, %v2054
        %v2062 = vadd.f32 %v2048, %v2055
        %v2063 = vadd.f32 %v2049, %v2056
        %v2064 = vadd.f32 %v2050, %v2057
        %v2065 = vmax.f32 %v2058, 1e-30
        %v2066 = vmax.f32 %v2059, 1e-30
        %v2067 = vmax.f32 %v2060, 1e-30
        %v2068 = vmax.f32 %v2061, 1e-30
        %v2069 = vmax.f32 %v2062, 1e-30
        %v2070 = vmax.f32 %v2063, 1e-30
        %v2071 = vmax.f32 %v2064, 1e-30
        %v2072 = vrcp.pop %v2065
        %v2073 = vrcp.pop %v2066
        %v2074 = vrcp.pop %v2067
        %v2075 = vrcp.pop %v2068
        %v2076 = vrcp.pop %v2069
        %v2077 = vrcp.pop %v2070
        %v2078 = vrcp.pop %v2071
        %v2079 = vmul.f32 %v1032, %v2072
        %v2080 = vmul.f32 %v1034, %v2073
        %v2081 = vmul.f32 %v1036, %v2074
        %v2082 = vmul.f32 %v1038, %v2075
        %v2083 = vmul.f32 %v1040, %v2076
        %v2084 = vmul.f32 %v1042, %v2077
        %v2085 = vmul.f32 %v1044, %v2078
        %vm2086 = vcmp.eq.s32.totalorder %v552, 4
        %v2087 = vsel %vm2086, 1, 0
        %v2088 = vcvt.s32.f32 %v2087
        %2090 = vset.pattern.permute.xlu0 4
        %2091 = vperm.xlu0 %2090, %v2079
        %v2092 = vpop.permute.xlu0 %2091
        %2095 = vset.pattern.permute.xlu0 4
        %2096 = vperm.xlu0 %2095, %v2080
        %v2097 = vpop.permute.xlu0 %2096
        %2100 = vset.pattern.permute.xlu0 4
        %2101 = vperm.xlu0 %2100, %v2081
        %v2102 = vpop.permute.xlu0 %2101
        %2105 = vset.pattern.permute.xlu0 4
        %2106 = vperm.xlu0 %2105, %v2082
        %v2107 = vpop.permute.xlu0 %2106
        %2110 = vset.pattern.permute.xlu0 4
        %2111 = vperm.xlu0 %2110, %v2083
        %v2112 = vpop.permute.xlu0 %2111
        %2115 = vset.pattern.permute.xlu0 4
        %2116 = vperm.xlu0 %2115, %v2084
        %v2117 = vpop.permute.xlu0 %2116
        %2120 = vset.pattern.permute.xlu0 4
        %2121 = vperm.xlu0 %2120, %v2085
        %v2122 = vpop.permute.xlu0 %2121
        %v2124 = vmul.f32 %v2092, %v2088
        %v2125 = vmul.f32 %v2097, %v2088
        %v2126 = vmul.f32 %v2102, %v2088
        %v2127 = vmul.f32 %v2107, %v2088
        %v2128 = vmul.f32 %v2112, %v2088
        %v2129 = vmul.f32 %v2117, %v2088
        %v2130 = vmul.f32 %v2122, %v2088
        %v2131 = vadd.f32 %v1912, %v2124
        %v2132 = vadd.f32 %v1913, %v2125
        %v2133 = vadd.f32 %v1914, %v2126
        %v2134 = vadd.f32 %v1915, %v2127
        %v2135 = vadd.f32 %v1916, %v2128
        %v2136 = vadd.f32 %v1917, %v2129
        %v2137 = vadd.f32 %v1918, %v2130
        %2138 = vset.pattern.permute.xlu0 5
        %2139 = vperm.xlu0 %2138, %v914
        %v2140 = vpop.permute.xlu0 %2139
        %v2142 = vsub.f32 %v879, %v2140
        %v2143 = vmul.f32 %v2142, 1.442695
        %v2144 = vpow.pop %v2143
        %v2145 = vmul.f32 %v2142, 0.2
        %v2146 = vmul.f32 %v2145, 1.442695
        %v2147 = vpow.pop %v2146
        %2148 = vset.pattern.permute.xlu0 5
        %2149 = vperm.xlu0 %2148, %v811
        %v2150 = vpop.permute.xlu0 %2149
        %2152 = vset.pattern.permute.xlu0 5
        %2153 = vperm.xlu0 %2152, %v812
        %v2154 = vpop.permute.xlu0 %2153
        %2156 = vset.pattern.permute.xlu0 5
        %2157 = vperm.xlu0 %2156, %v813
        %v2158 = vpop.permute.xlu0 %2157
        %2160 = vset.pattern.permute.xlu0 5
        %2161 = vperm.xlu0 %2160, %v814
        %v2162 = vpop.permute.xlu0 %2161
        %2164 = vset.pattern.permute.xlu0 5
        %2165 = vperm.xlu0 %2164, %v815
        %v2166 = vpop.permute.xlu0 %2165
        %2168 = vset.pattern.permute.xlu0 5
        %2169 = vperm.xlu0 %2168, %v816
        %v2170 = vpop.permute.xlu0 %2169
        %2172 = vset.pattern.permute.xlu0 5
        %2173 = vperm.xlu0 %2172, %v817
        %v2174 = vpop.permute.xlu0 %2173
        %v2176 = vperm.slane %v879, 5
        %v2177 = vadd.f32 %v2150, %v2176
        %v2178 = vadd.f32 %v2154, %v2176
        %v2179 = vadd.f32 %v2158, %v2176
        %v2180 = vadd.f32 %v2162, %v2176
        %v2181 = vadd.f32 %v2166, %v2176
        %v2182 = vadd.f32 %v2170, %v2176
        %v2183 = vadd.f32 %v2174, %v2176
        %vm2184 = vcmp.ge.f32.partialorder %v2177, 0.0
        %vm2185 = vcmp.ge.f32.partialorder %v2178, 0.0
        %vm2186 = vcmp.ge.f32.partialorder %v2179, 0.0
        %vm2187 = vcmp.ge.f32.partialorder %v2180, 0.0
        %vm2188 = vcmp.ge.f32.partialorder %v2181, 0.0
        %vm2189 = vcmp.ge.f32.partialorder %v2182, 0.0
        %vm2190 = vcmp.ge.f32.partialorder %v2183, 0.0
        %v2191 = vperm.slane %v2144, 5
        %v2192 = vsel %vm2184, %v2191, 0.0
        %v2193 = vsel %vm2185, %v2191, 0.0
        %v2194 = vsel %vm2186, %v2191, 0.0
        %v2195 = vsel %vm2187, %v2191, 0.0
        %v2196 = vsel %vm2188, %v2191, 0.0
        %v2197 = vsel %vm2189, %v2191, 0.0
        %v2198 = vsel %vm2190, %v2191, 0.0
        %v2199 = vmul.f32 %v588, %v2192
        %v2200 = vmul.f32 %v589, %v2193
        %v2201 = vmul.f32 %v590, %v2194
        %v2202 = vmul.f32 %v591, %v2195
        %v2203 = vmul.f32 %v592, %v2196
        %v2204 = vmul.f32 %v593, %v2197
        %v2205 = vmul.f32 %v594, %v2198
        %v2206 = vperm.slane %v2147, 5
        %v2207 = vsel %vm2184, 0.0, %v2206
        %v2208 = vsel %vm2185, 0.0, %v2206
        %v2209 = vsel %vm2186, 0.0, %v2206
        %v2210 = vsel %vm2187, 0.0, %v2206
        %v2211 = vsel %vm2188, 0.0, %v2206
        %v2212 = vsel %vm2189, 0.0, %v2206
        %v2213 = vsel %vm2190, 0.0, %v2206
        %v2214 = vmul.f32 %v588, %v2207
        %v2215 = vmul.f32 %v589, %v2208
        %v2216 = vmul.f32 %v590, %v2209
        %v2217 = vmul.f32 %v591, %v2210
        %v2218 = vmul.f32 %v592, %v2211
        %v2219 = vmul.f32 %v593, %v2212
        %v2220 = vmul.f32 %v594, %v2213
        %v2221 = vsel %vm1125, %v2199, 0.0
        %2222 = vadd.xlane.f32.xlu0 %v2221
        %v2223 = vpop.xlane.xlu0 %2222
        %v2224 = vsel %vm1125, %v2200, 0.0
        %2225 = vadd.xlane.f32.xlu0 %v2224
        %v2226 = vpop.xlane.xlu0 %2225
        %v2227 = vsel %vm1125, %v2201, 0.0
        %2228 = vadd.xlane.f32.xlu0 %v2227
        %v2229 = vpop.xlane.xlu0 %2228
        %v2230 = vsel %vm1125, %v2202, 0.0
        %2231 = vadd.xlane.f32.xlu0 %v2230
        %v2232 = vpop.xlane.xlu0 %2231
        %v2233 = vsel %vm1125, %v2203, 0.0
        %2234 = vadd.xlane.f32.xlu0 %v2233
        %v2235 = vpop.xlane.xlu0 %2234
        %v2236 = vsel %vm1125, %v2204, 0.0
        %2237 = vadd.xlane.f32.xlu0 %v2236
        %v2238 = vpop.xlane.xlu0 %2237
        %v2239 = vsel %vm1125, %v2205, 0.0
        %2240 = vadd.xlane.f32.xlu0 %v2239
        %v2241 = vpop.xlane.xlu0 %2240
        %v2242 = vsel %vm1125, %v2214, 0.0
        %2243 = vadd.xlane.f32.xlu0 %v2242
        %v2244 = vpop.xlane.xlu0 %2243
        %v2245 = vsel %vm1125, %v2215, 0.0
        %2246 = vadd.xlane.f32.xlu0 %v2245
        %v2247 = vpop.xlane.xlu0 %2246
        %v2248 = vsel %vm1125, %v2216, 0.0
        %2249 = vadd.xlane.f32.xlu0 %v2248
        %v2250 = vpop.xlane.xlu0 %2249
        %v2251 = vsel %vm1125, %v2217, 0.0
        %2252 = vadd.xlane.f32.xlu0 %v2251
        %v2253 = vpop.xlane.xlu0 %2252
        %v2254 = vsel %vm1125, %v2218, 0.0
        %2255 = vadd.xlane.f32.xlu0 %v2254
        %v2256 = vpop.xlane.xlu0 %2255
        %v2257 = vsel %vm1125, %v2219, 0.0
        %2258 = vadd.xlane.f32.xlu0 %v2257
        %v2259 = vpop.xlane.xlu0 %2258
        %v2260 = vsel %vm1125, %v2220, 0.0
        %2261 = vadd.xlane.f32.xlu0 %v2260
        %v2262 = vpop.xlane.xlu0 %2261
        %v2263 = vmul.f32 %v951, %v2223
        %v2264 = vmul.f32 %v953, %v2226
        %v2265 = vmul.f32 %v955, %v2229
        %v2266 = vmul.f32 %v957, %v2232
        %v2267 = vmul.f32 %v959, %v2235
        %v2268 = vmul.f32 %v961, %v2238
        %v2269 = vmul.f32 %v963, %v2241
        %v2270 = vmul.f32 %v972, %v2244
        %v2271 = vmul.f32 %v974, %v2247
        %v2272 = vmul.f32 %v976, %v2250
        %v2273 = vmul.f32 %v978, %v2253
        %v2274 = vmul.f32 %v980, %v2256
        %v2275 = vmul.f32 %v982, %v2259
        %v2276 = vmul.f32 %v984, %v2262
        %v2277 = vadd.f32 %v2263, %v2270
        %v2278 = vadd.f32 %v2264, %v2271
        %v2279 = vadd.f32 %v2265, %v2272
        %v2280 = vadd.f32 %v2266, %v2273
        %v2281 = vadd.f32 %v2267, %v2274
        %v2282 = vadd.f32 %v2268, %v2275
        %v2283 = vadd.f32 %v2269, %v2276
        %v2284 = vmax.f32 %v2277, 1e-30
        %v2285 = vmax.f32 %v2278, 1e-30
        %v2286 = vmax.f32 %v2279, 1e-30
        %v2287 = vmax.f32 %v2280, 1e-30
        %v2288 = vmax.f32 %v2281, 1e-30
        %v2289 = vmax.f32 %v2282, 1e-30
        %v2290 = vmax.f32 %v2283, 1e-30
        %v2291 = vrcp.pop %v2284
        %v2292 = vrcp.pop %v2285
        %v2293 = vrcp.pop %v2286
        %v2294 = vrcp.pop %v2287
        %v2295 = vrcp.pop %v2288
        %v2296 = vrcp.pop %v2289
        %v2297 = vrcp.pop %v2290
        %v2298 = vmul.f32 %v1032, %v2291
        %v2299 = vmul.f32 %v1034, %v2292
        %v2300 = vmul.f32 %v1036, %v2293
        %v2301 = vmul.f32 %v1038, %v2294
        %v2302 = vmul.f32 %v1040, %v2295
        %v2303 = vmul.f32 %v1042, %v2296
        %v2304 = vmul.f32 %v1044, %v2297
        %vm2305 = vcmp.eq.s32.totalorder %v552, 5
        %v2306 = vsel %vm2305, 1, 0
        %v2307 = vcvt.s32.f32 %v2306
        %2309 = vset.pattern.permute.xlu0 5
        %2310 = vperm.xlu0 %2309, %v2298
        %v2311 = vpop.permute.xlu0 %2310
        %2314 = vset.pattern.permute.xlu0 5
        %2315 = vperm.xlu0 %2314, %v2299
        %v2316 = vpop.permute.xlu0 %2315
        %2319 = vset.pattern.permute.xlu0 5
        %2320 = vperm.xlu0 %2319, %v2300
        %v2321 = vpop.permute.xlu0 %2320
        %2324 = vset.pattern.permute.xlu0 5
        %2325 = vperm.xlu0 %2324, %v2301
        %v2326 = vpop.permute.xlu0 %2325
        %2329 = vset.pattern.permute.xlu0 5
        %2330 = vperm.xlu0 %2329, %v2302
        %v2331 = vpop.permute.xlu0 %2330
        %2334 = vset.pattern.permute.xlu0 5
        %2335 = vperm.xlu0 %2334, %v2303
        %v2336 = vpop.permute.xlu0 %2335
        %2339 = vset.pattern.permute.xlu0 5
        %2340 = vperm.xlu0 %2339, %v2304
        %v2341 = vpop.permute.xlu0 %2340
        %v2343 = vmul.f32 %v2311, %v2307
        %v2344 = vmul.f32 %v2316, %v2307
        %v2345 = vmul.f32 %v2321, %v2307
        %v2346 = vmul.f32 %v2326, %v2307
        %v2347 = vmul.f32 %v2331, %v2307
        %v2348 = vmul.f32 %v2336, %v2307
        %v2349 = vmul.f32 %v2341, %v2307
        %v2350 = vadd.f32 %v2131, %v2343
        %v2351 = vadd.f32 %v2132, %v2344
        %v2352 = vadd.f32 %v2133, %v2345
        %v2353 = vadd.f32 %v2134, %v2346
        %v2354 = vadd.f32 %v2135, %v2347
        %v2355 = vadd.f32 %v2136, %v2348
        %v2356 = vadd.f32 %v2137, %v2349
        %2357 = vset.pattern.permute.xlu0 6
        %2358 = vperm.xlu0 %2357, %v914
        %v2359 = vpop.permute.xlu0 %2358
        %v2361 = vsub.f32 %v879, %v2359
        %v2362 = vmul.f32 %v2361, 1.442695
        %v2363 = vpow.pop %v2362
        %v2364 = vmul.f32 %v2361, 0.2
        %v2365 = vmul.f32 %v2364, 1.442695
        %v2366 = vpow.pop %v2365
        %2367 = vset.pattern.permute.xlu0 6
        %2368 = vperm.xlu0 %2367, %v811
        %v2369 = vpop.permute.xlu0 %2368
        %2371 = vset.pattern.permute.xlu0 6
        %2372 = vperm.xlu0 %2371, %v812
        %v2373 = vpop.permute.xlu0 %2372
        %2375 = vset.pattern.permute.xlu0 6
        %2376 = vperm.xlu0 %2375, %v813
        %v2377 = vpop.permute.xlu0 %2376
        %2379 = vset.pattern.permute.xlu0 6
        %2380 = vperm.xlu0 %2379, %v814
        %v2381 = vpop.permute.xlu0 %2380
        %2383 = vset.pattern.permute.xlu0 6
        %2384 = vperm.xlu0 %2383, %v815
        %v2385 = vpop.permute.xlu0 %2384
        %2387 = vset.pattern.permute.xlu0 6
        %2388 = vperm.xlu0 %2387, %v816
        %v2389 = vpop.permute.xlu0 %2388
        %2391 = vset.pattern.permute.xlu0 6
        %2392 = vperm.xlu0 %2391, %v817
        %v2393 = vpop.permute.xlu0 %2392
        %v2395 = vperm.slane %v879, 6
        %v2396 = vadd.f32 %v2369, %v2395
        %v2397 = vadd.f32 %v2373, %v2395
        %v2398 = vadd.f32 %v2377, %v2395
        %v2399 = vadd.f32 %v2381, %v2395
        %v2400 = vadd.f32 %v2385, %v2395
        %v2401 = vadd.f32 %v2389, %v2395
        %v2402 = vadd.f32 %v2393, %v2395
        %vm2403 = vcmp.ge.f32.partialorder %v2396, 0.0
        %vm2404 = vcmp.ge.f32.partialorder %v2397, 0.0
        %vm2405 = vcmp.ge.f32.partialorder %v2398, 0.0
        %vm2406 = vcmp.ge.f32.partialorder %v2399, 0.0
        %vm2407 = vcmp.ge.f32.partialorder %v2400, 0.0
        %vm2408 = vcmp.ge.f32.partialorder %v2401, 0.0
        %vm2409 = vcmp.ge.f32.partialorder %v2402, 0.0
        %v2410 = vperm.slane %v2363, 6
        %v2411 = vsel %vm2403, %v2410, 0.0
        %v2412 = vsel %vm2404, %v2410, 0.0
        %v2413 = vsel %vm2405, %v2410, 0.0
        %v2414 = vsel %vm2406, %v2410, 0.0
        %v2415 = vsel %vm2407, %v2410, 0.0
        %v2416 = vsel %vm2408, %v2410, 0.0
        %v2417 = vsel %vm2409, %v2410, 0.0
        %v2418 = vmul.f32 %v588, %v2411
        %v2419 = vmul.f32 %v589, %v2412
        %v2420 = vmul.f32 %v590, %v2413
        %v2421 = vmul.f32 %v591, %v2414
        %v2422 = vmul.f32 %v592, %v2415
        %v2423 = vmul.f32 %v593, %v2416
        %v2424 = vmul.f32 %v594, %v2417
        %v2425 = vperm.slane %v2366, 6
        %v2426 = vsel %vm2403, 0.0, %v2425
        %v2427 = vsel %vm2404, 0.0, %v2425
        %v2428 = vsel %vm2405, 0.0, %v2425
        %v2429 = vsel %vm2406, 0.0, %v2425
        %v2430 = vsel %vm2407, 0.0, %v2425
        %v2431 = vsel %vm2408, 0.0, %v2425
        %v2432 = vsel %vm2409, 0.0, %v2425
        %v2433 = vmul.f32 %v588, %v2426
        %v2434 = vmul.f32 %v589, %v2427
        %v2435 = vmul.f32 %v590, %v2428
        %v2436 = vmul.f32 %v591, %v2429
        %v2437 = vmul.f32 %v592, %v2430
        %v2438 = vmul.f32 %v593, %v2431
        %v2439 = vmul.f32 %v594, %v2432
        %v2440 = vsel %vm1125, %v2418, 0.0
        %2441 = vadd.xlane.f32.xlu0 %v2440
        %v2442 = vpop.xlane.xlu0 %2441
        %v2443 = vsel %vm1125, %v2419, 0.0
        %2444 = vadd.xlane.f32.xlu0 %v2443
        %v2445 = vpop.xlane.xlu0 %2444
        %v2446 = vsel %vm1125, %v2420, 0.0
        %2447 = vadd.xlane.f32.xlu0 %v2446
        %v2448 = vpop.xlane.xlu0 %2447
        %v2449 = vsel %vm1125, %v2421, 0.0
        %2450 = vadd.xlane.f32.xlu0 %v2449
        %v2451 = vpop.xlane.xlu0 %2450
        %v2452 = vsel %vm1125, %v2422, 0.0
        %2453 = vadd.xlane.f32.xlu0 %v2452
        %v2454 = vpop.xlane.xlu0 %2453
        %v2455 = vsel %vm1125, %v2423, 0.0
        %2456 = vadd.xlane.f32.xlu0 %v2455
        %v2457 = vpop.xlane.xlu0 %2456
        %v2458 = vsel %vm1125, %v2424, 0.0
        %2459 = vadd.xlane.f32.xlu0 %v2458
        %v2460 = vpop.xlane.xlu0 %2459
        %v2461 = vsel %vm1125, %v2433, 0.0
        %2462 = vadd.xlane.f32.xlu0 %v2461
        %v2463 = vpop.xlane.xlu0 %2462
        %v2464 = vsel %vm1125, %v2434, 0.0
        %2465 = vadd.xlane.f32.xlu0 %v2464
        %v2466 = vpop.xlane.xlu0 %2465
        %v2467 = vsel %vm1125, %v2435, 0.0
        %2468 = vadd.xlane.f32.xlu0 %v2467
        %v2469 = vpop.xlane.xlu0 %2468
        %v2470 = vsel %vm1125, %v2436, 0.0
        %2471 = vadd.xlane.f32.xlu0 %v2470
        %v2472 = vpop.xlane.xlu0 %2471
        %v2473 = vsel %vm1125, %v2437, 0.0
        %2474 = vadd.xlane.f32.xlu0 %v2473
        %v2475 = vpop.xlane.xlu0 %2474
        %v2476 = vsel %vm1125, %v2438, 0.0
        %2477 = vadd.xlane.f32.xlu0 %v2476
        %v2478 = vpop.xlane.xlu0 %2477
        %v2479 = vsel %vm1125, %v2439, 0.0
        %2480 = vadd.xlane.f32.xlu0 %v2479
        %v2481 = vpop.xlane.xlu0 %2480
        %v2482 = vmul.f32 %v951, %v2442
        %v2483 = vmul.f32 %v953, %v2445
        %v2484 = vmul.f32 %v955, %v2448
        %v2485 = vmul.f32 %v957, %v2451
        %v2486 = vmul.f32 %v959, %v2454
        %v2487 = vmul.f32 %v961, %v2457
        %v2488 = vmul.f32 %v963, %v2460
        %v2489 = vmul.f32 %v972, %v2463
        %v2490 = vmul.f32 %v974, %v2466
        %v2491 = vmul.f32 %v976, %v2469
        %v2492 = vmul.f32 %v978, %v2472
        %v2493 = vmul.f32 %v980, %v2475
        %v2494 = vmul.f32 %v982, %v2478
        %v2495 = vmul.f32 %v984, %v2481
        %v2496 = vadd.f32 %v2482, %v2489
        %v2497 = vadd.f32 %v2483, %v2490
        %v2498 = vadd.f32 %v2484, %v2491
        %v2499 = vadd.f32 %v2485, %v2492
        %v2500 = vadd.f32 %v2486, %v2493
        %v2501 = vadd.f32 %v2487, %v2494
        %v2502 = vadd.f32 %v2488, %v2495
        %v2503 = vmax.f32 %v2496, 1e-30
        %v2504 = vmax.f32 %v2497, 1e-30
        %v2505 = vmax.f32 %v2498, 1e-30
        %v2506 = vmax.f32 %v2499, 1e-30
        %v2507 = vmax.f32 %v2500, 1e-30
        %v2508 = vmax.f32 %v2501, 1e-30
        %v2509 = vmax.f32 %v2502, 1e-30
        %v2510 = vrcp.pop %v2503
        %v2511 = vrcp.pop %v2504
        %v2512 = vrcp.pop %v2505
        %v2513 = vrcp.pop %v2506
        %v2514 = vrcp.pop %v2507
        %v2515 = vrcp.pop %v2508
        %v2516 = vrcp.pop %v2509
        %v2517 = vmul.f32 %v1032, %v2510
        %v2518 = vmul.f32 %v1034, %v2511
        %v2519 = vmul.f32 %v1036, %v2512
        %v2520 = vmul.f32 %v1038, %v2513
        %v2521 = vmul.f32 %v1040, %v2514
        %v2522 = vmul.f32 %v1042, %v2515
        %v2523 = vmul.f32 %v1044, %v2516
        %vm2524 = vcmp.eq.s32.totalorder %v552, 6
        %v2525 = vsel %vm2524, 1, 0
        %v2526 = vcvt.s32.f32 %v2525
        %2528 = vset.pattern.permute.xlu0 6
        %2529 = vperm.xlu0 %2528, %v2517
        %v2530 = vpop.permute.xlu0 %2529
        %2533 = vset.pattern.permute.xlu0 6
        %2534 = vperm.xlu0 %2533, %v2518
        %v2535 = vpop.permute.xlu0 %2534
        %2538 = vset.pattern.permute.xlu0 6
        %2539 = vperm.xlu0 %2538, %v2519
        %v2540 = vpop.permute.xlu0 %2539
        %2543 = vset.pattern.permute.xlu0 6
        %2544 = vperm.xlu0 %2543, %v2520
        %v2545 = vpop.permute.xlu0 %2544
        %2548 = vset.pattern.permute.xlu0 6
        %2549 = vperm.xlu0 %2548, %v2521
        %v2550 = vpop.permute.xlu0 %2549
        %2553 = vset.pattern.permute.xlu0 6
        %2554 = vperm.xlu0 %2553, %v2522
        %v2555 = vpop.permute.xlu0 %2554
        %2558 = vset.pattern.permute.xlu0 6
        %2559 = vperm.xlu0 %2558, %v2523
        %v2560 = vpop.permute.xlu0 %2559
        %v2562 = vmul.f32 %v2530, %v2526
        %v2563 = vmul.f32 %v2535, %v2526
        %v2564 = vmul.f32 %v2540, %v2526
        %v2565 = vmul.f32 %v2545, %v2526
        %v2566 = vmul.f32 %v2550, %v2526
        %v2567 = vmul.f32 %v2555, %v2526
        %v2568 = vmul.f32 %v2560, %v2526
        %v2569 = vadd.f32 %v2350, %v2562
        %v2570 = vadd.f32 %v2351, %v2563
        %v2571 = vadd.f32 %v2352, %v2564
        %v2572 = vadd.f32 %v2353, %v2565
        %v2573 = vadd.f32 %v2354, %v2566
        %v2574 = vadd.f32 %v2355, %v2567
        %v2575 = vadd.f32 %v2356, %v2568
        %2576 = vset.pattern.permute.xlu0 7
        %2577 = vperm.xlu0 %2576, %v914
        %v2578 = vpop.permute.xlu0 %2577
        %v2580 = vsub.f32 %v879, %v2578
        %v2581 = vmul.f32 %v2580, 1.442695
        %v2582 = vpow.pop %v2581
        %v2583 = vmul.f32 %v2580, 0.2
        %v2584 = vmul.f32 %v2583, 1.442695
        %v2585 = vpow.pop %v2584
        %2586 = vset.pattern.permute.xlu0 7
        %2587 = vperm.xlu0 %2586, %v811
        %v2588 = vpop.permute.xlu0 %2587
        %2590 = vset.pattern.permute.xlu0 7
        %2591 = vperm.xlu0 %2590, %v812
        %v2592 = vpop.permute.xlu0 %2591
        %2594 = vset.pattern.permute.xlu0 7
        %2595 = vperm.xlu0 %2594, %v813
        %v2596 = vpop.permute.xlu0 %2595
        %2598 = vset.pattern.permute.xlu0 7
        %2599 = vperm.xlu0 %2598, %v814
        %v2600 = vpop.permute.xlu0 %2599
        %2602 = vset.pattern.permute.xlu0 7
        %2603 = vperm.xlu0 %2602, %v815
        %v2604 = vpop.permute.xlu0 %2603
        %2606 = vset.pattern.permute.xlu0 7
        %2607 = vperm.xlu0 %2606, %v816
        %v2608 = vpop.permute.xlu0 %2607
        %2610 = vset.pattern.permute.xlu0 7
        %2611 = vperm.xlu0 %2610, %v817
        %v2612 = vpop.permute.xlu0 %2611
        %v2614 = vperm.slane %v879, 7
        %v2615 = vadd.f32 %v2588, %v2614
        %v2616 = vadd.f32 %v2592, %v2614
        %v2617 = vadd.f32 %v2596, %v2614
        %v2618 = vadd.f32 %v2600, %v2614
        %v2619 = vadd.f32 %v2604, %v2614
        %v2620 = vadd.f32 %v2608, %v2614
        %v2621 = vadd.f32 %v2612, %v2614
        %vm2622 = vcmp.ge.f32.partialorder %v2615, 0.0
        %vm2623 = vcmp.ge.f32.partialorder %v2616, 0.0
        %vm2624 = vcmp.ge.f32.partialorder %v2617, 0.0
        %vm2625 = vcmp.ge.f32.partialorder %v2618, 0.0
        %vm2626 = vcmp.ge.f32.partialorder %v2619, 0.0
        %vm2627 = vcmp.ge.f32.partialorder %v2620, 0.0
        %vm2628 = vcmp.ge.f32.partialorder %v2621, 0.0
        %v2629 = vperm.slane %v2582, 7
        %v2630 = vsel %vm2622, %v2629, 0.0
        %v2631 = vsel %vm2623, %v2629, 0.0
        %v2632 = vsel %vm2624, %v2629, 0.0
        %v2633 = vsel %vm2625, %v2629, 0.0
        %v2634 = vsel %vm2626, %v2629, 0.0
        %v2635 = vsel %vm2627, %v2629, 0.0
        %v2636 = vsel %vm2628, %v2629, 0.0
        %v2637 = vmul.f32 %v588, %v2630
        %v2638 = vmul.f32 %v589, %v2631
        %v2639 = vmul.f32 %v590, %v2632
        %v2640 = vmul.f32 %v591, %v2633
        %v2641 = vmul.f32 %v592, %v2634
        %v2642 = vmul.f32 %v593, %v2635
        %v2643 = vmul.f32 %v594, %v2636
        %v2644 = vperm.slane %v2585, 7
        %v2645 = vsel %vm2622, 0.0, %v2644
        %v2646 = vsel %vm2623, 0.0, %v2644
        %v2647 = vsel %vm2624, 0.0, %v2644
        %v2648 = vsel %vm2625, 0.0, %v2644
        %v2649 = vsel %vm2626, 0.0, %v2644
        %v2650 = vsel %vm2627, 0.0, %v2644
        %v2651 = vsel %vm2628, 0.0, %v2644
        %v2652 = vmul.f32 %v588, %v2645
        %v2653 = vmul.f32 %v589, %v2646
        %v2654 = vmul.f32 %v590, %v2647
        %v2655 = vmul.f32 %v591, %v2648
        %v2656 = vmul.f32 %v592, %v2649
        %v2657 = vmul.f32 %v593, %v2650
        %v2658 = vmul.f32 %v594, %v2651
        %v2659 = vsel %vm1125, %v2637, 0.0
        %2660 = vadd.xlane.f32.xlu0 %v2659
        %v2661 = vpop.xlane.xlu0 %2660
        %v2662 = vsel %vm1125, %v2638, 0.0
        %2663 = vadd.xlane.f32.xlu0 %v2662
        %v2664 = vpop.xlane.xlu0 %2663
        %v2665 = vsel %vm1125, %v2639, 0.0
        %2666 = vadd.xlane.f32.xlu0 %v2665
        %v2667 = vpop.xlane.xlu0 %2666
        %v2668 = vsel %vm1125, %v2640, 0.0
        %2669 = vadd.xlane.f32.xlu0 %v2668
        %v2670 = vpop.xlane.xlu0 %2669
        %v2671 = vsel %vm1125, %v2641, 0.0
        %2672 = vadd.xlane.f32.xlu0 %v2671
        %v2673 = vpop.xlane.xlu0 %2672
        %v2674 = vsel %vm1125, %v2642, 0.0
        %2675 = vadd.xlane.f32.xlu0 %v2674
        %v2676 = vpop.xlane.xlu0 %2675
        %v2677 = vsel %vm1125, %v2643, 0.0
        %2678 = vadd.xlane.f32.xlu0 %v2677
        %v2679 = vpop.xlane.xlu0 %2678
        %v2680 = vsel %vm1125, %v2652, 0.0
        %2681 = vadd.xlane.f32.xlu0 %v2680
        %v2682 = vpop.xlane.xlu0 %2681
        %v2683 = vsel %vm1125, %v2653, 0.0
        %2684 = vadd.xlane.f32.xlu0 %v2683
        %v2685 = vpop.xlane.xlu0 %2684
        %v2686 = vsel %vm1125, %v2654, 0.0
        %2687 = vadd.xlane.f32.xlu0 %v2686
        %v2688 = vpop.xlane.xlu0 %2687
        %v2689 = vsel %vm1125, %v2655, 0.0
        %2690 = vadd.xlane.f32.xlu0 %v2689
        %v2691 = vpop.xlane.xlu0 %2690
        %v2692 = vsel %vm1125, %v2656, 0.0
        %2693 = vadd.xlane.f32.xlu0 %v2692
        %v2694 = vpop.xlane.xlu0 %2693
        %v2695 = vsel %vm1125, %v2657, 0.0
        %2696 = vadd.xlane.f32.xlu0 %v2695
        %v2697 = vpop.xlane.xlu0 %2696
        %v2698 = vsel %vm1125, %v2658, 0.0
        %2699 = vadd.xlane.f32.xlu0 %v2698
        %v2700 = vpop.xlane.xlu0 %2699
        %v2701 = vmul.f32 %v951, %v2661
        %v2702 = vmul.f32 %v953, %v2664
        %v2703 = vmul.f32 %v955, %v2667
        %v2704 = vmul.f32 %v957, %v2670
        %v2705 = vmul.f32 %v959, %v2673
        %v2706 = vmul.f32 %v961, %v2676
        %v2707 = vmul.f32 %v963, %v2679
        %v2708 = vmul.f32 %v972, %v2682
        %v2709 = vmul.f32 %v974, %v2685
        %v2710 = vmul.f32 %v976, %v2688
        %v2711 = vmul.f32 %v978, %v2691
        %v2712 = vmul.f32 %v980, %v2694
        %v2713 = vmul.f32 %v982, %v2697
        %v2714 = vmul.f32 %v984, %v2700
        %v2715 = vadd.f32 %v2701, %v2708
        %v2716 = vadd.f32 %v2702, %v2709
        %v2717 = vadd.f32 %v2703, %v2710
        %v2718 = vadd.f32 %v2704, %v2711
        %v2719 = vadd.f32 %v2705, %v2712
        %v2720 = vadd.f32 %v2706, %v2713
        %v2721 = vadd.f32 %v2707, %v2714
        %v2722 = vmax.f32 %v2715, 1e-30
        %v2723 = vmax.f32 %v2716, 1e-30
        %v2724 = vmax.f32 %v2717, 1e-30
        %v2725 = vmax.f32 %v2718, 1e-30
        %v2726 = vmax.f32 %v2719, 1e-30
        %v2727 = vmax.f32 %v2720, 1e-30
        %v2728 = vmax.f32 %v2721, 1e-30
        %v2729 = vrcp.pop %v2722
        %v2730 = vrcp.pop %v2723
        %v2731 = vrcp.pop %v2724
        %v2732 = vrcp.pop %v2725
        %v2733 = vrcp.pop %v2726
        %v2734 = vrcp.pop %v2727
        %v2735 = vrcp.pop %v2728
        %v2736 = vmul.f32 %v1032, %v2729
        %v2737 = vmul.f32 %v1034, %v2730
        %v2738 = vmul.f32 %v1036, %v2731
        %v2739 = vmul.f32 %v1038, %v2732
        %v2740 = vmul.f32 %v1040, %v2733
        %v2741 = vmul.f32 %v1042, %v2734
        %v2742 = vmul.f32 %v1044, %v2735
        %vm2743 = vcmp.eq.s32.totalorder %v552, 7
        %v2744 = vsel %vm2743, 1, 0
        %v2745 = vcvt.s32.f32 %v2744
        %2747 = vset.pattern.permute.xlu0 7
        %2748 = vperm.xlu0 %2747, %v2736
        %v2749 = vpop.permute.xlu0 %2748
        %2752 = vset.pattern.permute.xlu0 7
        %2753 = vperm.xlu0 %2752, %v2737
        %v2754 = vpop.permute.xlu0 %2753
        %2757 = vset.pattern.permute.xlu0 7
        %2758 = vperm.xlu0 %2757, %v2738
        %v2759 = vpop.permute.xlu0 %2758
        %2762 = vset.pattern.permute.xlu0 7
        %2763 = vperm.xlu0 %2762, %v2739
        %v2764 = vpop.permute.xlu0 %2763
        %2767 = vset.pattern.permute.xlu0 7
        %2768 = vperm.xlu0 %2767, %v2740
        %v2769 = vpop.permute.xlu0 %2768
        %2772 = vset.pattern.permute.xlu0 7
        %2773 = vperm.xlu0 %2772, %v2741
        %v2774 = vpop.permute.xlu0 %2773
        %2777 = vset.pattern.permute.xlu0 7
        %2778 = vperm.xlu0 %2777, %v2742
        %v2779 = vpop.permute.xlu0 %2778
        %v2781 = vmul.f32 %v2749, %v2745
        %v2782 = vmul.f32 %v2754, %v2745
        %v2783 = vmul.f32 %v2759, %v2745
        %v2784 = vmul.f32 %v2764, %v2745
        %v2785 = vmul.f32 %v2769, %v2745
        %v2786 = vmul.f32 %v2774, %v2745
        %v2787 = vmul.f32 %v2779, %v2745
        %v2788 = vadd.f32 %v2569, %v2781
        %v2789 = vadd.f32 %v2570, %v2782
        %v2790 = vadd.f32 %v2571, %v2783
        %v2791 = vadd.f32 %v2572, %v2784
        %v2792 = vadd.f32 %v2573, %v2785
        %v2793 = vadd.f32 %v2574, %v2786
        %v2794 = vadd.f32 %v2575, %v2787
        %v2795 = vsel %vm731, %v2788, 0.0
        %v2796 = vsel %vm732, %v2789, 0.0
        %v2797 = vsel %vm733, %v2790, 0.0
        %v2798 = vsel %vm734, %v2791, 0.0
        %v2799 = vsel %vm735, %v2792, 0.0
        %v2800 = vsel %vm736, %v2793, 0.0
        %v2801 = vsel %vm737, %v2794, 0.0
        %v2803 = vsel %vm895, %v2795, 0
        %v2806 = vsel %vm895, %v2796, 0
        %v2809 = vsel %vm895, %v2797, 0
        %v2812 = vsel %vm895, %v2798, 0
        %v2815 = vsel %vm895, %v2799, 0
        %v2818 = vsel %vm895, %v2800, 0
        %v2821 = vsel %vm895, %v2801, 0
        %2823 = vmatpush.msra.mxu0 0.0
        %2824 = vmatpush.msra.mxu0 0.0
        %2825 = vmatpush.msra.mxu0 0.0
        %2826 = vmatpush.msra.mxu0 0.0
        %2827 = vmatpush.msra.mxu0 0.0
        %2828 = vmatpush.msra.mxu0 0.0
        %2829 = vmatpush.msra.mxu0 0.0
        %2830 = vmatpush.msra.mxu0 0.0
        %2831 = vmatpush.msra.mxu0 0.0
        %2832 = vmatpush.msra.mxu0 0.0
        %2833 = vmatpush.msra.mxu0 0.0
        %2834 = vmatpush.msra.mxu0 0.0
        %2835 = vmatpush.msra.mxu0 0.0
        %2836 = vmatpush.msra.mxu0 0.0
        %2837 = vmatpush.msra.mxu0 0.0
        %2838 = vmatpush.msra.mxu0 %v484
        %2839 = vmatmul.f32.gmra.mxu0 %v2803
        %v2840 = vpop.f32.mrf.mxu0
        %v2841 = vadd.f32 0.0, %v2840
        %2842 = vmatmul.f32.gmra.mxu0 %v2806
        %v2843 = vpop.f32.mrf.mxu0
        %v2844 = vadd.f32 0.0, %v2843
        %2845 = vmatmul.f32.gmra.mxu0 %v2809
        %v2846 = vpop.f32.mrf.mxu0
        %v2847 = vadd.f32 0.0, %v2846
        %2848 = vmatmul.f32.gmra.mxu0 %v2812
        %v2849 = vpop.f32.mrf.mxu0
        %v2850 = vadd.f32 0.0, %v2849
        %2851 = vmatmul.f32.gmra.mxu0 %v2815
        %v2852 = vpop.f32.mrf.mxu0
        %v2853 = vadd.f32 0.0, %v2852
        %2854 = vmatmul.f32.gmra.mxu0 %v2818
        %v2855 = vpop.f32.mrf.mxu0
        %v2856 = vadd.f32 0.0, %v2855
        %2857 = vmatmul.f32.gmra.mxu0 %v2821
        %v2858 = vpop.f32.mrf.mxu0
        %v2859 = vadd.f32 0.0, %v2858
        %2860 = vdwg.mxu0
        %2861 = vmatpush.msra.mxu0 0.0
        %2862 = vmatpush.msra.mxu0 0.0
        %2863 = vmatpush.msra.mxu0 0.0
        %2864 = vmatpush.msra.mxu0 0.0
        %2865 = vmatpush.msra.mxu0 0.0
        %2866 = vmatpush.msra.mxu0 0.0
        %2867 = vmatpush.msra.mxu0 0.0
        %2868 = vmatpush.msra.mxu0 0.0
        %2869 = vmatpush.msra.mxu0 0.0
        %2870 = vmatpush.msra.mxu0 0.0
        %2871 = vmatpush.msra.mxu0 0.0
        %2872 = vmatpush.msra.mxu0 0.0
        %2873 = vmatpush.msra.mxu0 0.0
        %2874 = vmatpush.msra.mxu0 0.0
        %2875 = vmatpush.msra.mxu0 0.0
        %2876 = vmatpush.msra.mxu0 %v485
        %2877 = vmatmul.f32.gmra.mxu0 %v2803
        %v2878 = vpop.f32.mrf.mxu0
        %v2879 = vadd.f32 0.0, %v2878
        %2880 = vmatmul.f32.gmra.mxu0 %v2806
        %v2881 = vpop.f32.mrf.mxu0
        %v2882 = vadd.f32 0.0, %v2881
        %2883 = vmatmul.f32.gmra.mxu0 %v2809
        %v2884 = vpop.f32.mrf.mxu0
        %v2885 = vadd.f32 0.0, %v2884
        %2886 = vmatmul.f32.gmra.mxu0 %v2812
        %v2887 = vpop.f32.mrf.mxu0
        %v2888 = vadd.f32 0.0, %v2887
        %2889 = vmatmul.f32.gmra.mxu0 %v2815
        %v2890 = vpop.f32.mrf.mxu0
        %v2891 = vadd.f32 0.0, %v2890
        %2892 = vmatmul.f32.gmra.mxu0 %v2818
        %v2893 = vpop.f32.mrf.mxu0
        %v2894 = vadd.f32 0.0, %v2893
        %2895 = vmatmul.f32.gmra.mxu0 %v2821
        %v2896 = vpop.f32.mrf.mxu0
        %v2897 = vadd.f32 0.0, %v2896
        %2898 = vdwg.mxu0
        %v2899 = vmul.f32 %v2841, %v738
        %v2900 = vmul.f32 %v2879, %v739
        %v2901 = vmul.f32 %v2844, %v740
        %v2902 = vmul.f32 %v2882, %v741
        %v2903 = vmul.f32 %v2847, %v742
        %v2904 = vmul.f32 %v2885, %v743
        %v2905 = vmul.f32 %v2850, %v744
        %v2906 = vmul.f32 %v2888, %v745
        %v2907 = vmul.f32 %v2853, %v746
        %v2908 = vmul.f32 %v2891, %v747
        %v2909 = vmul.f32 %v2856, %v748
        %v2910 = vmul.f32 %v2894, %v749
        %v2911 = vmul.f32 %v2859, %v750
        %v2912 = vmul.f32 %v2897, %v751
        %2913 = vmatpush.msra.mxu0 %v501
        %2914 = vmatpush.msra.mxu0 %v500
        %2915 = vmatpush.msra.mxu0 %v499
        %2916 = vmatpush.msra.mxu0 %v498
        %2917 = vmatpush.msra.mxu0 %v497
        %2918 = vmatpush.msra.mxu0 %v496
        %2919 = vmatpush.msra.mxu0 %v495
        %2920 = vmatpush.msra.mxu0 %v494
        %2921 = vmatpush.msra.mxu0 %v493
        %2922 = vmatpush.msra.mxu0 %v492
        %2923 = vmatpush.msra.mxu0 %v491
        %2924 = vmatpush.msra.mxu0 %v490
        %2925 = vmatpush.msra.mxu0 %v489
        %2926 = vmatpush.msra.mxu0 %v488
        %2927 = vmatpush.msra.mxu0 %v487
        %2928 = vmatpush.msra.mxu0 %v486
        %2929 = vmatmul.f32.gmra.mxu0 %v2899
        %v2930 = vpop.f32.mrf.mxu0
        %v2931 = vadd.f32 0.0, %v2930
        %2932 = vmatmul.f32.gmra.mxu0 %v2901
        %v2933 = vpop.f32.mrf.mxu0
        %v2934 = vadd.f32 0.0, %v2933
        %2935 = vmatmul.f32.gmra.mxu0 %v2903
        %v2936 = vpop.f32.mrf.mxu0
        %v2937 = vadd.f32 0.0, %v2936
        %2938 = vmatmul.f32.gmra.mxu0 %v2905
        %v2939 = vpop.f32.mrf.mxu0
        %v2940 = vadd.f32 0.0, %v2939
        %2941 = vmatmul.f32.gmra.mxu0 %v2907
        %v2942 = vpop.f32.mrf.mxu0
        %v2943 = vadd.f32 0.0, %v2942
        %2944 = vmatmul.f32.gmra.mxu0 %v2909
        %v2945 = vpop.f32.mrf.mxu0
        %v2946 = vadd.f32 0.0, %v2945
        %2947 = vmatmul.f32.gmra.mxu0 %v2911
        %v2948 = vpop.f32.mrf.mxu0
        %v2949 = vadd.f32 0.0, %v2948
        %2950 = vdwg.mxu0
        %2951 = vmatpush.msra.mxu0 %v517
        %2952 = vmatpush.msra.mxu0 %v516
        %2953 = vmatpush.msra.mxu0 %v515
        %2954 = vmatpush.msra.mxu0 %v514
        %2955 = vmatpush.msra.mxu0 %v513
        %2956 = vmatpush.msra.mxu0 %v512
        %2957 = vmatpush.msra.mxu0 %v511
        %2958 = vmatpush.msra.mxu0 %v510
        %2959 = vmatpush.msra.mxu0 %v509
        %2960 = vmatpush.msra.mxu0 %v508
        %2961 = vmatpush.msra.mxu0 %v507
        %2962 = vmatpush.msra.mxu0 %v506
        %2963 = vmatpush.msra.mxu0 %v505
        %2964 = vmatpush.msra.mxu0 %v504
        %2965 = vmatpush.msra.mxu0 %v503
        %2966 = vmatpush.msra.mxu0 %v502
        %2967 = vmatmul.f32.gmra.mxu0 %v2900
        %v2968 = vpop.f32.mrf.mxu0
        %v2969 = vadd.f32 %v2931, %v2968
        %2970 = vmatmul.f32.gmra.mxu0 %v2902
        %v2971 = vpop.f32.mrf.mxu0
        %v2972 = vadd.f32 %v2934, %v2971
        %2973 = vmatmul.f32.gmra.mxu0 %v2904
        %v2974 = vpop.f32.mrf.mxu0
        %v2975 = vadd.f32 %v2937, %v2974
        %2976 = vmatmul.f32.gmra.mxu0 %v2906
        %v2977 = vpop.f32.mrf.mxu0
        %v2978 = vadd.f32 %v2940, %v2977
        %2979 = vmatmul.f32.gmra.mxu0 %v2908
        %v2980 = vpop.f32.mrf.mxu0
        %v2981 = vadd.f32 %v2943, %v2980
        %2982 = vmatmul.f32.gmra.mxu0 %v2910
        %v2983 = vpop.f32.mrf.mxu0
        %v2984 = vadd.f32 %v2946, %v2983
        %2985 = vmatmul.f32.gmra.mxu0 %v2912
        %v2986 = vpop.f32.mrf.mxu0
        %v2987 = vadd.f32 %v2949, %v2986
        %2988 = vdwg.mxu0
        %v2990 = vsel %vm895, %v2969, 0
        %v2993 = vsel %vm895, %v2972, 0
        %v2996 = vsel %vm895, %v2975, 0
        %v2999 = vsel %vm895, %v2978, 0
        %v3002 = vsel %vm895, %v2981, 0
        %v3005 = vsel %vm895, %v2984, 0
        %v3008 = vsel %vm895, %v2987, 0
        %3010 = vmatpush.msra.mxu0 0.0
        %3011 = vmatpush.msra.mxu0 0.0
        %3012 = vmatpush.msra.mxu0 0.0
        %3013 = vmatpush.msra.mxu0 0.0
        %3014 = vmatpush.msra.mxu0 0.0
        %3015 = vmatpush.msra.mxu0 0.0
        %3016 = vmatpush.msra.mxu0 0.0
        %3017 = vmatpush.msra.mxu0 0.0
        %3018 = vmatpush.msra.mxu0 0.0
        %3019 = vmatpush.msra.mxu0 0.0
        %3020 = vmatpush.msra.mxu0 0.0
        %3021 = vmatpush.msra.mxu0 0.0
        %3022 = vmatpush.msra.mxu0 0.0
        %3023 = vmatpush.msra.mxu0 0.0
        %3024 = vmatpush.msra.mxu0 0.0
        %3025 = vmatpush.msra.mxu0 %v484
        %3026 = vmatmul.f32.gmra.mxu0 %v2990
        %v3027 = vpop.f32.mrf.mxu0
        %v3028 = vadd.f32 0.0, %v3027
        %3029 = vmatmul.f32.gmra.mxu0 %v2993
        %v3030 = vpop.f32.mrf.mxu0
        %v3031 = vadd.f32 0.0, %v3030
        %3032 = vmatmul.f32.gmra.mxu0 %v2996
        %v3033 = vpop.f32.mrf.mxu0
        %v3034 = vadd.f32 0.0, %v3033
        %3035 = vmatmul.f32.gmra.mxu0 %v2999
        %v3036 = vpop.f32.mrf.mxu0
        %v3037 = vadd.f32 0.0, %v3036
        %3038 = vmatmul.f32.gmra.mxu0 %v3002
        %v3039 = vpop.f32.mrf.mxu0
        %v3040 = vadd.f32 0.0, %v3039
        %3041 = vmatmul.f32.gmra.mxu0 %v3005
        %v3042 = vpop.f32.mrf.mxu0
        %v3043 = vadd.f32 0.0, %v3042
        %3044 = vmatmul.f32.gmra.mxu0 %v3008
        %v3045 = vpop.f32.mrf.mxu0
        %v3046 = vadd.f32 0.0, %v3045
        %3047 = vdwg.mxu0
        %3048 = vmatpush.msra.mxu0 0.0
        %3049 = vmatpush.msra.mxu0 0.0
        %3050 = vmatpush.msra.mxu0 0.0
        %3051 = vmatpush.msra.mxu0 0.0
        %3052 = vmatpush.msra.mxu0 0.0
        %3053 = vmatpush.msra.mxu0 0.0
        %3054 = vmatpush.msra.mxu0 0.0
        %3055 = vmatpush.msra.mxu0 0.0
        %3056 = vmatpush.msra.mxu0 0.0
        %3057 = vmatpush.msra.mxu0 0.0
        %3058 = vmatpush.msra.mxu0 0.0
        %3059 = vmatpush.msra.mxu0 0.0
        %3060 = vmatpush.msra.mxu0 0.0
        %3061 = vmatpush.msra.mxu0 0.0
        %3062 = vmatpush.msra.mxu0 0.0
        %3063 = vmatpush.msra.mxu0 %v485
        %3064 = vmatmul.f32.gmra.mxu0 %v2990
        %v3065 = vpop.f32.mrf.mxu0
        %v3066 = vadd.f32 0.0, %v3065
        %3067 = vmatmul.f32.gmra.mxu0 %v2993
        %v3068 = vpop.f32.mrf.mxu0
        %v3069 = vadd.f32 0.0, %v3068
        %3070 = vmatmul.f32.gmra.mxu0 %v2996
        %v3071 = vpop.f32.mrf.mxu0
        %v3072 = vadd.f32 0.0, %v3071
        %3073 = vmatmul.f32.gmra.mxu0 %v2999
        %v3074 = vpop.f32.mrf.mxu0
        %v3075 = vadd.f32 0.0, %v3074
        %3076 = vmatmul.f32.gmra.mxu0 %v3002
        %v3077 = vpop.f32.mrf.mxu0
        %v3078 = vadd.f32 0.0, %v3077
        %3079 = vmatmul.f32.gmra.mxu0 %v3005
        %v3080 = vpop.f32.mrf.mxu0
        %v3081 = vadd.f32 0.0, %v3080
        %3082 = vmatmul.f32.gmra.mxu0 %v3008
        %v3083 = vpop.f32.mrf.mxu0
        %v3084 = vadd.f32 0.0, %v3083
        %3085 = vdwg.mxu0
        %v3086 = vsub.f32 %v2899, %v3028
        %v3087 = vsub.f32 %v2900, %v3066
        %v3088 = vsub.f32 %v2901, %v3031
        %v3089 = vsub.f32 %v2902, %v3069
        %v3090 = vsub.f32 %v2903, %v3034
        %v3091 = vsub.f32 %v2904, %v3072
        %v3092 = vsub.f32 %v2905, %v3037
        %v3093 = vsub.f32 %v2906, %v3075
        %v3094 = vsub.f32 %v2907, %v3040
        %v3095 = vsub.f32 %v2908, %v3078
        %v3096 = vsub.f32 %v2909, %v3043
        %v3097 = vsub.f32 %v2910, %v3081
        %v3098 = vsub.f32 %v2911, %v3046
        %v3099 = vsub.f32 %v2912, %v3084
        %v3100 = vmul.f32 %v3086, %v3086
        %v3101 = vmul.f32 %v3087, %v3087
        %v3102 = vmul.f32 %v3088, %v3088
        %v3103 = vmul.f32 %v3089, %v3089
        %v3104 = vmul.f32 %v3090, %v3090
        %v3105 = vmul.f32 %v3091, %v3091
        %v3106 = vmul.f32 %v3092, %v3092
        %v3107 = vmul.f32 %v3093, %v3093
        %v3108 = vmul.f32 %v3094, %v3094
        %v3109 = vmul.f32 %v3095, %v3095
        %v3110 = vmul.f32 %v3096, %v3096
        %v3111 = vmul.f32 %v3097, %v3097
        %v3112 = vmul.f32 %v3098, %v3098
        %v3113 = vmul.f32 %v3099, %v3099
        %3114 = vmatpush.msra.mxu0 %v501
        %3115 = vmatpush.msra.mxu0 %v500
        %3116 = vmatpush.msra.mxu0 %v499
        %3117 = vmatpush.msra.mxu0 %v498
        %3118 = vmatpush.msra.mxu0 %v497
        %3119 = vmatpush.msra.mxu0 %v496
        %3120 = vmatpush.msra.mxu0 %v495
        %3121 = vmatpush.msra.mxu0 %v494
        %3122 = vmatpush.msra.mxu0 %v493
        %3123 = vmatpush.msra.mxu0 %v492
        %3124 = vmatpush.msra.mxu0 %v491
        %3125 = vmatpush.msra.mxu0 %v490
        %3126 = vmatpush.msra.mxu0 %v489
        %3127 = vmatpush.msra.mxu0 %v488
        %3128 = vmatpush.msra.mxu0 %v487
        %3129 = vmatpush.msra.mxu0 %v486
        %3130 = vmatmul.f32.gmra.mxu0 %v3100
        %v3131 = vpop.f32.mrf.mxu0
        %v3132 = vadd.f32 1e-05, %v3131
        %3133 = vmatmul.f32.gmra.mxu0 %v3102
        %v3134 = vpop.f32.mrf.mxu0
        %v3135 = vadd.f32 1e-05, %v3134
        %3136 = vmatmul.f32.gmra.mxu0 %v3104
        %v3137 = vpop.f32.mrf.mxu0
        %v3138 = vadd.f32 1e-05, %v3137
        %3139 = vmatmul.f32.gmra.mxu0 %v3106
        %v3140 = vpop.f32.mrf.mxu0
        %v3141 = vadd.f32 1e-05, %v3140
        %3142 = vmatmul.f32.gmra.mxu0 %v3108
        %v3143 = vpop.f32.mrf.mxu0
        %v3144 = vadd.f32 1e-05, %v3143
        %3145 = vmatmul.f32.gmra.mxu0 %v3110
        %v3146 = vpop.f32.mrf.mxu0
        %v3147 = vadd.f32 1e-05, %v3146
        %3148 = vmatmul.f32.gmra.mxu0 %v3112
        %v3149 = vpop.f32.mrf.mxu0
        %v3150 = vadd.f32 1e-05, %v3149
        %3151 = vdwg.mxu0
        %3152 = vmatpush.msra.mxu0 %v517
        %3153 = vmatpush.msra.mxu0 %v516
        %3154 = vmatpush.msra.mxu0 %v515
        %3155 = vmatpush.msra.mxu0 %v514
        %3156 = vmatpush.msra.mxu0 %v513
        %3157 = vmatpush.msra.mxu0 %v512
        %3158 = vmatpush.msra.mxu0 %v511
        %3159 = vmatpush.msra.mxu0 %v510
        %3160 = vmatpush.msra.mxu0 %v509
        %3161 = vmatpush.msra.mxu0 %v508
        %3162 = vmatpush.msra.mxu0 %v507
        %3163 = vmatpush.msra.mxu0 %v506
        %3164 = vmatpush.msra.mxu0 %v505
        %3165 = vmatpush.msra.mxu0 %v504
        %3166 = vmatpush.msra.mxu0 %v503
        %3167 = vmatpush.msra.mxu0 %v502
        %3168 = vmatmul.f32.gmra.mxu0 %v3101
        %v3169 = vpop.f32.mrf.mxu0
        %v3170 = vadd.f32 %v3132, %v3169
        %3171 = vmatmul.f32.gmra.mxu0 %v3103
        %v3172 = vpop.f32.mrf.mxu0
        %v3173 = vadd.f32 %v3135, %v3172
        %3174 = vmatmul.f32.gmra.mxu0 %v3105
        %v3175 = vpop.f32.mrf.mxu0
        %v3176 = vadd.f32 %v3138, %v3175
        %3177 = vmatmul.f32.gmra.mxu0 %v3107
        %v3178 = vpop.f32.mrf.mxu0
        %v3179 = vadd.f32 %v3141, %v3178
        %3180 = vmatmul.f32.gmra.mxu0 %v3109
        %v3181 = vpop.f32.mrf.mxu0
        %v3182 = vadd.f32 %v3144, %v3181
        %3183 = vmatmul.f32.gmra.mxu0 %v3111
        %v3184 = vpop.f32.mrf.mxu0
        %v3185 = vadd.f32 %v3147, %v3184
        %3186 = vmatmul.f32.gmra.mxu0 %v3113
        %v3187 = vpop.f32.mrf.mxu0
        %v3188 = vadd.f32 %v3150, %v3187
        %3189 = vdwg.mxu0
        %v3190 = vrsqrt.pop %v3170
        %v3191 = vmul.f32 %v3190, %v3170
        %v3192 = vmul.f32 %v3191, %v3190
        %v3193 = vmul.f32 0.5, %v3192
        %v3194 = vsub.f32 1.5, %v3193
        %v3195 = vmul.f32 %v3190, %v3194
        %vm3196 = vweird.f32 %v3170
        %vm3197 = vweird.f32 %v3190
        %vm3198 = vmor %vm3196, %vm3197
        %v3199 = vsel %vm3198, %v3190, %v3195
        %v3200 = vrsqrt.pop %v3173
        %v3201 = vmul.f32 %v3200, %v3173
        %v3202 = vmul.f32 %v3201, %v3200
        %v3203 = vmul.f32 0.5, %v3202
        %v3204 = vsub.f32 1.5, %v3203
        %v3205 = vmul.f32 %v3200, %v3204
        %vm3206 = vweird.f32 %v3173
        %vm3207 = vweird.f32 %v3200
        %vm3208 = vmor %vm3206, %vm3207
        %v3209 = vsel %vm3208, %v3200, %v3205
        %v3210 = vrsqrt.pop %v3176
        %v3211 = vmul.f32 %v3210, %v3176
        %v3212 = vmul.f32 %v3211, %v3210
        %v3213 = vmul.f32 0.5, %v3212
        %v3214 = vsub.f32 1.5, %v3213
        %v3215 = vmul.f32 %v3210, %v3214
        %vm3216 = vweird.f32 %v3176
        %vm3217 = vweird.f32 %v3210
        %vm3218 = vmor %vm3216, %vm3217
        %v3219 = vsel %vm3218, %v3210, %v3215
        %v3220 = vrsqrt.pop %v3179
        %v3221 = vmul.f32 %v3220, %v3179
        %v3222 = vmul.f32 %v3221, %v3220
        %v3223 = vmul.f32 0.5, %v3222
        %v3224 = vsub.f32 1.5, %v3223
        %v3225 = vmul.f32 %v3220, %v3224
        %vm3226 = vweird.f32 %v3179
        %vm3227 = vweird.f32 %v3220
        %vm3228 = vmor %vm3226, %vm3227
        %v3229 = vsel %vm3228, %v3220, %v3225
        %v3230 = vrsqrt.pop %v3182
        %v3231 = vmul.f32 %v3230, %v3182
        %v3232 = vmul.f32 %v3231, %v3230
        %v3233 = vmul.f32 0.5, %v3232
        %v3234 = vsub.f32 1.5, %v3233
        %v3235 = vmul.f32 %v3230, %v3234
        %vm3236 = vweird.f32 %v3182
        %vm3237 = vweird.f32 %v3230
        %vm3238 = vmor %vm3236, %vm3237
        %v3239 = vsel %vm3238, %v3230, %v3235
        %v3240 = vrsqrt.pop %v3185
        %v3241 = vmul.f32 %v3240, %v3185
        %v3242 = vmul.f32 %v3241, %v3240
        %v3243 = vmul.f32 0.5, %v3242
        %v3244 = vsub.f32 1.5, %v3243
        %v3245 = vmul.f32 %v3240, %v3244
        %vm3246 = vweird.f32 %v3185
        %vm3247 = vweird.f32 %v3240
        %vm3248 = vmor %vm3246, %vm3247
        %v3249 = vsel %vm3248, %v3240, %v3245
        %v3250 = vrsqrt.pop %v3188
        %v3251 = vmul.f32 %v3250, %v3188
        %v3252 = vmul.f32 %v3251, %v3250
        %v3253 = vmul.f32 0.5, %v3252
        %v3254 = vsub.f32 1.5, %v3253
        %v3255 = vmul.f32 %v3250, %v3254
        %vm3256 = vweird.f32 %v3188
        %vm3257 = vweird.f32 %v3250
        %vm3258 = vmor %vm3256, %vm3257
        %v3259 = vsel %vm3258, %v3250, %v3255
        %v3261 = vsel %vm895, %v3199, 0
        %v3264 = vsel %vm895, %v3209, 0
        %v3267 = vsel %vm895, %v3219, 0
        %v3270 = vsel %vm895, %v3229, 0
        %v3273 = vsel %vm895, %v3239, 0
        %v3276 = vsel %vm895, %v3249, 0
        %v3279 = vsel %vm895, %v3259, 0
        %3281 = vmatpush.msra.mxu0 0.0
        %3282 = vmatpush.msra.mxu0 0.0
        %3283 = vmatpush.msra.mxu0 0.0
        %3284 = vmatpush.msra.mxu0 0.0
        %3285 = vmatpush.msra.mxu0 0.0
        %3286 = vmatpush.msra.mxu0 0.0
        %3287 = vmatpush.msra.mxu0 0.0
        %3288 = vmatpush.msra.mxu0 0.0
        %3289 = vmatpush.msra.mxu0 0.0
        %3290 = vmatpush.msra.mxu0 0.0
        %3291 = vmatpush.msra.mxu0 0.0
        %3292 = vmatpush.msra.mxu0 0.0
        %3293 = vmatpush.msra.mxu0 0.0
        %3294 = vmatpush.msra.mxu0 0.0
        %3295 = vmatpush.msra.mxu0 0.0
        %3296 = vmatpush.msra.mxu0 %v484
        %3297 = vmatmul.f32.gmra.mxu0 %v3261
        %v3298 = vpop.f32.mrf.mxu0
        %v3299 = vadd.f32 0.0, %v3298
        %3300 = vmatmul.f32.gmra.mxu0 %v3264
        %v3301 = vpop.f32.mrf.mxu0
        %v3302 = vadd.f32 0.0, %v3301
        %3303 = vmatmul.f32.gmra.mxu0 %v3267
        %v3304 = vpop.f32.mrf.mxu0
        %v3305 = vadd.f32 0.0, %v3304
        %3306 = vmatmul.f32.gmra.mxu0 %v3270
        %v3307 = vpop.f32.mrf.mxu0
        %v3308 = vadd.f32 0.0, %v3307
        %3309 = vmatmul.f32.gmra.mxu0 %v3273
        %v3310 = vpop.f32.mrf.mxu0
        %v3311 = vadd.f32 0.0, %v3310
        %3312 = vmatmul.f32.gmra.mxu0 %v3276
        %v3313 = vpop.f32.mrf.mxu0
        %v3314 = vadd.f32 0.0, %v3313
        %3315 = vmatmul.f32.gmra.mxu0 %v3279
        %v3316 = vpop.f32.mrf.mxu0
        %v3317 = vadd.f32 0.0, %v3316
        %3318 = vdwg.mxu0
        %3319 = vmatpush.msra.mxu0 0.0
        %3320 = vmatpush.msra.mxu0 0.0
        %3321 = vmatpush.msra.mxu0 0.0
        %3322 = vmatpush.msra.mxu0 0.0
        %3323 = vmatpush.msra.mxu0 0.0
        %3324 = vmatpush.msra.mxu0 0.0
        %3325 = vmatpush.msra.mxu0 0.0
        %3326 = vmatpush.msra.mxu0 0.0
        %3327 = vmatpush.msra.mxu0 0.0
        %3328 = vmatpush.msra.mxu0 0.0
        %3329 = vmatpush.msra.mxu0 0.0
        %3330 = vmatpush.msra.mxu0 0.0
        %3331 = vmatpush.msra.mxu0 0.0
        %3332 = vmatpush.msra.mxu0 0.0
        %3333 = vmatpush.msra.mxu0 0.0
        %3334 = vmatpush.msra.mxu0 %v485
        %3335 = vmatmul.f32.gmra.mxu0 %v3261
        %v3336 = vpop.f32.mrf.mxu0
        %v3337 = vadd.f32 0.0, %v3336
        %3338 = vmatmul.f32.gmra.mxu0 %v3264
        %v3339 = vpop.f32.mrf.mxu0
        %v3340 = vadd.f32 0.0, %v3339
        %3341 = vmatmul.f32.gmra.mxu0 %v3267
        %v3342 = vpop.f32.mrf.mxu0
        %v3343 = vadd.f32 0.0, %v3342
        %3344 = vmatmul.f32.gmra.mxu0 %v3270
        %v3345 = vpop.f32.mrf.mxu0
        %v3346 = vadd.f32 0.0, %v3345
        %3347 = vmatmul.f32.gmra.mxu0 %v3273
        %v3348 = vpop.f32.mrf.mxu0
        %v3349 = vadd.f32 0.0, %v3348
        %3350 = vmatmul.f32.gmra.mxu0 %v3276
        %v3351 = vpop.f32.mrf.mxu0
        %v3352 = vadd.f32 0.0, %v3351
        %3353 = vmatmul.f32.gmra.mxu0 %v3279
        %v3354 = vpop.f32.mrf.mxu0
        %v3355 = vadd.f32 0.0, %v3354
        %3356 = vdwg.mxu0
        %v3357 = vmul.f32 %v3086, %v3299
        %v3358 = vmul.f32 %v3087, %v3337
        %v3359 = vmul.f32 %v3088, %v3302
        %v3360 = vmul.f32 %v3089, %v3340
        %v3361 = vmul.f32 %v3090, %v3305
        %v3362 = vmul.f32 %v3091, %v3343
        %v3363 = vmul.f32 %v3092, %v3308
        %v3364 = vmul.f32 %v3093, %v3346
        %v3365 = vmul.f32 %v3094, %v3311
        %v3366 = vmul.f32 %v3095, %v3349
        %v3367 = vmul.f32 %v3096, %v3314
        %v3368 = vmul.f32 %v3097, %v3352
        %v3369 = vmul.f32 %v3098, %v3317
        %v3370 = vmul.f32 %v3099, %v3355
        %v3372 = vperm.slane %v607, 0
        %v3373 = vperm.slane %v607, 1
        %v3376 = vmul.f32 %v3357, %v3372
        %v3377 = vmul.f32 %v3358, %v3373
        %v3378 = vmul.f32 %v3359, %v3372
        %v3379 = vmul.f32 %v3360, %v3373
        %v3380 = vmul.f32 %v3361, %v3372
        %v3381 = vmul.f32 %v3362, %v3373
        %v3382 = vmul.f32 %v3363, %v3372
        %v3383 = vmul.f32 %v3364, %v3373
        %v3384 = vmul.f32 %v3365, %v3372
        %v3385 = vmul.f32 %v3366, %v3373
        %v3386 = vmul.f32 %v3367, %v3372
        %v3387 = vmul.f32 %v3368, %v3373
        %v3388 = vmul.f32 %v3369, %v3372
        %v3389 = vmul.f32 %v3370, %v3373
        %v3391 = vperm.slane %v608, 0
        %v3392 = vperm.slane %v608, 1
        %v3395 = vadd.f32 %v3376, %v3391
        %v3396 = vadd.f32 %v3377, %v3392
        %v3397 = vadd.f32 %v3378, %v3391
        %v3398 = vadd.f32 %v3379, %v3392
        %v3399 = vadd.f32 %v3380, %v3391
        %v3400 = vadd.f32 %v3381, %v3392
        %v3401 = vadd.f32 %v3382, %v3391
        %v3402 = vadd.f32 %v3383, %v3392
        %v3403 = vadd.f32 %v3384, %v3391
        %v3404 = vadd.f32 %v3385, %v3392
        %v3405 = vadd.f32 %v3386, %v3391
        %v3406 = vadd.f32 %v3387, %v3392
        %v3407 = vadd.f32 %v3388, %v3391
        %v3408 = vadd.f32 %v3389, %v3392
        %3409 = vmatpush.msra.mxu0 %v533
        %3410 = vmatpush.msra.mxu0 %v532
        %3411 = vmatpush.msra.mxu0 %v531
        %3412 = vmatpush.msra.mxu0 %v530
        %3413 = vmatpush.msra.mxu0 %v529
        %3414 = vmatpush.msra.mxu0 %v528
        %3415 = vmatpush.msra.mxu0 %v527
        %3416 = vmatpush.msra.mxu0 %v526
        %3417 = vmatpush.msra.mxu0 %v525
        %3418 = vmatpush.msra.mxu0 %v524
        %3419 = vmatpush.msra.mxu0 %v523
        %3420 = vmatpush.msra.mxu0 %v522
        %3421 = vmatpush.msra.mxu0 %v521
        %3422 = vmatpush.msra.mxu0 %v520
        %3423 = vmatpush.msra.mxu0 %v519
        %3424 = vmatpush.msra.mxu0 %v518
        %3425 = vmatmul.f32.gmra.mxu0 %v3395
        %v3426 = vpop.f32.mrf.mxu0
        %v3427 = vadd.f32 %v567, %v3426
        %3428 = vmatmul.f32.gmra.mxu0 %v3397
        %v3429 = vpop.f32.mrf.mxu0
        %v3430 = vadd.f32 %v568, %v3429
        %3431 = vmatmul.f32.gmra.mxu0 %v3399
        %v3432 = vpop.f32.mrf.mxu0
        %v3433 = vadd.f32 %v569, %v3432
        %3434 = vmatmul.f32.gmra.mxu0 %v3401
        %v3435 = vpop.f32.mrf.mxu0
        %v3436 = vadd.f32 %v570, %v3435
        %3437 = vmatmul.f32.gmra.mxu0 %v3403
        %v3438 = vpop.f32.mrf.mxu0
        %v3439 = vadd.f32 %v571, %v3438
        %3440 = vmatmul.f32.gmra.mxu0 %v3405
        %v3441 = vpop.f32.mrf.mxu0
        %v3442 = vadd.f32 %v572, %v3441
        %3443 = vmatmul.f32.gmra.mxu0 %v3407
        %v3444 = vpop.f32.mrf.mxu0
        %v3445 = vadd.f32 %v573, %v3444
        %3446 = vdwg.mxu0
        %3447 = vmatpush.msra.mxu0 %v549
        %3448 = vmatpush.msra.mxu0 %v548
        %3449 = vmatpush.msra.mxu0 %v547
        %3450 = vmatpush.msra.mxu0 %v546
        %3451 = vmatpush.msra.mxu0 %v545
        %3452 = vmatpush.msra.mxu0 %v544
        %3453 = vmatpush.msra.mxu0 %v543
        %3454 = vmatpush.msra.mxu0 %v542
        %3455 = vmatpush.msra.mxu0 %v541
        %3456 = vmatpush.msra.mxu0 %v540
        %3457 = vmatpush.msra.mxu0 %v539
        %3458 = vmatpush.msra.mxu0 %v538
        %3459 = vmatpush.msra.mxu0 %v537
        %3460 = vmatpush.msra.mxu0 %v536
        %3461 = vmatpush.msra.mxu0 %v535
        %3462 = vmatpush.msra.mxu0 %v534
        %3463 = vmatmul.f32.gmra.mxu0 %v3396
        %v3464 = vpop.f32.mrf.mxu0
        %v3465 = vadd.f32 %v3427, %v3464
        %3466 = vmatmul.f32.gmra.mxu0 %v3398
        %v3467 = vpop.f32.mrf.mxu0
        %v3468 = vadd.f32 %v3430, %v3467
        %3469 = vmatmul.f32.gmra.mxu0 %v3400
        %v3470 = vpop.f32.mrf.mxu0
        %v3471 = vadd.f32 %v3433, %v3470
        %3472 = vmatmul.f32.gmra.mxu0 %v3402
        %v3473 = vpop.f32.mrf.mxu0
        %v3474 = vadd.f32 %v3436, %v3473
        %3475 = vmatmul.f32.gmra.mxu0 %v3404
        %v3476 = vpop.f32.mrf.mxu0
        %v3477 = vadd.f32 %v3439, %v3476
        %3478 = vmatmul.f32.gmra.mxu0 %v3406
        %v3479 = vpop.f32.mrf.mxu0
        %v3480 = vadd.f32 %v3442, %v3479
        %3481 = vmatmul.f32.gmra.mxu0 %v3408
        %v3482 = vpop.f32.mrf.mxu0
        %v3483 = vadd.f32 %v3445, %v3482
        %3484 = vdwg.mxu0
        %v3486 = vperm.slane %v609, 0
        %v3488 = vadd.f32 %v3465, %v3486
        %v3489 = vadd.f32 %v3468, %v3486
        %v3490 = vadd.f32 %v3471, %v3486
        %v3491 = vadd.f32 %v3474, %v3486
        %v3492 = vadd.f32 %v3477, %v3486
        %v3493 = vadd.f32 %v3480, %v3486
        %v3494 = vadd.f32 %v3483, %v3486
        %s3495 = scalar_lea.vmem %s3, 32
        %v3496 = vld [vmem:[%s3495] sm:$0xff]
        %v3497 = vld [vmem:[%s3495 + $0x8] sm:$0xff]
        %v3498 = vld [vmem:[%s3495 + $0x10] sm:$0xff]
        %v3499 = vld [vmem:[%s3495 + $0x18] sm:$0xff]
        %s3500 = scalar_lea.vmem %s4, 32
        %v3501 = vld [vmem:[%s3500] sm:$0xff]
        %v3502 = vld [vmem:[%s3500 + $0x8] sm:$0xff]
        %v3503 = vld [vmem:[%s3500 + $0x10] sm:$0xff]
        %v3504 = vld [vmem:[%s3500 + $0x18] sm:$0xff]
        %s3505 = scalar_lea.vmem %s5, 32
        %v3506 = vld [vmem:[%s3505] sm:$0xff]
        %v3507 = vld [vmem:[%s3505 + $0x8] sm:$0xff]
        %v3508 = vld [vmem:[%s3505 + $0x10] sm:$0xff]
        %v3509 = vld [vmem:[%s3505 + $0x18] sm:$0xff]
        %s3510 = scalar_lea.vmem %s6, 2
        %v3511 = vld [vmem:[%s3510] sm:$0x3]
        %s3512 = scalar_lea.vmem %s7, 2
        %v3513 = vld [vmem:[%s3512] sm:$0x3]
        %s3514 = scalar_lea.vmem %s8, 1
        %v3515 = vld [vmem:[%s3514] sm:$0x1]
        %v3516 = vpack.c.bf16 %v3489, %v3488
        %v3517 = vpack.c.bf16 %v3491, %v3490
        %v3518 = vpack.c.bf16 %v3493, %v3492
        %v3519 = vpack.c.bf16 %v3494, %v3494
        %v3524 = vunpack.c.l.b16 %v3496
        %v3525 = vunpack.c.h.b16 %v3496
        %v3526 = vunpack.c.l.b16 %v3497
        %v3527 = vunpack.c.h.b16 %v3497
        %v3528 = vunpack.c.l.b16 %v3498
        %v3529 = vunpack.c.h.b16 %v3498
        %v3530 = vunpack.c.l.b16 %v3499
        %v3531 = vunpack.c.h.b16 %v3499
        %v3532 = vpack.c.b16 %v3526, %v3524
        %v3533 = vpack.c.b16 %v3527, %v3525
        %v3534 = vpack.c.b16 %v3530, %v3528
        %v3535 = vpack.c.b16 %v3531, %v3529
        %v3541 = vsel %vm634, %v3516, 0
        %v3544 = vsel %vm634, %v3517, 0
        %v3547 = vsel %vm634, %v3518, 0
        %v3550 = vsel %vm634, %v3519, 0
        %3552 = vmatpush.bf16.msra.mxu0 0
        %3553 = vmatpush.bf16.msra.mxu0 0
        %3554 = vmatpush.bf16.msra.mxu0 0
        %3555 = vmatpush.bf16.msra.mxu0 0
        %3556 = vmatpush.bf16.msra.mxu0 0
        %3557 = vmatpush.bf16.msra.mxu0 0
        %3558 = vmatpush.bf16.msra.mxu0 %v3534
        %3559 = vmatpush.bf16.msra.mxu0 %v3532
        %3560 = vmatmul.bf16.gmra.mxu0 %v3541
        %v3561 = vpop.f32.mrf.mxu0
        %v3562 = vadd.f32 0.0, %v3561
        %v3563 = vpop.f32.mrf.mxu0
        %v3564 = vadd.f32 0.0, %v3563
        %3565 = vmatmul.bf16.gmra.mxu0 %v3544
        %v3566 = vpop.f32.mrf.mxu0
        %v3567 = vadd.f32 0.0, %v3566
        %v3568 = vpop.f32.mrf.mxu0
        %v3569 = vadd.f32 0.0, %v3568
        %3570 = vmatmul.bf16.gmra.mxu0 %v3547
        %v3571 = vpop.f32.mrf.mxu0
        %v3572 = vadd.f32 0.0, %v3571
        %v3573 = vpop.f32.mrf.mxu0
        %v3574 = vadd.f32 0.0, %v3573
        %3575 = vmatmul.bf16.gmra.mxu0 %v3550
        %v3576 = vpop.f32.mrf.mxu0
        %v3577 = vadd.f32 0.0, %v3576
        %v3578 = vpop.f32.mrf.mxu0
        %3579 = vdwg.mxu0
        %3580 = vmatpush.bf16.msra.mxu0 0
        %3581 = vmatpush.bf16.msra.mxu0 0
        %3582 = vmatpush.bf16.msra.mxu0 0
        %3583 = vmatpush.bf16.msra.mxu0 0
        %3584 = vmatpush.bf16.msra.mxu0 0
        %3585 = vmatpush.bf16.msra.mxu0 0
        %3586 = vmatpush.bf16.msra.mxu0 %v3535
        %3587 = vmatpush.bf16.msra.mxu0 %v3533
        %3588 = vmatmul.bf16.gmra.mxu0 %v3541
        %v3589 = vpop.f32.mrf.mxu0
        %v3590 = vadd.f32 0.0, %v3589
        %v3591 = vpop.f32.mrf.mxu0
        %v3592 = vadd.f32 0.0, %v3591
        %3593 = vmatmul.bf16.gmra.mxu0 %v3544
        %v3594 = vpop.f32.mrf.mxu0
        %v3595 = vadd.f32 0.0, %v3594
        %v3596 = vpop.f32.mrf.mxu0
        %v3597 = vadd.f32 0.0, %v3596
        %3598 = vmatmul.bf16.gmra.mxu0 %v3547
        %v3599 = vpop.f32.mrf.mxu0
        %v3600 = vadd.f32 0.0, %v3599
        %v3601 = vpop.f32.mrf.mxu0
        %v3602 = vadd.f32 0.0, %v3601
        %3603 = vmatmul.bf16.gmra.mxu0 %v3550
        %v3604 = vpop.f32.mrf.mxu0
        %v3605 = vadd.f32 0.0, %v3604
        %v3606 = vpop.f32.mrf.mxu0
        %3607 = vdwg.mxu0
        %v3608 = vsel %vm731, %v3562, 0.0
        %v3609 = vsel %vm731, %v3590, 0.0
        %v3610 = vsel %vm732, %v3564, 0.0
        %v3611 = vsel %vm732, %v3592, 0.0
        %v3612 = vsel %vm733, %v3567, 0.0
        %v3613 = vsel %vm733, %v3595, 0.0
        %v3614 = vsel %vm734, %v3569, 0.0
        %v3615 = vsel %vm734, %v3597, 0.0
        %v3616 = vsel %vm735, %v3572, 0.0
        %v3617 = vsel %vm735, %v3600, 0.0
        %v3618 = vsel %vm736, %v3574, 0.0
        %v3619 = vsel %vm736, %v3602, 0.0
        %v3620 = vsel %vm737, %v3577, 0.0
        %v3621 = vsel %vm737, %v3605, 0.0
        %v3623 = vsel %vm634, %v3488, 0
        %v3626 = vsel %vm634, %v3489, 0
        %v3629 = vsel %vm634, %v3490, 0
        %v3632 = vsel %vm634, %v3491, 0
        %v3635 = vsel %vm634, %v3492, 0
        %v3638 = vsel %vm634, %v3493, 0
        %v3641 = vsel %vm634, %v3494, 0
        %3643 = vmatpush.msra.mxu0 0.0
        %3644 = vmatpush.msra.mxu0 0.0
        %3645 = vmatpush.msra.mxu0 0.0
        %3646 = vmatpush.msra.mxu0 0.0
        %3647 = vmatpush.msra.mxu0 0.0
        %3648 = vmatpush.msra.mxu0 0.0
        %3649 = vmatpush.msra.mxu0 0.0
        %3650 = vmatpush.msra.mxu0 0.0
        %3651 = vmatpush.msra.mxu0 0.0
        %3652 = vmatpush.msra.mxu0 0.0
        %3653 = vmatpush.msra.mxu0 0.0
        %3654 = vmatpush.msra.mxu0 0.0
        %3655 = vmatpush.msra.mxu0 %v3504
        %3656 = vmatpush.msra.mxu0 %v3503
        %3657 = vmatpush.msra.mxu0 %v3502
        %3658 = vmatpush.msra.mxu0 %v3501
        %3659 = vmatmul.f32.gmra.mxu0 %v3623
        %v3660 = vpop.f32.mrf.mxu0
        %v3661 = vadd.f32 0.0, %v3660
        %3662 = vmatmul.f32.gmra.mxu0 %v3626
        %v3663 = vpop.f32.mrf.mxu0
        %v3664 = vadd.f32 0.0, %v3663
        %3665 = vmatmul.f32.gmra.mxu0 %v3629
        %v3666 = vpop.f32.mrf.mxu0
        %v3667 = vadd.f32 0.0, %v3666
        %3668 = vmatmul.f32.gmra.mxu0 %v3632
        %v3669 = vpop.f32.mrf.mxu0
        %v3670 = vadd.f32 0.0, %v3669
        %3671 = vmatmul.f32.gmra.mxu0 %v3635
        %v3672 = vpop.f32.mrf.mxu0
        %v3673 = vadd.f32 0.0, %v3672
        %3674 = vmatmul.f32.gmra.mxu0 %v3638
        %v3675 = vpop.f32.mrf.mxu0
        %v3676 = vadd.f32 0.0, %v3675
        %3677 = vmatmul.f32.gmra.mxu0 %v3641
        %v3678 = vpop.f32.mrf.mxu0
        %v3679 = vadd.f32 0.0, %v3678
        %3680 = vdwg.mxu0
        %v3681 = vsel %vm731, %v3661, 0.0
        %v3682 = vsel %vm732, %v3664, 0.0
        %v3683 = vsel %vm733, %v3667, 0.0
        %v3684 = vsel %vm734, %v3670, 0.0
        %v3685 = vsel %vm735, %v3673, 0.0
        %v3686 = vsel %vm736, %v3676, 0.0
        %v3687 = vsel %vm737, %v3679, 0.0
        %3688 = vmatpush.msra.mxu0 0.0
        %3689 = vmatpush.msra.mxu0 0.0
        %3690 = vmatpush.msra.mxu0 0.0
        %3691 = vmatpush.msra.mxu0 0.0
        %3692 = vmatpush.msra.mxu0 0.0
        %3693 = vmatpush.msra.mxu0 0.0
        %3694 = vmatpush.msra.mxu0 0.0
        %3695 = vmatpush.msra.mxu0 0.0
        %3696 = vmatpush.msra.mxu0 0.0
        %3697 = vmatpush.msra.mxu0 0.0
        %3698 = vmatpush.msra.mxu0 0.0
        %3699 = vmatpush.msra.mxu0 0.0
        %3700 = vmatpush.msra.mxu0 %v3509
        %3701 = vmatpush.msra.mxu0 %v3508
        %3702 = vmatpush.msra.mxu0 %v3507
        %3703 = vmatpush.msra.mxu0 %v3506
        %3704 = vmatmul.f32.gmra.mxu0 %v3623
        %v3705 = vpop.f32.mrf.mxu0
        %v3706 = vadd.f32 0.0, %v3705
        %3707 = vmatmul.f32.gmra.mxu0 %v3626
        %v3708 = vpop.f32.mrf.mxu0
        %v3709 = vadd.f32 0.0, %v3708
        %3710 = vmatmul.f32.gmra.mxu0 %v3629
        %v3711 = vpop.f32.mrf.mxu0
        %v3712 = vadd.f32 0.0, %v3711
        %3713 = vmatmul.f32.gmra.mxu0 %v3632
        %v3714 = vpop.f32.mrf.mxu0
        %v3715 = vadd.f32 0.0, %v3714
        %3716 = vmatmul.f32.gmra.mxu0 %v3635
        %v3717 = vpop.f32.mrf.mxu0
        %v3718 = vadd.f32 0.0, %v3717
        %3719 = vmatmul.f32.gmra.mxu0 %v3638
        %v3720 = vpop.f32.mrf.mxu0
        %v3721 = vadd.f32 0.0, %v3720
        %3722 = vmatmul.f32.gmra.mxu0 %v3641
        %v3723 = vpop.f32.mrf.mxu0
        %v3724 = vadd.f32 0.0, %v3723
        %3725 = vdwg.mxu0
        %v3726 = vsel %vm731, %v3706, 0.0
        %v3727 = vsel %vm732, %v3709, 0.0
        %v3728 = vsel %vm733, %v3712, 0.0
        %v3729 = vsel %vm734, %v3715, 0.0
        %v3730 = vsel %vm735, %v3718, 0.0
        %v3731 = vsel %vm736, %v3721, 0.0
        %v3732 = vsel %vm737, %v3724, 0.0
        %3733 = vxpose.xlu0.b32.start [1/16] %v3726, 128
        %3734 = vxpose.xlu0.b32.cont [2/16] %v3727, 128
        %3735 = vxpose.xlu0.b32.cont [3/16] %v3728, 128
        %3736 = vxpose.xlu0.b32.cont [4/16] %v3729, 128
        %3737 = vxpose.xlu0.b32.cont [5/16] %v3730, 128
        %3738 = vxpose.xlu0.b32.cont [6/16] %v3731, 128
        %3739 = vxpose.xlu0.b32.cont [7/16] %v3732, 128
        %3740 = vxpose.xlu0.b32.cont [8/16] 0.0, 128
        %3741 = vxpose.xlu0.b32.cont [9/16] 0.0, 128
        %3742 = vxpose.xlu0.b32.cont [10/16] 0.0, 128
        %3743 = vxpose.xlu0.b32.cont [11/16] 0.0, 128
        %3744 = vxpose.xlu0.b32.cont [12/16] 0.0, 128
        %3745 = vxpose.xlu0.b32.cont [13/16] 0.0, 128
        %3746 = vxpose.xlu0.b32.cont [14/16] 0.0, 128
        %3747 = vxpose.xlu0.b32.cont [15/16] 0.0, 128
        %3748 = vxpose.xlu0.b32.end [16/16] 0.0, 128
        %v3749 = vpop.trf.xlu0
        %v3750 = vpop.trf.xlu0
        %v3751 = vpop.trf.xlu0
        %v3752 = vpop.trf.xlu0
        %v3753 = vpop.trf.xlu0
        %v3754 = vpop.trf.xlu0
        %v3755 = vpop.trf.xlu0
        %v3756 = vpop.trf.xlu0
        %v3757 = vpop.trf.xlu0
        %v3758 = vpop.trf.xlu0
        %v3759 = vpop.trf.xlu0
        %v3760 = vpop.trf.xlu0
        %v3761 = vpop.trf.xlu0
        %v3762 = vpop.trf.xlu0
        %v3763 = vpop.trf.xlu0
        %v3764 = vpop.trf.xlu0
        %v3765 = vsel %vm895, %v3726, -inf
        %v3766 = vsel %vm895, %v3727, -inf
        %v3767 = vsel %vm895, %v3728, -inf
        %v3768 = vsel %vm895, %v3729, -inf
        %v3769 = vsel %vm895, %v3730, -inf
        %v3770 = vmax.f32 %v3765, %v3769
        %v3771 = vsel %vm895, %v3731, -inf
        %v3772 = vmax.f32 %v3766, %v3771
        %v3773 = vsel %vm895, %v3732, -inf
        %v3774 = vmax.f32 %v3767, %v3773
        %v3775 = vmax.f32 %v3770, %v3772
        %v3776 = vmax.f32 %v3774, %v3768
        %v3777 = vmax.f32 %v3775, %v3776
        %v3778 = vrot.slane %v3777, 4
        %v3779 = vmax.f32 %v3777, %v3778
        %v3780 = vrot.slane %v3779, 2
        %v3781 = vmax.f32 %v3779, %v3780
        %v3782 = vrot.slane %v3781, 1
        %v3783 = vmax.f32 %v3781, %v3782
        %v3784 = vadd.f32 %v3681, %v3783
        %v3785 = vadd.f32 %v3682, %v3783
        %v3786 = vadd.f32 %v3683, %v3783
        %v3787 = vadd.f32 %v3684, %v3783
        %v3788 = vadd.f32 %v3685, %v3783
        %v3789 = vadd.f32 %v3686, %v3783
        %v3790 = vadd.f32 %v3687, %v3783
        %vm3791 = vcmp.ge.f32.partialorder %v3784, 0.0
        %vm3792 = vcmp.ge.f32.partialorder %v3785, 0.0
        %vm3793 = vcmp.ge.f32.partialorder %v3786, 0.0
        %vm3794 = vcmp.ge.f32.partialorder %v3787, 0.0
        %vm3795 = vcmp.ge.f32.partialorder %v3788, 0.0
        %vm3796 = vcmp.ge.f32.partialorder %v3789, 0.0
        %vm3797 = vcmp.ge.f32.partialorder %v3790, 0.0
        %v3798 = vmul.f32 %v3784, 0.2
        %v3799 = vmul.f32 %v3785, 0.2
        %v3800 = vmul.f32 %v3786, 0.2
        %v3801 = vmul.f32 %v3787, 0.2
        %v3802 = vmul.f32 %v3788, 0.2
        %v3803 = vmul.f32 %v3789, 0.2
        %v3804 = vmul.f32 %v3790, 0.2
        %v3805 = vsel %vm3791, %v3784, %v3798
        %v3806 = vsel %vm3792, %v3785, %v3799
        %v3807 = vsel %vm3793, %v3786, %v3800
        %v3808 = vsel %vm3794, %v3787, %v3801
        %v3809 = vsel %vm3795, %v3788, %v3802
        %v3810 = vsel %vm3796, %v3789, %v3803
        %v3811 = vsel %vm3797, %v3790, %v3804
        %v3812 = vsub.f32 %v3784, %v3805
        %v3813 = vsub.f32 %v3785, %v3806
        %v3814 = vsub.f32 %v3786, %v3807
        %v3815 = vsub.f32 %v3787, %v3808
        %v3816 = vsub.f32 %v3788, %v3809
        %v3817 = vsub.f32 %v3789, %v3810
        %v3818 = vsub.f32 %v3790, %v3811
        %v3819 = vmul.f32 %v3812, 1.442695
        %v3820 = vpow.pop %v3819
        %v3821 = vmul.f32 %v3813, 1.442695
        %v3822 = vpow.pop %v3821
        %v3823 = vmul.f32 %v3814, 1.442695
        %v3824 = vpow.pop %v3823
        %v3825 = vmul.f32 %v3815, 1.442695
        %v3826 = vpow.pop %v3825
        %v3827 = vmul.f32 %v3816, 1.442695
        %v3828 = vpow.pop %v3827
        %v3829 = vmul.f32 %v3817, 1.442695
        %v3830 = vpow.pop %v3829
        %v3831 = vmul.f32 %v3818, 1.442695
        %v3832 = vpow.pop %v3831
        %v3833 = vsub.f32 %v3798, %v3805
        %v3834 = vsub.f32 %v3799, %v3806
        %v3835 = vsub.f32 %v3800, %v3807
        %v3836 = vsub.f32 %v3801, %v3808
        %v3837 = vsub.f32 %v3802, %v3809
        %v3838 = vsub.f32 %v3803, %v3810
        %v3839 = vsub.f32 %v3804, %v3811
        %v3840 = vmul.f32 %v3833, 1.442695
        %v3841 = vpow.pop %v3840
        %v3842 = vmul.f32 %v3834, 1.442695
        %v3843 = vpow.pop %v3842
        %v3844 = vmul.f32 %v3835, 1.442695
        %v3845 = vpow.pop %v3844
        %v3846 = vmul.f32 %v3836, 1.442695
        %v3847 = vpow.pop %v3846
        %v3848 = vmul.f32 %v3837, 1.442695
        %v3849 = vpow.pop %v3848
        %v3850 = vmul.f32 %v3838, 1.442695
        %v3851 = vpow.pop %v3850
        %v3852 = vmul.f32 %v3839, 1.442695
        %v3853 = vpow.pop %v3852
        %3855 = vset.pattern.permute.xlu0 0
        %3856 = vperm.xlu0 %3855, %v3783
        %v3857 = vpop.permute.xlu0 %3856
        %v3859 = vsub.f32 %v3749, %v3857
        %v3860 = vmul.f32 %v3859, 1.442695
        %v3861 = vpow.pop %v3860
        %v3862 = vmul.f32 %v3859, 0.2
        %v3863 = vmul.f32 %v3862, 1.442695
        %v3864 = vpow.pop %v3863
        %v3865 = vadd.f32 %v3681, %v3726
        %v3866 = vadd.f32 %v3682, %v3727
        %v3867 = vadd.f32 %v3683, %v3728
        %v3868 = vadd.f32 %v3684, %v3729
        %v3869 = vadd.f32 %v3685, %v3730
        %v3870 = vadd.f32 %v3686, %v3731
        %v3871 = vadd.f32 %v3687, %v3732
        %vm3872 = vcmp.ge.f32.partialorder %v3865, 0.0
        %vm3873 = vcmp.ge.f32.partialorder %v3866, 0.0
        %vm3874 = vcmp.ge.f32.partialorder %v3867, 0.0
        %vm3875 = vcmp.ge.f32.partialorder %v3868, 0.0
        %vm3876 = vcmp.ge.f32.partialorder %v3869, 0.0
        %vm3877 = vcmp.ge.f32.partialorder %v3870, 0.0
        %vm3878 = vcmp.ge.f32.partialorder %v3871, 0.0
        %v3879 = vmul.f32 %v3865, 0.2
        %v3880 = vmul.f32 %v3866, 0.2
        %v3881 = vmul.f32 %v3867, 0.2
        %v3882 = vmul.f32 %v3868, 0.2
        %v3883 = vmul.f32 %v3869, 0.2
        %v3884 = vmul.f32 %v3870, 0.2
        %v3885 = vmul.f32 %v3871, 0.2
        %v3886 = vsel %vm3872, %v3865, %v3879
        %v3887 = vsel %vm3873, %v3866, %v3880
        %v3888 = vsel %vm3874, %v3867, %v3881
        %v3889 = vsel %vm3875, %v3868, %v3882
        %v3890 = vsel %vm3876, %v3869, %v3883
        %v3891 = vsel %vm3877, %v3870, %v3884
        %v3892 = vsel %vm3878, %v3871, %v3885
        %v3893 = vsub.f32 %v3886, %v3805
        %v3894 = vsub.f32 %v3887, %v3806
        %v3895 = vsub.f32 %v3888, %v3807
        %v3896 = vsub.f32 %v3889, %v3808
        %v3897 = vsub.f32 %v3890, %v3809
        %v3898 = vsub.f32 %v3891, %v3810
        %v3899 = vsub.f32 %v3892, %v3811
        %v3900 = vmul.f32 %v3893, 1.442695
        %v3901 = vpow.pop %v3900
        %v3902 = vmul.f32 %v3894, 1.442695
        %v3903 = vpow.pop %v3902
        %v3904 = vmul.f32 %v3895, 1.442695
        %v3905 = vpow.pop %v3904
        %v3906 = vmul.f32 %v3896, 1.442695
        %v3907 = vpow.pop %v3906
        %v3908 = vmul.f32 %v3897, 1.442695
        %v3909 = vpow.pop %v3908
        %v3910 = vmul.f32 %v3898, 1.442695
        %v3911 = vpow.pop %v3910
        %v3912 = vmul.f32 %v3899, 1.442695
        %v3913 = vpow.pop %v3912
        %3915 = vset.pattern.permute.xlu0 0
        %3916 = vperm.xlu0 %3915, %v3681
        %v3917 = vpop.permute.xlu0 %3916
        %3920 = vset.pattern.permute.xlu0 0
        %3921 = vperm.xlu0 %3920, %v3682
        %v3922 = vpop.permute.xlu0 %3921
        %3925 = vset.pattern.permute.xlu0 0
        %3926 = vperm.xlu0 %3925, %v3683
        %v3927 = vpop.permute.xlu0 %3926
        %3930 = vset.pattern.permute.xlu0 0
        %3931 = vperm.xlu0 %3930, %v3684
        %v3932 = vpop.permute.xlu0 %3931
        %3935 = vset.pattern.permute.xlu0 0
        %3936 = vperm.xlu0 %3935, %v3685
        %v3937 = vpop.permute.xlu0 %3936
        %3940 = vset.pattern.permute.xlu0 0
        %3941 = vperm.xlu0 %3940, %v3686
        %v3942 = vpop.permute.xlu0 %3941
        %3945 = vset.pattern.permute.xlu0 0
        %3946 = vperm.xlu0 %3945, %v3687
        %v3947 = vpop.permute.xlu0 %3946
        %v3949 = vperm.slane %v3749, 0
        %v3950 = vadd.f32 %v3917, %v3949
        %v3951 = vadd.f32 %v3922, %v3949
        %v3952 = vadd.f32 %v3927, %v3949
        %v3953 = vadd.f32 %v3932, %v3949
        %v3954 = vadd.f32 %v3937, %v3949
        %v3955 = vadd.f32 %v3942, %v3949
        %v3956 = vadd.f32 %v3947, %v3949
        %vm3957 = vcmp.ge.f32.partialorder %v3950, 0.0
        %vm3958 = vcmp.ge.f32.partialorder %v3951, 0.0
        %vm3959 = vcmp.ge.f32.partialorder %v3952, 0.0
        %vm3960 = vcmp.ge.f32.partialorder %v3953, 0.0
        %vm3961 = vcmp.ge.f32.partialorder %v3954, 0.0
        %vm3962 = vcmp.ge.f32.partialorder %v3955, 0.0
        %vm3963 = vcmp.ge.f32.partialorder %v3956, 0.0
        %v3964 = vperm.slane %v3861, 0
        %v3965 = vsel %vm3957, %v3964, 0.0
        %v3966 = vsel %vm3958, %v3964, 0.0
        %v3967 = vsel %vm3959, %v3964, 0.0
        %v3968 = vsel %vm3960, %v3964, 0.0
        %v3969 = vsel %vm3961, %v3964, 0.0
        %v3970 = vsel %vm3962, %v3964, 0.0
        %v3971 = vsel %vm3963, %v3964, 0.0
        %v3972 = vmul.f32 %v588, %v3965
        %v3973 = vmul.f32 %v589, %v3966
        %v3974 = vmul.f32 %v590, %v3967
        %v3975 = vmul.f32 %v591, %v3968
        %v3976 = vmul.f32 %v592, %v3969
        %v3977 = vmul.f32 %v593, %v3970
        %v3978 = vmul.f32 %v594, %v3971
        %v3979 = vperm.slane %v3864, 0
        %v3980 = vsel %vm3957, 0.0, %v3979
        %v3981 = vsel %vm3958, 0.0, %v3979
        %v3982 = vsel %vm3959, 0.0, %v3979
        %v3983 = vsel %vm3960, 0.0, %v3979
        %v3984 = vsel %vm3961, 0.0, %v3979
        %v3985 = vsel %vm3962, 0.0, %v3979
        %v3986 = vsel %vm3963, 0.0, %v3979
        %v3987 = vmul.f32 %v588, %v3980
        %v3988 = vmul.f32 %v589, %v3981
        %v3989 = vmul.f32 %v590, %v3982
        %v3990 = vmul.f32 %v591, %v3983
        %v3991 = vmul.f32 %v592, %v3984
        %v3992 = vmul.f32 %v593, %v3985
        %v3993 = vmul.f32 %v594, %v3986
        %v3994 = vsel %vm1125, %v3972, 0.0
        %3995 = vadd.xlane.f32.xlu0 %v3994
        %v3996 = vpop.xlane.xlu0 %3995
        %v3997 = vsel %vm1125, %v3973, 0.0
        %3998 = vadd.xlane.f32.xlu0 %v3997
        %v3999 = vpop.xlane.xlu0 %3998
        %v4000 = vsel %vm1125, %v3974, 0.0
        %4001 = vadd.xlane.f32.xlu0 %v4000
        %v4002 = vpop.xlane.xlu0 %4001
        %v4003 = vsel %vm1125, %v3975, 0.0
        %4004 = vadd.xlane.f32.xlu0 %v4003
        %v4005 = vpop.xlane.xlu0 %4004
        %v4006 = vsel %vm1125, %v3976, 0.0
        %4007 = vadd.xlane.f32.xlu0 %v4006
        %v4008 = vpop.xlane.xlu0 %4007
        %v4009 = vsel %vm1125, %v3977, 0.0
        %4010 = vadd.xlane.f32.xlu0 %v4009
        %v4011 = vpop.xlane.xlu0 %4010
        %v4012 = vsel %vm1125, %v3978, 0.0
        %4013 = vadd.xlane.f32.xlu0 %v4012
        %v4014 = vpop.xlane.xlu0 %4013
        %v4015 = vsel %vm1125, %v3987, 0.0
        %4016 = vadd.xlane.f32.xlu0 %v4015
        %v4017 = vpop.xlane.xlu0 %4016
        %v4018 = vsel %vm1125, %v3988, 0.0
        %4019 = vadd.xlane.f32.xlu0 %v4018
        %v4020 = vpop.xlane.xlu0 %4019
        %v4021 = vsel %vm1125, %v3989, 0.0
        %4022 = vadd.xlane.f32.xlu0 %v4021
        %v4023 = vpop.xlane.xlu0 %4022
        %v4024 = vsel %vm1125, %v3990, 0.0
        %4025 = vadd.xlane.f32.xlu0 %v4024
        %v4026 = vpop.xlane.xlu0 %4025
        %v4027 = vsel %vm1125, %v3991, 0.0
        %4028 = vadd.xlane.f32.xlu0 %v4027
        %v4029 = vpop.xlane.xlu0 %4028
        %v4030 = vsel %vm1125, %v3992, 0.0
        %4031 = vadd.xlane.f32.xlu0 %v4030
        %v4032 = vpop.xlane.xlu0 %4031
        %v4033 = vsel %vm1125, %v3993, 0.0
        %4034 = vadd.xlane.f32.xlu0 %v4033
        %v4035 = vpop.xlane.xlu0 %4034
        %v4036 = vmul.f32 %v3820, %v3996
        %v4037 = vmul.f32 %v3822, %v3999
        %v4038 = vmul.f32 %v3824, %v4002
        %v4039 = vmul.f32 %v3826, %v4005
        %v4040 = vmul.f32 %v3828, %v4008
        %v4041 = vmul.f32 %v3830, %v4011
        %v4042 = vmul.f32 %v3832, %v4014
        %v4043 = vmul.f32 %v3841, %v4017
        %v4044 = vmul.f32 %v3843, %v4020
        %v4045 = vmul.f32 %v3845, %v4023
        %v4046 = vmul.f32 %v3847, %v4026
        %v4047 = vmul.f32 %v3849, %v4029
        %v4048 = vmul.f32 %v3851, %v4032
        %v4049 = vmul.f32 %v3853, %v4035
        %v4050 = vadd.f32 %v4036, %v4043
        %v4051 = vadd.f32 %v4037, %v4044
        %v4052 = vadd.f32 %v4038, %v4045
        %v4053 = vadd.f32 %v4039, %v4046
        %v4054 = vadd.f32 %v4040, %v4047
        %v4055 = vadd.f32 %v4041, %v4048
        %v4056 = vadd.f32 %v4042, %v4049
        %v4057 = vmax.f32 %v4050, 1e-30
        %v4058 = vmax.f32 %v4051, 1e-30
        %v4059 = vmax.f32 %v4052, 1e-30
        %v4060 = vmax.f32 %v4053, 1e-30
        %v4061 = vmax.f32 %v4054, 1e-30
        %v4062 = vmax.f32 %v4055, 1e-30
        %v4063 = vmax.f32 %v4056, 1e-30
        %v4064 = vrcp.pop %v4057
        %v4065 = vrcp.pop %v4058
        %v4066 = vrcp.pop %v4059
        %v4067 = vrcp.pop %v4060
        %v4068 = vrcp.pop %v4061
        %v4069 = vrcp.pop %v4062
        %v4070 = vrcp.pop %v4063
        %v4071 = vmul.f32 %v3901, %v4064
        %v4072 = vmul.f32 %v3903, %v4065
        %v4073 = vmul.f32 %v3905, %v4066
        %v4074 = vmul.f32 %v3907, %v4067
        %v4075 = vmul.f32 %v3909, %v4068
        %v4076 = vmul.f32 %v3911, %v4069
        %v4077 = vmul.f32 %v3913, %v4070
        %4079 = vset.pattern.permute.xlu0 0
        %4080 = vperm.xlu0 %4079, %v4071
        %v4081 = vpop.permute.xlu0 %4080
        %4084 = vset.pattern.permute.xlu0 0
        %4085 = vperm.xlu0 %4084, %v4072
        %v4086 = vpop.permute.xlu0 %4085
        %4089 = vset.pattern.permute.xlu0 0
        %4090 = vperm.xlu0 %4089, %v4073
        %v4091 = vpop.permute.xlu0 %4090
        %4094 = vset.pattern.permute.xlu0 0
        %4095 = vperm.xlu0 %4094, %v4074
        %v4096 = vpop.permute.xlu0 %4095
        %4099 = vset.pattern.permute.xlu0 0
        %4100 = vperm.xlu0 %4099, %v4075
        %v4101 = vpop.permute.xlu0 %4100
        %4104 = vset.pattern.permute.xlu0 0
        %4105 = vperm.xlu0 %4104, %v4076
        %v4106 = vpop.permute.xlu0 %4105
        %4109 = vset.pattern.permute.xlu0 0
        %4110 = vperm.xlu0 %4109, %v4077
        %v4111 = vpop.permute.xlu0 %4110
        %v4113 = vmul.f32 %v4081, %v1212
        %v4114 = vmul.f32 %v4086, %v1212
        %v4115 = vmul.f32 %v4091, %v1212
        %v4116 = vmul.f32 %v4096, %v1212
        %v4117 = vmul.f32 %v4101, %v1212
        %v4118 = vmul.f32 %v4106, %v1212
        %v4119 = vmul.f32 %v4111, %v1212
        %v4120 = vadd.f32 %v4113, 0.0
        %v4121 = vadd.f32 %v4114, 0.0
        %v4122 = vadd.f32 %v4115, 0.0
        %v4123 = vadd.f32 %v4116, 0.0
        %v4124 = vadd.f32 %v4117, 0.0
        %v4125 = vadd.f32 %v4118, 0.0
        %v4126 = vadd.f32 %v4119, 0.0
        %4127 = vset.pattern.permute.xlu0 1
        %4128 = vperm.xlu0 %4127, %v3783
        %v4129 = vpop.permute.xlu0 %4128
        %v4131 = vsub.f32 %v3749, %v4129
        %v4132 = vmul.f32 %v4131, 1.442695
        %v4133 = vpow.pop %v4132
        %v4134 = vmul.f32 %v4131, 0.2
        %v4135 = vmul.f32 %v4134, 1.442695
        %v4136 = vpow.pop %v4135
        %4137 = vset.pattern.permute.xlu0 1
        %4138 = vperm.xlu0 %4137, %v3681
        %v4139 = vpop.permute.xlu0 %4138
        %4141 = vset.pattern.permute.xlu0 1
        %4142 = vperm.xlu0 %4141, %v3682
        %v4143 = vpop.permute.xlu0 %4142
        %4145 = vset.pattern.permute.xlu0 1
        %4146 = vperm.xlu0 %4145, %v3683
        %v4147 = vpop.permute.xlu0 %4146
        %4149 = vset.pattern.permute.xlu0 1
        %4150 = vperm.xlu0 %4149, %v3684
        %v4151 = vpop.permute.xlu0 %4150
        %4153 = vset.pattern.permute.xlu0 1
        %4154 = vperm.xlu0 %4153, %v3685
        %v4155 = vpop.permute.xlu0 %4154
        %4157 = vset.pattern.permute.xlu0 1
        %4158 = vperm.xlu0 %4157, %v3686
        %v4159 = vpop.permute.xlu0 %4158
        %4161 = vset.pattern.permute.xlu0 1
        %4162 = vperm.xlu0 %4161, %v3687
        %v4163 = vpop.permute.xlu0 %4162
        %v4165 = vperm.slane %v3749, 1
        %v4166 = vadd.f32 %v4139, %v4165
        %v4167 = vadd.f32 %v4143, %v4165
        %v4168 = vadd.f32 %v4147, %v4165
        %v4169 = vadd.f32 %v4151, %v4165
        %v4170 = vadd.f32 %v4155, %v4165
        %v4171 = vadd.f32 %v4159, %v4165
        %v4172 = vadd.f32 %v4163, %v4165
        %vm4173 = vcmp.ge.f32.partialorder %v4166, 0.0
        %vm4174 = vcmp.ge.f32.partialorder %v4167, 0.0
        %vm4175 = vcmp.ge.f32.partialorder %v4168, 0.0
        %vm4176 = vcmp.ge.f32.partialorder %v4169, 0.0
        %vm4177 = vcmp.ge.f32.partialorder %v4170, 0.0
        %vm4178 = vcmp.ge.f32.partialorder %v4171, 0.0
        %vm4179 = vcmp.ge.f32.partialorder %v4172, 0.0
        %v4180 = vperm.slane %v4133, 1
        %v4181 = vsel %vm4173, %v4180, 0.0
        %v4182 = vsel %vm4174, %v4180, 0.0
        %v4183 = vsel %vm4175, %v4180, 0.0
        %v4184 = vsel %vm4176, %v4180, 0.0
        %v4185 = vsel %vm4177, %v4180, 0.0
        %v4186 = vsel %vm4178, %v4180, 0.0
        %v4187 = vsel %vm4179, %v4180, 0.0
        %v4188 = vmul.f32 %v588, %v4181
        %v4189 = vmul.f32 %v589, %v4182
        %v4190 = vmul.f32 %v590, %v4183
        %v4191 = vmul.f32 %v591, %v4184
        %v4192 = vmul.f32 %v592, %v4185
        %v4193 = vmul.f32 %v593, %v4186
        %v4194 = vmul.f32 %v594, %v4187
        %v4195 = vperm.slane %v4136, 1
        %v4196 = vsel %vm4173, 0.0, %v4195
        %v4197 = vsel %vm4174, 0.0, %v4195
        %v4198 = vsel %vm4175, 0.0, %v4195
        %v4199 = vsel %vm4176, 0.0, %v4195
        %v4200 = vsel %vm4177, 0.0, %v4195
        %v4201 = vsel %vm4178, 0.0, %v4195
        %v4202 = vsel %vm4179, 0.0, %v4195
        %v4203 = vmul.f32 %v588, %v4196
        %v4204 = vmul.f32 %v589, %v4197
        %v4205 = vmul.f32 %v590, %v4198
        %v4206 = vmul.f32 %v591, %v4199
        %v4207 = vmul.f32 %v592, %v4200
        %v4208 = vmul.f32 %v593, %v4201
        %v4209 = vmul.f32 %v594, %v4202
        %v4210 = vsel %vm1125, %v4188, 0.0
        %4211 = vadd.xlane.f32.xlu0 %v4210
        %v4212 = vpop.xlane.xlu0 %4211
        %v4213 = vsel %vm1125, %v4189, 0.0
        %4214 = vadd.xlane.f32.xlu0 %v4213
        %v4215 = vpop.xlane.xlu0 %4214
        %v4216 = vsel %vm1125, %v4190, 0.0
        %4217 = vadd.xlane.f32.xlu0 %v4216
        %v4218 = vpop.xlane.xlu0 %4217
        %v4219 = vsel %vm1125, %v4191, 0.0
        %4220 = vadd.xlane.f32.xlu0 %v4219
        %v4221 = vpop.xlane.xlu0 %4220
        %v4222 = vsel %vm1125, %v4192, 0.0
        %4223 = vadd.xlane.f32.xlu0 %v4222
        %v4224 = vpop.xlane.xlu0 %4223
        %v4225 = vsel %vm1125, %v4193, 0.0
        %4226 = vadd.xlane.f32.xlu0 %v4225
        %v4227 = vpop.xlane.xlu0 %4226
        %v4228 = vsel %vm1125, %v4194, 0.0
        %4229 = vadd.xlane.f32.xlu0 %v4228
        %v4230 = vpop.xlane.xlu0 %4229
        %v4231 = vsel %vm1125, %v4203, 0.0
        %4232 = vadd.xlane.f32.xlu0 %v4231
        %v4233 = vpop.xlane.xlu0 %4232
        %v4234 = vsel %vm1125, %v4204, 0.0
        %4235 = vadd.xlane.f32.xlu0 %v4234
        %v4236 = vpop.xlane.xlu0 %4235
        %v4237 = vsel %vm1125, %v4205, 0.0
        %4238 = vadd.xlane.f32.xlu0 %v4237
        %v4239 = vpop.xlane.xlu0 %4238
        %v4240 = vsel %vm1125, %v4206, 0.0
        %4241 = vadd.xlane.f32.xlu0 %v4240
        %v4242 = vpop.xlane.xlu0 %4241
        %v4243 = vsel %vm1125, %v4207, 0.0
        %4244 = vadd.xlane.f32.xlu0 %v4243
        %v4245 = vpop.xlane.xlu0 %4244
        %v4246 = vsel %vm1125, %v4208, 0.0
        %4247 = vadd.xlane.f32.xlu0 %v4246
        %v4248 = vpop.xlane.xlu0 %4247
        %v4249 = vsel %vm1125, %v4209, 0.0
        %4250 = vadd.xlane.f32.xlu0 %v4249
        %v4251 = vpop.xlane.xlu0 %4250
        %v4252 = vmul.f32 %v3820, %v4212
        %v4253 = vmul.f32 %v3822, %v4215
        %v4254 = vmul.f32 %v3824, %v4218
        %v4255 = vmul.f32 %v3826, %v4221
        %v4256 = vmul.f32 %v3828, %v4224
        %v4257 = vmul.f32 %v3830, %v4227
        %v4258 = vmul.f32 %v3832, %v4230
        %v4259 = vmul.f32 %v3841, %v4233
        %v4260 = vmul.f32 %v3843, %v4236
        %v4261 = vmul.f32 %v3845, %v4239
        %v4262 = vmul.f32 %v3847, %v4242
        %v4263 = vmul.f32 %v3849, %v4245
        %v4264 = vmul.f32 %v3851, %v4248
        %v4265 = vmul.f32 %v3853, %v4251
        %v4266 = vadd.f32 %v4252, %v4259
        %v4267 = vadd.f32 %v4253, %v4260
        %v4268 = vadd.f32 %v4254, %v4261
        %v4269 = vadd.f32 %v4255, %v4262
        %v4270 = vadd.f32 %v4256, %v4263
        %v4271 = vadd.f32 %v4257, %v4264
        %v4272 = vadd.f32 %v4258, %v4265
        %v4273 = vmax.f32 %v4266, 1e-30
        %v4274 = vmax.f32 %v4267, 1e-30
        %v4275 = vmax.f32 %v4268, 1e-30
        %v4276 = vmax.f32 %v4269, 1e-30
        %v4277 = vmax.f32 %v4270, 1e-30
        %v4278 = vmax.f32 %v4271, 1e-30
        %v4279 = vmax.f32 %v4272, 1e-30
        %v4280 = vrcp.pop %v4273
        %v4281 = vrcp.pop %v4274
        %v4282 = vrcp.pop %v4275
        %v4283 = vrcp.pop %v4276
        %v4284 = vrcp.pop %v4277
        %v4285 = vrcp.pop %v4278
        %v4286 = vrcp.pop %v4279
        %v4287 = vmul.f32 %v3901, %v4280
        %v4288 = vmul.f32 %v3903, %v4281
        %v4289 = vmul.f32 %v3905, %v4282
        %v4290 = vmul.f32 %v3907, %v4283
        %v4291 = vmul.f32 %v3909, %v4284
        %v4292 = vmul.f32 %v3911, %v4285
        %v4293 = vmul.f32 %v3913, %v4286
        %4295 = vset.pattern.permute.xlu0 1
        %4296 = vperm.xlu0 %4295, %v4287
        %v4297 = vpop.permute.xlu0 %4296
        %4300 = vset.pattern.permute.xlu0 1
        %4301 = vperm.xlu0 %4300, %v4288
        %v4302 = vpop.permute.xlu0 %4301
        %4305 = vset.pattern.permute.xlu0 1
        %4306 = vperm.xlu0 %4305, %v4289
        %v4307 = vpop.permute.xlu0 %4306
        %4310 = vset.pattern.permute.xlu0 1
        %4311 = vperm.xlu0 %4310, %v4290
        %v4312 = vpop.permute.xlu0 %4311
        %4315 = vset.pattern.permute.xlu0 1
        %4316 = vperm.xlu0 %4315, %v4291
        %v4317 = vpop.permute.xlu0 %4316
        %4320 = vset.pattern.permute.xlu0 1
        %4321 = vperm.xlu0 %4320, %v4292
        %v4322 = vpop.permute.xlu0 %4321
        %4325 = vset.pattern.permute.xlu0 1
        %4326 = vperm.xlu0 %4325, %v4293
        %v4327 = vpop.permute.xlu0 %4326
        %v4329 = vmul.f32 %v4297, %v1431
        %v4330 = vmul.f32 %v4302, %v1431
        %v4331 = vmul.f32 %v4307, %v1431
        %v4332 = vmul.f32 %v4312, %v1431
        %v4333 = vmul.f32 %v4317, %v1431
        %v4334 = vmul.f32 %v4322, %v1431
        %v4335 = vmul.f32 %v4327, %v1431
        %v4336 = vadd.f32 %v4120, %v4329
        %v4337 = vadd.f32 %v4121, %v4330
        %v4338 = vadd.f32 %v4122, %v4331
        %v4339 = vadd.f32 %v4123, %v4332
        %v4340 = vadd.f32 %v4124, %v4333
        %v4341 = vadd.f32 %v4125, %v4334
        %v4342 = vadd.f32 %v4126, %v4335
        %4343 = vset.pattern.permute.xlu0 2
        %4344 = vperm.xlu0 %4343, %v3783
        %v4345 = vpop.permute.xlu0 %4344
        %v4347 = vsub.f32 %v3749, %v4345
        %v4348 = vmul.f32 %v4347, 1.442695
        %v4349 = vpow.pop %v4348
        %v4350 = vmul.f32 %v4347, 0.2
        %v4351 = vmul.f32 %v4350, 1.442695
        %v4352 = vpow.pop %v4351
        %4353 = vset.pattern.permute.xlu0 2
        %4354 = vperm.xlu0 %4353, %v3681
        %v4355 = vpop.permute.xlu0 %4354
        %4357 = vset.pattern.permute.xlu0 2
        %4358 = vperm.xlu0 %4357, %v3682
        %v4359 = vpop.permute.xlu0 %4358
        %4361 = vset.pattern.permute.xlu0 2
        %4362 = vperm.xlu0 %4361, %v3683
        %v4363 = vpop.permute.xlu0 %4362
        %4365 = vset.pattern.permute.xlu0 2
        %4366 = vperm.xlu0 %4365, %v3684
        %v4367 = vpop.permute.xlu0 %4366
        %4369 = vset.pattern.permute.xlu0 2
        %4370 = vperm.xlu0 %4369, %v3685
        %v4371 = vpop.permute.xlu0 %4370
        %4373 = vset.pattern.permute.xlu0 2
        %4374 = vperm.xlu0 %4373, %v3686
        %v4375 = vpop.permute.xlu0 %4374
        %4377 = vset.pattern.permute.xlu0 2
        %4378 = vperm.xlu0 %4377, %v3687
        %v4379 = vpop.permute.xlu0 %4378
        %v4381 = vperm.slane %v3749, 2
        %v4382 = vadd.f32 %v4355, %v4381
        %v4383 = vadd.f32 %v4359, %v4381
        %v4384 = vadd.f32 %v4363, %v4381
        %v4385 = vadd.f32 %v4367, %v4381
        %v4386 = vadd.f32 %v4371, %v4381
        %v4387 = vadd.f32 %v4375, %v4381
        %v4388 = vadd.f32 %v4379, %v4381
        %vm4389 = vcmp.ge.f32.partialorder %v4382, 0.0
        %vm4390 = vcmp.ge.f32.partialorder %v4383, 0.0
        %vm4391 = vcmp.ge.f32.partialorder %v4384, 0.0
        %vm4392 = vcmp.ge.f32.partialorder %v4385, 0.0
        %vm4393 = vcmp.ge.f32.partialorder %v4386, 0.0
        %vm4394 = vcmp.ge.f32.partialorder %v4387, 0.0
        %vm4395 = vcmp.ge.f32.partialorder %v4388, 0.0
        %v4396 = vperm.slane %v4349, 2
        %v4397 = vsel %vm4389, %v4396, 0.0
        %v4398 = vsel %vm4390, %v4396, 0.0
        %v4399 = vsel %vm4391, %v4396, 0.0
        %v4400 = vsel %vm4392, %v4396, 0.0
        %v4401 = vsel %vm4393, %v4396, 0.0
        %v4402 = vsel %vm4394, %v4396, 0.0
        %v4403 = vsel %vm4395, %v4396, 0.0
        %v4404 = vmul.f32 %v588, %v4397
        %v4405 = vmul.f32 %v589, %v4398
        %v4406 = vmul.f32 %v590, %v4399
        %v4407 = vmul.f32 %v591, %v4400
        %v4408 = vmul.f32 %v592, %v4401
        %v4409 = vmul.f32 %v593, %v4402
        %v4410 = vmul.f32 %v594, %v4403
        %v4411 = vperm.slane %v4352, 2
        %v4412 = vsel %vm4389, 0.0, %v4411
        %v4413 = vsel %vm4390, 0.0, %v4411
        %v4414 = vsel %vm4391, 0.0, %v4411
        %v4415 = vsel %vm4392, 0.0, %v4411
        %v4416 = vsel %vm4393, 0.0, %v4411
        %v4417 = vsel %vm4394, 0.0, %v4411
        %v4418 = vsel %vm4395, 0.0, %v4411
        %v4419 = vmul.f32 %v588, %v4412
        %v4420 = vmul.f32 %v589, %v4413
        %v4421 = vmul.f32 %v590, %v4414
        %v4422 = vmul.f32 %v591, %v4415
        %v4423 = vmul.f32 %v592, %v4416
        %v4424 = vmul.f32 %v593, %v4417
        %v4425 = vmul.f32 %v594, %v4418
        %v4426 = vsel %vm1125, %v4404, 0.0
        %4427 = vadd.xlane.f32.xlu0 %v4426
        %v4428 = vpop.xlane.xlu0 %4427
        %v4429 = vsel %vm1125, %v4405, 0.0
        %4430 = vadd.xlane.f32.xlu0 %v4429
        %v4431 = vpop.xlane.xlu0 %4430
        %v4432 = vsel %vm1125, %v4406, 0.0
        %4433 = vadd.xlane.f32.xlu0 %v4432
        %v4434 = vpop.xlane.xlu0 %4433
        %v4435 = vsel %vm1125, %v4407, 0.0
        %4436 = vadd.xlane.f32.xlu0 %v4435
        %v4437 = vpop.xlane.xlu0 %4436
        %v4438 = vsel %vm1125, %v4408, 0.0
        %4439 = vadd.xlane.f32.xlu0 %v4438
        %v4440 = vpop.xlane.xlu0 %4439
        %v4441 = vsel %vm1125, %v4409, 0.0
        %4442 = vadd.xlane.f32.xlu0 %v4441
        %v4443 = vpop.xlane.xlu0 %4442
        %v4444 = vsel %vm1125, %v4410, 0.0
        %4445 = vadd.xlane.f32.xlu0 %v4444
        %v4446 = vpop.xlane.xlu0 %4445
        %v4447 = vsel %vm1125, %v4419, 0.0
        %4448 = vadd.xlane.f32.xlu0 %v4447
        %v4449 = vpop.xlane.xlu0 %4448
        %v4450 = vsel %vm1125, %v4420, 0.0
        %4451 = vadd.xlane.f32.xlu0 %v4450
        %v4452 = vpop.xlane.xlu0 %4451
        %v4453 = vsel %vm1125, %v4421, 0.0
        %4454 = vadd.xlane.f32.xlu0 %v4453
        %v4455 = vpop.xlane.xlu0 %4454
        %v4456 = vsel %vm1125, %v4422, 0.0
        %4457 = vadd.xlane.f32.xlu0 %v4456
        %v4458 = vpop.xlane.xlu0 %4457
        %v4459 = vsel %vm1125, %v4423, 0.0
        %4460 = vadd.xlane.f32.xlu0 %v4459
        %v4461 = vpop.xlane.xlu0 %4460
        %v4462 = vsel %vm1125, %v4424, 0.0
        %4463 = vadd.xlane.f32.xlu0 %v4462
        %v4464 = vpop.xlane.xlu0 %4463
        %v4465 = vsel %vm1125, %v4425, 0.0
        %4466 = vadd.xlane.f32.xlu0 %v4465
        %v4467 = vpop.xlane.xlu0 %4466
        %v4468 = vmul.f32 %v3820, %v4428
        %v4469 = vmul.f32 %v3822, %v4431
        %v4470 = vmul.f32 %v3824, %v4434
        %v4471 = vmul.f32 %v3826, %v4437
        %v4472 = vmul.f32 %v3828, %v4440
        %v4473 = vmul.f32 %v3830, %v4443
        %v4474 = vmul.f32 %v3832, %v4446
        %v4475 = vmul.f32 %v3841, %v4449
        %v4476 = vmul.f32 %v3843, %v4452
        %v4477 = vmul.f32 %v3845, %v4455
        %v4478 = vmul.f32 %v3847, %v4458
        %v4479 = vmul.f32 %v3849, %v4461
        %v4480 = vmul.f32 %v3851, %v4464
        %v4481 = vmul.f32 %v3853, %v4467
        %v4482 = vadd.f32 %v4468, %v4475
        %v4483 = vadd.f32 %v4469, %v4476
        %v4484 = vadd.f32 %v4470, %v4477
        %v4485 = vadd.f32 %v4471, %v4478
        %v4486 = vadd.f32 %v4472, %v4479
        %v4487 = vadd.f32 %v4473, %v4480
        %v4488 = vadd.f32 %v4474, %v4481
        %v4489 = vmax.f32 %v4482, 1e-30
        %v4490 = vmax.f32 %v4483, 1e-30
        %v4491 = vmax.f32 %v4484, 1e-30
        %v4492 = vmax.f32 %v4485, 1e-30
        %v4493 = vmax.f32 %v4486, 1e-30
        %v4494 = vmax.f32 %v4487, 1e-30
        %v4495 = vmax.f32 %v4488, 1e-30
        %v4496 = vrcp.pop %v4489
        %v4497 = vrcp.pop %v4490
        %v4498 = vrcp.pop %v4491
        %v4499 = vrcp.pop %v4492
        %v4500 = vrcp.pop %v4493
        %v4501 = vrcp.pop %v4494
        %v4502 = vrcp.pop %v4495
        %v4503 = vmul.f32 %v3901, %v4496
        %v4504 = vmul.f32 %v3903, %v4497
        %v4505 = vmul.f32 %v3905, %v4498
        %v4506 = vmul.f32 %v3907, %v4499
        %v4507 = vmul.f32 %v3909, %v4500
        %v4508 = vmul.f32 %v3911, %v4501
        %v4509 = vmul.f32 %v3913, %v4502
        %4511 = vset.pattern.permute.xlu0 2
        %4512 = vperm.xlu0 %4511, %v4503
        %v4513 = vpop.permute.xlu0 %4512
        %4516 = vset.pattern.permute.xlu0 2
        %4517 = vperm.xlu0 %4516, %v4504
        %v4518 = vpop.permute.xlu0 %4517
        %4521 = vset.pattern.permute.xlu0 2
        %4522 = vperm.xlu0 %4521, %v4505
        %v4523 = vpop.permute.xlu0 %4522
        %4526 = vset.pattern.permute.xlu0 2
        %4527 = vperm.xlu0 %4526, %v4506
        %v4528 = vpop.permute.xlu0 %4527
        %4531 = vset.pattern.permute.xlu0 2
        %4532 = vperm.xlu0 %4531, %v4507
        %v4533 = vpop.permute.xlu0 %4532
        %4536 = vset.pattern.permute.xlu0 2
        %4537 = vperm.xlu0 %4536, %v4508
        %v4538 = vpop.permute.xlu0 %4537
        %4541 = vset.pattern.permute.xlu0 2
        %4542 = vperm.xlu0 %4541, %v4509
        %v4543 = vpop.permute.xlu0 %4542
        %v4545 = vmul.f32 %v4513, %v1650
        %v4546 = vmul.f32 %v4518, %v1650
        %v4547 = vmul.f32 %v4523, %v1650
        %v4548 = vmul.f32 %v4528, %v1650
        %v4549 = vmul.f32 %v4533, %v1650
        %v4550 = vmul.f32 %v4538, %v1650
        %v4551 = vmul.f32 %v4543, %v1650
        %v4552 = vadd.f32 %v4336, %v4545
        %v4553 = vadd.f32 %v4337, %v4546
        %v4554 = vadd.f32 %v4338, %v4547
        %v4555 = vadd.f32 %v4339, %v4548
        %v4556 = vadd.f32 %v4340, %v4549
        %v4557 = vadd.f32 %v4341, %v4550
        %v4558 = vadd.f32 %v4342, %v4551
        %4559 = vset.pattern.permute.xlu0 3
        %4560 = vperm.xlu0 %4559, %v3783
        %v4561 = vpop.permute.xlu0 %4560
        %v4563 = vsub.f32 %v3749, %v4561
        %v4564 = vmul.f32 %v4563, 1.442695
        %v4565 = vpow.pop %v4564
        %v4566 = vmul.f32 %v4563, 0.2
        %v4567 = vmul.f32 %v4566, 1.442695
        %v4568 = vpow.pop %v4567
        %4569 = vset.pattern.permute.xlu0 3
        %4570 = vperm.xlu0 %4569, %v3681
        %v4571 = vpop.permute.xlu0 %4570
        %4573 = vset.pattern.permute.xlu0 3
        %4574 = vperm.xlu0 %4573, %v3682
        %v4575 = vpop.permute.xlu0 %4574
        %4577 = vset.pattern.permute.xlu0 3
        %4578 = vperm.xlu0 %4577, %v3683
        %v4579 = vpop.permute.xlu0 %4578
        %4581 = vset.pattern.permute.xlu0 3
        %4582 = vperm.xlu0 %4581, %v3684
        %v4583 = vpop.permute.xlu0 %4582
        %4585 = vset.pattern.permute.xlu0 3
        %4586 = vperm.xlu0 %4585, %v3685
        %v4587 = vpop.permute.xlu0 %4586
        %4589 = vset.pattern.permute.xlu0 3
        %4590 = vperm.xlu0 %4589, %v3686
        %v4591 = vpop.permute.xlu0 %4590
        %4593 = vset.pattern.permute.xlu0 3
        %4594 = vperm.xlu0 %4593, %v3687
        %v4595 = vpop.permute.xlu0 %4594
        %v4597 = vperm.slane %v3749, 3
        %v4598 = vadd.f32 %v4571, %v4597
        %v4599 = vadd.f32 %v4575, %v4597
        %v4600 = vadd.f32 %v4579, %v4597
        %v4601 = vadd.f32 %v4583, %v4597
        %v4602 = vadd.f32 %v4587, %v4597
        %v4603 = vadd.f32 %v4591, %v4597
        %v4604 = vadd.f32 %v4595, %v4597
        %vm4605 = vcmp.ge.f32.partialorder %v4598, 0.0
        %vm4606 = vcmp.ge.f32.partialorder %v4599, 0.0
        %vm4607 = vcmp.ge.f32.partialorder %v4600, 0.0
        %vm4608 = vcmp.ge.f32.partialorder %v4601, 0.0
        %vm4609 = vcmp.ge.f32.partialorder %v4602, 0.0
        %vm4610 = vcmp.ge.f32.partialorder %v4603, 0.0
        %vm4611 = vcmp.ge.f32.partialorder %v4604, 0.0
        %v4612 = vperm.slane %v4565, 3
        %v4613 = vsel %vm4605, %v4612, 0.0
        %v4614 = vsel %vm4606, %v4612, 0.0
        %v4615 = vsel %vm4607, %v4612, 0.0
        %v4616 = vsel %vm4608, %v4612, 0.0
        %v4617 = vsel %vm4609, %v4612, 0.0
        %v4618 = vsel %vm4610, %v4612, 0.0
        %v4619 = vsel %vm4611, %v4612, 0.0
        %v4620 = vmul.f32 %v588, %v4613
        %v4621 = vmul.f32 %v589, %v4614
        %v4622 = vmul.f32 %v590, %v4615
        %v4623 = vmul.f32 %v591, %v4616
        %v4624 = vmul.f32 %v592, %v4617
        %v4625 = vmul.f32 %v593, %v4618
        %v4626 = vmul.f32 %v594, %v4619
        %v4627 = vperm.slane %v4568, 3
        %v4628 = vsel %vm4605, 0.0, %v4627
        %v4629 = vsel %vm4606, 0.0, %v4627
        %v4630 = vsel %vm4607, 0.0, %v4627
        %v4631 = vsel %vm4608, 0.0, %v4627
        %v4632 = vsel %vm4609, 0.0, %v4627
        %v4633 = vsel %vm4610, 0.0, %v4627
        %v4634 = vsel %vm4611, 0.0, %v4627
        %v4635 = vmul.f32 %v588, %v4628
        %v4636 = vmul.f32 %v589, %v4629
        %v4637 = vmul.f32 %v590, %v4630
        %v4638 = vmul.f32 %v591, %v4631
        %v4639 = vmul.f32 %v592, %v4632
        %v4640 = vmul.f32 %v593, %v4633
        %v4641 = vmul.f32 %v594, %v4634
        %v4642 = vsel %vm1125, %v4620, 0.0
        %4643 = vadd.xlane.f32.xlu0 %v4642
        %v4644 = vpop.xlane.xlu0 %4643
        %v4645 = vsel %vm1125, %v4621, 0.0
        %4646 = vadd.xlane.f32.xlu0 %v4645
        %v4647 = vpop.xlane.xlu0 %4646
        %v4648 = vsel %vm1125, %v4622, 0.0
        %4649 = vadd.xlane.f32.xlu0 %v4648
        %v4650 = vpop.xlane.xlu0 %4649
        %v4651 = vsel %vm1125, %v4623, 0.0
        %4652 = vadd.xlane.f32.xlu0 %v4651
        %v4653 = vpop.xlane.xlu0 %4652
        %v4654 = vsel %vm1125, %v4624, 0.0
        %4655 = vadd.xlane.f32.xlu0 %v4654
        %v4656 = vpop.xlane.xlu0 %4655
        %v4657 = vsel %vm1125, %v4625, 0.0
        %4658 = vadd.xlane.f32.xlu0 %v4657
        %v4659 = vpop.xlane.xlu0 %4658
        %v4660 = vsel %vm1125, %v4626, 0.0
        %4661 = vadd.xlane.f32.xlu0 %v4660
        %v4662 = vpop.xlane.xlu0 %4661
        %v4663 = vsel %vm1125, %v4635, 0.0
        %4664 = vadd.xlane.f32.xlu0 %v4663
        %v4665 = vpop.xlane.xlu0 %4664
        %v4666 = vsel %vm1125, %v4636, 0.0
        %4667 = vadd.xlane.f32.xlu0 %v4666
        %v4668 = vpop.xlane.xlu0 %4667
        %v4669 = vsel %vm1125, %v4637, 0.0
        %4670 = vadd.xlane.f32.xlu0 %v4669
        %v4671 = vpop.xlane.xlu0 %4670
        %v4672 = vsel %vm1125, %v4638, 0.0
        %4673 = vadd.xlane.f32.xlu0 %v4672
        %v4674 = vpop.xlane.xlu0 %4673
        %v4675 = vsel %vm1125, %v4639, 0.0
        %4676 = vadd.xlane.f32.xlu0 %v4675
        %v4677 = vpop.xlane.xlu0 %4676
        %v4678 = vsel %vm1125, %v4640, 0.0
        %4679 = vadd.xlane.f32.xlu0 %v4678
        %v4680 = vpop.xlane.xlu0 %4679
        %v4681 = vsel %vm1125, %v4641, 0.0
        %4682 = vadd.xlane.f32.xlu0 %v4681
        %v4683 = vpop.xlane.xlu0 %4682
        %v4684 = vmul.f32 %v3820, %v4644
        %v4685 = vmul.f32 %v3822, %v4647
        %v4686 = vmul.f32 %v3824, %v4650
        %v4687 = vmul.f32 %v3826, %v4653
        %v4688 = vmul.f32 %v3828, %v4656
        %v4689 = vmul.f32 %v3830, %v4659
        %v4690 = vmul.f32 %v3832, %v4662
        %v4691 = vmul.f32 %v3841, %v4665
        %v4692 = vmul.f32 %v3843, %v4668
        %v4693 = vmul.f32 %v3845, %v4671
        %v4694 = vmul.f32 %v3847, %v4674
        %v4695 = vmul.f32 %v3849, %v4677
        %v4696 = vmul.f32 %v3851, %v4680
        %v4697 = vmul.f32 %v3853, %v4683
        %v4698 = vadd.f32 %v4684, %v4691
        %v4699 = vadd.f32 %v4685, %v4692
        %v4700 = vadd.f32 %v4686, %v4693
        %v4701 = vadd.f32 %v4687, %v4694
        %v4702 = vadd.f32 %v4688, %v4695
        %v4703 = vadd.f32 %v4689, %v4696
        %v4704 = vadd.f32 %v4690, %v4697
        %v4705 = vmax.f32 %v4698, 1e-30
        %v4706 = vmax.f32 %v4699, 1e-30
        %v4707 = vmax.f32 %v4700, 1e-30
        %v4708 = vmax.f32 %v4701, 1e-30
        %v4709 = vmax.f32 %v4702, 1e-30
        %v4710 = vmax.f32 %v4703, 1e-30
        %v4711 = vmax.f32 %v4704, 1e-30
        %v4712 = vrcp.pop %v4705
        %v4713 = vrcp.pop %v4706
        %v4714 = vrcp.pop %v4707
        %v4715 = vrcp.pop %v4708
        %v4716 = vrcp.pop %v4709
        %v4717 = vrcp.pop %v4710
        %v4718 = vrcp.pop %v4711
        %v4719 = vmul.f32 %v3901, %v4712
        %v4720 = vmul.f32 %v3903, %v4713
        %v4721 = vmul.f32 %v3905, %v4714
        %v4722 = vmul.f32 %v3907, %v4715
        %v4723 = vmul.f32 %v3909, %v4716
        %v4724 = vmul.f32 %v3911, %v4717
        %v4725 = vmul.f32 %v3913, %v4718
        %4727 = vset.pattern.permute.xlu0 3
        %4728 = vperm.xlu0 %4727, %v4719
        %v4729 = vpop.permute.xlu0 %4728
        %4732 = vset.pattern.permute.xlu0 3
        %4733 = vperm.xlu0 %4732, %v4720
        %v4734 = vpop.permute.xlu0 %4733
        %4737 = vset.pattern.permute.xlu0 3
        %4738 = vperm.xlu0 %4737, %v4721
        %v4739 = vpop.permute.xlu0 %4738
        %4742 = vset.pattern.permute.xlu0 3
        %4743 = vperm.xlu0 %4742, %v4722
        %v4744 = vpop.permute.xlu0 %4743
        %4747 = vset.pattern.permute.xlu0 3
        %4748 = vperm.xlu0 %4747, %v4723
        %v4749 = vpop.permute.xlu0 %4748
        %4752 = vset.pattern.permute.xlu0 3
        %4753 = vperm.xlu0 %4752, %v4724
        %v4754 = vpop.permute.xlu0 %4753
        %4757 = vset.pattern.permute.xlu0 3
        %4758 = vperm.xlu0 %4757, %v4725
        %v4759 = vpop.permute.xlu0 %4758
        %v4761 = vmul.f32 %v4729, %v1869
        %v4762 = vmul.f32 %v4734, %v1869
        %v4763 = vmul.f32 %v4739, %v1869
        %v4764 = vmul.f32 %v4744, %v1869
        %v4765 = vmul.f32 %v4749, %v1869
        %v4766 = vmul.f32 %v4754, %v1869
        %v4767 = vmul.f32 %v4759, %v1869
        %v4768 = vadd.f32 %v4552, %v4761
        %v4769 = vadd.f32 %v4553, %v4762
        %v4770 = vadd.f32 %v4554, %v4763
        %v4771 = vadd.f32 %v4555, %v4764
        %v4772 = vadd.f32 %v4556, %v4765
        %v4773 = vadd.f32 %v4557, %v4766
        %v4774 = vadd.f32 %v4558, %v4767
        %4775 = vset.pattern.permute.xlu0 4
        %4776 = vperm.xlu0 %4775, %v3783
        %v4777 = vpop.permute.xlu0 %4776
        %v4779 = vsub.f32 %v3749, %v4777
        %v4780 = vmul.f32 %v4779, 1.442695
        %v4781 = vpow.pop %v4780
        %v4782 = vmul.f32 %v4779, 0.2
        %v4783 = vmul.f32 %v4782, 1.442695
        %v4784 = vpow.pop %v4783
        %4785 = vset.pattern.permute.xlu0 4
        %4786 = vperm.xlu0 %4785, %v3681
        %v4787 = vpop.permute.xlu0 %4786
        %4789 = vset.pattern.permute.xlu0 4
        %4790 = vperm.xlu0 %4789, %v3682
        %v4791 = vpop.permute.xlu0 %4790
        %4793 = vset.pattern.permute.xlu0 4
        %4794 = vperm.xlu0 %4793, %v3683
        %v4795 = vpop.permute.xlu0 %4794
        %4797 = vset.pattern.permute.xlu0 4
        %4798 = vperm.xlu0 %4797, %v3684
        %v4799 = vpop.permute.xlu0 %4798
        %4801 = vset.pattern.permute.xlu0 4
        %4802 = vperm.xlu0 %4801, %v3685
        %v4803 = vpop.permute.xlu0 %4802
        %4805 = vset.pattern.permute.xlu0 4
        %4806 = vperm.xlu0 %4805, %v3686
        %v4807 = vpop.permute.xlu0 %4806
        %4809 = vset.pattern.permute.xlu0 4
        %4810 = vperm.xlu0 %4809, %v3687
        %v4811 = vpop.permute.xlu0 %4810
        %v4813 = vperm.slane %v3749, 4
        %v4814 = vadd.f32 %v4787, %v4813
        %v4815 = vadd.f32 %v4791, %v4813
        %v4816 = vadd.f32 %v4795, %v4813
        %v4817 = vadd.f32 %v4799, %v4813
        %v4818 = vadd.f32 %v4803, %v4813
        %v4819 = vadd.f32 %v4807, %v4813
        %v4820 = vadd.f32 %v4811, %v4813
        %vm4821 = vcmp.ge.f32.partialorder %v4814, 0.0
        %vm4822 = vcmp.ge.f32.partialorder %v4815, 0.0
        %vm4823 = vcmp.ge.f32.partialorder %v4816, 0.0
        %vm4824 = vcmp.ge.f32.partialorder %v4817, 0.0
        %vm4825 = vcmp.ge.f32.partialorder %v4818, 0.0
        %vm4826 = vcmp.ge.f32.partialorder %v4819, 0.0
        %vm4827 = vcmp.ge.f32.partialorder %v4820, 0.0
        %v4828 = vperm.slane %v4781, 4
        %v4829 = vsel %vm4821, %v4828, 0.0
        %v4830 = vsel %vm4822, %v4828, 0.0
        %v4831 = vsel %vm4823, %v4828, 0.0
        %v4832 = vsel %vm4824, %v4828, 0.0
        %v4833 = vsel %vm4825, %v4828, 0.0
        %v4834 = vsel %vm4826, %v4828, 0.0
        %v4835 = vsel %vm4827, %v4828, 0.0
        %v4836 = vmul.f32 %v588, %v4829
        %v4837 = vmul.f32 %v589, %v4830
        %v4838 = vmul.f32 %v590, %v4831
        %v4839 = vmul.f32 %v591, %v4832
        %v4840 = vmul.f32 %v592, %v4833
        %v4841 = vmul.f32 %v593, %v4834
        %v4842 = vmul.f32 %v594, %v4835
        %v4843 = vperm.slane %v4784, 4
        %v4844 = vsel %vm4821, 0.0, %v4843
        %v4845 = vsel %vm4822, 0.0, %v4843
        %v4846 = vsel %vm4823, 0.0, %v4843
        %v4847 = vsel %vm4824, 0.0, %v4843
        %v4848 = vsel %vm4825, 0.0, %v4843
        %v4849 = vsel %vm4826, 0.0, %v4843
        %v4850 = vsel %vm4827, 0.0, %v4843
        %v4851 = vmul.f32 %v588, %v4844
        %v4852 = vmul.f32 %v589, %v4845
        %v4853 = vmul.f32 %v590, %v4846
        %v4854 = vmul.f32 %v591, %v4847
        %v4855 = vmul.f32 %v592, %v4848
        %v4856 = vmul.f32 %v593, %v4849
        %v4857 = vmul.f32 %v594, %v4850
        %v4858 = vsel %vm1125, %v4836, 0.0
        %4859 = vadd.xlane.f32.xlu0 %v4858
        %v4860 = vpop.xlane.xlu0 %4859
        %v4861 = vsel %vm1125, %v4837, 0.0
        %4862 = vadd.xlane.f32.xlu0 %v4861
        %v4863 = vpop.xlane.xlu0 %4862
        %v4864 = vsel %vm1125, %v4838, 0.0
        %4865 = vadd.xlane.f32.xlu0 %v4864
        %v4866 = vpop.xlane.xlu0 %4865
        %v4867 = vsel %vm1125, %v4839, 0.0
        %4868 = vadd.xlane.f32.xlu0 %v4867
        %v4869 = vpop.xlane.xlu0 %4868
        %v4870 = vsel %vm1125, %v4840, 0.0
        %4871 = vadd.xlane.f32.xlu0 %v4870
        %v4872 = vpop.xlane.xlu0 %4871
        %v4873 = vsel %vm1125, %v4841, 0.0
        %4874 = vadd.xlane.f32.xlu0 %v4873
        %v4875 = vpop.xlane.xlu0 %4874
        %v4876 = vsel %vm1125, %v4842, 0.0
        %4877 = vadd.xlane.f32.xlu0 %v4876
        %v4878 = vpop.xlane.xlu0 %4877
        %v4879 = vsel %vm1125, %v4851, 0.0
        %4880 = vadd.xlane.f32.xlu0 %v4879
        %v4881 = vpop.xlane.xlu0 %4880
        %v4882 = vsel %vm1125, %v4852, 0.0
        %4883 = vadd.xlane.f32.xlu0 %v4882
        %v4884 = vpop.xlane.xlu0 %4883
        %v4885 = vsel %vm1125, %v4853, 0.0
        %4886 = vadd.xlane.f32.xlu0 %v4885
        %v4887 = vpop.xlane.xlu0 %4886
        %v4888 = vsel %vm1125, %v4854, 0.0
        %4889 = vadd.xlane.f32.xlu0 %v4888
        %v4890 = vpop.xlane.xlu0 %4889
        %v4891 = vsel %vm1125, %v4855, 0.0
        %4892 = vadd.xlane.f32.xlu0 %v4891
        %v4893 = vpop.xlane.xlu0 %4892
        %v4894 = vsel %vm1125, %v4856, 0.0
        %4895 = vadd.xlane.f32.xlu0 %v4894
        %v4896 = vpop.xlane.xlu0 %4895
        %v4897 = vsel %vm1125, %v4857, 0.0
        %4898 = vadd.xlane.f32.xlu0 %v4897
        %v4899 = vpop.xlane.xlu0 %4898
        %v4900 = vmul.f32 %v3820, %v4860
        %v4901 = vmul.f32 %v3822, %v4863
        %v4902 = vmul.f32 %v3824, %v4866
        %v4903 = vmul.f32 %v3826, %v4869
        %v4904 = vmul.f32 %v3828, %v4872
        %v4905 = vmul.f32 %v3830, %v4875
        %v4906 = vmul.f32 %v3832, %v4878
        %v4907 = vmul.f32 %v3841, %v4881
        %v4908 = vmul.f32 %v3843, %v4884
        %v4909 = vmul.f32 %v3845, %v4887
        %v4910 = vmul.f32 %v3847, %v4890
        %v4911 = vmul.f32 %v3849, %v4893
        %v4912 = vmul.f32 %v3851, %v4896
        %v4913 = vmul.f32 %v3853, %v4899
        %v4914 = vadd.f32 %v4900, %v4907
        %v4915 = vadd.f32 %v4901, %v4908
        %v4916 = vadd.f32 %v4902, %v4909
        %v4917 = vadd.f32 %v4903, %v4910
        %v4918 = vadd.f32 %v4904, %v4911
        %v4919 = vadd.f32 %v4905, %v4912
        %v4920 = vadd.f32 %v4906, %v4913
        %v4921 = vmax.f32 %v4914, 1e-30
        %v4922 = vmax.f32 %v4915, 1e-30
        %v4923 = vmax.f32 %v4916, 1e-30
        %v4924 = vmax.f32 %v4917, 1e-30
        %v4925 = vmax.f32 %v4918, 1e-30
        %v4926 = vmax.f32 %v4919, 1e-30
        %v4927 = vmax.f32 %v4920, 1e-30
        %v4928 = vrcp.pop %v4921
        %v4929 = vrcp.pop %v4922
        %v4930 = vrcp.pop %v4923
        %v4931 = vrcp.pop %v4924
        %v4932 = vrcp.pop %v4925
        %v4933 = vrcp.pop %v4926
        %v4934 = vrcp.pop %v4927
        %v4935 = vmul.f32 %v3901, %v4928
        %v4936 = vmul.f32 %v3903, %v4929
        %v4937 = vmul.f32 %v3905, %v4930
        %v4938 = vmul.f32 %v3907, %v4931
        %v4939 = vmul.f32 %v3909, %v4932
        %v4940 = vmul.f32 %v3911, %v4933
        %v4941 = vmul.f32 %v3913, %v4934
        %4943 = vset.pattern.permute.xlu0 4
        %4944 = vperm.xlu0 %4943, %v4935
        %v4945 = vpop.permute.xlu0 %4944
        %4948 = vset.pattern.permute.xlu0 4
        %4949 = vperm.xlu0 %4948, %v4936
        %v4950 = vpop.permute.xlu0 %4949
        %4953 = vset.pattern.permute.xlu0 4
        %4954 = vperm.xlu0 %4953, %v4937
        %v4955 = vpop.permute.xlu0 %4954
        %4958 = vset.pattern.permute.xlu0 4
        %4959 = vperm.xlu0 %4958, %v4938
        %v4960 = vpop.permute.xlu0 %4959
        %4963 = vset.pattern.permute.xlu0 4
        %4964 = vperm.xlu0 %4963, %v4939
        %v4965 = vpop.permute.xlu0 %4964
        %4968 = vset.pattern.permute.xlu0 4
        %4969 = vperm.xlu0 %4968, %v4940
        %v4970 = vpop.permute.xlu0 %4969
        %4973 = vset.pattern.permute.xlu0 4
        %4974 = vperm.xlu0 %4973, %v4941
        %v4975 = vpop.permute.xlu0 %4974
        %v4977 = vmul.f32 %v4945, %v2088
        %v4978 = vmul.f32 %v4950, %v2088
        %v4979 = vmul.f32 %v4955, %v2088
        %v4980 = vmul.f32 %v4960, %v2088
        %v4981 = vmul.f32 %v4965, %v2088
        %v4982 = vmul.f32 %v4970, %v2088
        %v4983 = vmul.f32 %v4975, %v2088
        %v4984 = vadd.f32 %v4768, %v4977
        %v4985 = vadd.f32 %v4769, %v4978
        %v4986 = vadd.f32 %v4770, %v4979
        %v4987 = vadd.f32 %v4771, %v4980
        %v4988 = vadd.f32 %v4772, %v4981
        %v4989 = vadd.f32 %v4773, %v4982
        %v4990 = vadd.f32 %v4774, %v4983
        %4991 = vset.pattern.permute.xlu0 5
        %4992 = vperm.xlu0 %4991, %v3783
        %v4993 = vpop.permute.xlu0 %4992
        %v4995 = vsub.f32 %v3749, %v4993
        %v4996 = vmul.f32 %v4995, 1.442695
        %v4997 = vpow.pop %v4996
        %v4998 = vmul.f32 %v4995, 0.2
        %v4999 = vmul.f32 %v4998, 1.442695
        %v5000 = vpow.pop %v4999
        %5001 = vset.pattern.permute.xlu0 5
        %5002 = vperm.xlu0 %5001, %v3681
        %v5003 = vpop.permute.xlu0 %5002
        %5005 = vset.pattern.permute.xlu0 5
        %5006 = vperm.xlu0 %5005, %v3682
        %v5007 = vpop.permute.xlu0 %5006
        %5009 = vset.pattern.permute.xlu0 5
        %5010 = vperm.xlu0 %5009, %v3683
        %v5011 = vpop.permute.xlu0 %5010
        %5013 = vset.pattern.permute.xlu0 5
        %5014 = vperm.xlu0 %5013, %v3684
        %v5015 = vpop.permute.xlu0 %5014
        %5017 = vset.pattern.permute.xlu0 5
        %5018 = vperm.xlu0 %5017, %v3685
        %v5019 = vpop.permute.xlu0 %5018
        %5021 = vset.pattern.permute.xlu0 5
        %5022 = vperm.xlu0 %5021, %v3686
        %v5023 = vpop.permute.xlu0 %5022
        %5025 = vset.pattern.permute.xlu0 5
        %5026 = vperm.xlu0 %5025, %v3687
        %v5027 = vpop.permute.xlu0 %5026
        %v5029 = vperm.slane %v3749, 5
        %v5030 = vadd.f32 %v5003, %v5029
        %v5031 = vadd.f32 %v5007, %v5029
        %v5032 = vadd.f32 %v5011, %v5029
        %v5033 = vadd.f32 %v5015, %v5029
        %v5034 = vadd.f32 %v5019, %v5029
        %v5035 = vadd.f32 %v5023, %v5029
        %v5036 = vadd.f32 %v5027, %v5029
        %vm5037 = vcmp.ge.f32.partialorder %v5030, 0.0
        %vm5038 = vcmp.ge.f32.partialorder %v5031, 0.0
        %vm5039 = vcmp.ge.f32.partialorder %v5032, 0.0
        %vm5040 = vcmp.ge.f32.partialorder %v5033, 0.0
        %vm5041 = vcmp.ge.f32.partialorder %v5034, 0.0
        %vm5042 = vcmp.ge.f32.partialorder %v5035, 0.0
        %vm5043 = vcmp.ge.f32.partialorder %v5036, 0.0
        %v5044 = vperm.slane %v4997, 5
        %v5045 = vsel %vm5037, %v5044, 0.0
        %v5046 = vsel %vm5038, %v5044, 0.0
        %v5047 = vsel %vm5039, %v5044, 0.0
        %v5048 = vsel %vm5040, %v5044, 0.0
        %v5049 = vsel %vm5041, %v5044, 0.0
        %v5050 = vsel %vm5042, %v5044, 0.0
        %v5051 = vsel %vm5043, %v5044, 0.0
        %v5052 = vmul.f32 %v588, %v5045
        %v5053 = vmul.f32 %v589, %v5046
        %v5054 = vmul.f32 %v590, %v5047
        %v5055 = vmul.f32 %v591, %v5048
        %v5056 = vmul.f32 %v592, %v5049
        %v5057 = vmul.f32 %v593, %v5050
        %v5058 = vmul.f32 %v594, %v5051
        %v5059 = vperm.slane %v5000, 5
        %v5060 = vsel %vm5037, 0.0, %v5059
        %v5061 = vsel %vm5038, 0.0, %v5059
        %v5062 = vsel %vm5039, 0.0, %v5059
        %v5063 = vsel %vm5040, 0.0, %v5059
        %v5064 = vsel %vm5041, 0.0, %v5059
        %v5065 = vsel %vm5042, 0.0, %v5059
        %v5066 = vsel %vm5043, 0.0, %v5059
        %v5067 = vmul.f32 %v588, %v5060
        %v5068 = vmul.f32 %v589, %v5061
        %v5069 = vmul.f32 %v590, %v5062
        %v5070 = vmul.f32 %v591, %v5063
        %v5071 = vmul.f32 %v592, %v5064
        %v5072 = vmul.f32 %v593, %v5065
        %v5073 = vmul.f32 %v594, %v5066
        %v5074 = vsel %vm1125, %v5052, 0.0
        %5075 = vadd.xlane.f32.xlu0 %v5074
        %v5076 = vpop.xlane.xlu0 %5075
        %v5077 = vsel %vm1125, %v5053, 0.0
        %5078 = vadd.xlane.f32.xlu0 %v5077
        %v5079 = vpop.xlane.xlu0 %5078
        %v5080 = vsel %vm1125, %v5054, 0.0
        %5081 = vadd.xlane.f32.xlu0 %v5080
        %v5082 = vpop.xlane.xlu0 %5081
        %v5083 = vsel %vm1125, %v5055, 0.0
        %5084 = vadd.xlane.f32.xlu0 %v5083
        %v5085 = vpop.xlane.xlu0 %5084
        %v5086 = vsel %vm1125, %v5056, 0.0
        %5087 = vadd.xlane.f32.xlu0 %v5086
        %v5088 = vpop.xlane.xlu0 %5087
        %v5089 = vsel %vm1125, %v5057, 0.0
        %5090 = vadd.xlane.f32.xlu0 %v5089
        %v5091 = vpop.xlane.xlu0 %5090
        %v5092 = vsel %vm1125, %v5058, 0.0
        %5093 = vadd.xlane.f32.xlu0 %v5092
        %v5094 = vpop.xlane.xlu0 %5093
        %v5095 = vsel %vm1125, %v5067, 0.0
        %5096 = vadd.xlane.f32.xlu0 %v5095
        %v5097 = vpop.xlane.xlu0 %5096
        %v5098 = vsel %vm1125, %v5068, 0.0
        %5099 = vadd.xlane.f32.xlu0 %v5098
        %v5100 = vpop.xlane.xlu0 %5099
        %v5101 = vsel %vm1125, %v5069, 0.0
        %5102 = vadd.xlane.f32.xlu0 %v5101
        %v5103 = vpop.xlane.xlu0 %5102
        %v5104 = vsel %vm1125, %v5070, 0.0
        %5105 = vadd.xlane.f32.xlu0 %v5104
        %v5106 = vpop.xlane.xlu0 %5105
        %v5107 = vsel %vm1125, %v5071, 0.0
        %5108 = vadd.xlane.f32.xlu0 %v5107
        %v5109 = vpop.xlane.xlu0 %5108
        %v5110 = vsel %vm1125, %v5072, 0.0
        %5111 = vadd.xlane.f32.xlu0 %v5110
        %v5112 = vpop.xlane.xlu0 %5111
        %v5113 = vsel %vm1125, %v5073, 0.0
        %5114 = vadd.xlane.f32.xlu0 %v5113
        %v5115 = vpop.xlane.xlu0 %5114
        %v5116 = vmul.f32 %v3820, %v5076
        %v5117 = vmul.f32 %v3822, %v5079
        %v5118 = vmul.f32 %v3824, %v5082
        %v5119 = vmul.f32 %v3826, %v5085
        %v5120 = vmul.f32 %v3828, %v5088
        %v5121 = vmul.f32 %v3830, %v5091
        %v5122 = vmul.f32 %v3832, %v5094
        %v5123 = vmul.f32 %v3841, %v5097
        %v5124 = vmul.f32 %v3843, %v5100
        %v5125 = vmul.f32 %v3845, %v5103
        %v5126 = vmul.f32 %v3847, %v5106
        %v5127 = vmul.f32 %v3849, %v5109
        %v5128 = vmul.f32 %v3851, %v5112
        %v5129 = vmul.f32 %v3853, %v5115
        %v5130 = vadd.f32 %v5116, %v5123
        %v5131 = vadd.f32 %v5117, %v5124
        %v5132 = vadd.f32 %v5118, %v5125
        %v5133 = vadd.f32 %v5119, %v5126
        %v5134 = vadd.f32 %v5120, %v5127
        %v5135 = vadd.f32 %v5121, %v5128
        %v5136 = vadd.f32 %v5122, %v5129
        %v5137 = vmax.f32 %v5130, 1e-30
        %v5138 = vmax.f32 %v5131, 1e-30
        %v5139 = vmax.f32 %v5132, 1e-30
        %v5140 = vmax.f32 %v5133, 1e-30
        %v5141 = vmax.f32 %v5134, 1e-30
        %v5142 = vmax.f32 %v5135, 1e-30
        %v5143 = vmax.f32 %v5136, 1e-30
        %v5144 = vrcp.pop %v5137
        %v5145 = vrcp.pop %v5138
        %v5146 = vrcp.pop %v5139
        %v5147 = vrcp.pop %v5140
        %v5148 = vrcp.pop %v5141
        %v5149 = vrcp.pop %v5142
        %v5150 = vrcp.pop %v5143
        %v5151 = vmul.f32 %v3901, %v5144
        %v5152 = vmul.f32 %v3903, %v5145
        %v5153 = vmul.f32 %v3905, %v5146
        %v5154 = vmul.f32 %v3907, %v5147
        %v5155 = vmul.f32 %v3909, %v5148
        %v5156 = vmul.f32 %v3911, %v5149
        %v5157 = vmul.f32 %v3913, %v5150
        %5159 = vset.pattern.permute.xlu0 5
        %5160 = vperm.xlu0 %5159, %v5151
        %v5161 = vpop.permute.xlu0 %5160
        %5164 = vset.pattern.permute.xlu0 5
        %5165 = vperm.xlu0 %5164, %v5152
        %v5166 = vpop.permute.xlu0 %5165
        %5169 = vset.pattern.permute.xlu0 5
        %5170 = vperm.xlu0 %5169, %v5153
        %v5171 = vpop.permute.xlu0 %5170
        %5174 = vset.pattern.permute.xlu0 5
        %5175 = vperm.xlu0 %5174, %v5154
        %v5176 = vpop.permute.xlu0 %5175
        %5179 = vset.pattern.permute.xlu0 5
        %5180 = vperm.xlu0 %5179, %v5155
        %v5181 = vpop.permute.xlu0 %5180
        %5184 = vset.pattern.permute.xlu0 5
        %5185 = vperm.xlu0 %5184, %v5156
        %v5186 = vpop.permute.xlu0 %5185
        %5189 = vset.pattern.permute.xlu0 5
        %5190 = vperm.xlu0 %5189, %v5157
        %v5191 = vpop.permute.xlu0 %5190
        %v5193 = vmul.f32 %v5161, %v2307
        %v5194 = vmul.f32 %v5166, %v2307
        %v5195 = vmul.f32 %v5171, %v2307
        %v5196 = vmul.f32 %v5176, %v2307
        %v5197 = vmul.f32 %v5181, %v2307
        %v5198 = vmul.f32 %v5186, %v2307
        %v5199 = vmul.f32 %v5191, %v2307
        %v5200 = vadd.f32 %v4984, %v5193
        %v5201 = vadd.f32 %v4985, %v5194
        %v5202 = vadd.f32 %v4986, %v5195
        %v5203 = vadd.f32 %v4987, %v5196
        %v5204 = vadd.f32 %v4988, %v5197
        %v5205 = vadd.f32 %v4989, %v5198
        %v5206 = vadd.f32 %v4990, %v5199
        %5207 = vset.pattern.permute.xlu0 6
        %5208 = vperm.xlu0 %5207, %v3783
        %v5209 = vpop.permute.xlu0 %5208
        %v5211 = vsub.f32 %v3749, %v5209
        %v5212 = vmul.f32 %v5211, 1.442695
        %v5213 = vpow.pop %v5212
        %v5214 = vmul.f32 %v5211, 0.2
        %v5215 = vmul.f32 %v5214, 1.442695
        %v5216 = vpow.pop %v5215
        %5217 = vset.pattern.permute.xlu0 6
        %5218 = vperm.xlu0 %5217, %v3681
        %v5219 = vpop.permute.xlu0 %5218
        %5221 = vset.pattern.permute.xlu0 6
        %5222 = vperm.xlu0 %5221, %v3682
        %v5223 = vpop.permute.xlu0 %5222
        %5225 = vset.pattern.permute.xlu0 6
        %5226 = vperm.xlu0 %5225, %v3683
        %v5227 = vpop.permute.xlu0 %5226
        %5229 = vset.pattern.permute.xlu0 6
        %5230 = vperm.xlu0 %5229, %v3684
        %v5231 = vpop.permute.xlu0 %5230
        %5233 = vset.pattern.permute.xlu0 6
        %5234 = vperm.xlu0 %5233, %v3685
        %v5235 = vpop.permute.xlu0 %5234
        %5237 = vset.pattern.permute.xlu0 6
        %5238 = vperm.xlu0 %5237, %v3686
        %v5239 = vpop.permute.xlu0 %5238
        %5241 = vset.pattern.permute.xlu0 6
        %5242 = vperm.xlu0 %5241, %v3687
        %v5243 = vpop.permute.xlu0 %5242
        %v5245 = vperm.slane %v3749, 6
        %v5246 = vadd.f32 %v5219, %v5245
        %v5247 = vadd.f32 %v5223, %v5245
        %v5248 = vadd.f32 %v5227, %v5245
        %v5249 = vadd.f32 %v5231, %v5245
        %v5250 = vadd.f32 %v5235, %v5245
        %v5251 = vadd.f32 %v5239, %v5245
        %v5252 = vadd.f32 %v5243, %v5245
        %vm5253 = vcmp.ge.f32.partialorder %v5246, 0.0
        %vm5254 = vcmp.ge.f32.partialorder %v5247, 0.0
        %vm5255 = vcmp.ge.f32.partialorder %v5248, 0.0
        %vm5256 = vcmp.ge.f32.partialorder %v5249, 0.0
        %vm5257 = vcmp.ge.f32.partialorder %v5250, 0.0
        %vm5258 = vcmp.ge.f32.partialorder %v5251, 0.0
        %vm5259 = vcmp.ge.f32.partialorder %v5252, 0.0
        %v5260 = vperm.slane %v5213, 6
        %v5261 = vsel %vm5253, %v5260, 0.0
        %v5262 = vsel %vm5254, %v5260, 0.0
        %v5263 = vsel %vm5255, %v5260, 0.0
        %v5264 = vsel %vm5256, %v5260, 0.0
        %v5265 = vsel %vm5257, %v5260, 0.0
        %v5266 = vsel %vm5258, %v5260, 0.0
        %v5267 = vsel %vm5259, %v5260, 0.0
        %v5268 = vmul.f32 %v588, %v5261
        %v5269 = vmul.f32 %v589, %v5262
        %v5270 = vmul.f32 %v590, %v5263
        %v5271 = vmul.f32 %v591, %v5264
        %v5272 = vmul.f32 %v592, %v5265
        %v5273 = vmul.f32 %v593, %v5266
        %v5274 = vmul.f32 %v594, %v5267
        %v5275 = vperm.slane %v5216, 6
        %v5276 = vsel %vm5253, 0.0, %v5275
        %v5277 = vsel %vm5254, 0.0, %v5275
        %v5278 = vsel %vm5255, 0.0, %v5275
        %v5279 = vsel %vm5256, 0.0, %v5275
        %v5280 = vsel %vm5257, 0.0, %v5275
        %v5281 = vsel %vm5258, 0.0, %v5275
        %v5282 = vsel %vm5259, 0.0, %v5275
        %v5283 = vmul.f32 %v588, %v5276
        %v5284 = vmul.f32 %v589, %v5277
        %v5285 = vmul.f32 %v590, %v5278
        %v5286 = vmul.f32 %v591, %v5279
        %v5287 = vmul.f32 %v592, %v5280
        %v5288 = vmul.f32 %v593, %v5281
        %v5289 = vmul.f32 %v594, %v5282
        %v5290 = vsel %vm1125, %v5268, 0.0
        %5291 = vadd.xlane.f32.xlu0 %v5290
        %v5292 = vpop.xlane.xlu0 %5291
        %v5293 = vsel %vm1125, %v5269, 0.0
        %5294 = vadd.xlane.f32.xlu0 %v5293
        %v5295 = vpop.xlane.xlu0 %5294
        %v5296 = vsel %vm1125, %v5270, 0.0
        %5297 = vadd.xlane.f32.xlu0 %v5296
        %v5298 = vpop.xlane.xlu0 %5297
        %v5299 = vsel %vm1125, %v5271, 0.0
        %5300 = vadd.xlane.f32.xlu0 %v5299
        %v5301 = vpop.xlane.xlu0 %5300
        %v5302 = vsel %vm1125, %v5272, 0.0
        %5303 = vadd.xlane.f32.xlu0 %v5302
        %v5304 = vpop.xlane.xlu0 %5303
        %v5305 = vsel %vm1125, %v5273, 0.0
        %5306 = vadd.xlane.f32.xlu0 %v5305
        %v5307 = vpop.xlane.xlu0 %5306
        %v5308 = vsel %vm1125, %v5274, 0.0
        %5309 = vadd.xlane.f32.xlu0 %v5308
        %v5310 = vpop.xlane.xlu0 %5309
        %v5311 = vsel %vm1125, %v5283, 0.0
        %5312 = vadd.xlane.f32.xlu0 %v5311
        %v5313 = vpop.xlane.xlu0 %5312
        %v5314 = vsel %vm1125, %v5284, 0.0
        %5315 = vadd.xlane.f32.xlu0 %v5314
        %v5316 = vpop.xlane.xlu0 %5315
        %v5317 = vsel %vm1125, %v5285, 0.0
        %5318 = vadd.xlane.f32.xlu0 %v5317
        %v5319 = vpop.xlane.xlu0 %5318
        %v5320 = vsel %vm1125, %v5286, 0.0
        %5321 = vadd.xlane.f32.xlu0 %v5320
        %v5322 = vpop.xlane.xlu0 %5321
        %v5323 = vsel %vm1125, %v5287, 0.0
        %5324 = vadd.xlane.f32.xlu0 %v5323
        %v5325 = vpop.xlane.xlu0 %5324
        %v5326 = vsel %vm1125, %v5288, 0.0
        %5327 = vadd.xlane.f32.xlu0 %v5326
        %v5328 = vpop.xlane.xlu0 %5327
        %v5329 = vsel %vm1125, %v5289, 0.0
        %5330 = vadd.xlane.f32.xlu0 %v5329
        %v5331 = vpop.xlane.xlu0 %5330
        %v5332 = vmul.f32 %v3820, %v5292
        %v5333 = vmul.f32 %v3822, %v5295
        %v5334 = vmul.f32 %v3824, %v5298
        %v5335 = vmul.f32 %v3826, %v5301
        %v5336 = vmul.f32 %v3828, %v5304
        %v5337 = vmul.f32 %v3830, %v5307
        %v5338 = vmul.f32 %v3832, %v5310
        %v5339 = vmul.f32 %v3841, %v5313
        %v5340 = vmul.f32 %v3843, %v5316
        %v5341 = vmul.f32 %v3845, %v5319
        %v5342 = vmul.f32 %v3847, %v5322
        %v5343 = vmul.f32 %v3849, %v5325
        %v5344 = vmul.f32 %v3851, %v5328
        %v5345 = vmul.f32 %v3853, %v5331
        %v5346 = vadd.f32 %v5332, %v5339
        %v5347 = vadd.f32 %v5333, %v5340
        %v5348 = vadd.f32 %v5334, %v5341
        %v5349 = vadd.f32 %v5335, %v5342
        %v5350 = vadd.f32 %v5336, %v5343
        %v5351 = vadd.f32 %v5337, %v5344
        %v5352 = vadd.f32 %v5338, %v5345
        %v5353 = vmax.f32 %v5346, 1e-30
        %v5354 = vmax.f32 %v5347, 1e-30
        %v5355 = vmax.f32 %v5348, 1e-30
        %v5356 = vmax.f32 %v5349, 1e-30
        %v5357 = vmax.f32 %v5350, 1e-30
        %v5358 = vmax.f32 %v5351, 1e-30
        %v5359 = vmax.f32 %v5352, 1e-30
        %v5360 = vrcp.pop %v5353
        %v5361 = vrcp.pop %v5354
        %v5362 = vrcp.pop %v5355
        %v5363 = vrcp.pop %v5356
        %v5364 = vrcp.pop %v5357
        %v5365 = vrcp.pop %v5358
        %v5366 = vrcp.pop %v5359
        %v5367 = vmul.f32 %v3901, %v5360
        %v5368 = vmul.f32 %v3903, %v5361
        %v5369 = vmul.f32 %v3905, %v5362
        %v5370 = vmul.f32 %v3907, %v5363
        %v5371 = vmul.f32 %v3909, %v5364
        %v5372 = vmul.f32 %v3911, %v5365
        %v5373 = vmul.f32 %v3913, %v5366
        %5375 = vset.pattern.permute.xlu0 6
        %5376 = vperm.xlu0 %5375, %v5367
        %v5377 = vpop.permute.xlu0 %5376
        %5380 = vset.pattern.permute.xlu0 6
        %5381 = vperm.xlu0 %5380, %v5368
        %v5382 = vpop.permute.xlu0 %5381
        %5385 = vset.pattern.permute.xlu0 6
        %5386 = vperm.xlu0 %5385, %v5369
        %v5387 = vpop.permute.xlu0 %5386
        %5390 = vset.pattern.permute.xlu0 6
        %5391 = vperm.xlu0 %5390, %v5370
        %v5392 = vpop.permute.xlu0 %5391
        %5395 = vset.pattern.permute.xlu0 6
        %5396 = vperm.xlu0 %5395, %v5371
        %v5397 = vpop.permute.xlu0 %5396
        %5400 = vset.pattern.permute.xlu0 6
        %5401 = vperm.xlu0 %5400, %v5372
        %v5402 = vpop.permute.xlu0 %5401
        %5405 = vset.pattern.permute.xlu0 6
        %5406 = vperm.xlu0 %5405, %v5373
        %v5407 = vpop.permute.xlu0 %5406
        %v5409 = vmul.f32 %v5377, %v2526
        %v5410 = vmul.f32 %v5382, %v2526
        %v5411 = vmul.f32 %v5387, %v2526
        %v5412 = vmul.f32 %v5392, %v2526
        %v5413 = vmul.f32 %v5397, %v2526
        %v5414 = vmul.f32 %v5402, %v2526
        %v5415 = vmul.f32 %v5407, %v2526
        %v5416 = vadd.f32 %v5200, %v5409
        %v5417 = vadd.f32 %v5201, %v5410
        %v5418 = vadd.f32 %v5202, %v5411
        %v5419 = vadd.f32 %v5203, %v5412
        %v5420 = vadd.f32 %v5204, %v5413
        %v5421 = vadd.f32 %v5205, %v5414
        %v5422 = vadd.f32 %v5206, %v5415
        %5423 = vset.pattern.permute.xlu0 7
        %5424 = vperm.xlu0 %5423, %v3783
        %v5425 = vpop.permute.xlu0 %5424
        %v5427 = vsub.f32 %v3749, %v5425
        %v5428 = vmul.f32 %v5427, 1.442695
        %v5429 = vpow.pop %v5428
        %v5430 = vmul.f32 %v5427, 0.2
        %v5431 = vmul.f32 %v5430, 1.442695
        %v5432 = vpow.pop %v5431
        %5433 = vset.pattern.permute.xlu0 7
        %5434 = vperm.xlu0 %5433, %v3681
        %v5435 = vpop.permute.xlu0 %5434
        %5437 = vset.pattern.permute.xlu0 7
        %5438 = vperm.xlu0 %5437, %v3682
        %v5439 = vpop.permute.xlu0 %5438
        %5441 = vset.pattern.permute.xlu0 7
        %5442 = vperm.xlu0 %5441, %v3683
        %v5443 = vpop.permute.xlu0 %5442
        %5445 = vset.pattern.permute.xlu0 7
        %5446 = vperm.xlu0 %5445, %v3684
        %v5447 = vpop.permute.xlu0 %5446
        %5449 = vset.pattern.permute.xlu0 7
        %5450 = vperm.xlu0 %5449, %v3685
        %v5451 = vpop.permute.xlu0 %5450
        %5453 = vset.pattern.permute.xlu0 7
        %5454 = vperm.xlu0 %5453, %v3686
        %v5455 = vpop.permute.xlu0 %5454
        %5457 = vset.pattern.permute.xlu0 7
        %5458 = vperm.xlu0 %5457, %v3687
        %v5459 = vpop.permute.xlu0 %5458
        %v5461 = vperm.slane %v3749, 7
        %v5462 = vadd.f32 %v5435, %v5461
        %v5463 = vadd.f32 %v5439, %v5461
        %v5464 = vadd.f32 %v5443, %v5461
        %v5465 = vadd.f32 %v5447, %v5461
        %v5466 = vadd.f32 %v5451, %v5461
        %v5467 = vadd.f32 %v5455, %v5461
        %v5468 = vadd.f32 %v5459, %v5461
        %vm5469 = vcmp.ge.f32.partialorder %v5462, 0.0
        %vm5470 = vcmp.ge.f32.partialorder %v5463, 0.0
        %vm5471 = vcmp.ge.f32.partialorder %v5464, 0.0
        %vm5472 = vcmp.ge.f32.partialorder %v5465, 0.0
        %vm5473 = vcmp.ge.f32.partialorder %v5466, 0.0
        %vm5474 = vcmp.ge.f32.partialorder %v5467, 0.0
        %vm5475 = vcmp.ge.f32.partialorder %v5468, 0.0
        %v5476 = vperm.slane %v5429, 7
        %v5477 = vsel %vm5469, %v5476, 0.0
        %v5478 = vsel %vm5470, %v5476, 0.0
        %v5479 = vsel %vm5471, %v5476, 0.0
        %v5480 = vsel %vm5472, %v5476, 0.0
        %v5481 = vsel %vm5473, %v5476, 0.0
        %v5482 = vsel %vm5474, %v5476, 0.0
        %v5483 = vsel %vm5475, %v5476, 0.0
        %v5484 = vmul.f32 %v588, %v5477
        %v5485 = vmul.f32 %v589, %v5478
        %v5486 = vmul.f32 %v590, %v5479
        %v5487 = vmul.f32 %v591, %v5480
        %v5488 = vmul.f32 %v592, %v5481
        %v5489 = vmul.f32 %v593, %v5482
        %v5490 = vmul.f32 %v594, %v5483
        %v5491 = vperm.slane %v5432, 7
        %v5492 = vsel %vm5469, 0.0, %v5491
        %v5493 = vsel %vm5470, 0.0, %v5491
        %v5494 = vsel %vm5471, 0.0, %v5491
        %v5495 = vsel %vm5472, 0.0, %v5491
        %v5496 = vsel %vm5473, 0.0, %v5491
        %v5497 = vsel %vm5474, 0.0, %v5491
        %v5498 = vsel %vm5475, 0.0, %v5491
        %v5499 = vmul.f32 %v588, %v5492
        %v5500 = vmul.f32 %v589, %v5493
        %v5501 = vmul.f32 %v590, %v5494
        %v5502 = vmul.f32 %v591, %v5495
        %v5503 = vmul.f32 %v592, %v5496
        %v5504 = vmul.f32 %v593, %v5497
        %v5505 = vmul.f32 %v594, %v5498
        %v5506 = vsel %vm1125, %v5484, 0.0
        %5507 = vadd.xlane.f32.xlu0 %v5506
        %v5508 = vpop.xlane.xlu0 %5507
        %v5509 = vsel %vm1125, %v5485, 0.0
        %5510 = vadd.xlane.f32.xlu0 %v5509
        %v5511 = vpop.xlane.xlu0 %5510
        %v5512 = vsel %vm1125, %v5486, 0.0
        %5513 = vadd.xlane.f32.xlu0 %v5512
        %v5514 = vpop.xlane.xlu0 %5513
        %v5515 = vsel %vm1125, %v5487, 0.0
        %5516 = vadd.xlane.f32.xlu0 %v5515
        %v5517 = vpop.xlane.xlu0 %5516
        %v5518 = vsel %vm1125, %v5488, 0.0
        %5519 = vadd.xlane.f32.xlu0 %v5518
        %v5520 = vpop.xlane.xlu0 %5519
        %v5521 = vsel %vm1125, %v5489, 0.0
        %5522 = vadd.xlane.f32.xlu0 %v5521
        %v5523 = vpop.xlane.xlu0 %5522
        %v5524 = vsel %vm1125, %v5490, 0.0
        %5525 = vadd.xlane.f32.xlu0 %v5524
        %v5526 = vpop.xlane.xlu0 %5525
        %v5527 = vsel %vm1125, %v5499, 0.0
        %5528 = vadd.xlane.f32.xlu0 %v5527
        %v5529 = vpop.xlane.xlu0 %5528
        %v5530 = vsel %vm1125, %v5500, 0.0
        %5531 = vadd.xlane.f32.xlu0 %v5530
        %v5532 = vpop.xlane.xlu0 %5531
        %v5533 = vsel %vm1125, %v5501, 0.0
        %5534 = vadd.xlane.f32.xlu0 %v5533
        %v5535 = vpop.xlane.xlu0 %5534
        %v5536 = vsel %vm1125, %v5502, 0.0
        %5537 = vadd.xlane.f32.xlu0 %v5536
        %v5538 = vpop.xlane.xlu0 %5537
        %v5539 = vsel %vm1125, %v5503, 0.0
        %5540 = vadd.xlane.f32.xlu0 %v5539
        %v5541 = vpop.xlane.xlu0 %5540
        %v5542 = vsel %vm1125, %v5504, 0.0
        %5543 = vadd.xlane.f32.xlu0 %v5542
        %v5544 = vpop.xlane.xlu0 %5543
        %v5545 = vsel %vm1125, %v5505, 0.0
        %5546 = vadd.xlane.f32.xlu0 %v5545
        %v5547 = vpop.xlane.xlu0 %5546
        %v5548 = vmul.f32 %v3820, %v5508
        %v5549 = vmul.f32 %v3822, %v5511
        %v5550 = vmul.f32 %v3824, %v5514
        %v5551 = vmul.f32 %v3826, %v5517
        %v5552 = vmul.f32 %v3828, %v5520
        %v5553 = vmul.f32 %v3830, %v5523
        %v5554 = vmul.f32 %v3832, %v5526
        %v5555 = vmul.f32 %v3841, %v5529
        %v5556 = vmul.f32 %v3843, %v5532
        %v5557 = vmul.f32 %v3845, %v5535
        %v5558 = vmul.f32 %v3847, %v5538
        %v5559 = vmul.f32 %v3849, %v5541
        %v5560 = vmul.f32 %v3851, %v5544
        %v5561 = vmul.f32 %v3853, %v5547
        %v5562 = vadd.f32 %v5548, %v5555
        %v5563 = vadd.f32 %v5549, %v5556
        %v5564 = vadd.f32 %v5550, %v5557
        %v5565 = vadd.f32 %v5551, %v5558
        %v5566 = vadd.f32 %v5552, %v5559
        %v5567 = vadd.f32 %v5553, %v5560
        %v5568 = vadd.f32 %v5554, %v5561
        %v5569 = vmax.f32 %v5562, 1e-30
        %v5570 = vmax.f32 %v5563, 1e-30
        %v5571 = vmax.f32 %v5564, 1e-30
        %v5572 = vmax.f32 %v5565, 1e-30
        %v5573 = vmax.f32 %v5566, 1e-30
        %v5574 = vmax.f32 %v5567, 1e-30
        %v5575 = vmax.f32 %v5568, 1e-30
        %v5576 = vrcp.pop %v5569
        %v5577 = vrcp.pop %v5570
        %v5578 = vrcp.pop %v5571
        %v5579 = vrcp.pop %v5572
        %v5580 = vrcp.pop %v5573
        %v5581 = vrcp.pop %v5574
        %v5582 = vrcp.pop %v5575
        %v5583 = vmul.f32 %v3901, %v5576
        %v5584 = vmul.f32 %v3903, %v5577
        %v5585 = vmul.f32 %v3905, %v5578
        %v5586 = vmul.f32 %v3907, %v5579
        %v5587 = vmul.f32 %v3909, %v5580
        %v5588 = vmul.f32 %v3911, %v5581
        %v5589 = vmul.f32 %v3913, %v5582
        %5591 = vset.pattern.permute.xlu0 7
        %5592 = vperm.xlu0 %5591, %v5583
        %v5593 = vpop.permute.xlu0 %5592
        %5596 = vset.pattern.permute.xlu0 7
        %5597 = vperm.xlu0 %5596, %v5584
        %v5598 = vpop.permute.xlu0 %5597
        %5601 = vset.pattern.permute.xlu0 7
        %5602 = vperm.xlu0 %5601, %v5585
        %v5603 = vpop.permute.xlu0 %5602
        %5606 = vset.pattern.permute.xlu0 7
        %5607 = vperm.xlu0 %5606, %v5586
        %v5608 = vpop.permute.xlu0 %5607
        %5611 = vset.pattern.permute.xlu0 7
        %5612 = vperm.xlu0 %5611, %v5587
        %v5613 = vpop.permute.xlu0 %5612
        %5616 = vset.pattern.permute.xlu0 7
        %5617 = vperm.xlu0 %5616, %v5588
        %v5618 = vpop.permute.xlu0 %5617
        %5621 = vset.pattern.permute.xlu0 7
        %5622 = vperm.xlu0 %5621, %v5589
        %v5623 = vpop.permute.xlu0 %5622
        %v5625 = vmul.f32 %v5593, %v2745
        %v5626 = vmul.f32 %v5598, %v2745
        %v5627 = vmul.f32 %v5603, %v2745
        %v5628 = vmul.f32 %v5608, %v2745
        %v5629 = vmul.f32 %v5613, %v2745
        %v5630 = vmul.f32 %v5618, %v2745
        %v5631 = vmul.f32 %v5623, %v2745
        %v5632 = vadd.f32 %v5416, %v5625
        %v5633 = vadd.f32 %v5417, %v5626
        %v5634 = vadd.f32 %v5418, %v5627
        %v5635 = vadd.f32 %v5419, %v5628
        %v5636 = vadd.f32 %v5420, %v5629
        %v5637 = vadd.f32 %v5421, %v5630
        %v5638 = vadd.f32 %v5422, %v5631
        %v5639 = vsel %vm731, %v5632, 0.0
        %v5640 = vsel %vm732, %v5633, 0.0
        %v5641 = vsel %vm733, %v5634, 0.0
        %v5642 = vsel %vm734, %v5635, 0.0
        %v5643 = vsel %vm735, %v5636, 0.0
        %v5644 = vsel %vm736, %v5637, 0.0
        %v5645 = vsel %vm737, %v5638, 0.0
        %v5647 = vsel %vm895, %v5639, 0
        %v5650 = vsel %vm895, %v5640, 0
        %v5653 = vsel %vm895, %v5641, 0
        %v5656 = vsel %vm895, %v5642, 0
        %v5659 = vsel %vm895, %v5643, 0
        %v5662 = vsel %vm895, %v5644, 0
        %v5665 = vsel %vm895, %v5645, 0
        %5667 = vmatpush.msra.mxu0 0.0
        %5668 = vmatpush.msra.mxu0 0.0
        %5669 = vmatpush.msra.mxu0 0.0
        %5670 = vmatpush.msra.mxu0 0.0
        %5671 = vmatpush.msra.mxu0 0.0
        %5672 = vmatpush.msra.mxu0 0.0
        %5673 = vmatpush.msra.mxu0 0.0
        %5674 = vmatpush.msra.mxu0 0.0
        %5675 = vmatpush.msra.mxu0 0.0
        %5676 = vmatpush.msra.mxu0 0.0
        %5677 = vmatpush.msra.mxu0 0.0
        %5678 = vmatpush.msra.mxu0 0.0
        %5679 = vmatpush.msra.mxu0 0.0
        %5680 = vmatpush.msra.mxu0 0.0
        %5681 = vmatpush.msra.mxu0 0.0
        %5682 = vmatpush.msra.mxu0 %v484
        %5683 = vmatmul.f32.gmra.mxu0 %v5647
        %v5684 = vpop.f32.mrf.mxu0
        %v5685 = vadd.f32 0.0, %v5684
        %5686 = vmatmul.f32.gmra.mxu0 %v5650
        %v5687 = vpop.f32.mrf.mxu0
        %v5688 = vadd.f32 0.0, %v5687
        %5689 = vmatmul.f32.gmra.mxu0 %v5653
        %v5690 = vpop.f32.mrf.mxu0
        %v5691 = vadd.f32 0.0, %v5690
        %5692 = vmatmul.f32.gmra.mxu0 %v5656
        %v5693 = vpop.f32.mrf.mxu0
        %v5694 = vadd.f32 0.0, %v5693
        %5695 = vmatmul.f32.gmra.mxu0 %v5659
        %v5696 = vpop.f32.mrf.mxu0
        %v5697 = vadd.f32 0.0, %v5696
        %5698 = vmatmul.f32.gmra.mxu0 %v5662
        %v5699 = vpop.f32.mrf.mxu0
        %v5700 = vadd.f32 0.0, %v5699
        %5701 = vmatmul.f32.gmra.mxu0 %v5665
        %v5702 = vpop.f32.mrf.mxu0
        %v5703 = vadd.f32 0.0, %v5702
        %5704 = vdwg.mxu0
        %5705 = vmatpush.msra.mxu0 0.0
        %5706 = vmatpush.msra.mxu0 0.0
        %5707 = vmatpush.msra.mxu0 0.0
        %5708 = vmatpush.msra.mxu0 0.0
        %5709 = vmatpush.msra.mxu0 0.0
        %5710 = vmatpush.msra.mxu0 0.0
        %5711 = vmatpush.msra.mxu0 0.0
        %5712 = vmatpush.msra.mxu0 0.0
        %5713 = vmatpush.msra.mxu0 0.0
        %5714 = vmatpush.msra.mxu0 0.0
        %5715 = vmatpush.msra.mxu0 0.0
        %5716 = vmatpush.msra.mxu0 0.0
        %5717 = vmatpush.msra.mxu0 0.0
        %5718 = vmatpush.msra.mxu0 0.0
        %5719 = vmatpush.msra.mxu0 0.0
        %5720 = vmatpush.msra.mxu0 %v485
        %5721 = vmatmul.f32.gmra.mxu0 %v5647
        %v5722 = vpop.f32.mrf.mxu0
        %v5723 = vadd.f32 0.0, %v5722
        %5724 = vmatmul.f32.gmra.mxu0 %v5650
        %v5725 = vpop.f32.mrf.mxu0
        %v5726 = vadd.f32 0.0, %v5725
        %5727 = vmatmul.f32.gmra.mxu0 %v5653
        %v5728 = vpop.f32.mrf.mxu0
        %v5729 = vadd.f32 0.0, %v5728
        %5730 = vmatmul.f32.gmra.mxu0 %v5656
        %v5731 = vpop.f32.mrf.mxu0
        %v5732 = vadd.f32 0.0, %v5731
        %5733 = vmatmul.f32.gmra.mxu0 %v5659
        %v5734 = vpop.f32.mrf.mxu0
        %v5735 = vadd.f32 0.0, %v5734
        %5736 = vmatmul.f32.gmra.mxu0 %v5662
        %v5737 = vpop.f32.mrf.mxu0
        %v5738 = vadd.f32 0.0, %v5737
        %5739 = vmatmul.f32.gmra.mxu0 %v5665
        %v5740 = vpop.f32.mrf.mxu0
        %v5741 = vadd.f32 0.0, %v5740
        %5742 = vdwg.mxu0
        %v5743 = vmul.f32 %v5685, %v3608
        %v5744 = vmul.f32 %v5723, %v3609
        %v5745 = vmul.f32 %v5688, %v3610
        %v5746 = vmul.f32 %v5726, %v3611
        %v5747 = vmul.f32 %v5691, %v3612
        %v5748 = vmul.f32 %v5729, %v3613
        %v5749 = vmul.f32 %v5694, %v3614
        %v5750 = vmul.f32 %v5732, %v3615
        %v5751 = vmul.f32 %v5697, %v3616
        %v5752 = vmul.f32 %v5735, %v3617
        %v5753 = vmul.f32 %v5700, %v3618
        %v5754 = vmul.f32 %v5738, %v3619
        %v5755 = vmul.f32 %v5703, %v3620
        %v5756 = vmul.f32 %v5741, %v3621
        %5757 = vmatpush.msra.mxu0 %v501
        %5758 = vmatpush.msra.mxu0 %v500
        %5759 = vmatpush.msra.mxu0 %v499
        %5760 = vmatpush.msra.mxu0 %v498
        %5761 = vmatpush.msra.mxu0 %v497
        %5762 = vmatpush.msra.mxu0 %v496
        %5763 = vmatpush.msra.mxu0 %v495
        %5764 = vmatpush.msra.mxu0 %v494
        %5765 = vmatpush.msra.mxu0 %v493
        %5766 = vmatpush.msra.mxu0 %v492
        %5767 = vmatpush.msra.mxu0 %v491
        %5768 = vmatpush.msra.mxu0 %v490
        %5769 = vmatpush.msra.mxu0 %v489
        %5770 = vmatpush.msra.mxu0 %v488
        %5771 = vmatpush.msra.mxu0 %v487
        %5772 = vmatpush.msra.mxu0 %v486
        %5773 = vmatmul.f32.gmra.mxu0 %v5743
        %v5774 = vpop.f32.mrf.mxu0
        %v5775 = vadd.f32 0.0, %v5774
        %5776 = vmatmul.f32.gmra.mxu0 %v5745
        %v5777 = vpop.f32.mrf.mxu0
        %v5778 = vadd.f32 0.0, %v5777
        %5779 = vmatmul.f32.gmra.mxu0 %v5747
        %v5780 = vpop.f32.mrf.mxu0
        %v5781 = vadd.f32 0.0, %v5780
        %5782 = vmatmul.f32.gmra.mxu0 %v5749
        %v5783 = vpop.f32.mrf.mxu0
        %v5784 = vadd.f32 0.0, %v5783
        %5785 = vmatmul.f32.gmra.mxu0 %v5751
        %v5786 = vpop.f32.mrf.mxu0
        %v5787 = vadd.f32 0.0, %v5786
        %5788 = vmatmul.f32.gmra.mxu0 %v5753
        %v5789 = vpop.f32.mrf.mxu0
        %v5790 = vadd.f32 0.0, %v5789
        %5791 = vmatmul.f32.gmra.mxu0 %v5755
        %v5792 = vpop.f32.mrf.mxu0
        %v5793 = vadd.f32 0.0, %v5792
        %5794 = vdwg.mxu0
        %5795 = vmatpush.msra.mxu0 %v517
        %5796 = vmatpush.msra.mxu0 %v516
        %5797 = vmatpush.msra.mxu0 %v515
        %5798 = vmatpush.msra.mxu0 %v514
        %5799 = vmatpush.msra.mxu0 %v513
        %5800 = vmatpush.msra.mxu0 %v512
        %5801 = vmatpush.msra.mxu0 %v511
        %5802 = vmatpush.msra.mxu0 %v510
        %5803 = vmatpush.msra.mxu0 %v509
        %5804 = vmatpush.msra.mxu0 %v508
        %5805 = vmatpush.msra.mxu0 %v507
        %5806 = vmatpush.msra.mxu0 %v506
        %5807 = vmatpush.msra.mxu0 %v505
        %5808 = vmatpush.msra.mxu0 %v504
        %5809 = vmatpush.msra.mxu0 %v503
        %5810 = vmatpush.msra.mxu0 %v502
        %5811 = vmatmul.f32.gmra.mxu0 %v5744
        %v5812 = vpop.f32.mrf.mxu0
        %v5813 = vadd.f32 %v5775, %v5812
        %5814 = vmatmul.f32.gmra.mxu0 %v5746
        %v5815 = vpop.f32.mrf.mxu0
        %v5816 = vadd.f32 %v5778, %v5815
        %5817 = vmatmul.f32.gmra.mxu0 %v5748
        %v5818 = vpop.f32.mrf.mxu0
        %v5819 = vadd.f32 %v5781, %v5818
        %5820 = vmatmul.f32.gmra.mxu0 %v5750
        %v5821 = vpop.f32.mrf.mxu0
        %v5822 = vadd.f32 %v5784, %v5821
        %5823 = vmatmul.f32.gmra.mxu0 %v5752
        %v5824 = vpop.f32.mrf.mxu0
        %v5825 = vadd.f32 %v5787, %v5824
        %5826 = vmatmul.f32.gmra.mxu0 %v5754
        %v5827 = vpop.f32.mrf.mxu0
        %v5828 = vadd.f32 %v5790, %v5827
        %5829 = vmatmul.f32.gmra.mxu0 %v5756
        %v5830 = vpop.f32.mrf.mxu0
        %v5831 = vadd.f32 %v5793, %v5830
        %5832 = vdwg.mxu0
        %v5834 = vsel %vm895, %v5813, 0
        %v5837 = vsel %vm895, %v5816, 0
        %v5840 = vsel %vm895, %v5819, 0
        %v5843 = vsel %vm895, %v5822, 0
        %v5846 = vsel %vm895, %v5825, 0
        %v5849 = vsel %vm895, %v5828, 0
        %v5852 = vsel %vm895, %v5831, 0
        %5854 = vmatpush.msra.mxu0 0.0
        %5855 = vmatpush.msra.mxu0 0.0
        %5856 = vmatpush.msra.mxu0 0.0
        %5857 = vmatpush.msra.mxu0 0.0
        %5858 = vmatpush.msra.mxu0 0.0
        %5859 = vmatpush.msra.mxu0 0.0
        %5860 = vmatpush.msra.mxu0 0.0
        %5861 = vmatpush.msra.mxu0 0.0
        %5862 = vmatpush.msra.mxu0 0.0
        %5863 = vmatpush.msra.mxu0 0.0
        %5864 = vmatpush.msra.mxu0 0.0
        %5865 = vmatpush.msra.mxu0 0.0
        %5866 = vmatpush.msra.mxu0 0.0
        %5867 = vmatpush.msra.mxu0 0.0
        %5868 = vmatpush.msra.mxu0 0.0
        %5869 = vmatpush.msra.mxu0 %v484
        %5870 = vmatmul.f32.gmra.mxu0 %v5834
        %v5871 = vpop.f32.mrf.mxu0
        %v5872 = vadd.f32 0.0, %v5871
        %5873 = vmatmul.f32.gmra.mxu0 %v5837
        %v5874 = vpop.f32.mrf.mxu0
        %v5875 = vadd.f32 0.0, %v5874
        %5876 = vmatmul.f32.gmra.mxu0 %v5840
        %v5877 = vpop.f32.mrf.mxu0
        %v5878 = vadd.f32 0.0, %v5877
        %5879 = vmatmul.f32.gmra.mxu0 %v5843
        %v5880 = vpop.f32.mrf.mxu0
        %v5881 = vadd.f32 0.0, %v5880
        %5882 = vmatmul.f32.gmra.mxu0 %v5846
        %v5883 = vpop.f32.mrf.mxu0
        %v5884 = vadd.f32 0.0, %v5883
        %5885 = vmatmul.f32.gmra.mxu0 %v5849
        %v5886 = vpop.f32.mrf.mxu0
        %v5887 = vadd.f32 0.0, %v5886
        %5888 = vmatmul.f32.gmra.mxu0 %v5852
        %v5889 = vpop.f32.mrf.mxu0
        %v5890 = vadd.f32 0.0, %v5889
        %5891 = vdwg.mxu0
        %5892 = vmatpush.msra.mxu0 0.0
        %5893 = vmatpush.msra.mxu0 0.0
        %5894 = vmatpush.msra.mxu0 0.0
        %5895 = vmatpush.msra.mxu0 0.0
        %5896 = vmatpush.msra.mxu0 0.0
        %5897 = vmatpush.msra.mxu0 0.0
        %5898 = vmatpush.msra.mxu0 0.0
        %5899 = vmatpush.msra.mxu0 0.0
        %5900 = vmatpush.msra.mxu0 0.0
        %5901 = vmatpush.msra.mxu0 0.0
        %5902 = vmatpush.msra.mxu0 0.0
        %5903 = vmatpush.msra.mxu0 0.0
        %5904 = vmatpush.msra.mxu0 0.0
        %5905 = vmatpush.msra.mxu0 0.0
        %5906 = vmatpush.msra.mxu0 0.0
        %5907 = vmatpush.msra.mxu0 %v485
        %5908 = vmatmul.f32.gmra.mxu0 %v5834
        %v5909 = vpop.f32.mrf.mxu0
        %v5910 = vadd.f32 0.0, %v5909
        %5911 = vmatmul.f32.gmra.mxu0 %v5837
        %v5912 = vpop.f32.mrf.mxu0
        %v5913 = vadd.f32 0.0, %v5912
        %5914 = vmatmul.f32.gmra.mxu0 %v5840
        %v5915 = vpop.f32.mrf.mxu0
        %v5916 = vadd.f32 0.0, %v5915
        %5917 = vmatmul.f32.gmra.mxu0 %v5843
        %v5918 = vpop.f32.mrf.mxu0
        %v5919 = vadd.f32 0.0, %v5918
        %5920 = vmatmul.f32.gmra.mxu0 %v5846
        %v5921 = vpop.f32.mrf.mxu0
        %v5922 = vadd.f32 0.0, %v5921
        %5923 = vmatmul.f32.gmra.mxu0 %v5849
        %v5924 = vpop.f32.mrf.mxu0
        %v5925 = vadd.f32 0.0, %v5924
        %5926 = vmatmul.f32.gmra.mxu0 %v5852
        %v5927 = vpop.f32.mrf.mxu0
        %v5928 = vadd.f32 0.0, %v5927
        %5929 = vdwg.mxu0
        %v5930 = vsub.f32 %v5743, %v5872
        %v5931 = vsub.f32 %v5744, %v5910
        %v5932 = vsub.f32 %v5745, %v5875
        %v5933 = vsub.f32 %v5746, %v5913
        %v5934 = vsub.f32 %v5747, %v5878
        %v5935 = vsub.f32 %v5748, %v5916
        %v5936 = vsub.f32 %v5749, %v5881
        %v5937 = vsub.f32 %v5750, %v5919
        %v5938 = vsub.f32 %v5751, %v5884
        %v5939 = vsub.f32 %v5752, %v5922
        %v5940 = vsub.f32 %v5753, %v5887
        %v5941 = vsub.f32 %v5754, %v5925
        %v5942 = vsub.f32 %v5755, %v5890
        %v5943 = vsub.f32 %v5756, %v5928
        %v5944 = vmul.f32 %v5930, %v5930
        %v5945 = vmul.f32 %v5931, %v5931
        %v5946 = vmul.f32 %v5932, %v5932
        %v5947 = vmul.f32 %v5933, %v5933
        %v5948 = vmul.f32 %v5934, %v5934
        %v5949 = vmul.f32 %v5935, %v5935
        %v5950 = vmul.f32 %v5936, %v5936
        %v5951 = vmul.f32 %v5937, %v5937
        %v5952 = vmul.f32 %v5938, %v5938
        %v5953 = vmul.f32 %v5939, %v5939
        %v5954 = vmul.f32 %v5940, %v5940
        %v5955 = vmul.f32 %v5941, %v5941
        %v5956 = vmul.f32 %v5942, %v5942
        %v5957 = vmul.f32 %v5943, %v5943
        %5958 = vmatpush.msra.mxu0 %v501
        %5959 = vmatpush.msra.mxu0 %v500
        %5960 = vmatpush.msra.mxu0 %v499
        %5961 = vmatpush.msra.mxu0 %v498
        %5962 = vmatpush.msra.mxu0 %v497
        %5963 = vmatpush.msra.mxu0 %v496
        %5964 = vmatpush.msra.mxu0 %v495
        %5965 = vmatpush.msra.mxu0 %v494
        %5966 = vmatpush.msra.mxu0 %v493
        %5967 = vmatpush.msra.mxu0 %v492
        %5968 = vmatpush.msra.mxu0 %v491
        %5969 = vmatpush.msra.mxu0 %v490
        %5970 = vmatpush.msra.mxu0 %v489
        %5971 = vmatpush.msra.mxu0 %v488
        %5972 = vmatpush.msra.mxu0 %v487
        %5973 = vmatpush.msra.mxu0 %v486
        %5974 = vmatmul.f32.gmra.mxu0 %v5944
        %v5975 = vpop.f32.mrf.mxu0
        %v5976 = vadd.f32 1e-05, %v5975
        %5977 = vmatmul.f32.gmra.mxu0 %v5946
        %v5978 = vpop.f32.mrf.mxu0
        %v5979 = vadd.f32 1e-05, %v5978
        %5980 = vmatmul.f32.gmra.mxu0 %v5948
        %v5981 = vpop.f32.mrf.mxu0
        %v5982 = vadd.f32 1e-05, %v5981
        %5983 = vmatmul.f32.gmra.mxu0 %v5950
        %v5984 = vpop.f32.mrf.mxu0
        %v5985 = vadd.f32 1e-05, %v5984
        %5986 = vmatmul.f32.gmra.mxu0 %v5952
        %v5987 = vpop.f32.mrf.mxu0
        %v5988 = vadd.f32 1e-05, %v5987
        %5989 = vmatmul.f32.gmra.mxu0 %v5954
        %v5990 = vpop.f32.mrf.mxu0
        %v5991 = vadd.f32 1e-05, %v5990
        %5992 = vmatmul.f32.gmra.mxu0 %v5956
        %v5993 = vpop.f32.mrf.mxu0
        %v5994 = vadd.f32 1e-05, %v5993
        %5995 = vdwg.mxu0
        %5996 = vmatpush.msra.mxu0 %v517
        %5997 = vmatpush.msra.mxu0 %v516
        %5998 = vmatpush.msra.mxu0 %v515
        %5999 = vmatpush.msra.mxu0 %v514
        %6000 = vmatpush.msra.mxu0 %v513
        %6001 = vmatpush.msra.mxu0 %v512
        %6002 = vmatpush.msra.mxu0 %v511
        %6003 = vmatpush.msra.mxu0 %v510
        %6004 = vmatpush.msra.mxu0 %v509
        %6005 = vmatpush.msra.mxu0 %v508
        %6006 = vmatpush.msra.mxu0 %v507
        %6007 = vmatpush.msra.mxu0 %v506
        %6008 = vmatpush.msra.mxu0 %v505
        %6009 = vmatpush.msra.mxu0 %v504
        %6010 = vmatpush.msra.mxu0 %v503
        %6011 = vmatpush.msra.mxu0 %v502
        %6012 = vmatmul.f32.gmra.mxu0 %v5945
        %v6013 = vpop.f32.mrf.mxu0
        %v6014 = vadd.f32 %v5976, %v6013
        %6015 = vmatmul.f32.gmra.mxu0 %v5947
        %v6016 = vpop.f32.mrf.mxu0
        %v6017 = vadd.f32 %v5979, %v6016
        %6018 = vmatmul.f32.gmra.mxu0 %v5949
        %v6019 = vpop.f32.mrf.mxu0
        %v6020 = vadd.f32 %v5982, %v6019
        %6021 = vmatmul.f32.gmra.mxu0 %v5951
        %v6022 = vpop.f32.mrf.mxu0
        %v6023 = vadd.f32 %v5985, %v6022
        %6024 = vmatmul.f32.gmra.mxu0 %v5953
        %v6025 = vpop.f32.mrf.mxu0
        %v6026 = vadd.f32 %v5988, %v6025
        %6027 = vmatmul.f32.gmra.mxu0 %v5955
        %v6028 = vpop.f32.mrf.mxu0
        %v6029 = vadd.f32 %v5991, %v6028
        %6030 = vmatmul.f32.gmra.mxu0 %v5957
        %v6031 = vpop.f32.mrf.mxu0
        %v6032 = vadd.f32 %v5994, %v6031
        %6033 = vdwg.mxu0
        %v6034 = vrsqrt.pop %v6014
        %v6035 = vmul.f32 %v6034, %v6014
        %v6036 = vmul.f32 %v6035, %v6034
        %v6037 = vmul.f32 0.5, %v6036
        %v6038 = vsub.f32 1.5, %v6037
        %v6039 = vmul.f32 %v6034, %v6038
        %vm6040 = vweird.f32 %v6014
        %vm6041 = vweird.f32 %v6034
        %vm6042 = vmor %vm6040, %vm6041
        %v6043 = vsel %vm6042, %v6034, %v6039
        %v6044 = vrsqrt.pop %v6017
        %v6045 = vmul.f32 %v6044, %v6017
        %v6046 = vmul.f32 %v6045, %v6044
        %v6047 = vmul.f32 0.5, %v6046
        %v6048 = vsub.f32 1.5, %v6047
        %v6049 = vmul.f32 %v6044, %v6048
        %vm6050 = vweird.f32 %v6017
        %vm6051 = vweird.f32 %v6044
        %vm6052 = vmor %vm6050, %vm6051
        %v6053 = vsel %vm6052, %v6044, %v6049
        %v6054 = vrsqrt.pop %v6020
        %v6055 = vmul.f32 %v6054, %v6020
        %v6056 = vmul.f32 %v6055, %v6054
        %v6057 = vmul.f32 0.5, %v6056
        %v6058 = vsub.f32 1.5, %v6057
        %v6059 = vmul.f32 %v6054, %v6058
        %vm6060 = vweird.f32 %v6020
        %vm6061 = vweird.f32 %v6054
        %vm6062 = vmor %vm6060, %vm6061
        %v6063 = vsel %vm6062, %v6054, %v6059
        %v6064 = vrsqrt.pop %v6023
        %v6065 = vmul.f32 %v6064, %v6023
        %v6066 = vmul.f32 %v6065, %v6064
        %v6067 = vmul.f32 0.5, %v6066
        %v6068 = vsub.f32 1.5, %v6067
        %v6069 = vmul.f32 %v6064, %v6068
        %vm6070 = vweird.f32 %v6023
        %vm6071 = vweird.f32 %v6064
        %vm6072 = vmor %vm6070, %vm6071
        %v6073 = vsel %vm6072, %v6064, %v6069
        %v6074 = vrsqrt.pop %v6026
        %v6075 = vmul.f32 %v6074, %v6026
        %v6076 = vmul.f32 %v6075, %v6074
        %v6077 = vmul.f32 0.5, %v6076
        %v6078 = vsub.f32 1.5, %v6077
        %v6079 = vmul.f32 %v6074, %v6078
        %vm6080 = vweird.f32 %v6026
        %vm6081 = vweird.f32 %v6074
        %vm6082 = vmor %vm6080, %vm6081
        %v6083 = vsel %vm6082, %v6074, %v6079
        %v6084 = vrsqrt.pop %v6029
        %v6085 = vmul.f32 %v6084, %v6029
        %v6086 = vmul.f32 %v6085, %v6084
        %v6087 = vmul.f32 0.5, %v6086
        %v6088 = vsub.f32 1.5, %v6087
        %v6089 = vmul.f32 %v6084, %v6088
        %vm6090 = vweird.f32 %v6029
        %vm6091 = vweird.f32 %v6084
        %vm6092 = vmor %vm6090, %vm6091
        %v6093 = vsel %vm6092, %v6084, %v6089
        %v6094 = vrsqrt.pop %v6032
        %v6095 = vmul.f32 %v6094, %v6032
        %v6096 = vmul.f32 %v6095, %v6094
        %v6097 = vmul.f32 0.5, %v6096
        %v6098 = vsub.f32 1.5, %v6097
        %v6099 = vmul.f32 %v6094, %v6098
        %vm6100 = vweird.f32 %v6032
        %vm6101 = vweird.f32 %v6094
        %vm6102 = vmor %vm6100, %vm6101
        %v6103 = vsel %vm6102, %v6094, %v6099
        %v6105 = vsel %vm895, %v6043, 0
        %v6108 = vsel %vm895, %v6053, 0
        %v6111 = vsel %vm895, %v6063, 0
        %v6114 = vsel %vm895, %v6073, 0
        %v6117 = vsel %vm895, %v6083, 0
        %v6120 = vsel %vm895, %v6093, 0
        %v6123 = vsel %vm895, %v6103, 0
        %6125 = vmatpush.msra.mxu0 0.0
        %6126 = vmatpush.msra.mxu0 0.0
        %6127 = vmatpush.msra.mxu0 0.0
        %6128 = vmatpush.msra.mxu0 0.0
        %6129 = vmatpush.msra.mxu0 0.0
        %6130 = vmatpush.msra.mxu0 0.0
        %6131 = vmatpush.msra.mxu0 0.0
        %6132 = vmatpush.msra.mxu0 0.0
        %6133 = vmatpush.msra.mxu0 0.0
        %6134 = vmatpush.msra.mxu0 0.0
        %6135 = vmatpush.msra.mxu0 0.0
        %6136 = vmatpush.msra.mxu0 0.0
        %6137 = vmatpush.msra.mxu0 0.0
        %6138 = vmatpush.msra.mxu0 0.0
        %6139 = vmatpush.msra.mxu0 0.0
        %6140 = vmatpush.msra.mxu0 %v484
        %6141 = vmatmul.f32.gmra.mxu0 %v6105
        %v6142 = vpop.f32.mrf.mxu0
        %v6143 = vadd.f32 0.0, %v6142
        %6144 = vmatmul.f32.gmra.mxu0 %v6108
        %v6145 = vpop.f32.mrf.mxu0
        %v6146 = vadd.f32 0.0, %v6145
        %6147 = vmatmul.f32.gmra.mxu0 %v6111
        %v6148 = vpop.f32.mrf.mxu0
        %v6149 = vadd.f32 0.0, %v6148
        %6150 = vmatmul.f32.gmra.mxu0 %v6114
        %v6151 = vpop.f32.mrf.mxu0
        %v6152 = vadd.f32 0.0, %v6151
        %6153 = vmatmul.f32.gmra.mxu0 %v6117
        %v6154 = vpop.f32.mrf.mxu0
        %v6155 = vadd.f32 0.0, %v6154
        %6156 = vmatmul.f32.gmra.mxu0 %v6120
        %v6157 = vpop.f32.mrf.mxu0
        %v6158 = vadd.f32 0.0, %v6157
        %6159 = vmatmul.f32.gmra.mxu0 %v6123
        %v6160 = vpop.f32.mrf.mxu0
        %v6161 = vadd.f32 0.0, %v6160
        %6162 = vdwg.mxu0
        %6163 = vmatpush.msra.mxu0 0.0
        %6164 = vmatpush.msra.mxu0 0.0
        %6165 = vmatpush.msra.mxu0 0.0
        %6166 = vmatpush.msra.mxu0 0.0
        %6167 = vmatpush.msra.mxu0 0.0
        %6168 = vmatpush.msra.mxu0 0.0
        %6169 = vmatpush.msra.mxu0 0.0
        %6170 = vmatpush.msra.mxu0 0.0
        %6171 = vmatpush.msra.mxu0 0.0
        %6172 = vmatpush.msra.mxu0 0.0
        %6173 = vmatpush.msra.mxu0 0.0
        %6174 = vmatpush.msra.mxu0 0.0
        %6175 = vmatpush.msra.mxu0 0.0
        %6176 = vmatpush.msra.mxu0 0.0
        %6177 = vmatpush.msra.mxu0 0.0
        %6178 = vmatpush.msra.mxu0 %v485
        %6179 = vmatmul.f32.gmra.mxu0 %v6105
        %v6180 = vpop.f32.mrf.mxu0
        %v6181 = vadd.f32 0.0, %v6180
        %6182 = vmatmul.f32.gmra.mxu0 %v6108
        %v6183 = vpop.f32.mrf.mxu0
        %v6184 = vadd.f32 0.0, %v6183
        %6185 = vmatmul.f32.gmra.mxu0 %v6111
        %v6186 = vpop.f32.mrf.mxu0
        %v6187 = vadd.f32 0.0, %v6186
        %6188 = vmatmul.f32.gmra.mxu0 %v6114
        %v6189 = vpop.f32.mrf.mxu0
        %v6190 = vadd.f32 0.0, %v6189
        %6191 = vmatmul.f32.gmra.mxu0 %v6117
        %v6192 = vpop.f32.mrf.mxu0
        %v6193 = vadd.f32 0.0, %v6192
        %6194 = vmatmul.f32.gmra.mxu0 %v6120
        %v6195 = vpop.f32.mrf.mxu0
        %v6196 = vadd.f32 0.0, %v6195
        %6197 = vmatmul.f32.gmra.mxu0 %v6123
        %v6198 = vpop.f32.mrf.mxu0
        %v6199 = vadd.f32 0.0, %v6198
        %6200 = vdwg.mxu0
        %v6201 = vmul.f32 %v5930, %v6143
        %v6202 = vmul.f32 %v5931, %v6181
        %v6203 = vmul.f32 %v5932, %v6146
        %v6204 = vmul.f32 %v5933, %v6184
        %v6205 = vmul.f32 %v5934, %v6149
        %v6206 = vmul.f32 %v5935, %v6187
        %v6207 = vmul.f32 %v5936, %v6152
        %v6208 = vmul.f32 %v5937, %v6190
        %v6209 = vmul.f32 %v5938, %v6155
        %v6210 = vmul.f32 %v5939, %v6193
        %v6211 = vmul.f32 %v5940, %v6158
        %v6212 = vmul.f32 %v5941, %v6196
        %v6213 = vmul.f32 %v5942, %v6161
        %v6214 = vmul.f32 %v5943, %v6199
        %v6216 = vperm.slane %v3511, 0
        %v6217 = vperm.slane %v3511, 1
        %v6220 = vmul.f32 %v6201, %v6216
        %v6221 = vmul.f32 %v6202, %v6217
        %v6222 = vmul.f32 %v6203, %v6216
        %v6223 = vmul.f32 %v6204, %v6217
        %v6224 = vmul.f32 %v6205, %v6216
        %v6225 = vmul.f32 %v6206, %v6217
        %v6226 = vmul.f32 %v6207, %v6216
        %v6227 = vmul.f32 %v6208, %v6217
        %v6228 = vmul.f32 %v6209, %v6216
        %v6229 = vmul.f32 %v6210, %v6217
        %v6230 = vmul.f32 %v6211, %v6216
        %v6231 = vmul.f32 %v6212, %v6217
        %v6232 = vmul.f32 %v6213, %v6216
        %v6233 = vmul.f32 %v6214, %v6217
        %v6235 = vperm.slane %v3513, 0
        %v6236 = vperm.slane %v3513, 1
        %v6239 = vadd.f32 %v6220, %v6235
        %v6240 = vadd.f32 %v6221, %v6236
        %v6241 = vadd.f32 %v6222, %v6235
        %v6242 = vadd.f32 %v6223, %v6236
        %v6243 = vadd.f32 %v6224, %v6235
        %v6244 = vadd.f32 %v6225, %v6236
        %v6245 = vadd.f32 %v6226, %v6235
        %v6246 = vadd.f32 %v6227, %v6236
        %v6247 = vadd.f32 %v6228, %v6235
        %v6248 = vadd.f32 %v6229, %v6236
        %v6249 = vadd.f32 %v6230, %v6235
        %v6250 = vadd.f32 %v6231, %v6236
        %v6251 = vadd.f32 %v6232, %v6235
        %v6252 = vadd.f32 %v6233, %v6236
        %6253 = vmatpush.msra.mxu0 %v533
        %6254 = vmatpush.msra.mxu0 %v532
        %6255 = vmatpush.msra.mxu0 %v531
        %6256 = vmatpush.msra.mxu0 %v530
        %6257 = vmatpush.msra.mxu0 %v529
        %6258 = vmatpush.msra.mxu0 %v528
        %6259 = vmatpush.msra.mxu0 %v527
        %6260 = vmatpush.msra.mxu0 %v526
        %6261 = vmatpush.msra.mxu0 %v525
        %6262 = vmatpush.msra.mxu0 %v524
        %6263 = vmatpush.msra.mxu0 %v523
        %6264 = vmatpush.msra.mxu0 %v522
        %6265 = vmatpush.msra.mxu0 %v521
        %6266 = vmatpush.msra.mxu0 %v520
        %6267 = vmatpush.msra.mxu0 %v519
        %6268 = vmatpush.msra.mxu0 %v518
        %6269 = vmatmul.f32.gmra.mxu0 %v6239
        %v6270 = vpop.f32.mrf.mxu0
        %v6271 = vadd.f32 %v3488, %v6270
        %6272 = vmatmul.f32.gmra.mxu0 %v6241
        %v6273 = vpop.f32.mrf.mxu0
        %v6274 = vadd.f32 %v3489, %v6273
        %6275 = vmatmul.f32.gmra.mxu0 %v6243
        %v6276 = vpop.f32.mrf.mxu0
        %v6277 = vadd.f32 %v3490, %v6276
        %6278 = vmatmul.f32.gmra.mxu0 %v6245
        %v6279 = vpop.f32.mrf.mxu0
        %v6280 = vadd.f32 %v3491, %v6279
        %6281 = vmatmul.f32.gmra.mxu0 %v6247
        %v6282 = vpop.f32.mrf.mxu0
        %v6283 = vadd.f32 %v3492, %v6282
        %6284 = vmatmul.f32.gmra.mxu0 %v6249
        %v6285 = vpop.f32.mrf.mxu0
        %v6286 = vadd.f32 %v3493, %v6285
        %6287 = vmatmul.f32.gmra.mxu0 %v6251
        %v6288 = vpop.f32.mrf.mxu0
        %v6289 = vadd.f32 %v3494, %v6288
        %6290 = vdwg.mxu0
        %6291 = vmatpush.msra.mxu0 %v549
        %6292 = vmatpush.msra.mxu0 %v548
        %6293 = vmatpush.msra.mxu0 %v547
        %6294 = vmatpush.msra.mxu0 %v546
        %6295 = vmatpush.msra.mxu0 %v545
        %6296 = vmatpush.msra.mxu0 %v544
        %6297 = vmatpush.msra.mxu0 %v543
        %6298 = vmatpush.msra.mxu0 %v542
        %6299 = vmatpush.msra.mxu0 %v541
        %6300 = vmatpush.msra.mxu0 %v540
        %6301 = vmatpush.msra.mxu0 %v539
        %6302 = vmatpush.msra.mxu0 %v538
        %6303 = vmatpush.msra.mxu0 %v537
        %6304 = vmatpush.msra.mxu0 %v536
        %6305 = vmatpush.msra.mxu0 %v535
        %6306 = vmatpush.msra.mxu0 %v534
        %6307 = vmatmul.f32.gmra.mxu0 %v6240
        %v6308 = vpop.f32.mrf.mxu0
        %v6309 = vadd.f32 %v6271, %v6308
        %6310 = vmatmul.f32.gmra.mxu0 %v6242
        %v6311 = vpop.f32.mrf.mxu0
        %v6312 = vadd.f32 %v6274, %v6311
        %6313 = vmatmul.f32.gmra.mxu0 %v6244
        %v6314 = vpop.f32.mrf.mxu0
        %v6315 = vadd.f32 %v6277, %v6314
        %6316 = vmatmul.f32.gmra.mxu0 %v6246
        %v6317 = vpop.f32.mrf.mxu0
        %v6318 = vadd.f32 %v6280, %v6317
        %6319 = vmatmul.f32.gmra.mxu0 %v6248
        %v6320 = vpop.f32.mrf.mxu0
        %v6321 = vadd.f32 %v6283, %v6320
        %6322 = vmatmul.f32.gmra.mxu0 %v6250
        %v6323 = vpop.f32.mrf.mxu0
        %v6324 = vadd.f32 %v6286, %v6323
        %6325 = vmatmul.f32.gmra.mxu0 %v6252
        %v6326 = vpop.f32.mrf.mxu0
        %v6327 = vadd.f32 %v6289, %v6326
        %6328 = vdwg.mxu0
        %v6330 = vperm.slane %v3515, 0
        %v6332 = vadd.f32 %v6309, %v6330
        %v6333 = vadd.f32 %v6312, %v6330
        %v6334 = vadd.f32 %v6315, %v6330
        %v6335 = vadd.f32 %v6318, %v6330
        %v6336 = vadd.f32 %v6321, %v6330
        %v6337 = vadd.f32 %v6324, %v6330
        %v6338 = vadd.f32 %v6327, %v6330
        %v6339 = vsel %vm731, %v6332, 0.0
        %v6340 = vsel %vm732, %v6333, 0.0
        %v6341 = vsel %vm733, %v6334, 0.0
        %v6342 = vsel %vm734, %v6335, 0.0
        %v6343 = vsel %vm735, %v6336, 0.0
        %v6344 = vsel %vm736, %v6337, 0.0
        %v6345 = vsel %vm737, %v6338, 0.0
        %v6347 = vsel %vm1125, %v550, 0
        %6349 = vmatpush.msra.mxu0 0.0
        %6350 = vmatpush.msra.mxu0 0.0
        %6351 = vmatpush.msra.mxu0 0.0
        %6352 = vmatpush.msra.mxu0 0.0
        %6353 = vmatpush.msra.mxu0 0.0
        %6354 = vmatpush.msra.mxu0 0.0
        %6355 = vmatpush.msra.mxu0 0.0
        %6356 = vmatpush.msra.mxu0 0.0
        %6357 = vmatpush.msra.mxu0 0.0
        %6358 = vmatpush.msra.mxu0 %v6345
        %6359 = vmatpush.msra.mxu0 %v6344
        %6360 = vmatpush.msra.mxu0 %v6343
        %6361 = vmatpush.msra.mxu0 %v6342
        %6362 = vmatpush.msra.mxu0 %v6341
        %6363 = vmatpush.msra.mxu0 %v6340
        %6364 = vmatpush.msra.mxu0 %v6339
        %6365 = vmatmul.f32.gmra.mxu0 %v6347
        %v6366 = vpop.f32.mrf.mxu0
        %v6367 = vadd.f32 0.0, %v6366
        %6368 = vdwg.mxu0
        %vm6369 = vcmask 257024
        %6370 = vst.msk [vmem:[%s465] sm:$0xf] %vm6369, %v6367
        %s6371 = sand.u32 %s323, 1
        %s6372 = scalar_lea.sflag [#allocation3], %s6371
        %s6373 = sand.u32 %s323, 1
        %s6374 = smul.addr %s6373, 4
        %s6375 = scalar_lea.vmem [#allocation2], %s6374
        // Predicated region
        $region73: #{tpu_custom_call.1} parent=71 // pred_check
          %p6376 = pneg %p333
        $region74: #{tpu_custom_call.1} parent=71 // pred_check_branch
          %6378 = sbr.rel (%p6376) target = $region76
        $region75: #{tpu_custom_call.1} parent=71 // pred_region
          %6380 = vsyncadd %s6372, 0
          %s6381 = smul.addr %s27, 4
          %s6382 = scalar_lea.hbm %s13, %s6381
          %s6384 = sshll.u32 %s6375, 4
          %s6385 = int_to_ptr.vmem [resolvable:$true] %s6384
          %s6386 = sshll.u32 %s6382, 4
          %s6387 = int_to_ptr.hbm [resolvable:$true] %s6386
          %6389 = dma.vmem_to_hbm [thread:$0]  %s6385, 64, %s6387, %s6372
        $region76: #{tpu_custom_call.1} parent=71 // pred_fallthru
          _
      $region72: #{tpu_custom_call.1} parent=5 // pred_fallthru
        _
      %p6390 = scmp.le.s32.totalorder 2, %s22
      // Predicated region
      $region77: #{tpu_custom_call.1} parent=5 // pred_check
        %p6391 = pneg %p6390
      $region78: #{tpu_custom_call.1} parent=5 // pred_check_branch
        %6393 = sbr.rel (%p6391) target = $region80
      $region79: #{tpu_custom_call.1} parent=5 // pred_region
        %s6394 = ssub.s32 %s22, 2
        // Predicated region
        $region81: #{tpu_custom_call.1} parent=79 // pred_check
          %p6395 = pneg %p339
        $region82: #{tpu_custom_call.1} parent=79 // pred_check_branch
          %6397 = sbr.rel (%p6395) target = $region84
        $region83: #{tpu_custom_call.1} parent=79 // pred_region
          %s6398 = sand.u32 %s324, 1
          %s6399 = scalar_lea.sflag [#allocation3], %s6398
          %s6400 = sand.u32 %s324, 1
          %s6401 = smul.addr %s6400, 4
          %s6402 = scalar_lea.vmem [#allocation2], %s6401
          %6404 = dma.done %s6399, 64
        $region84: #{tpu_custom_call.1} parent=79 // pred_fallthru
          _
      $region80: #{tpu_custom_call.1} parent=5 // pred_fallthru
        _
    $region6: #{tpu_custom_call.1} parent=1 // loop_footer
      %s26 = sadd.s32 1, %s22
    $region7: #{tpu_custom_call.1} parent=1 // loop_footer_branch
      %21 = sbr.rel target = $region3
    $region8: #{tpu_custom_call.1} parent=1 // loop_exit
      _
    %6405 = vsyncpa [#allocation3], 1
    %s6406 = scalar_lea.sflag [#allocation3], 1
    %6407 = vsyncpa %s6406, 1

</llo_original>
